<compile_context>
chip_gen: v5e
topology: v5e:2x2
jax: 0.10.0
libtpu: 0.0.40
codegen_flags: <defaults>
</compile_context>

<pallas_src>
import numpy as np
import jax
import jax.numpy as jnp
from jax import lax
from jax.experimental import pallas as pl
from jax.experimental.pallas import tpu as pltpu


# ---------------------------------------------------------------------------
# Kernel 1: fused "3x3 same conv" (tap-merged matmuls) + 2x2/2 max-pool +
# bias + ReLU, NHWC, one image per grid step.
#
# The input arrives with the dx taps already merged into the channel axis
# (Kc = 3*Cin), or fully im2col'ed for conv1 (n_dy = 1, Kc = 27->32), so each
# row group of R pooled rows needs only n_dy MXU matmuls of shape
# (2R*W, Kc) x (Kc, Cout), all in bf16 with f32 accumulation.
# ---------------------------------------------------------------------------
def conv_pool(x, w, b, *, n_dy, rows_per_iter, out_dtype):
    """x: (B, 2*Hh + n_dy - 1, W, Kc) bf16, w: (n_dy, Kc, Cout) bf16,
       b: (Cout,) f32  ->  (B, Hh, W//2, Cout) out_dtype (already pooled)."""
    B, Hin, W, Kc = x.shape
    Cout = w.shape[-1]
    Hh = (Hin - (n_dy - 1)) // 2
    Wh = W // 2
    R = rows_per_iter
    assert Hh % R == 0 and W % 8 == 0
    n_groups = Hh // R
    M = 2 * R * W                                     # matmul rows per group
    br = jnp.reshape(b, (1, Cout)).astype(jnp.float32)

    def kernel(x_ref, w_ref, b_ref, o_ref, rbuf):
        @pl.loop(0, n_groups)                         # bounded live ranges
        def _(g):
            r0 = pl.multiple_of(g * (2 * R), 2 * R)
            acc = None
            for dy in range(n_dy):                    # short tap loop, unrolled
                patch = x_ref[0, pl.ds(r0 + dy, 2 * R), :, :].reshape(M, Kc)
                part = jnp.dot(patch, w_ref[dy],
                               preferred_element_type=jnp.float32)
                acc = part if acc is None else acc + part
            y = acc.reshape(R, 2, W, Cout)
            # pool over row pairs in registers, park in VMEM for the column pool
            rbuf[...] = jnp.maximum(y[:, 0], y[:, 1]).reshape(R * W, Cout)
            ev = rbuf[pl.ds(0, R * Wh, stride=2), :]  # even columns
            od = rbuf[pl.ds(1, R * Wh, stride=2), :]  # odd columns
            pooled = jnp.maximum(ev, od).reshape(R, Wh, Cout)
            pooled = jnp.maximum(pooled + b_ref[...], 0.0)   # bias+ReLU after pool
            o_ref[0, pl.ds(pl.multiple_of(g * R, R), R)] = pooled.astype(o_ref.dtype)

    return pl.pallas_call(
        kernel,
        out_shape=jax.ShapeDtypeStruct((B, Hh, Wh, Cout), out_dtype),
        grid=(B,),
        in_specs=[
            pl.BlockSpec((1, Hin, W, Kc), lambda i: (i, 0, 0, 0)),
            pl.BlockSpec((n_dy, Kc, Cout), lambda i: (0, 0, 0)),
            pl.BlockSpec((1, Cout), lambda i: (0, 0)),
        ],
        out_specs=pl.BlockSpec((1, Hh, Wh, Cout), lambda i: (i, 0, 0, 0)),
        scratch_shapes=[pltpu.VMEM((R * W, Cout), jnp.float32)],
        compiler_params=pltpu.CompilerParams(dimension_semantics=("parallel",)),
    )(x, w, br)


# ---------------------------------------------------------------------------
# XLA-side tap merging (tiny tensors, fused pad/slice/concat/cast).
# ---------------------------------------------------------------------------
def _im2col_3x3(x):
    """(B,H,W,C) -> (B,H,W,9C): zero-padded 'same' 3x3 patches, [dy,dx,c] order."""
    B, H, W, C = x.shape
    xp = jnp.pad(x, ((0, 0), (1, 1), (1, 1), (0, 0)))
    cols = [xp[:, dy:dy + H, dx:dx + W, :] for dy in range(3) for dx in range(3)]
    return jnp.concatenate(cols, axis=-1)


def _merge_dx_taps(x):
    """(B,H,W,C) -> (B,H+2,W,3C): rows zero-padded, the three column-shifted
    copies concatenated into the channel axis ([dx, c] order)."""
    B, H, W, C = x.shape
    xp = jnp.pad(x, ((0, 0), (1, 1), (1, 1), (0, 0)))
    return jnp.concatenate([xp[:, :, d:d + W, :] for d in range(3)], axis=-1)


# ---------------------------------------------------------------------------
# Kernel 2: fc1 (bf16 weight streaming, K-tiled, f32 accumulation in the
# resident output-side scratch) with the fc2(+ReLU) -> fc3 head fused into
# the last-k epilogue (w2/w3/biases are tiny and VMEM resident).
# ---------------------------------------------------------------------------
def fc_fused(x, w1, b1, w2, b2, w3, b3, *, tk):
    """relu(x @ w1 + b1) -> relu(. @ w2 + b2) -> . @ w3 + b3, one pallas_call."""
    Mb, K = x.shape
    N1, N2, N3 = w1.shape[1], w2.shape[1], w3.shape[1]
    assert K % tk == 0
    nk = K // tk
    b1r = jnp.reshape(b1, (1, N1))
    b2r = jnp.reshape(b2, (1, N2))
    b3r = jnp.reshape(b3, (1, N3))

    def kernel(x_ref, w1_ref, b1_ref, w2_ref, b2_ref, w3_ref, b3_ref,
               o_ref, acc_ref):
        k = pl.program_id(0)

        @pl.when(k == 0)
        def _():
            acc_ref[...] = jnp.zeros_like(acc_ref)

        acc_ref[...] += jnp.dot(x_ref[...], w1_ref[...],
                                preferred_element_type=jnp.float32)

        @pl.when(k == nk - 1)
        def _():
            h = jnp.maximum(acc_ref[...] + b1_ref[...], 0.0)          # fc1 + ReLU
            # TODO(synk): nn.Dropout(0.5) is identity in eval/inference mode; not applied.
            h = jnp.maximum(jnp.dot(h, w2_ref[...],
                                    preferred_element_type=jnp.float32)
                            + b2_ref[...], 0.0)                       # fc2 + ReLU
            o_ref[...] = (jnp.dot(h, w3_ref[...],
                                  preferred_element_type=jnp.float32)
                          + b3_ref[...]).astype(o_ref.dtype)          # fc3

    return pl.pallas_call(
        kernel,
        out_shape=jax.ShapeDtypeStruct((Mb, N3), jnp.float32),
        grid=(nk,),
        in_specs=[
            pl.BlockSpec((Mb, tk), lambda k: (0, k)),
            pl.BlockSpec((tk, N1), lambda k: (k, 0)),
            pl.BlockSpec((1, N1), lambda k: (0, 0)),
            pl.BlockSpec((N1, N2), lambda k: (0, 0)),
            pl.BlockSpec((1, N2), lambda k: (0, 0)),
            pl.BlockSpec((N2, N3), lambda k: (0, 0)),
            pl.BlockSpec((1, N3), lambda k: (0, 0)),
        ],
        out_specs=pl.BlockSpec((Mb, N3), lambda k: (0, 0)),
        scratch_shapes=[pltpu.VMEM((Mb, N1), jnp.float32)],
        compiler_params=pltpu.CompilerParams(
            dimension_semantics=("arbitrary",),
            vmem_limit_bytes=32 * 1024 * 1024),
    )(x, w1, b1r, w2, b2r, w3, b3r)


# ---------------------------------------------------------------------------
# Parameters (deterministic, synthetic) and the full forward pass.
# ---------------------------------------------------------------------------
def init_params(key):
    ks = jax.random.split(key, 12)

    def conv_w(k, cin, cout):
        w = jax.random.normal(k, (3, 3, cin, cout), jnp.float32) * np.sqrt(2.0 / (9 * cin))
        return w.astype(jnp.bfloat16)          # bf16 MXU operands (f32 accumulation)

    def fc_w(k, fin, fout, dtype=jnp.float32):
        return (jax.random.normal(k, (fin, fout), jnp.float32)
                * np.sqrt(2.0 / fin)).astype(dtype)

    def bias(k, n):
        return 0.01 * jax.random.normal(k, (n,), jnp.float32)

    return {
        "w1": conv_w(ks[0], 3, 32),          "b1": bias(ks[1], 32),
        "w2": conv_w(ks[2], 32, 64),         "b2": bias(ks[3], 64),
        "w3": conv_w(ks[4], 64, 128),        "b3": bias(ks[5], 128),
        # fc1 weight rows are generated directly in NHWC-flatten order (a
        # static permutation of torch's CHW-order rows, i.e. a pure
        # reparameterization of the same module), stored bf16.
        "wf1": fc_w(ks[6], 8 * 8 * 128, 512, jnp.bfloat16), "bf1": bias(ks[7], 512),
        "wf2": fc_w(ks[8], 512, 128),        "bf2": bias(ks[9], 128),
        "wf3": fc_w(ks[10], 128, 4),         "bf3": bias(ks[11], 4),
    }


def emotion_net_forward(x_nchw, p):
    x = jnp.transpose(x_nchw, (0, 2, 3, 1))                          # NCHW -> NHWC
    # conv1: full 3x3 im2col in XLA (input is ~50 KiB); K padded 27 -> 32.
    xc = jnp.pad(_im2col_3x3(x), ((0, 0), (0, 0), (0, 0), (0, 5))).astype(jnp.bfloat16)
    w1 = jnp.pad(p["w1"].reshape(27, 32), ((0, 5), (0, 0))).reshape(1, 32, 32)
    x = conv_pool(xc, w1, p["b1"], n_dy=1, rows_per_iter=4,
                  out_dtype=jnp.bfloat16)                            # (B,32,32, 32)
    # conv2 / conv3: dx taps merged into K (= 3*Cin), bf16 throughout.
    x = conv_pool(_merge_dx_taps(x), p["w2"].reshape(3, 96, 64), p["b2"],
                  n_dy=3, rows_per_iter=4, out_dtype=jnp.bfloat16)   # (B,16,16, 64)
    x = conv_pool(_merge_dx_taps(x), p["w3"].reshape(3, 192, 128), p["b3"],
                  n_dy=3, rows_per_iter=4, out_dtype=jnp.bfloat16)   # (B, 8, 8,128)
    # NHWC flatten; already bf16 (fc1 weight rows match this order) -> metadata only.
    x = x.reshape(x.shape[0], 8 * 8 * 128)
    # TODO(synk): nn.Dropout(0.5) is identity in eval/inference mode; not applied.
    return fc_fused(x, p["wf1"], p["bf1"], p["wf2"], p["bf2"],
                    p["wf3"], p["bf3"], tk=4096)                     # (B, 4)


# Pure-JAX reference for verification (same parameters, f32 math).
def reference_forward(x_nchw, p):
    x = jnp.transpose(x_nchw, (0, 2, 3, 1))
    for w, b in ((p["w1"], p["b1"]), (p["w2"], p["b2"]), (p["w3"], p["b3"])):
        x = lax.conv_general_dilated(x, w.astype(jnp.float32), (1, 1), "SAME",
                                     dimension_numbers=("NHWC", "HWIO", "NHWC"))
        x = jax.nn.relu(x + b)
        x = lax.reduce_window(x, -jnp.inf, lax.max,
                              (1, 2, 2, 1), (1, 2, 2, 1), "VALID")
    x = x.reshape(x.shape[0], -1)                                    # NHWC flatten
    x = jax.nn.relu(x @ p["wf1"].astype(jnp.float32) + p["bf1"])
    x = jax.nn.relu(x @ p["wf2"] + p["bf2"])
    return x @ p["wf3"] + p["bf3"]


if __name__ == "__main__":
    key = jax.random.PRNGKey(0)
    k_params, k_x = jax.random.split(key)
    params = init_params(k_params)

    # fc1 (128*8*8 inputs after three 2x2 pools) implies 3x64x64 NCHW images.
    x = jax.random.normal(k_x, (2, 3, 64, 64), jnp.float32)

    fwd = jax.jit(emotion_net_forward)
    out = jax.block_until_ready(fwd(x, params))
    assert out.shape == (2, 4) and out.dtype == jnp.float32

    ref = reference_forward(x, params)
    # bf16 MXU operands / inter-layer activations (f32 accumulation) are a
    # deliberate precision trade; weights are shared exactly with the reference.
    np.testing.assert_allclose(np.asarray(out), np.asarray(ref),
                               rtol=5e-2, atol=1e-1)
    print("KERNEL_OK")
</pallas_src>

<mosaic_0001>
module attributes {stable_mosaic.version = 11 : i64} {
  func.func @kernel(%arg0: i32, %arg1: memref<1x64x64x32xbf16, #tpu.memory_space<vmem>>, %arg2: memref<1x32x32xbf16, #tpu.memory_space<vmem>>, %arg3: memref<1x32xf32, #tpu.memory_space<vmem>>, %arg4: memref<1x32x32x32xbf16, #tpu.memory_space<vmem>>, %arg5: memref<256x32xf32, #tpu.memory_space<vmem>>) attributes {dimension_semantics = [#tpu.dimension_semantics<parallel>], iteration_bounds = array<i64: 2>, scalar_prefetch = 0 : i64, scratch_operands = 1 : i64, tpu.core_type = #tpu.core_type<tc>, window_params = [{transform_indices = @transform_0, window_bounds = array<i64: 1, 64, 64, 32>}, {pipeline_mode = #tpu.pipeline_mode<synchronous>, transform_indices = @transform_1, window_bounds = array<i64: 1, 32, 32>}, {pipeline_mode = #tpu.pipeline_mode<synchronous>, transform_indices = @transform_2, window_bounds = array<i64: 1, 32>}, {transform_indices = @transform_3, window_bounds = array<i64: 1, 32, 32, 32>}]} {
    %c0_i32 = arith.constant 0 : i32
    %c8_i32 = arith.constant 8 : i32
    %0 = arith.addi %c0_i32, %c8_i32 : i32
    %c1_i32 = arith.constant 1 : i32
    scf.for %arg6 = %c0_i32 to %0 step %c1_i32  : i32 {
      %c1_i32_1 = arith.constant 1 : i32
      %1 = arith.muli %arg6, %c1_i32_1 : i32
      %c0_i32_2 = arith.constant 0 : i32
      %2 = arith.addi %c0_i32_2, %1 : i32
      %c8_i32_3 = arith.constant 8 : i32
      %3 = arith.muli %2, %c8_i32_3 : i32
      %4 = tpu.assume_multiple %3, 8 : i32
      %c0_i32_4 = arith.constant 0 : i32
      %5 = arith.addi %4, %c0_i32_4 : i32
      %c0 = arith.constant 0 : index
      %6 = arith.index_cast %5 : i32 to index
      %c0_5 = arith.constant 0 : index
      %c0_6 = arith.constant 0 : index
      %7 = vector.load %arg1[%c0, %6, %c0_5, %c0_6] : memref<1x64x64x32xbf16, #tpu.memory_space<vmem>>, vector<1x8x64x32xbf16>
      %8 = vector.shape_cast %7 : vector<1x8x64x32xbf16> to vector<8x64x32xbf16>
      %9 = vector.shape_cast %8 : vector<8x64x32xbf16> to vector<512x32xbf16>
      %c0_7 = arith.constant 0 : index
      %c0_8 = arith.constant 0 : index
      %c0_9 = arith.constant 0 : index
      %10 = vector.load %arg2[%c0_7, %c0_8, %c0_9] : memref<1x32x32xbf16, #tpu.memory_space<vmem>>, vector<1x32x32xbf16>
      %11 = vector.shape_cast %10 : vector<1x32x32xbf16> to vector<32x32xbf16>
      %cst = arith.constant dense<0.000000e+00> : vector<512x32xf32>
      %12 = tpu.matmul %9, %11, %cst {dimension_numbers = #tpu.dot_dimension_numbers<[1], [0], [0], [1], [0, 0, 1, 1], [], []>} : vector<512x32xbf16>, vector<32x32xbf16>, vector<512x32xf32> -> vector<512x32xf32>
      %13 = vector.shape_cast %12 : vector<512x32xf32> to vector<4x2x64x32xf32>
      %14 = vector.extract_strided_slice %13 {offsets = [0, 0, 0, 0], sizes = [4, 1, 64, 32], strides = [1, 1, 1, 1]} : vector<4x2x64x32xf32> to vector<4x1x64x32xf32>
      %15 = vector.shape_cast %14 : vector<4x1x64x32xf32> to vector<4x64x32xf32>
      %16 = vector.extract_strided_slice %13 {offsets = [0, 1, 0, 0], sizes = [4, 1, 64, 32], strides = [1, 1, 1, 1]} : vector<4x2x64x32xf32> to vector<4x1x64x32xf32>
      %17 = vector.shape_cast %16 : vector<4x1x64x32xf32> to vector<4x64x32xf32>
      %18 = arith.maximumf %15, %17 : vector<4x64x32xf32>
      %19 = vector.shape_cast %18 : vector<4x64x32xf32> to vector<256x32xf32>
      %c0_10 = arith.constant 0 : index
      %c0_11 = arith.constant 0 : index
      %20 = vector.load %arg5[%c0_10, %c0_11] : memref<256x32xf32, #tpu.memory_space<vmem>>, vector<256x32xf32>
      tpu.vector_store %arg5[%c0_10, %c0_11], %19 {strides = array<i32>} : memref<256x32xf32, #tpu.memory_space<vmem>>, vector<256x32xf32>,
      %c0_12 = arith.constant 0 : index
      %c0_13 = arith.constant 0 : index
      %21 = tpu.strided_load %arg5[%c0_12, %c0_13] {strides = array<i32: 2, 1>} : memref<256x32xf32, #tpu.memory_space<vmem>>, vector<128x32xf32>
      %c1 = arith.constant 1 : index
      %c0_14 = arith.constant 0 : index
      %22 = tpu.strided_load %arg5[%c1, %c0_14] {strides = array<i32: 2, 1>} : memref<256x32xf32, #tpu.memory_space<vmem>>, vector<128x32xf32>
      %23 = arith.maximumf %21, %22 : vector<128x32xf32>
      %24 = vector.shape_cast %23 : vector<128x32xf32> to vector<4x32x32xf32>
      %c0_15 = arith.constant 0 : index
      %c0_16 = arith.constant 0 : index
      %25 = vector.load %arg3[%c0_15, %c0_16] : memref<1x32xf32, #tpu.memory_space<vmem>>, vector<1x32xf32>
      %26 = vector.shape_cast %25 : vector<1x32xf32> to vector<1x1x32xf32>
      %27 = vector.broadcast %26 : vector<1x1x32xf32> to vector<4x32x32xf32>
      %28 = arith.addf %24, %27 : vector<4x32x32xf32>
      %cst_17 = arith.constant 0.000000e+00 : f32
      %29 = vector.broadcast %cst_17 : f32 to vector<4x32x32xf32>
      %30 = arith.maximumf %28, %29 : vector<4x32x32xf32>
      %31 = arith.truncf %30 : vector<4x32x32xf32> to vector<4x32x32xbf16>
      %c4_i32 = arith.constant 4 : i32
      %32 = arith.muli %2, %c4_i32 : i32
      %33 = tpu.assume_multiple %32, 4 : i32
      %c0_18 = arith.constant 0 : index
      %34 = arith.index_cast %33 : i32 to index
      %c0_19 = arith.constant 0 : index
      %c0_20 = arith.constant 0 : index
      %35 = vector.load %arg4[%c0_18, %34, %c0_19, %c0_20] : memref<1x32x32x32xbf16, #tpu.memory_space<vmem>>, vector<1x4x32x32xbf16>
      %36 = vector.shape_cast %35 : vector<1x4x32x32xbf16> to vector<4x32x32xbf16>
      %37 = vector.shape_cast %31 : vector<4x32x32xbf16> to vector<1x4x32x32xbf16>
      tpu.vector_store %arg4[%c0_18, %34, %c0_19, %c0_20], %37 {strides = array<i32>} : memref<1x32x32x32xbf16, #tpu.memory_space<vmem>>, vector<1x4x32x32xbf16>,
    }
    %c8_i32_0 = arith.constant 8 : i32
    return
  }
  func.func @transform_0(%arg0: i32) -> (i32, i32, i32, i32) {
    %c0_i32 = arith.constant 0 : i32
    %c0_i32_0 = arith.constant 0 : i32
    %c0_i32_1 = arith.constant 0 : i32
    %c0_i32_2 = arith.constant 0 : i32
    return %arg0, %c0_i32, %c0_i32_0, %c0_i32_1 : i32, i32, i32, i32
  }
  func.func @transform_1(%arg0: i32) -> (i32, i32, i32) {
    %c0_i32 = arith.constant 0 : i32
    %c0_i32_0 = arith.constant 0 : i32
    %c0_i32_1 = arith.constant 0 : i32
    %c0_i32_2 = arith.constant 0 : i32
    return %c0_i32, %c0_i32_0, %c0_i32_1 : i32, i32, i32
  }
  func.func @transform_2(%arg0: i32) -> (i32, i32) {
    %c0_i32 = arith.constant 0 : i32
    %c0_i32_0 = arith.constant 0 : i32
    %c0_i32_1 = arith.constant 0 : i32
    return %c0_i32, %c0_i32_0 : i32, i32
  }
  func.func @transform_3(%arg0: i32) -> (i32, i32, i32, i32) {
    %c0_i32 = arith.constant 0 : i32
    %c0_i32_0 = arith.constant 0 : i32
    %c0_i32_1 = arith.constant 0 : i32
    %c0_i32_2 = arith.constant 0 : i32
    return %arg0, %c0_i32, %c0_i32_0, %c0_i32_1 : i32, i32, i32, i32
  }
}

module attributes {stable_mosaic.version = 11 : i64} {
  func.func @kernel(%arg0: i32, %arg1: memref<1x34x32x96xbf16, #tpu.memory_space<vmem>>, %arg2: memref<3x96x64xbf16, #tpu.memory_space<vmem>>, %arg3: memref<1x64xf32, #tpu.memory_space<vmem>>, %arg4: memref<1x16x16x64xbf16, #tpu.memory_space<vmem>>, %arg5: memref<128x64xf32, #tpu.memory_space<vmem>>) attributes {dimension_semantics = [#tpu.dimension_semantics<parallel>], iteration_bounds = array<i64: 2>, scalar_prefetch = 0 : i64, scratch_operands = 1 : i64, tpu.core_type = #tpu.core_type<tc>, window_params = [{transform_indices = @transform_0, window_bounds = array<i64: 1, 34, 32, 96>}, {pipeline_mode = #tpu.pipeline_mode<synchronous>, transform_indices = @transform_1, window_bounds = array<i64: 3, 96, 64>}, {pipeline_mode = #tpu.pipeline_mode<synchronous>, transform_indices = @transform_2, window_bounds = array<i64: 1, 64>}, {transform_indices = @transform_3, window_bounds = array<i64: 1, 16, 16, 64>}]} {
    %c0_i32 = arith.constant 0 : i32
    %c4_i32 = arith.constant 4 : i32
    %0 = arith.addi %c0_i32, %c4_i32 : i32
    %c1_i32 = arith.constant 1 : i32
    scf.for %arg6 = %c0_i32 to %0 step %c1_i32  : i32 {
      %c1_i32_1 = arith.constant 1 : i32
      %1 = arith.muli %arg6, %c1_i32_1 : i32
      %c0_i32_2 = arith.constant 0 : i32
      %2 = arith.addi %c0_i32_2, %1 : i32
      %c8_i32 = arith.constant 8 : i32
      %3 = arith.muli %2, %c8_i32 : i32
      %4 = tpu.assume_multiple %3, 8 : i32
      %c0_i32_3 = arith.constant 0 : i32
      %5 = arith.addi %4, %c0_i32_3 : i32
      %c0 = arith.constant 0 : index
      %6 = arith.index_cast %5 : i32 to index
      %c0_4 = arith.constant 0 : index
      %c0_5 = arith.constant 0 : index
      %7 = vector.load %arg1[%c0, %6, %c0_4, %c0_5] : memref<1x34x32x96xbf16, #tpu.memory_space<vmem>>, vector<1x8x32x96xbf16>
      %8 = vector.shape_cast %7 : vector<1x8x32x96xbf16> to vector<8x32x96xbf16>
      %9 = vector.shape_cast %8 : vector<8x32x96xbf16> to vector<256x96xbf16>
      %c0_6 = arith.constant 0 : index
      %c0_7 = arith.constant 0 : index
      %c0_8 = arith.constant 0 : index
      %10 = vector.load %arg2[%c0_6, %c0_7, %c0_8] : memref<3x96x64xbf16, #tpu.memory_space<vmem>>, vector<1x96x64xbf16>
      %11 = vector.shape_cast %10 : vector<1x96x64xbf16> to vector<96x64xbf16>
      %cst = arith.constant dense<0.000000e+00> : vector<256x64xf32>
      %12 = tpu.matmul %9, %11, %cst {dimension_numbers = #tpu.dot_dimension_numbers<[1], [0], [0], [1], [0, 0, 1, 1], [], []>} : vector<256x96xbf16>, vector<96x64xbf16>, vector<256x64xf32> -> vector<256x64xf32>
      %c1_i32_9 = arith.constant 1 : i32
      %13 = arith.addi %4, %c1_i32_9 : i32
      %c0_10 = arith.constant 0 : index
      %14 = arith.index_cast %13 : i32 to index
      %c0_11 = arith.constant 0 : index
      %c0_12 = arith.constant 0 : index
      %15 = vector.load %arg1[%c0_10, %14, %c0_11, %c0_12] : memref<1x34x32x96xbf16, #tpu.memory_space<vmem>>, vector<1x8x32x96xbf16>
      %16 = vector.shape_cast %15 : vector<1x8x32x96xbf16> to vector<8x32x96xbf16>
      %17 = vector.shape_cast %16 : vector<8x32x96xbf16> to vector<256x96xbf16>
      %c1 = arith.constant 1 : index
      %c0_13 = arith.constant 0 : index
      %c0_14 = arith.constant 0 : index
      %18 = vector.load %arg2[%c1, %c0_13, %c0_14] : memref<3x96x64xbf16, #tpu.memory_space<vmem>>, vector<1x96x64xbf16>
      %19 = vector.shape_cast %18 : vector<1x96x64xbf16> to vector<96x64xbf16>
      %cst_15 = arith.constant dense<0.000000e+00> : vector<256x64xf32>
      %20 = tpu.matmul %17, %19, %cst_15 {dimension_numbers = #tpu.dot_dimension_numbers<[1], [0], [0], [1], [0, 0, 1, 1], [], []>} : vector<256x96xbf16>, vector<96x64xbf16>, vector<256x64xf32> -> vector<256x64xf32>
      %21 = arith.addf %12, %20 : vector<256x64xf32>
      %c2_i32 = arith.constant 2 : i32
      %22 = arith.addi %4, %c2_i32 : i32
      %c0_16 = arith.constant 0 : index
      %23 = arith.index_cast %22 : i32 to index
      %c0_17 = arith.constant 0 : index
      %c0_18 = arith.constant 0 : index
      %24 = vector.load %arg1[%c0_16, %23, %c0_17, %c0_18] : memref<1x34x32x96xbf16, #tpu.memory_space<vmem>>, vector<1x8x32x96xbf16>
      %25 = vector.shape_cast %24 : vector<1x8x32x96xbf16> to vector<8x32x96xbf16>
      %26 = vector.shape_cast %25 : vector<8x32x96xbf16> to vector<256x96xbf16>
      %c2 = arith.constant 2 : index
      %c0_19 = arith.constant 0 : index
      %c0_20 = arith.constant 0 : index
      %27 = vector.load %arg2[%c2, %c0_19, %c0_20] : memref<3x96x64xbf16, #tpu.memory_space<vmem>>, vector<1x96x64xbf16>
      %28 = vector.shape_cast %27 : vector<1x96x64xbf16> to vector<96x64xbf16>
      %cst_21 = arith.constant dense<0.000000e+00> : vector<256x64xf32>
      %29 = tpu.matmul %26, %28, %cst_21 {dimension_numbers = #tpu.dot_dimension_numbers<[1], [0], [0], [1], [0, 0, 1, 1], [], []>} : vector<256x96xbf16>, vector<96x64xbf16>, vector<256x64xf32> -> vector<256x64xf32>
      %30 = arith.addf %21, %29 : vector<256x64xf32>
      %31 = vector.shape_cast %30 : vector<256x64xf32> to vector<4x2x32x64xf32>
      %32 = vector.extract_strided_slice %31 {offsets = [0, 0, 0, 0], sizes = [4, 1, 32, 64], strides = [1, 1, 1, 1]} : vector<4x2x32x64xf32> to vector<4x1x32x64xf32>
      %33 = vector.shape_cast %32 : vector<4x1x32x64xf32> to vector<4x32x64xf32>
      %34 = vector.extract_strided_slice %31 {offsets = [0, 1, 0, 0], sizes = [4, 1, 32, 64], strides = [1, 1, 1, 1]} : vector<4x2x32x64xf32> to vector<4x1x32x64xf32>
      %35 = vector.shape_cast %34 : vector<4x1x32x64xf32> to vector<4x32x64xf32>
      %36 = arith.maximumf %33, %35 : vector<4x32x64xf32>
      %37 = vector.shape_cast %36 : vector<4x32x64xf32> to vector<128x64xf32>
      %c0_22 = arith.constant 0 : index
      %c0_23 = arith.constant 0 : index
      %38 = vector.load %arg5[%c0_22, %c0_23] : memref<128x64xf32, #tpu.memory_space<vmem>>, vector<128x64xf32>
      tpu.vector_store %arg5[%c0_22, %c0_23], %37 {strides = array<i32>} : memref<128x64xf32, #tpu.memory_space<vmem>>, vector<128x64xf32>,
      %c0_24 = arith.constant 0 : index
      %c0_25 = arith.constant 0 : index
      %39 = tpu.strided_load %arg5[%c0_24, %c0_25] {strides = array<i32: 2, 1>} : memref<128x64xf32, #tpu.memory_space<vmem>>, vector<64x64xf32>
      %c1_26 = arith.constant 1 : index
      %c0_27 = arith.constant 0 : index
      %40 = tpu.strided_load %arg5[%c1_26, %c0_27] {strides = array<i32: 2, 1>} : memref<128x64xf32, #tpu.memory_space<vmem>>, vector<64x64xf32>
      %41 = arith.maximumf %39, %40 : vector<64x64xf32>
      %42 = vector.shape_cast %41 : vector<64x64xf32> to vector<4x16x64xf32>
      %c0_28 = arith.constant 0 : index
      %c0_29 = arith.constant 0 : index
      %43 = vector.load %arg3[%c0_28, %c0_29] : memref<1x64xf32, #tpu.memory_space<vmem>>, vector<1x64xf32>
      %44 = vector.shape_cast %43 : vector<1x64xf32> to vector<1x1x64xf32>
      %45 = vector.broadcast %44 : vector<1x1x64xf32> to vector<4x16x64xf32>
      %46 = arith.addf %42, %45 : vector<4x16x64xf32>
      %cst_30 = arith.constant 0.000000e+00 : f32
      %47 = vector.broadcast %cst_30 : f32 to vector<4x16x64xf32>
      %48 = arith.maximumf %46, %47 : vector<4x16x64xf32>
      %49 = arith.truncf %48 : vector<4x16x64xf32> to vector<4x16x64xbf16>
      %c4_i32_31 = arith.constant 4 : i32
      %50 = arith.muli %2, %c4_i32_31 : i32
      %51 = tpu.assume_multiple %50, 4 : i32
      %c0_32 = arith.constant 0 : index
      %52 = arith.index_cast %51 : i32 to index
      %c0_33 = arith.constant 0 : index
      %c0_34 = arith.constant 0 : index
      %53 = vector.load %arg4[%c0_32, %52, %c0_33, %c0_34] : memref<1x16x16x64xbf16, #tpu.memory_space<vmem>>, vector<1x4x16x64xbf16>
      %54 = vector.shape_cast %53 : vector<1x4x16x64xbf16> to vector<4x16x64xbf16>
      %55 = vector.shape_cast %49 : vector<4x16x64xbf16> to vector<1x4x16x64xbf16>
      tpu.vector_store %arg4[%c0_32, %52, %c0_33, %c0_34], %55 {strides = array<i32>} : memref<1x16x16x64xbf16, #tpu.memory_space<vmem>>, vector<1x4x16x64xbf16>,
    }
    %c4_i32_0 = arith.constant 4 : i32
    return
  }
  func.func @transform_0(%arg0: i32) -> (i32, i32, i32, i32) {
    %c0_i32 = arith.constant 0 : i32
    %c0_i32_0 = arith.constant 0 : i32
    %c0_i32_1 = arith.constant 0 : i32
    %c0_i32_2 = arith.constant 0 : i32
    return %arg0, %c0_i32, %c0_i32_0, %c0_i32_1 : i32, i32, i32, i32
  }
  func.func @transform_1(%arg0: i32) -> (i32, i32, i32) {
    %c0_i32 = arith.constant 0 : i32
    %c0_i32_0 = arith.constant 0 : i32
    %c0_i32_1 = arith.constant 0 : i32
    %c0_i32_2 = arith.constant 0 : i32
    return %c0_i32, %c0_i32_0, %c0_i32_1 : i32, i32, i32
  }
  func.func @transform_2(%arg0: i32) -> (i32, i32) {
    %c0_i32 = arith.constant 0 : i32
    %c0_i32_0 = arith.constant 0 : i32
    %c0_i32_1 = arith.constant 0 : i32
    return %c0_i32, %c0_i32_0 : i32, i32
  }
  func.func @transform_3(%arg0: i32) -> (i32, i32, i32, i32) {
    %c0_i32 = arith.constant 0 : i32
    %c0_i32_0 = arith.constant 0 : i32
    %c0_i32_1 = arith.constant 0 : i32
    %c0_i32_2 = arith.constant 0 : i32
    return %arg0, %c0_i32, %c0_i32_0, %c0_i32_1 : i32, i32, i32, i32
  }
}

module attributes {stable_mosaic.version = 11 : i64} {
  func.func @kernel(%arg0: i32, %arg1: memref<1x18x16x192xbf16, #tpu.memory_space<vmem>>, %arg2: memref<3x192x128xbf16, #tpu.memory_space<vmem>>, %arg3: memref<1x128xf32, #tpu.memory_space<vmem>>, %arg4: memref<1x8x8x128xbf16, #tpu.memory_space<vmem>>, %arg5: memref<64x128xf32, #tpu.memory_space<vmem>>) attributes {dimension_semantics = [#tpu.dimension_semantics<parallel>], iteration_bounds = array<i64: 2>, scalar_prefetch = 0 : i64, scratch_operands = 1 : i64, tpu.core_type = #tpu.core_type<tc>, window_params = [{transform_indices = @transform_0, window_bounds = array<i64: 1, 18, 16, 192>}, {pipeline_mode = #tpu.pipeline_mode<synchronous>, transform_indices = @transform_1, window_bounds = array<i64: 3, 192, 128>}, {pipeline_mode = #tpu.pipeline_mode<synchronous>, transform_indices = @transform_2, window_bounds = array<i64: 1, 128>}, {transform_indices = @transform_3, window_bounds = array<i64: 1, 8, 8, 128>}]} {
    %c0_i32 = arith.constant 0 : i32
    %c2_i32 = arith.constant 2 : i32
    %0 = arith.addi %c0_i32, %c2_i32 : i32
    %c1_i32 = arith.constant 1 : i32
    scf.for %arg6 = %c0_i32 to %0 step %c1_i32  : i32 {
      %c1_i32_1 = arith.constant 1 : i32
      %1 = arith.muli %arg6, %c1_i32_1 : i32
      %c0_i32_2 = arith.constant 0 : i32
      %2 = arith.addi %c0_i32_2, %1 : i32
      %c8_i32 = arith.constant 8 : i32
      %3 = arith.muli %2, %c8_i32 : i32
      %4 = tpu.assume_multiple %3, 8 : i32
      %c0_i32_3 = arith.constant 0 : i32
      %5 = arith.addi %4, %c0_i32_3 : i32
      %c0 = arith.constant 0 : index
      %6 = arith.index_cast %5 : i32 to index
      %c0_4 = arith.constant 0 : index
      %c0_5 = arith.constant 0 : index
      %7 = vector.load %arg1[%c0, %6, %c0_4, %c0_5] : memref<1x18x16x192xbf16, #tpu.memory_space<vmem>>, vector<1x8x16x192xbf16>
      %8 = vector.shape_cast %7 : vector<1x8x16x192xbf16> to vector<8x16x192xbf16>
      %9 = vector.shape_cast %8 : vector<8x16x192xbf16> to vector<128x192xbf16>
      %c0_6 = arith.constant 0 : index
      %c0_7 = arith.constant 0 : index
      %c0_8 = arith.constant 0 : index
      %10 = vector.load %arg2[%c0_6, %c0_7, %c0_8] : memref<3x192x128xbf16, #tpu.memory_space<vmem>>, vector<1x192x128xbf16>
      %11 = vector.shape_cast %10 : vector<1x192x128xbf16> to vector<192x128xbf16>
      %cst = arith.constant dense<0.000000e+00> : vector<128x128xf32>
      %12 = tpu.matmul %9, %11, %cst {dimension_numbers = #tpu.dot_dimension_numbers<[1], [0], [0], [1], [0, 0, 1, 1], [], []>} : vector<128x192xbf16>, vector<192x128xbf16>, vector<128x128xf32> -> vector<128x128xf32>
      %c1_i32_9 = arith.constant 1 : i32
      %13 = arith.addi %4, %c1_i32_9 : i32
      %c0_10 = arith.constant 0 : index
      %14 = arith.index_cast %13 : i32 to index
      %c0_11 = arith.constant 0 : index
      %c0_12 = arith.constant 0 : index
      %15 = vector.load %arg1[%c0_10, %14, %c0_11, %c0_12] : memref<1x18x16x192xbf16, #tpu.memory_space<vmem>>, vector<1x8x16x192xbf16>
      %16 = vector.shape_cast %15 : vector<1x8x16x192xbf16> to vector<8x16x192xbf16>
      %17 = vector.shape_cast %16 : vector<8x16x192xbf16> to vector<128x192xbf16>
      %c1 = arith.constant 1 : index
      %c0_13 = arith.constant 0 : index
      %c0_14 = arith.constant 0 : index
      %18 = vector.load %arg2[%c1, %c0_13, %c0_14] : memref<3x192x128xbf16, #tpu.memory_space<vmem>>, vector<1x192x128xbf16>
      %19 = vector.shape_cast %18 : vector<1x192x128xbf16> to vector<192x128xbf16>
      %cst_15 = arith.constant dense<0.000000e+00> : vector<128x128xf32>
      %20 = tpu.matmul %17, %19, %cst_15 {dimension_numbers = #tpu.dot_dimension_numbers<[1], [0], [0], [1], [0, 0, 1, 1], [], []>} : vector<128x192xbf16>, vector<192x128xbf16>, vector<128x128xf32> -> vector<128x128xf32>
      %21 = arith.addf %12, %20 : vector<128x128xf32>
      %c2_i32_16 = arith.constant 2 : i32
      %22 = arith.addi %4, %c2_i32_16 : i32
      %c0_17 = arith.constant 0 : index
      %23 = arith.index_cast %22 : i32 to index
      %c0_18 = arith.constant 0 : index
      %c0_19 = arith.constant 0 : index
      %24 = vector.load %arg1[%c0_17, %23, %c0_18, %c0_19] : memref<1x18x16x192xbf16, #tpu.memory_space<vmem>>, vector<1x8x16x192xbf16>
      %25 = vector.shape_cast %24 : vector<1x8x16x192xbf16> to vector<8x16x192xbf16>
      %26 = vector.shape_cast %25 : vector<8x16x192xbf16> to vector<128x192xbf16>
      %c2 = arith.constant 2 : index
      %c0_20 = arith.constant 0 : index
      %c0_21 = arith.constant 0 : index
      %27 = vector.load %arg2[%c2, %c0_20, %c0_21] : memref<3x192x128xbf16, #tpu.memory_space<vmem>>, vector<1x192x128xbf16>
      %28 = vector.shape_cast %27 : vector<1x192x128xbf16> to vector<192x128xbf16>
      %cst_22 = arith.constant dense<0.000000e+00> : vector<128x128xf32>
      %29 = tpu.matmul %26, %28, %cst_22 {dimension_numbers = #tpu.dot_dimension_numbers<[1], [0], [0], [1], [0, 0, 1, 1], [], []>} : vector<128x192xbf16>, vector<192x128xbf16>, vector<128x128xf32> -> vector<128x128xf32>
      %30 = arith.addf %21, %29 : vector<128x128xf32>
      %31 = vector.shape_cast %30 : vector<128x128xf32> to vector<4x2x16x128xf32>
      %32 = vector.extract_strided_slice %31 {offsets = [0, 0, 0, 0], sizes = [4, 1, 16, 128], strides = [1, 1, 1, 1]} : vector<4x2x16x128xf32> to vector<4x1x16x128xf32>
      %33 = vector.shape_cast %32 : vector<4x1x16x128xf32> to vector<4x16x128xf32>
      %34 = vector.extract_strided_slice %31 {offsets = [0, 1, 0, 0], sizes = [4, 1, 16, 128], strides = [1, 1, 1, 1]} : vector<4x2x16x128xf32> to vector<4x1x16x128xf32>
      %35 = vector.shape_cast %34 : vector<4x1x16x128xf32> to vector<4x16x128xf32>
      %36 = arith.maximumf %33, %35 : vector<4x16x128xf32>
      %37 = vector.shape_cast %36 : vector<4x16x128xf32> to vector<64x128xf32>
      %c0_23 = arith.constant 0 : index
      %c0_24 = arith.constant 0 : index
      %38 = vector.load %arg5[%c0_23, %c0_24] : memref<64x128xf32, #tpu.memory_space<vmem>>, vector<64x128xf32>
      tpu.vector_store %arg5[%c0_23, %c0_24], %37 {strides = array<i32>} : memref<64x128xf32, #tpu.memory_space<vmem>>, vector<64x128xf32>,
      %c0_25 = arith.constant 0 : index
      %c0_26 = arith.constant 0 : index
      %39 = tpu.strided_load %arg5[%c0_25, %c0_26] {strides = array<i32: 2, 1>} : memref<64x128xf32, #tpu.memory_space<vmem>>, vector<32x128xf32>
      %c1_27 = arith.constant 1 : index
      %c0_28 = arith.constant 0 : index
      %40 = tpu.strided_load %arg5[%c1_27, %c0_28] {strides = array<i32: 2, 1>} : memref<64x128xf32, #tpu.memory_space<vmem>>, vector<32x128xf32>
      %41 = arith.maximumf %39, %40 : vector<32x128xf32>
      %42 = vector.shape_cast %41 : vector<32x128xf32> to vector<4x8x128xf32>
      %c0_29 = arith.constant 0 : index
      %c0_30 = arith.constant 0 : index
      %43 = vector.load %arg3[%c0_29, %c0_30] : memref<1x128xf32, #tpu.memory_space<vmem>>, vector<1x128xf32>
      %44 = vector.shape_cast %43 : vector<1x128xf32> to vector<1x1x128xf32>
      %45 = vector.broadcast %44 : vector<1x1x128xf32> to vector<4x8x128xf32>
      %46 = arith.addf %42, %45 : vector<4x8x128xf32>
      %cst_31 = arith.constant 0.000000e+00 : f32
      %47 = vector.broadcast %cst_31 : f32 to vector<4x8x128xf32>
      %48 = arith.maximumf %46, %47 : vector<4x8x128xf32>
      %49 = arith.truncf %48 : vector<4x8x128xf32> to vector<4x8x128xbf16>
      %c4_i32 = arith.constant 4 : i32
      %50 = arith.muli %2, %c4_i32 : i32
      %51 = tpu.assume_multiple %50, 4 : i32
      %c0_32 = arith.constant 0 : index
      %52 = arith.index_cast %51 : i32 to index
      %c0_33 = arith.constant 0 : index
      %c0_34 = arith.constant 0 : index
      %53 = vector.load %arg4[%c0_32, %52, %c0_33, %c0_34] : memref<1x8x8x128xbf16, #tpu.memory_space<vmem>>, vector<1x4x8x128xbf16>
      %54 = vector.shape_cast %53 : vector<1x4x8x128xbf16> to vector<4x8x128xbf16>
      %55 = vector.shape_cast %49 : vector<4x8x128xbf16> to vector<1x4x8x128xbf16>
      tpu.vector_store %arg4[%c0_32, %52, %c0_33, %c0_34], %55 {strides = array<i32>} : memref<1x8x8x128xbf16, #tpu.memory_space<vmem>>, vector<1x4x8x128xbf16>,
    }
    %c2_i32_0 = arith.constant 2 : i32
    return
  }
  func.func @transform_0(%arg0: i32) -> (i32, i32, i32, i32) {
    %c0_i32 = arith.constant 0 : i32
    %c0_i32_0 = arith.constant 0 : i32
    %c0_i32_1 = arith.constant 0 : i32
    %c0_i32_2 = arith.constant 0 : i32
    return %arg0, %c0_i32, %c0_i32_0, %c0_i32_1 : i32, i32, i32, i32
  }
  func.func @transform_1(%arg0: i32) -> (i32, i32, i32) {
    %c0_i32 = arith.constant 0 : i32
    %c0_i32_0 = arith.constant 0 : i32
    %c0_i32_1 = arith.constant 0 : i32
    %c0_i32_2 = arith.constant 0 : i32
    return %c0_i32, %c0_i32_0, %c0_i32_1 : i32, i32, i32
  }
  func.func @transform_2(%arg0: i32) -> (i32, i32) {
    %c0_i32 = arith.constant 0 : i32
    %c0_i32_0 = arith.constant 0 : i32
    %c0_i32_1 = arith.constant 0 : i32
    return %c0_i32, %c0_i32_0 : i32, i32
  }
  func.func @transform_3(%arg0: i32) -> (i32, i32, i32, i32) {
    %c0_i32 = arith.constant 0 : i32
    %c0_i32_0 = arith.constant 0 : i32
    %c0_i32_1 = arith.constant 0 : i32
    %c0_i32_2 = arith.constant 0 : i32
    return %arg0, %c0_i32, %c0_i32_0, %c0_i32_1 : i32, i32, i32, i32
  }
}

module attributes {stable_mosaic.version = 11 : i64} {
  func.func @kernel(%arg0: i32, %arg1: memref<2x4096xbf16, #tpu.memory_space<vmem>>, %arg2: memref<4096x512xbf16, #tpu.memory_space<vmem>>, %arg3: memref<1x512xf32, #tpu.memory_space<vmem>>, %arg4: memref<512x128xf32, #tpu.memory_space<vmem>>, %arg5: memref<1x128xf32, #tpu.memory_space<vmem>>, %arg6: memref<128x4xf32, #tpu.memory_space<vmem>>, %arg7: memref<1x4xf32, #tpu.memory_space<vmem>>, %arg8: memref<2x4xf32, #tpu.memory_space<vmem>>, %arg9: memref<2x512xf32, #tpu.memory_space<vmem>>) attributes {dimension_semantics = [#tpu.dimension_semantics<arbitrary>], iteration_bounds = array<i64: 2>, scalar_prefetch = 0 : i64, scratch_operands = 1 : i64, tpu.core_type = #tpu.core_type<tc>, window_params = [{transform_indices = @transform_0, window_bounds = array<i64: 2, 4096>}, {transform_indices = @transform_1, window_bounds = array<i64: 4096, 512>}, {pipeline_mode = #tpu.pipeline_mode<synchronous>, transform_indices = @transform_2, window_bounds = array<i64: 1, 512>}, {pipeline_mode = #tpu.pipeline_mode<synchronous>, transform_indices = @transform_3, window_bounds = array<i64: 512, 128>}, {pipeline_mode = #tpu.pipeline_mode<synchronous>, transform_indices = @transform_4, window_bounds = array<i64: 1, 128>}, {pipeline_mode = #tpu.pipeline_mode<synchronous>, transform_indices = @transform_5, window_bounds = array<i64: 128, 4>}, {pipeline_mode = #tpu.pipeline_mode<synchronous>, transform_indices = @transform_6, window_bounds = array<i64: 1, 4>}, {pipeline_mode = #tpu.pipeline_mode<synchronous>, transform_indices = @transform_7, window_bounds = array<i64: 2, 4>}]} {
    %c0_i32 = arith.constant 0 : i32
    %0 = arith.cmpi eq, %arg0, %c0_i32 : i32
    %1 = arith.extui %0 : i1 to i32
    %c0_i32_0 = arith.constant 0 : i32
    %2 = arith.cmpi ne, %1, %c0_i32_0 : i32
    scf.if %2 {
      %cst_9 = arith.constant 0.000000e+00 : f32
      %12 = vector.broadcast %cst_9 : f32 to vector<2x512xf32>
      %c0_10 = arith.constant 0 : index
      %c0_11 = arith.constant 0 : index
      %13 = vector.load %arg9[%c0_10, %c0_11] : memref<2x512xf32, #tpu.memory_space<vmem>>, vector<2x512xf32>
      tpu.vector_store %arg9[%c0_10, %c0_11], %12 {strides = array<i32>} : memref<2x512xf32, #tpu.memory_space<vmem>>, vector<2x512xf32>,
    } else {
    }
    %c0 = arith.constant 0 : index
    %c0_1 = arith.constant 0 : index
    %3 = vector.load %arg9[%c0, %c0_1] : memref<2x512xf32, #tpu.memory_space<vmem>>, vector<2x512xf32>
    %c0_2 = arith.constant 0 : index
    %c0_3 = arith.constant 0 : index
    %4 = vector.load %arg1[%c0_2, %c0_3] : memref<2x4096xbf16, #tpu.memory_space<vmem>>, vector<2x4096xbf16>
    %c0_4 = arith.constant 0 : index
    %c0_5 = arith.constant 0 : index
    %5 = vector.load %arg2[%c0_4, %c0_5] : memref<4096x512xbf16, #tpu.memory_space<vmem>>, vector<4096x512xbf16>
    %cst = arith.constant dense<0.000000e+00> : vector<2x512xf32>
    %6 = tpu.matmul %4, %5, %cst {dimension_numbers = #tpu.dot_dimension_numbers<[1], [0], [0], [1], [0, 0, 1, 1], [], []>} : vector<2x4096xbf16>, vector<4096x512xbf16>, vector<2x512xf32> -> vector<2x512xf32>
    %7 = arith.addf %3, %6 : vector<2x512xf32>
    %c0_6 = arith.constant 0 : index
    %c0_7 = arith.constant 0 : index
    %8 = vector.load %arg9[%c0_6, %c0_7] : memref<2x512xf32, #tpu.memory_space<vmem>>, vector<2x512xf32>
    tpu.vector_store %arg9[%c0_6, %c0_7], %7 {strides = array<i32>} : memref<2x512xf32, #tpu.memory_space<vmem>>, vector<2x512xf32>,
    %c1_i32 = arith.constant 1 : i32
    %9 = arith.cmpi eq, %arg0, %c1_i32 : i32
    %10 = arith.extui %9 : i1 to i32
    %c0_i32_8 = arith.constant 0 : i32
    %11 = arith.cmpi ne, %10, %c0_i32_8 : i32
    scf.if %11 {
      %c0_9 = arith.constant 0 : index
      %c0_10 = arith.constant 0 : index
      %12 = vector.load %arg9[%c0_9, %c0_10] : memref<2x512xf32, #tpu.memory_space<vmem>>, vector<2x512xf32>
      %c0_11 = arith.constant 0 : index
      %c0_12 = arith.constant 0 : index
      %13 = vector.load %arg3[%c0_11, %c0_12] : memref<1x512xf32, #tpu.memory_space<vmem>>, vector<1x512xf32>
      %14 = vector.broadcast %13 : vector<1x512xf32> to vector<2x512xf32>
      %15 = arith.addf %12, %14 : vector<2x512xf32>
      %cst_13 = arith.constant 0.000000e+00 : f32
      %16 = vector.broadcast %cst_13 : f32 to vector<2x512xf32>
      %17 = arith.maximumf %15, %16 : vector<2x512xf32>
      %c0_14 = arith.constant 0 : index
      %c0_15 = arith.constant 0 : index
      %18 = vector.load %arg4[%c0_14, %c0_15] : memref<512x128xf32, #tpu.memory_space<vmem>>, vector<512x128xf32>
      %cst_16 = arith.constant dense<0.000000e+00> : vector<2x128xf32>
      %19 = tpu.matmul %17, %18, %cst_16 {dimension_numbers = #tpu.dot_dimension_numbers<[1], [0], [0], [1], [0, 0, 1, 1], [], []>} : vector<2x512xf32>, vector<512x128xf32>, vector<2x128xf32> -> vector<2x128xf32>
      %c0_17 = arith.constant 0 : index
      %c0_18 = arith.constant 0 : index
      %20 = vector.load %arg5[%c0_17, %c0_18] : memref<1x128xf32, #tpu.memory_space<vmem>>, vector<1x128xf32>
      %21 = vector.broadcast %20 : vector<1x128xf32> to vector<2x128xf32>
      %22 = arith.addf %19, %21 : vector<2x128xf32>
      %cst_19 = arith.constant 0.000000e+00 : f32
      %23 = vector.broadcast %cst_19 : f32 to vector<2x128xf32>
      %24 = arith.maximumf %22, %23 : vector<2x128xf32>
      %c0_20 = arith.constant 0 : index
      %c0_21 = arith.constant 0 : index
      %25 = vector.load %arg6[%c0_20, %c0_21] : memref<128x4xf32, #tpu.memory_space<vmem>>, vector<128x4xf32>
      %cst_22 = arith.constant dense<0.000000e+00> : vector<2x4xf32>
      %26 = tpu.matmul %24, %25, %cst_22 {dimension_numbers = #tpu.dot_dimension_numbers<[1], [0], [0], [1], [0, 0, 1, 1], [], []>} : vector<2x128xf32>, vector<128x4xf32>, vector<2x4xf32> -> vector<2x4xf32>
      %c0_23 = arith.constant 0 : index
      %c0_24 = arith.constant 0 : index
      %27 = vector.load %arg7[%c0_23, %c0_24] : memref<1x4xf32, #tpu.memory_space<vmem>>, vector<1x4xf32>
      %28 = vector.broadcast %27 : vector<1x4xf32> to vector<2x4xf32>
      %29 = arith.addf %26, %28 : vector<2x4xf32>
      %c0_25 = arith.constant 0 : index
      %c0_26 = arith.constant 0 : index
      %30 = vector.load %arg8[%c0_25, %c0_26] : memref<2x4xf32, #tpu.memory_space<vmem>>, vector<2x4xf32>
      tpu.vector_store %arg8[%c0_25, %c0_26], %29 {strides = array<i32>} : memref<2x4xf32, #tpu.memory_space<vmem>>, vector<2x4xf32>,
    } else {
    }
    return
  }
  func.func @transform_0(%arg0: i32) -> (i32, i32) {
    %c0_i32 = arith.constant 0 : i32
    %c0_i32_0 = arith.constant 0 : i32
    return %c0_i32, %arg0 : i32, i32
  }
  func.func @transform_1(%arg0: i32) -> (i32, i32) {
    %c0_i32 = arith.constant 0 : i32
    %c0_i32_0 = arith.constant 0 : i32
    return %arg0, %c0_i32 : i32, i32
  }
  func.func @transform_2(%arg0: i32) -> (i32, i32) {
    %c0_i32 = arith.constant 0 : i32
    %c0_i32_0 = arith.constant 0 : i32
    %c0_i32_1 = arith.constant 0 : i32
    return %c0_i32, %c0_i32_0 : i32, i32
  }
  func.func @transform_3(%arg0: i32) -> (i32, i32) {
    %c0_i32 = arith.constant 0 : i32
    %c0_i32_0 = arith.constant 0 : i32
    %c0_i32_1 = arith.constant 0 : i32
    return %c0_i32, %c0_i32_0 : i32, i32
  }
  func.func @transform_4(%arg0: i32) -> (i32, i32) {
    %c0_i32 = arith.constant 0 : i32
    %c0_i32_0 = arith.constant 0 : i32
    %c0_i32_1 = arith.constant 0 : i32
    return %c0_i32, %c0_i32_0 : i32, i32
  }
  func.func @transform_5(%arg0: i32) -> (i32, i32) {
    %c0_i32 = arith.constant 0 : i32
    %c0_i32_0 = arith.constant 0 : i32
    %c0_i32_1 = arith.constant 0 : i32
    return %c0_i32, %c0_i32_0 : i32, i32
  }
  func.func @transform_6(%arg0: i32) -> (i32, i32) {
    %c0_i32 = arith.constant 0 : i32
    %c0_i32_0 = arith.constant 0 : i32
    %c0_i32_1 = arith.constant 0 : i32
    return %c0_i32, %c0_i32_0 : i32, i32
  }
  func.func @transform_7(%arg0: i32) -> (i32, i32) {
    %c0_i32 = arith.constant 0 : i32
    %c0_i32_0 = arith.constant 0 : i32
    %c0_i32_1 = arith.constant 0 : i32
    return %c0_i32, %c0_i32_0 : i32, i32
  }
}

</mosaic_0001>

<llo_original>
// kernel: emotion_net_forward.4
$region0: #{emotion_net_forward.4}
  #allocation0 [shape = 'u32[]', space=smem, size = 0x4, offset = 0x4, fixed_abs, tag = 'smem constant byte address 0x4 - core index']
  #allocation1 [shape = 'u32[72,128]{1,0:T(1,128)}', space=vmem, size = 0x9000, scoped, tag = 'internal scratch']
  #allocation2 [shape = 'f32[256,32]{1,0:T(8,128)}', space=vmem, size = 0x20000, scoped, tag = 'scratch operand']
  %s0 = inlined_call_operand.vmem [shape: bf16[2,64,64,32], index: 0, kind: input, shape index: {}]
  %s1 = inlined_call_operand.vmem [shape: bf16[1,32,32], index: 1, kind: input, shape index: {}]
  %s2 = inlined_call_operand.vmem [shape: f32[1,32], index: 2, kind: input, shape index: {}]
  %s3 = inlined_call_operand.vmem [shape: bf16[2,32,32,32], index: 3, kind: output, shape index: {}]
  %s4 = sld [smem:[#allocation0]]
  $region52: #{emotion_net_forward.4} parent=0
    _
  %s6 = ssub.s32 1, %s4
  %s7 = scalar_select 0, %s6, %s4
  loop: start=0, step=1, limit=4
  $region2: #{emotion_net_forward.4} parent=0 // loop_pre_header
    _
  $region3: #{emotion_net_forward.4} parent=0 // loop_header
    %s9 = sphi 0, %s13
    %p10 = scmp.ge.s32.totalorder %s9, 4
    %s19 = sphi 0, %s21
    %s22 = sphi 0, %s19
    %s23 = sphi 0, %s22
    %s39 = sphi 0, %s23
    %s43 = sphi 0, %s43
    %s45 = sphi 0, %s43
    %s46 = sphi 0, %s45
    %s60 = sphi 0, %s46
    %s64 = sphi 0, %s64
    %s66 = sphi 0, %s64
    %s67 = sphi 0, %s66
    %s81 = sphi 0, %s67
    %s87 = sphi 0, %s89
    %s90 = sphi 0, %s87
    %s91 = sphi 0, %s90
    %s107 = sphi 0, %s91
  $region4: #{emotion_net_forward.4} parent=0 // loop_header_branch
    %12 = sbr.rel (%p10) target = $region8
  $region5: #{emotion_net_forward.4} parent=0 // loop_body
    %s14 = ssub.s32 %s9, 1
    %s15 = ssub.s32 %s9, 2
    %s16 = sadd.s32 %s9, 1
    %s17 = ssub.s32 %s9, %s16
    %p18 = scmp.eq.s32.totalorder %s17, 0
    %s20 = sadd.s32 %s19, 1
    %s21 = scalar_select %p18, %s19, %s20
    %p24 = pneg %p18
    %p25 = scmp.eq.s32.totalorder %s9, 1
    %p26 = por %p24, %p25
    %p27 = scmp.ne.s32.totalorder %s19, %s22
    %p28 = scmp.eq.s32.totalorder %s9, 0
    %p29 = por %p27, %p28
    %p30 = scmp.ne.s32.totalorder %s19, %s22
    %p31 = scmp.eq.s32.totalorder %s14, 1
    %p32 = por %p30, %p31
    %p33 = scmp.ne.s32.totalorder %s22, %s23
    %p34 = scmp.eq.s32.totalorder %s14, 0
    %p35 = por %p33, %p34
    %p36 = scmp.ne.s32.totalorder %s22, %s23
    %p37 = scmp.eq.s32.totalorder %s15, 1
    %p38 = por %p36, %p37
    %p40 = scmp.ne.s32.totalorder %s23, %s39
    %p41 = scmp.eq.s32.totalorder %s15, 0
    %p42 = por %p40, %p41
    %s44 = sadd.s32 %s43, 1
    %p47 = scmp.eq.s32.totalorder %s9, 1
    %p48 = scmp.ne.s32.totalorder %s43, %s45
    %p49 = scmp.eq.s32.totalorder %s9, 0
    %p50 = por %p48, %p49
    %p51 = scmp.ne.s32.totalorder %s43, %s45
    %p52 = scmp.eq.s32.totalorder %s14, 1
    %p53 = por %p51, %p52
    %p54 = scmp.ne.s32.totalorder %s45, %s46
    %p55 = scmp.eq.s32.totalorder %s14, 0
    %p56 = por %p54, %p55
    %p57 = scmp.ne.s32.totalorder %s45, %s46
    %p58 = scmp.eq.s32.totalorder %s15, 1
    %p59 = por %p57, %p58
    %p61 = scmp.ne.s32.totalorder %s46, %s60
    %p62 = scmp.eq.s32.totalorder %s15, 0
    %p63 = por %p61, %p62
    %s65 = sadd.s32 %s64, 1
    %p68 = scmp.eq.s32.totalorder %s9, 1
    %p69 = scmp.ne.s32.totalorder %s64, %s66
    %p70 = scmp.eq.s32.totalorder %s9, 0
    %p71 = por %p69, %p70
    %p72 = scmp.ne.s32.totalorder %s64, %s66
    %p73 = scmp.eq.s32.totalorder %s14, 1
    %p74 = por %p72, %p73
    %p75 = scmp.ne.s32.totalorder %s66, %s67
    %p76 = scmp.eq.s32.totalorder %s14, 0
    %p77 = por %p75, %p76
    %p78 = scmp.ne.s32.totalorder %s66, %s67
    %p79 = scmp.eq.s32.totalorder %s15, 1
    %p80 = por %p78, %p79
    %p82 = scmp.ne.s32.totalorder %s67, %s81
    %p83 = scmp.eq.s32.totalorder %s15, 0
    %p84 = por %p82, %p83
    %s85 = ssub.s32 %s9, %s16
    %p86 = scmp.eq.s32.totalorder %s85, 0
    %s88 = sadd.s32 %s87, 1
    %s89 = scalar_select %p86, %s87, %s88
    %p92 = pneg %p86
    %p93 = scmp.eq.s32.totalorder %s9, 1
    %p94 = por %p92, %p93
    %p95 = scmp.ne.s32.totalorder %s87, %s90
    %p96 = scmp.eq.s32.totalorder %s9, 0
    %p97 = por %p95, %p96
    %p98 = scmp.ne.s32.totalorder %s87, %s90
    %p99 = scmp.eq.s32.totalorder %s14, 1
    %p100 = por %p98, %p99
    %p101 = scmp.ne.s32.totalorder %s90, %s91
    %p102 = scmp.eq.s32.totalorder %s14, 0
    %p103 = por %p101, %p102
    %p104 = scmp.ne.s32.totalorder %s90, %s91
    %p105 = scmp.eq.s32.totalorder %s15, 1
    %p106 = por %p104, %p105
    %p108 = scmp.ne.s32.totalorder %s91, %s107
    %p109 = scmp.eq.s32.totalorder %s15, 0
    %p110 = por %p108, %p109
    %p111 = scmp.le.s32.totalorder 1, %s9
    %p112 = scmp.lt.s32.totalorder %s9, 3
    %p113 = pnand %p111, %p112
    %p114 = pneg %p113
    // Predicated region
    $region9: #{emotion_net_forward.4} parent=5 // pred_check
      _
    $region10: #{emotion_net_forward.4} parent=5 // pred_check_branch
      %116 = sbr.rel (%p113) target = $region12
    $region11: #{emotion_net_forward.4} parent=5 // pred_region
      %s117 = ssub.s32 %s9, 1
      // Predicated region
      $region13: #{emotion_net_forward.4} parent=11 // pred_check
        %p118 = pneg %p56
      $region14: #{emotion_net_forward.4} parent=11 // pred_check_branch
        %120 = sbr.rel (%p118) target = $region16
      $region15: #{emotion_net_forward.4} parent=11 // pred_region
        _
      $region16: #{emotion_net_forward.4} parent=11 // pred_fallthru
        _
      // Predicated region
      $region17: #{emotion_net_forward.4} parent=11 // pred_check
        %p121 = pneg %p77
      $region18: #{emotion_net_forward.4} parent=11 // pred_check_branch
        %123 = sbr.rel (%p121) target = $region20
      $region19: #{emotion_net_forward.4} parent=11 // pred_region
        _
      $region20: #{emotion_net_forward.4} parent=11 // pred_fallthru
        _
    $region12: #{emotion_net_forward.4} parent=5 // pred_fallthru
      _
    %p124 = scmp.lt.s32.totalorder %s9, 2
    // Predicated region
    $region21: #{emotion_net_forward.4} parent=5 // pred_check
      %p125 = pneg %p124
    $region22: #{emotion_net_forward.4} parent=5 // pred_check_branch
      %127 = sbr.rel (%p125) target = $region24
    $region23: #{emotion_net_forward.4} parent=5 // pred_region
      // Predicated region
      $region25: #{emotion_net_forward.4} parent=23 // pred_check
        %p128 = pneg %p29
      $region26: #{emotion_net_forward.4} parent=23 // pred_check_branch
        %130 = sbr.rel (%p128) target = $region28
      $region27: #{emotion_net_forward.4} parent=23 // pred_region
        %p131 = scmp.lt.s32.totalorder %s9, 1
        %s132 = scalar_select %p131, %s9, 1
        %s133 = smul.addr %s132, 512
        %s134 = smul.addr %s133, 4
        %s135 = scalar_lea.vmem %s0, %s134
      $region28: #{emotion_net_forward.4} parent=23 // pred_fallthru
        _
    $region24: #{emotion_net_forward.4} parent=5 // pred_fallthru
      _
    %p136 = scmp.le.s32.totalorder 1, %s9
    %p137 = scmp.lt.s32.totalorder %s9, 3
    %p138 = pnand %p136, %p137
    %p139 = pneg %p138
    // Predicated region
    $region29: #{emotion_net_forward.4} parent=5 // pred_check
      _
    $region30: #{emotion_net_forward.4} parent=5 // pred_check_branch
      %141 = sbr.rel (%p138) target = $region32
    $region31: #{emotion_net_forward.4} parent=5 // pred_region
      %s142 = ssub.s32 %s9, 1
      %p143 = scmp.lt.s32.totalorder %s14, 1
      %s144 = scalar_select %p143, %s14, 1
      %s145 = smul.addr %s144, 512
      %s146 = smul.addr %s145, 4
      %s147 = scalar_lea.vmem %s0, %s146
      %p148 = pneg %p35
      %p149 = pneg %p32
      %p150 = pneg %p56
      %p151 = pneg %p53
      %p152 = pneg %p77
      %p153 = pneg %p74
      %p154 = pneg %p103
      %p155 = pneg %p100
      %p156 = scmp.lt.s32.totalorder %s14, 1
      %s157 = scalar_select %p156, %s14, 1
      %s158 = smul.addr %s157, 128
      %s159 = smul.addr %s158, 4
      %s160 = scalar_lea.vmem %s3, %s159
      %p161 = scmp.lt.s32.totalorder %s14, 1
      %s162 = scalar_select %p161, %s14, 1
      %s163 = smul.addr %s162, 512
      %s164 = smul.addr %s163, 4
      %s165 = scalar_lea.vmem %s0, %s164
      %p166 = scmp.lt.s32.totalorder %s14, 1
      %s167 = scalar_select %p166, %s14, 1
      %s168 = smul.addr %s167, 128
      %s169 = smul.addr %s168, 4
      %s170 = scalar_lea.vmem %s3, %s169
      loop: start=0, step=1, limit=8
      $region33: #{emotion_net_forward.4} parent=31 // loop_pre_header
        _
      $region34: #{emotion_net_forward.4} parent=31 // loop_header
        %s173 = sphi 0, %s177
        %p174 = scmp.ge.s32.totalorder %s173, 8
      $region35: #{emotion_net_forward.4} parent=31 // loop_header_branch
        %176 = sbr.rel (%p174) target = $region39
      $region36: #{emotion_net_forward.4} parent=31 // loop_body
        %s178 = smul.u32 %s173, 8
        %s179 = smul.u32 %s178, 8
        %s180 = smul.addr %s179, 4
        %s181 = scalar_lea.vmem %s165, %s180
        %v182 = vld [vmem:[%s181] sm:$0xf]
        %v183 = vld [vmem:[%s181 + $0x4] sm:$0xf]
        %v184 = vld [vmem:[%s181 + $0x8] sm:$0xf]
        %v185 = vld [vmem:[%s181 + $0xc] sm:$0xf]
        %v186 = vld [vmem:[%s181 + $0x10] sm:$0xf]
        %v187 = vld [vmem:[%s181 + $0x14] sm:$0xf]
        %v188 = vld [vmem:[%s181 + $0x18] sm:$0xf]
        %v189 = vld [vmem:[%s181 + $0x1c] sm:$0xf]
        %v190 = vld [vmem:[%s181 + $0x20] sm:$0xf]
        %v191 = vld [vmem:[%s181 + $0x24] sm:$0xf]
        %v192 = vld [vmem:[%s181 + $0x28] sm:$0xf]
        %v193 = vld [vmem:[%s181 + $0x2c] sm:$0xf]
        %v194 = vld [vmem:[%s181 + $0x30] sm:$0xf]
        %v195 = vld [vmem:[%s181 + $0x34] sm:$0xf]
        %v196 = vld [vmem:[%s181 + $0x38] sm:$0xf]
        %v197 = vld [vmem:[%s181 + $0x3c] sm:$0xf]
        %v198 = vld [vmem:[%s181 + $0x40] sm:$0xf]
        %v199 = vld [vmem:[%s181 + $0x44] sm:$0xf]
        %v200 = vld [vmem:[%s181 + $0x48] sm:$0xf]
        %v201 = vld [vmem:[%s181 + $0x4c] sm:$0xf]
        %v202 = vld [vmem:[%s181 + $0x50] sm:$0xf]
        %v203 = vld [vmem:[%s181 + $0x54] sm:$0xf]
        %v204 = vld [vmem:[%s181 + $0x58] sm:$0xf]
        %v205 = vld [vmem:[%s181 + $0x5c] sm:$0xf]
        %v206 = vld [vmem:[%s181 + $0x60] sm:$0xf]
        %v207 = vld [vmem:[%s181 + $0x64] sm:$0xf]
        %v208 = vld [vmem:[%s181 + $0x68] sm:$0xf]
        %v209 = vld [vmem:[%s181 + $0x6c] sm:$0xf]
        %v210 = vld [vmem:[%s181 + $0x70] sm:$0xf]
        %v211 = vld [vmem:[%s181 + $0x74] sm:$0xf]
        %v212 = vld [vmem:[%s181 + $0x78] sm:$0xf]
        %v213 = vld [vmem:[%s181 + $0x7c] sm:$0xf]
        %v214 = vld [vmem:[%s181 + $0x80] sm:$0xf]
        %v215 = vld [vmem:[%s181 + $0x84] sm:$0xf]
        %v216 = vld [vmem:[%s181 + $0x88] sm:$0xf]
        %v217 = vld [vmem:[%s181 + $0x8c] sm:$0xf]
        %v218 = vld [vmem:[%s181 + $0x90] sm:$0xf]
        %v219 = vld [vmem:[%s181 + $0x94] sm:$0xf]
        %v220 = vld [vmem:[%s181 + $0x98] sm:$0xf]
        %v221 = vld [vmem:[%s181 + $0x9c] sm:$0xf]
        %v222 = vld [vmem:[%s181 + $0xa0] sm:$0xf]
        %v223 = vld [vmem:[%s181 + $0xa4] sm:$0xf]
        %v224 = vld [vmem:[%s181 + $0xa8] sm:$0xf]
        %v225 = vld [vmem:[%s181 + $0xac] sm:$0xf]
        %v226 = vld [vmem:[%s181 + $0xb0] sm:$0xf]
        %v227 = vld [vmem:[%s181 + $0xb4] sm:$0xf]
        %v228 = vld [vmem:[%s181 + $0xb8] sm:$0xf]
        %v229 = vld [vmem:[%s181 + $0xbc] sm:$0xf]
        %v230 = vld [vmem:[%s181 + $0xc0] sm:$0xf]
        %v231 = vld [vmem:[%s181 + $0xc4] sm:$0xf]
        %v232 = vld [vmem:[%s181 + $0xc8] sm:$0xf]
        %v233 = vld [vmem:[%s181 + $0xcc] sm:$0xf]
        %v234 = vld [vmem:[%s181 + $0xd0] sm:$0xf]
        %v235 = vld [vmem:[%s181 + $0xd4] sm:$0xf]
        %v236 = vld [vmem:[%s181 + $0xd8] sm:$0xf]
        %v237 = vld [vmem:[%s181 + $0xdc] sm:$0xf]
        %v238 = vld [vmem:[%s181 + $0xe0] sm:$0xf]
        %v239 = vld [vmem:[%s181 + $0xe4] sm:$0xf]
        %v240 = vld [vmem:[%s181 + $0xe8] sm:$0xf]
        %v241 = vld [vmem:[%s181 + $0xec] sm:$0xf]
        %v242 = vld [vmem:[%s181 + $0xf0] sm:$0xf]
        %v243 = vld [vmem:[%s181 + $0xf4] sm:$0xf]
        %v244 = vld [vmem:[%s181 + $0xf8] sm:$0xf]
        %v245 = vld [vmem:[%s181 + $0xfc] sm:$0xf]
        %v246 = vld [vmem:[%s1] sm:$0xf]
        %v247 = vld [vmem:[%s1 + $0x4] sm:$0xf]
        %v248 = vld [vmem:[%s1 + $0x8] sm:$0xf]
        %v249 = vld [vmem:[%s1 + $0xc] sm:$0xf]
        %v314 = vunpack.c.l.b16 %v182
        %v315 = vunpack.c.l.b16 %v183
        %v316 = vunpack.c.l.b16 %v184
        %v317 = vunpack.c.l.b16 %v185
        %v318 = vunpack.c.l.b16 %v186
        %v319 = vunpack.c.l.b16 %v187
        %v320 = vunpack.c.l.b16 %v188
        %v321 = vunpack.c.l.b16 %v189
        %v322 = vunpack.c.l.b16 %v190
        %v323 = vunpack.c.l.b16 %v191
        %v324 = vunpack.c.l.b16 %v192
        %v325 = vunpack.c.l.b16 %v193
        %v326 = vunpack.c.l.b16 %v194
        %v327 = vunpack.c.l.b16 %v195
        %v328 = vunpack.c.l.b16 %v196
        %v329 = vunpack.c.l.b16 %v197
        %v330 = vunpack.c.l.b16 %v198
        %v331 = vunpack.c.l.b16 %v199
        %v332 = vunpack.c.l.b16 %v200
        %v333 = vunpack.c.l.b16 %v201
        %v334 = vunpack.c.l.b16 %v202
        %v335 = vunpack.c.l.b16 %v203
        %v336 = vunpack.c.l.b16 %v204
        %v337 = vunpack.c.l.b16 %v205
        %v338 = vunpack.c.l.b16 %v206
        %v339 = vunpack.c.l.b16 %v207
        %v340 = vunpack.c.l.b16 %v208
        %v341 = vunpack.c.l.b16 %v209
        %v342 = vunpack.c.l.b16 %v210
        %v343 = vunpack.c.l.b16 %v211
        %v344 = vunpack.c.l.b16 %v212
        %v345 = vunpack.c.l.b16 %v213
        %v346 = vunpack.c.l.b16 %v214
        %v347 = vunpack.c.l.b16 %v215
        %v348 = vunpack.c.l.b16 %v216
        %v349 = vunpack.c.l.b16 %v217
        %v350 = vunpack.c.l.b16 %v218
        %v351 = vunpack.c.l.b16 %v219
        %v352 = vunpack.c.l.b16 %v220
        %v353 = vunpack.c.l.b16 %v221
        %v354 = vunpack.c.l.b16 %v222
        %v355 = vunpack.c.l.b16 %v223
        %v356 = vunpack.c.l.b16 %v224
        %v357 = vunpack.c.l.b16 %v225
        %v358 = vunpack.c.l.b16 %v226
        %v359 = vunpack.c.l.b16 %v227
        %v360 = vunpack.c.l.b16 %v228
        %v361 = vunpack.c.l.b16 %v229
        %v362 = vunpack.c.l.b16 %v230
        %v363 = vunpack.c.l.b16 %v231
        %v364 = vunpack.c.l.b16 %v232
        %v365 = vunpack.c.l.b16 %v233
        %v366 = vunpack.c.l.b16 %v234
        %v367 = vunpack.c.l.b16 %v235
        %v368 = vunpack.c.l.b16 %v236
        %v369 = vunpack.c.l.b16 %v237
        %v370 = vunpack.c.l.b16 %v238
        %v371 = vunpack.c.l.b16 %v239
        %v372 = vunpack.c.l.b16 %v240
        %v373 = vunpack.c.l.b16 %v241
        %v374 = vunpack.c.l.b16 %v242
        %v375 = vunpack.c.l.b16 %v243
        %v376 = vunpack.c.l.b16 %v244
        %v377 = vunpack.c.l.b16 %v245
        %v378 = vpack.c.b16 %v315, %v314
        %v379 = vpack.c.b16 %v317, %v316
        %v380 = vpack.c.b16 %v319, %v318
        %v381 = vpack.c.b16 %v321, %v320
        %v382 = vpack.c.b16 %v323, %v322
        %v383 = vpack.c.b16 %v325, %v324
        %v384 = vpack.c.b16 %v327, %v326
        %v385 = vpack.c.b16 %v329, %v328
        %v386 = vpack.c.b16 %v331, %v330
        %v387 = vpack.c.b16 %v333, %v332
        %v388 = vpack.c.b16 %v335, %v334
        %v389 = vpack.c.b16 %v337, %v336
        %v390 = vpack.c.b16 %v339, %v338
        %v391 = vpack.c.b16 %v341, %v340
        %v392 = vpack.c.b16 %v343, %v342
        %v393 = vpack.c.b16 %v345, %v344
        %v394 = vpack.c.b16 %v347, %v346
        %v395 = vpack.c.b16 %v349, %v348
        %v396 = vpack.c.b16 %v351, %v350
        %v397 = vpack.c.b16 %v353, %v352
        %v398 = vpack.c.b16 %v355, %v354
        %v399 = vpack.c.b16 %v357, %v356
        %v400 = vpack.c.b16 %v359, %v358
        %v401 = vpack.c.b16 %v361, %v360
        %v402 = vpack.c.b16 %v363, %v362
        %v403 = vpack.c.b16 %v365, %v364
        %v404 = vpack.c.b16 %v367, %v366
        %v405 = vpack.c.b16 %v369, %v368
        %v406 = vpack.c.b16 %v371, %v370
        %v407 = vpack.c.b16 %v373, %v372
        %v408 = vpack.c.b16 %v375, %v374
        %v409 = vpack.c.b16 %v377, %v376
        %v414 = vunpack.c.l.b16 %v246
        %v415 = vunpack.c.l.b16 %v247
        %v416 = vunpack.c.l.b16 %v248
        %v417 = vunpack.c.l.b16 %v249
        %v418 = vpack.c.b16 %v415, %v414
        %v419 = vpack.c.b16 %v417, %v416
        %vm422 = vcmask 261120
        %v424 = vsel %vm422, %v378, 0
        %v427 = vsel %vm422, %v379, 0
        %v430 = vsel %vm422, %v380, 0
        %v433 = vsel %vm422, %v381, 0
        %v436 = vsel %vm422, %v382, 0
        %v439 = vsel %vm422, %v383, 0
        %v442 = vsel %vm422, %v384, 0
        %v445 = vsel %vm422, %v385, 0
        %v448 = vsel %vm422, %v386, 0
        %v451 = vsel %vm422, %v387, 0
        %v454 = vsel %vm422, %v388, 0
        %v457 = vsel %vm422, %v389, 0
        %v460 = vsel %vm422, %v390, 0
        %v463 = vsel %vm422, %v391, 0
        %v466 = vsel %vm422, %v392, 0
        %v469 = vsel %vm422, %v393, 0
        %v472 = vsel %vm422, %v394, 0
        %v475 = vsel %vm422, %v395, 0
        %v478 = vsel %vm422, %v396, 0
        %v481 = vsel %vm422, %v397, 0
        %v484 = vsel %vm422, %v398, 0
        %v487 = vsel %vm422, %v399, 0
        %v490 = vsel %vm422, %v400, 0
        %v493 = vsel %vm422, %v401, 0
        %v496 = vsel %vm422, %v402, 0
        %v499 = vsel %vm422, %v403, 0
        %v502 = vsel %vm422, %v404, 0
        %v505 = vsel %vm422, %v405, 0
        %v508 = vsel %vm422, %v406, 0
        %v511 = vsel %vm422, %v407, 0
        %v514 = vsel %vm422, %v408, 0
        %v517 = vsel %vm422, %v409, 0
        %519 = vmatpush.bf16.msra.mxu0 0
        %520 = vmatpush.bf16.msra.mxu0 0
        %521 = vmatpush.bf16.msra.mxu0 0
        %522 = vmatpush.bf16.msra.mxu0 0
        %523 = vmatpush.bf16.msra.mxu0 0
        %524 = vmatpush.bf16.msra.mxu0 0
        %525 = vmatpush.bf16.msra.mxu0 %v419
        %526 = vmatpush.bf16.msra.mxu0 %v418
        %527 = vmatmul.bf16.gmra.mxu0 %v424
        %v528 = vpop.f32.mrf.mxu0
        %v529 = vadd.f32 0.0, %v528
        %v530 = vpop.f32.mrf.mxu0
        %v531 = vadd.f32 0.0, %v530
        %532 = vmatmul.bf16.gmra.mxu0 %v427
        %v533 = vpop.f32.mrf.mxu0
        %v534 = vadd.f32 0.0, %v533
        %v535 = vpop.f32.mrf.mxu0
        %v536 = vadd.f32 0.0, %v535
        %537 = vmatmul.bf16.gmra.mxu0 %v430
        %v538 = vpop.f32.mrf.mxu0
        %v539 = vadd.f32 0.0, %v538
        %v540 = vpop.f32.mrf.mxu0
        %v541 = vadd.f32 0.0, %v540
        %542 = vmatmul.bf16.gmra.mxu0 %v433
        %v543 = vpop.f32.mrf.mxu0
        %v544 = vadd.f32 0.0, %v543
        %v545 = vpop.f32.mrf.mxu0
        %v546 = vadd.f32 0.0, %v545
        %547 = vmatmul.bf16.gmra.mxu0 %v436
        %v548 = vpop.f32.mrf.mxu0
        %v549 = vadd.f32 0.0, %v548
        %v550 = vpop.f32.mrf.mxu0
        %v551 = vadd.f32 0.0, %v550
        %552 = vmatmul.bf16.gmra.mxu0 %v439
        %v553 = vpop.f32.mrf.mxu0
        %v554 = vadd.f32 0.0, %v553
        %v555 = vpop.f32.mrf.mxu0
        %v556 = vadd.f32 0.0, %v555
        %557 = vmatmul.bf16.gmra.mxu0 %v442
        %v558 = vpop.f32.mrf.mxu0
        %v559 = vadd.f32 0.0, %v558
        %v560 = vpop.f32.mrf.mxu0
        %v561 = vadd.f32 0.0, %v560
        %562 = vmatmul.bf16.gmra.mxu0 %v445
        %v563 = vpop.f32.mrf.mxu0
        %v564 = vadd.f32 0.0, %v563
        %v565 = vpop.f32.mrf.mxu0
        %v566 = vadd.f32 0.0, %v565
        %567 = vmatmul.bf16.gmra.mxu0 %v448
        %v568 = vpop.f32.mrf.mxu0
        %v569 = vadd.f32 0.0, %v568
        %v570 = vpop.f32.mrf.mxu0
        %v571 = vadd.f32 0.0, %v570
        %572 = vmatmul.bf16.gmra.mxu0 %v451
        %v573 = vpop.f32.mrf.mxu0
        %v574 = vadd.f32 0.0, %v573
        %v575 = vpop.f32.mrf.mxu0
        %v576 = vadd.f32 0.0, %v575
        %577 = vmatmul.bf16.gmra.mxu0 %v454
        %v578 = vpop.f32.mrf.mxu0
        %v579 = vadd.f32 0.0, %v578
        %v580 = vpop.f32.mrf.mxu0
        %v581 = vadd.f32 0.0, %v580
        %582 = vmatmul.bf16.gmra.mxu0 %v457
        %v583 = vpop.f32.mrf.mxu0
        %v584 = vadd.f32 0.0, %v583
        %v585 = vpop.f32.mrf.mxu0
        %v586 = vadd.f32 0.0, %v585
        %587 = vmatmul.bf16.gmra.mxu0 %v460
        %v588 = vpop.f32.mrf.mxu0
        %v589 = vadd.f32 0.0, %v588
        %v590 = vpop.f32.mrf.mxu0
        %v591 = vadd.f32 0.0, %v590
        %592 = vmatmul.bf16.gmra.mxu0 %v463
        %v593 = vpop.f32.mrf.mxu0
        %v594 = vadd.f32 0.0, %v593
        %v595 = vpop.f32.mrf.mxu0
        %v596 = vadd.f32 0.0, %v595
        %597 = vmatmul.bf16.gmra.mxu0 %v466
        %v598 = vpop.f32.mrf.mxu0
        %v599 = vadd.f32 0.0, %v598
        %v600 = vpop.f32.mrf.mxu0
        %v601 = vadd.f32 0.0, %v600
        %602 = vmatmul.bf16.gmra.mxu0 %v469
        %v603 = vpop.f32.mrf.mxu0
        %v604 = vadd.f32 0.0, %v603
        %v605 = vpop.f32.mrf.mxu0
        %v606 = vadd.f32 0.0, %v605
        %607 = vmatmul.bf16.gmra.mxu0 %v472
        %v608 = vpop.f32.mrf.mxu0
        %v609 = vadd.f32 0.0, %v608
        %v610 = vpop.f32.mrf.mxu0
        %v611 = vadd.f32 0.0, %v610
        %612 = vmatmul.bf16.gmra.mxu0 %v475
        %v613 = vpop.f32.mrf.mxu0
        %v614 = vadd.f32 0.0, %v613
        %v615 = vpop.f32.mrf.mxu0
        %v616 = vadd.f32 0.0, %v615
        %617 = vmatmul.bf16.gmra.mxu0 %v478
        %v618 = vpop.f32.mrf.mxu0
        %v619 = vadd.f32 0.0, %v618
        %v620 = vpop.f32.mrf.mxu0
        %v621 = vadd.f32 0.0, %v620
        %622 = vmatmul.bf16.gmra.mxu0 %v481
        %v623 = vpop.f32.mrf.mxu0
        %v624 = vadd.f32 0.0, %v623
        %v625 = vpop.f32.mrf.mxu0
        %v626 = vadd.f32 0.0, %v625
        %627 = vmatmul.bf16.gmra.mxu0 %v484
        %v628 = vpop.f32.mrf.mxu0
        %v629 = vadd.f32 0.0, %v628
        %v630 = vpop.f32.mrf.mxu0
        %v631 = vadd.f32 0.0, %v630
        %632 = vmatmul.bf16.gmra.mxu0 %v487
        %v633 = vpop.f32.mrf.mxu0
        %v634 = vadd.f32 0.0, %v633
        %v635 = vpop.f32.mrf.mxu0
        %v636 = vadd.f32 0.0, %v635
        %637 = vmatmul.bf16.gmra.mxu0 %v490
        %v638 = vpop.f32.mrf.mxu0
        %v639 = vadd.f32 0.0, %v638
        %v640 = vpop.f32.mrf.mxu0
        %v641 = vadd.f32 0.0, %v640
        %642 = vmatmul.bf16.gmra.mxu0 %v493
        %v643 = vpop.f32.mrf.mxu0
        %v644 = vadd.f32 0.0, %v643
        %v645 = vpop.f32.mrf.mxu0
        %v646 = vadd.f32 0.0, %v645
        %647 = vmatmul.bf16.gmra.mxu0 %v496
        %v648 = vpop.f32.mrf.mxu0
        %v649 = vadd.f32 0.0, %v648
        %v650 = vpop.f32.mrf.mxu0
        %v651 = vadd.f32 0.0, %v650
        %652 = vmatmul.bf16.gmra.mxu0 %v499
        %v653 = vpop.f32.mrf.mxu0
        %v654 = vadd.f32 0.0, %v653
        %v655 = vpop.f32.mrf.mxu0
        %v656 = vadd.f32 0.0, %v655
        %657 = vmatmul.bf16.gmra.mxu0 %v502
        %v658 = vpop.f32.mrf.mxu0
        %v659 = vadd.f32 0.0, %v658
        %v660 = vpop.f32.mrf.mxu0
        %v661 = vadd.f32 0.0, %v660
        %662 = vmatmul.bf16.gmra.mxu0 %v505
        %v663 = vpop.f32.mrf.mxu0
        %v664 = vadd.f32 0.0, %v663
        %v665 = vpop.f32.mrf.mxu0
        %v666 = vadd.f32 0.0, %v665
        %667 = vmatmul.bf16.gmra.mxu0 %v508
        %v668 = vpop.f32.mrf.mxu0
        %v669 = vadd.f32 0.0, %v668
        %v670 = vpop.f32.mrf.mxu0
        %v671 = vadd.f32 0.0, %v670
        %672 = vmatmul.bf16.gmra.mxu0 %v511
        %v673 = vpop.f32.mrf.mxu0
        %v674 = vadd.f32 0.0, %v673
        %v675 = vpop.f32.mrf.mxu0
        %v676 = vadd.f32 0.0, %v675
        %677 = vmatmul.bf16.gmra.mxu0 %v514
        %v678 = vpop.f32.mrf.mxu0
        %v679 = vadd.f32 0.0, %v678
        %v680 = vpop.f32.mrf.mxu0
        %v681 = vadd.f32 0.0, %v680
        %682 = vmatmul.bf16.gmra.mxu0 %v517
        %v683 = vpop.f32.mrf.mxu0
        %v684 = vadd.f32 0.0, %v683
        %v685 = vpop.f32.mrf.mxu0
        %v686 = vadd.f32 0.0, %v685
        %687 = vdwg.mxu0
        %v688 = vmax.f32 %v529, %v549
        %v689 = vmax.f32 %v531, %v551
        %v690 = vmax.f32 %v534, %v554
        %v691 = vmax.f32 %v536, %v556
        %v692 = vmax.f32 %v539, %v559
        %v693 = vmax.f32 %v541, %v561
        %v694 = vmax.f32 %v544, %v564
        %v695 = vmax.f32 %v546, %v566
        %v696 = vmax.f32 %v569, %v589
        %v697 = vmax.f32 %v571, %v591
        %v698 = vmax.f32 %v574, %v594
        %v699 = vmax.f32 %v576, %v596
        %v700 = vmax.f32 %v579, %v599
        %v701 = vmax.f32 %v581, %v601
        %v702 = vmax.f32 %v584, %v604
        %v703 = vmax.f32 %v586, %v606
        %v704 = vmax.f32 %v609, %v629
        %v705 = vmax.f32 %v611, %v631
        %v706 = vmax.f32 %v614, %v634
        %v707 = vmax.f32 %v616, %v636
        %v708 = vmax.f32 %v619, %v639
        %v709 = vmax.f32 %v621, %v641
        %v710 = vmax.f32 %v624, %v644
        %v711 = vmax.f32 %v626, %v646
        %v712 = vmax.f32 %v649, %v669
        %v713 = vmax.f32 %v651, %v671
        %v714 = vmax.f32 %v654, %v674
        %v715 = vmax.f32 %v656, %v676
        %v716 = vmax.f32 %v659, %v679
        %v717 = vmax.f32 %v661, %v681
        %v718 = vmax.f32 %v664, %v684
        %v719 = vmax.f32 %v666, %v686
        %720 = vst.msk [vmem:[#allocation2] sm:$0xff] %vm422, %v688
        %721 = vst.msk [vmem:[#allocation2 + $0x8] sm:$0xff] %vm422, %v689
        %722 = vst.msk [vmem:[#allocation2 + $0x10] sm:$0xff] %vm422, %v690
        %723 = vst.msk [vmem:[#allocation2 + $0x18] sm:$0xff] %vm422, %v691
        %724 = vst.msk [vmem:[#allocation2 + $0x20] sm:$0xff] %vm422, %v692
        %725 = vst.msk [vmem:[#allocation2 + $0x28] sm:$0xff] %vm422, %v693
        %726 = vst.msk [vmem:[#allocation2 + $0x30] sm:$0xff] %vm422, %v694
        %727 = vst.msk [vmem:[#allocation2 + $0x38] sm:$0xff] %vm422, %v695
        %728 = vst.msk [vmem:[#allocation2 + $0x40] sm:$0xff] %vm422, %v696
        %729 = vst.msk [vmem:[#allocation2 + $0x48] sm:$0xff] %vm422, %v697
        %730 = vst.msk [vmem:[#allocation2 + $0x50] sm:$0xff] %vm422, %v698
        %731 = vst.msk [vmem:[#allocation2 + $0x58] sm:$0xff] %vm422, %v699
        %732 = vst.msk [vmem:[#allocation2 + $0x60] sm:$0xff] %vm422, %v700
        %733 = vst.msk [vmem:[#allocation2 + $0x68] sm:$0xff] %vm422, %v701
        %734 = vst.msk [vmem:[#allocation2 + $0x70] sm:$0xff] %vm422, %v702
        %735 = vst.msk [vmem:[#allocation2 + $0x78] sm:$0xff] %vm422, %v703
        %736 = vst.msk [vmem:[#allocation2 + $0x80] sm:$0xff] %vm422, %v704
        %737 = vst.msk [vmem:[#allocation2 + $0x88] sm:$0xff] %vm422, %v705
        %738 = vst.msk [vmem:[#allocation2 + $0x90] sm:$0xff] %vm422, %v706
        %739 = vst.msk [vmem:[#allocation2 + $0x98] sm:$0xff] %vm422, %v707
        %740 = vst.msk [vmem:[#allocation2 + $0xa0] sm:$0xff] %vm422, %v708
        %741 = vst.msk [vmem:[#allocation2 + $0xa8] sm:$0xff] %vm422, %v709
        %742 = vst.msk [vmem:[#allocation2 + $0xb0] sm:$0xff] %vm422, %v710
        %743 = vst.msk [vmem:[#allocation2 + $0xb8] sm:$0xff] %vm422, %v711
        %744 = vst.msk [vmem:[#allocation2 + $0xc0] sm:$0xff] %vm422, %v712
        %745 = vst.msk [vmem:[#allocation2 + $0xc8] sm:$0xff] %vm422, %v713
        %746 = vst.msk [vmem:[#allocation2 + $0xd0] sm:$0xff] %vm422, %v714
        %747 = vst.msk [vmem:[#allocation2 + $0xd8] sm:$0xff] %vm422, %v715
        %748 = vst.msk [vmem:[#allocation2 + $0xe0] sm:$0xff] %vm422, %v716
        %749 = vst.msk [vmem:[#allocation2 + $0xe8] sm:$0xff] %vm422, %v717
        %750 = vst.msk [vmem:[#allocation2 + $0xf0] sm:$0xff] %vm422, %v718
        %751 = vst.msk [vmem:[#allocation2 + $0xf8] sm:$0xff] %vm422, %v719
        %v752 = vld [vmem:[#allocation2] ss:$2 sm:$0xff]
        %s753 = scalar_lea.vmem [#allocation2], 16
        %v754 = vld [vmem:[%s753] ss:$2 sm:$0xff]
        %s755 = scalar_lea.vmem [#allocation2], 32
        %v756 = vld [vmem:[%s755] ss:$2 sm:$0xff]
        %s757 = scalar_lea.vmem [#allocation2], 48
        %v758 = vld [vmem:[%s757] ss:$2 sm:$0xff]
        %s759 = scalar_lea.vmem [#allocation2], 64
        %v760 = vld [vmem:[%s759] ss:$2 sm:$0xff]
        %s761 = scalar_lea.vmem [#allocation2], 80
        %v762 = vld [vmem:[%s761] ss:$2 sm:$0xff]
        %s763 = scalar_lea.vmem [#allocation2], 96
        %v764 = vld [vmem:[%s763] ss:$2 sm:$0xff]
        %s765 = scalar_lea.vmem [#allocation2], 112
        %v766 = vld [vmem:[%s765] ss:$2 sm:$0xff]
        %s767 = scalar_lea.vmem [#allocation2], 128
        %v768 = vld [vmem:[%s767] ss:$2 sm:$0xff]
        %s769 = scalar_lea.vmem [#allocation2], 144
        %v770 = vld [vmem:[%s769] ss:$2 sm:$0xff]
        %s771 = scalar_lea.vmem [#allocation2], 160
        %v772 = vld [vmem:[%s771] ss:$2 sm:$0xff]
        %s773 = scalar_lea.vmem [#allocation2], 176
        %v774 = vld [vmem:[%s773] ss:$2 sm:$0xff]
        %s775 = scalar_lea.vmem [#allocation2], 192
        %v776 = vld [vmem:[%s775] ss:$2 sm:$0xff]
        %s777 = scalar_lea.vmem [#allocation2], 208
        %v778 = vld [vmem:[%s777] ss:$2 sm:$0xff]
        %s779 = scalar_lea.vmem [#allocation2], 224
        %v780 = vld [vmem:[%s779] ss:$2 sm:$0xff]
        %s781 = scalar_lea.vmem [#allocation2], 240
        %v782 = vld [vmem:[%s781] ss:$2 sm:$0xff]
        %s783 = scalar_lea.vmem [#allocation2], 1
        %v784 = vld [vmem:[%s783] ss:$2 sm:$0xff]
        %s785 = scalar_lea.vmem [#allocation2], 17
        %v786 = vld [vmem:[%s785] ss:$2 sm:$0xff]
        %s787 = scalar_lea.vmem [#allocation2], 33
        %v788 = vld [vmem:[%s787] ss:$2 sm:$0xff]
        %s789 = scalar_lea.vmem [#allocation2], 49
        %v790 = vld [vmem:[%s789] ss:$2 sm:$0xff]
        %s791 = scalar_lea.vmem [#allocation2], 65
        %v792 = vld [vmem:[%s791] ss:$2 sm:$0xff]
        %s793 = scalar_lea.vmem [#allocation2], 81
        %v794 = vld [vmem:[%s793] ss:$2 sm:$0xff]
        %s795 = scalar_lea.vmem [#allocation2], 97
        %v796 = vld [vmem:[%s795] ss:$2 sm:$0xff]
        %s797 = scalar_lea.vmem [#allocation2], 113
        %v798 = vld [vmem:[%s797] ss:$2 sm:$0xff]
        %s799 = scalar_lea.vmem [#allocation2], 129
        %v800 = vld [vmem:[%s799] ss:$2 sm:$0xff]
        %s801 = scalar_lea.vmem [#allocation2], 145
        %v802 = vld [vmem:[%s801] ss:$2 sm:$0xff]
        %s803 = scalar_lea.vmem [#allocation2], 161
        %v804 = vld [vmem:[%s803] ss:$2 sm:$0xff]
        %s805 = scalar_lea.vmem [#allocation2], 177
        %v806 = vld [vmem:[%s805] ss:$2 sm:$0xff]
        %s807 = scalar_lea.vmem [#allocation2], 193
        %v808 = vld [vmem:[%s807] ss:$2 sm:$0xff]
        %s809 = scalar_lea.vmem [#allocation2], 209
        %v810 = vld [vmem:[%s809] ss:$2 sm:$0xff]
        %s811 = scalar_lea.vmem [#allocation2], 225
        %v812 = vld [vmem:[%s811] ss:$2 sm:$0xff]
        %s813 = scalar_lea.vmem [#allocation2], 241
        %v814 = vld [vmem:[%s813] ss:$2 sm:$0xff]
        %v815 = vmax.f32 %v752, %v784
        %v816 = vmax.f32 %v754, %v786
        %v817 = vmax.f32 %v756, %v788
        %v818 = vmax.f32 %v758, %v790
        %v819 = vmax.f32 %v760, %v792
        %v820 = vmax.f32 %v762, %v794
        %v821 = vmax.f32 %v764, %v796
        %v822 = vmax.f32 %v766, %v798
        %v823 = vmax.f32 %v768, %v800
        %v824 = vmax.f32 %v770, %v802
        %v825 = vmax.f32 %v772, %v804
        %v826 = vmax.f32 %v774, %v806
        %v827 = vmax.f32 %v776, %v808
        %v828 = vmax.f32 %v778, %v810
        %v829 = vmax.f32 %v780, %v812
        %v830 = vmax.f32 %v782, %v814
        %v831 = vld [vmem:[%s2] sm:$0x1]
        %v833 = vperm.slane %v831, 0
        %v835 = vadd.f32 %v815, %v833
        %v836 = vadd.f32 %v816, %v833
        %v837 = vadd.f32 %v817, %v833
        %v838 = vadd.f32 %v818, %v833
        %v839 = vadd.f32 %v819, %v833
        %v840 = vadd.f32 %v820, %v833
        %v841 = vadd.f32 %v821, %v833
        %v842 = vadd.f32 %v822, %v833
        %v843 = vadd.f32 %v823, %v833
        %v844 = vadd.f32 %v824, %v833
        %v845 = vadd.f32 %v825, %v833
        %v846 = vadd.f32 %v826, %v833
        %v847 = vadd.f32 %v827, %v833
        %v848 = vadd.f32 %v828, %v833
        %v849 = vadd.f32 %v829, %v833
        %v850 = vadd.f32 %v830, %v833
        %v851 = vmax.f32 %v835, 0.0
        %v852 = vmax.f32 %v836, 0.0
        %v853 = vmax.f32 %v837, 0.0
        %v854 = vmax.f32 %v838, 0.0
        %v855 = vmax.f32 %v839, 0.0
        %v856 = vmax.f32 %v840, 0.0
        %v857 = vmax.f32 %v841, 0.0
        %v858 = vmax.f32 %v842, 0.0
        %v859 = vmax.f32 %v843, 0.0
        %v860 = vmax.f32 %v844, 0.0
        %v861 = vmax.f32 %v845, 0.0
        %v862 = vmax.f32 %v846, 0.0
        %v863 = vmax.f32 %v847, 0.0
        %v864 = vmax.f32 %v848, 0.0
        %v865 = vmax.f32 %v849, 0.0
        %v866 = vmax.f32 %v850, 0.0
        %v867 = vpack.c.bf16 %v851, %v851
        %v868 = vpack.c.bf16 %v852, %v852
        %v869 = vpack.c.bf16 %v853, %v853
        %v870 = vpack.c.bf16 %v854, %v854
        %v871 = vpack.c.bf16 %v855, %v855
        %v872 = vpack.c.bf16 %v856, %v856
        %v873 = vpack.c.bf16 %v857, %v857
        %v874 = vpack.c.bf16 %v858, %v858
        %v875 = vpack.c.bf16 %v859, %v859
        %v876 = vpack.c.bf16 %v860, %v860
        %v877 = vpack.c.bf16 %v861, %v861
        %v878 = vpack.c.bf16 %v862, %v862
        %v879 = vpack.c.bf16 %v863, %v863
        %v880 = vpack.c.bf16 %v864, %v864
        %v881 = vpack.c.bf16 %v865, %v865
        %v882 = vpack.c.bf16 %v866, %v866
        %s883 = smul.u32 %s173, 4
        %s884 = smul.u32 %s883, 4
        %s885 = smul.addr %s884, 4
        %s886 = scalar_lea.vmem %s170, %s885
        %vm887 = vcmask 257024
        %888 = vst.msk [vmem:[%s886] sm:$0xf] %vm887, %v867
        %889 = vst.msk [vmem:[%s886 + $0x4] sm:$0xf] %vm887, %v868
        %890 = vst.msk [vmem:[%s886 + $0x8] sm:$0xf] %vm887, %v869
        %891 = vst.msk [vmem:[%s886 + $0xc] sm:$0xf] %vm887, %v870
        %892 = vst.msk [vmem:[%s886 + $0x10] sm:$0xf] %vm887, %v871
        %893 = vst.msk [vmem:[%s886 + $0x14] sm:$0xf] %vm887, %v872
        %894 = vst.msk [vmem:[%s886 + $0x18] sm:$0xf] %vm887, %v873
        %895 = vst.msk [vmem:[%s886 + $0x1c] sm:$0xf] %vm887, %v874
        %896 = vst.msk [vmem:[%s886 + $0x20] sm:$0xf] %vm887, %v875
        %897 = vst.msk [vmem:[%s886 + $0x24] sm:$0xf] %vm887, %v876
        %898 = vst.msk [vmem:[%s886 + $0x28] sm:$0xf] %vm887, %v877
        %899 = vst.msk [vmem:[%s886 + $0x2c] sm:$0xf] %vm887, %v878
        %900 = vst.msk [vmem:[%s886 + $0x30] sm:$0xf] %vm887, %v879
        %901 = vst.msk [vmem:[%s886 + $0x34] sm:$0xf] %vm887, %v880
        %902 = vst.msk [vmem:[%s886 + $0x38] sm:$0xf] %vm887, %v881
        %903 = vst.msk [vmem:[%s886 + $0x3c] sm:$0xf] %vm887, %v882
      $region37: #{emotion_net_forward.4} parent=31 // loop_footer
        %s177 = sadd.s32 1, %s173
      $region38: #{emotion_net_forward.4} parent=31 // loop_footer_branch
        %172 = sbr.rel target = $region34
      $region39: #{emotion_net_forward.4} parent=31 // loop_exit
        _
      %p904 = scmp.lt.s32.totalorder %s14, 1
      %s905 = scalar_select %p904, %s14, 1
      %s906 = smul.addr %s905, 128
      %s907 = smul.addr %s906, 4
      %s908 = scalar_lea.vmem %s3, %s907
      // Predicated region
      $region40: #{emotion_net_forward.4} parent=31 // pred_check
        %p909 = pneg %p100
      $region41: #{emotion_net_forward.4} parent=31 // pred_check_branch
        %911 = sbr.rel (%p909) target = $region43
      $region42: #{emotion_net_forward.4} parent=31 // pred_region
        _
      $region43: #{emotion_net_forward.4} parent=31 // pred_fallthru
        _
    $region32: #{emotion_net_forward.4} parent=5 // pred_fallthru
      _
    %p912 = scmp.le.s32.totalorder 2, %s9
    // Predicated region
    $region44: #{emotion_net_forward.4} parent=5 // pred_check
      %p913 = pneg %p912
    $region45: #{emotion_net_forward.4} parent=5 // pred_check_branch
      %915 = sbr.rel (%p913) target = $region47
    $region46: #{emotion_net_forward.4} parent=5 // pred_region
      %s916 = ssub.s32 %s9, 2
      // Predicated region
      $region48: #{emotion_net_forward.4} parent=46 // pred_check
        %p917 = pneg %p106
      $region49: #{emotion_net_forward.4} parent=46 // pred_check_branch
        %919 = sbr.rel (%p917) target = $region51
      $region50: #{emotion_net_forward.4} parent=46 // pred_region
        %p920 = scmp.lt.s32.totalorder %s15, 1
        %s921 = scalar_select %p920, %s15, 1
        %s922 = smul.addr %s921, 128
        %s923 = smul.addr %s922, 4
        %s924 = scalar_lea.vmem %s3, %s923
      $region51: #{emotion_net_forward.4} parent=46 // pred_fallthru
        _
    $region47: #{emotion_net_forward.4} parent=5 // pred_fallthru
      _
  $region6: #{emotion_net_forward.4} parent=0 // loop_footer
    %s13 = sadd.s32 1, %s9
  $region7: #{emotion_net_forward.4} parent=0 // loop_footer_branch
    %8 = sbr.rel target = $region3
  $region8: #{emotion_net_forward.4} parent=0 // loop_exit
    _

// kernel: emotion_net_forward.5
$region0: #{emotion_net_forward.5}
  #allocation0 [shape = 'u32[]', space=smem, size = 0x4, offset = 0x4, fixed_abs, tag = 'smem constant byte address 0x4 - core index']
  #allocation1 [shape = 'u32[72,128]{1,0:T(1,128)}', space=vmem, size = 0x9000, scoped, tag = 'internal scratch']
  #allocation2 [shape = 'f32[128,64]{1,0:T(8,128)}', space=vmem, size = 0x10000, scoped, tag = 'scratch operand']
  %s0 = inlined_call_operand.vmem [shape: bf16[2,34,32,96], index: 0, kind: input, shape index: {}]
  %s1 = inlined_call_operand.vmem [shape: bf16[3,96,64], index: 1, kind: input, shape index: {}]
  %s2 = inlined_call_operand.vmem [shape: f32[1,64], index: 2, kind: input, shape index: {}]
  %s3 = inlined_call_operand.vmem [shape: bf16[2,16,16,64], index: 3, kind: output, shape index: {}]
  %s4 = sld [smem:[#allocation0]]
  $region52: #{emotion_net_forward.5} parent=0
    _
  %s6 = ssub.s32 1, %s4
  %s7 = scalar_select 0, %s6, %s4
  loop: start=0, step=1, limit=4
  $region2: #{emotion_net_forward.5} parent=0 // loop_pre_header
    _
  $region3: #{emotion_net_forward.5} parent=0 // loop_header
    %s9 = sphi 0, %s13
    %p10 = scmp.ge.s32.totalorder %s9, 4
    %s19 = sphi 0, %s21
    %s22 = sphi 0, %s19
    %s23 = sphi 0, %s22
    %s39 = sphi 0, %s23
    %s43 = sphi 0, %s43
    %s45 = sphi 0, %s43
    %s46 = sphi 0, %s45
    %s60 = sphi 0, %s46
    %s64 = sphi 0, %s64
    %s66 = sphi 0, %s64
    %s67 = sphi 0, %s66
    %s81 = sphi 0, %s67
    %s87 = sphi 0, %s89
    %s90 = sphi 0, %s87
    %s91 = sphi 0, %s90
    %s107 = sphi 0, %s91
  $region4: #{emotion_net_forward.5} parent=0 // loop_header_branch
    %12 = sbr.rel (%p10) target = $region8
  $region5: #{emotion_net_forward.5} parent=0 // loop_body
    %s14 = ssub.s32 %s9, 1
    %s15 = ssub.s32 %s9, 2
    %s16 = sadd.s32 %s9, 1
    %s17 = ssub.s32 %s9, %s16
    %p18 = scmp.eq.s32.totalorder %s17, 0
    %s20 = sadd.s32 %s19, 1
    %s21 = scalar_select %p18, %s19, %s20
    %p24 = pneg %p18
    %p25 = scmp.eq.s32.totalorder %s9, 1
    %p26 = por %p24, %p25
    %p27 = scmp.ne.s32.totalorder %s19, %s22
    %p28 = scmp.eq.s32.totalorder %s9, 0
    %p29 = por %p27, %p28
    %p30 = scmp.ne.s32.totalorder %s19, %s22
    %p31 = scmp.eq.s32.totalorder %s14, 1
    %p32 = por %p30, %p31
    %p33 = scmp.ne.s32.totalorder %s22, %s23
    %p34 = scmp.eq.s32.totalorder %s14, 0
    %p35 = por %p33, %p34
    %p36 = scmp.ne.s32.totalorder %s22, %s23
    %p37 = scmp.eq.s32.totalorder %s15, 1
    %p38 = por %p36, %p37
    %p40 = scmp.ne.s32.totalorder %s23, %s39
    %p41 = scmp.eq.s32.totalorder %s15, 0
    %p42 = por %p40, %p41
    %s44 = sadd.s32 %s43, 1
    %p47 = scmp.eq.s32.totalorder %s9, 1
    %p48 = scmp.ne.s32.totalorder %s43, %s45
    %p49 = scmp.eq.s32.totalorder %s9, 0
    %p50 = por %p48, %p49
    %p51 = scmp.ne.s32.totalorder %s43, %s45
    %p52 = scmp.eq.s32.totalorder %s14, 1
    %p53 = por %p51, %p52
    %p54 = scmp.ne.s32.totalorder %s45, %s46
    %p55 = scmp.eq.s32.totalorder %s14, 0
    %p56 = por %p54, %p55
    %p57 = scmp.ne.s32.totalorder %s45, %s46
    %p58 = scmp.eq.s32.totalorder %s15, 1
    %p59 = por %p57, %p58
    %p61 = scmp.ne.s32.totalorder %s46, %s60
    %p62 = scmp.eq.s32.totalorder %s15, 0
    %p63 = por %p61, %p62
    %s65 = sadd.s32 %s64, 1
    %p68 = scmp.eq.s32.totalorder %s9, 1
    %p69 = scmp.ne.s32.totalorder %s64, %s66
    %p70 = scmp.eq.s32.totalorder %s9, 0
    %p71 = por %p69, %p70
    %p72 = scmp.ne.s32.totalorder %s64, %s66
    %p73 = scmp.eq.s32.totalorder %s14, 1
    %p74 = por %p72, %p73
    %p75 = scmp.ne.s32.totalorder %s66, %s67
    %p76 = scmp.eq.s32.totalorder %s14, 0
    %p77 = por %p75, %p76
    %p78 = scmp.ne.s32.totalorder %s66, %s67
    %p79 = scmp.eq.s32.totalorder %s15, 1
    %p80 = por %p78, %p79
    %p82 = scmp.ne.s32.totalorder %s67, %s81
    %p83 = scmp.eq.s32.totalorder %s15, 0
    %p84 = por %p82, %p83
    %s85 = ssub.s32 %s9, %s16
    %p86 = scmp.eq.s32.totalorder %s85, 0
    %s88 = sadd.s32 %s87, 1
    %s89 = scalar_select %p86, %s87, %s88
    %p92 = pneg %p86
    %p93 = scmp.eq.s32.totalorder %s9, 1
    %p94 = por %p92, %p93
    %p95 = scmp.ne.s32.totalorder %s87, %s90
    %p96 = scmp.eq.s32.totalorder %s9, 0
    %p97 = por %p95, %p96
    %p98 = scmp.ne.s32.totalorder %s87, %s90
    %p99 = scmp.eq.s32.totalorder %s14, 1
    %p100 = por %p98, %p99
    %p101 = scmp.ne.s32.totalorder %s90, %s91
    %p102 = scmp.eq.s32.totalorder %s14, 0
    %p103 = por %p101, %p102
    %p104 = scmp.ne.s32.totalorder %s90, %s91
    %p105 = scmp.eq.s32.totalorder %s15, 1
    %p106 = por %p104, %p105
    %p108 = scmp.ne.s32.totalorder %s91, %s107
    %p109 = scmp.eq.s32.totalorder %s15, 0
    %p110 = por %p108, %p109
    %p111 = scmp.le.s32.totalorder 1, %s9
    %p112 = scmp.lt.s32.totalorder %s9, 3
    %p113 = pnand %p111, %p112
    %p114 = pneg %p113
    // Predicated region
    $region9: #{emotion_net_forward.5} parent=5 // pred_check
      _
    $region10: #{emotion_net_forward.5} parent=5 // pred_check_branch
      %116 = sbr.rel (%p113) target = $region12
    $region11: #{emotion_net_forward.5} parent=5 // pred_region
      %s117 = ssub.s32 %s9, 1
      // Predicated region
      $region13: #{emotion_net_forward.5} parent=11 // pred_check
        %p118 = pneg %p56
      $region14: #{emotion_net_forward.5} parent=11 // pred_check_branch
        %120 = sbr.rel (%p118) target = $region16
      $region15: #{emotion_net_forward.5} parent=11 // pred_region
        _
      $region16: #{emotion_net_forward.5} parent=11 // pred_fallthru
        _
      // Predicated region
      $region17: #{emotion_net_forward.5} parent=11 // pred_check
        %p121 = pneg %p77
      $region18: #{emotion_net_forward.5} parent=11 // pred_check_branch
        %123 = sbr.rel (%p121) target = $region20
      $region19: #{emotion_net_forward.5} parent=11 // pred_region
        _
      $region20: #{emotion_net_forward.5} parent=11 // pred_fallthru
        _
    $region12: #{emotion_net_forward.5} parent=5 // pred_fallthru
      _
    %p124 = scmp.lt.s32.totalorder %s9, 2
    // Predicated region
    $region21: #{emotion_net_forward.5} parent=5 // pred_check
      %p125 = pneg %p124
    $region22: #{emotion_net_forward.5} parent=5 // pred_check_branch
      %127 = sbr.rel (%p125) target = $region24
    $region23: #{emotion_net_forward.5} parent=5 // pred_region
      // Predicated region
      $region25: #{emotion_net_forward.5} parent=23 // pred_check
        %p128 = pneg %p29
      $region26: #{emotion_net_forward.5} parent=23 // pred_check_branch
        %130 = sbr.rel (%p128) target = $region28
      $region27: #{emotion_net_forward.5} parent=23 // pred_region
        %p131 = scmp.lt.s32.totalorder %s9, 1
        %s132 = scalar_select %p131, %s9, 1
        %s133 = smul.addr %s132, 136
        %s134 = smul.addr %s133, 4
        %s135 = scalar_lea.vmem %s0, %s134
      $region28: #{emotion_net_forward.5} parent=23 // pred_fallthru
        _
    $region24: #{emotion_net_forward.5} parent=5 // pred_fallthru
      _
    %p136 = scmp.le.s32.totalorder 1, %s9
    %p137 = scmp.lt.s32.totalorder %s9, 3
    %p138 = pnand %p136, %p137
    %p139 = pneg %p138
    // Predicated region
    $region29: #{emotion_net_forward.5} parent=5 // pred_check
      _
    $region30: #{emotion_net_forward.5} parent=5 // pred_check_branch
      %141 = sbr.rel (%p138) target = $region32
    $region31: #{emotion_net_forward.5} parent=5 // pred_region
      %s142 = ssub.s32 %s9, 1
      %p143 = scmp.lt.s32.totalorder %s14, 1
      %s144 = scalar_select %p143, %s14, 1
      %s145 = smul.addr %s144, 136
      %s146 = smul.addr %s145, 4
      %s147 = scalar_lea.vmem %s0, %s146
      %p148 = pneg %p35
      %p149 = pneg %p32
      %p150 = pneg %p56
      %p151 = pneg %p53
      %p152 = pneg %p77
      %p153 = pneg %p74
      %p154 = pneg %p103
      %p155 = pneg %p100
      %p156 = scmp.lt.s32.totalorder %s14, 1
      %s157 = scalar_select %p156, %s14, 1
      %s158 = smul.addr %s157, 32
      %s159 = smul.addr %s158, 4
      %s160 = scalar_lea.vmem %s3, %s159
      %p161 = scmp.lt.s32.totalorder %s14, 1
      %s162 = scalar_select %p161, %s14, 1
      %s163 = smul.addr %s162, 136
      %s164 = smul.addr %s163, 4
      %s165 = scalar_lea.vmem %s0, %s164
      %p166 = scmp.lt.s32.totalorder %s14, 1
      %s167 = scalar_select %p166, %s14, 1
      %s168 = smul.addr %s167, 32
      %s169 = smul.addr %s168, 4
      %s170 = scalar_lea.vmem %s3, %s169
      loop: start=0, step=1, limit=4
      $region33: #{emotion_net_forward.5} parent=31 // loop_pre_header
        _
      $region34: #{emotion_net_forward.5} parent=31 // loop_header
        %s173 = sphi 0, %s177
        %p174 = scmp.ge.s32.totalorder %s173, 4
      $region35: #{emotion_net_forward.5} parent=31 // loop_header_branch
        %176 = sbr.rel (%p174) target = $region39
      $region36: #{emotion_net_forward.5} parent=31 // loop_body
        %s178 = smul.u32 %s173, 8
        %s179 = smul.u32 %s178, 4
        %s180 = smul.addr %s179, 4
        %s181 = scalar_lea.vmem %s165, %s180
        %v182 = vld [vmem:[%s181] sm:$0xf]
        %v183 = vld [vmem:[%s181 + $0x4] sm:$0xf]
        %v184 = vld [vmem:[%s181 + $0x8] sm:$0xf]
        %v185 = vld [vmem:[%s181 + $0xc] sm:$0xf]
        %v186 = vld [vmem:[%s181 + $0x10] sm:$0xf]
        %v187 = vld [vmem:[%s181 + $0x14] sm:$0xf]
        %v188 = vld [vmem:[%s181 + $0x18] sm:$0xf]
        %v189 = vld [vmem:[%s181 + $0x1c] sm:$0xf]
        %v190 = vld [vmem:[%s181 + $0x20] sm:$0xf]
        %v191 = vld [vmem:[%s181 + $0x24] sm:$0xf]
        %v192 = vld [vmem:[%s181 + $0x28] sm:$0xf]
        %v193 = vld [vmem:[%s181 + $0x2c] sm:$0xf]
        %v194 = vld [vmem:[%s181 + $0x30] sm:$0xf]
        %v195 = vld [vmem:[%s181 + $0x34] sm:$0xf]
        %v196 = vld [vmem:[%s181 + $0x38] sm:$0xf]
        %v197 = vld [vmem:[%s181 + $0x3c] sm:$0xf]
        %v198 = vld [vmem:[%s181 + $0x40] sm:$0xf]
        %v199 = vld [vmem:[%s181 + $0x44] sm:$0xf]
        %v200 = vld [vmem:[%s181 + $0x48] sm:$0xf]
        %v201 = vld [vmem:[%s181 + $0x4c] sm:$0xf]
        %v202 = vld [vmem:[%s181 + $0x50] sm:$0xf]
        %v203 = vld [vmem:[%s181 + $0x54] sm:$0xf]
        %v204 = vld [vmem:[%s181 + $0x58] sm:$0xf]
        %v205 = vld [vmem:[%s181 + $0x5c] sm:$0xf]
        %v206 = vld [vmem:[%s181 + $0x60] sm:$0xf]
        %v207 = vld [vmem:[%s181 + $0x64] sm:$0xf]
        %v208 = vld [vmem:[%s181 + $0x68] sm:$0xf]
        %v209 = vld [vmem:[%s181 + $0x6c] sm:$0xf]
        %v210 = vld [vmem:[%s181 + $0x70] sm:$0xf]
        %v211 = vld [vmem:[%s181 + $0x74] sm:$0xf]
        %v212 = vld [vmem:[%s181 + $0x78] sm:$0xf]
        %v213 = vld [vmem:[%s181 + $0x7c] sm:$0xf]
        %v214 = vld [vmem:[%s1] sm:$0xf]
        %v215 = vld [vmem:[%s1 + $0x4] sm:$0xf]
        %v216 = vld [vmem:[%s1 + $0x8] sm:$0xf]
        %v217 = vld [vmem:[%s1 + $0xc] sm:$0xf]
        %v218 = vld [vmem:[%s1 + $0x10] sm:$0xf]
        %v219 = vld [vmem:[%s1 + $0x14] sm:$0xf]
        %v220 = vld [vmem:[%s1 + $0x18] sm:$0xf]
        %v221 = vld [vmem:[%s1 + $0x1c] sm:$0xf]
        %v222 = vld [vmem:[%s1 + $0x20] sm:$0xf]
        %v223 = vld [vmem:[%s1 + $0x24] sm:$0xf]
        %v224 = vld [vmem:[%s1 + $0x28] sm:$0xf]
        %v225 = vld [vmem:[%s1 + $0x2c] sm:$0xf]
        %s226 = sadd.s32 %s178, 1
        %s227 = smul.u32 %s226, 4
        %s228 = smul.addr %s227, 4
        %s229 = scalar_lea.vmem %s165, %s228
        %v230 = vld [vmem:[%s229] sm:$0xf]
        %v231 = vld [vmem:[%s229 + $0x4] sm:$0xf]
        %v232 = vld [vmem:[%s229 + $0x8] sm:$0xf]
        %v233 = vld [vmem:[%s229 + $0xc] sm:$0xf]
        %v234 = vld [vmem:[%s229 + $0x10] sm:$0xf]
        %v235 = vld [vmem:[%s229 + $0x14] sm:$0xf]
        %v236 = vld [vmem:[%s229 + $0x18] sm:$0xf]
        %v237 = vld [vmem:[%s229 + $0x1c] sm:$0xf]
        %v238 = vld [vmem:[%s229 + $0x20] sm:$0xf]
        %v239 = vld [vmem:[%s229 + $0x24] sm:$0xf]
        %v240 = vld [vmem:[%s229 + $0x28] sm:$0xf]
        %v241 = vld [vmem:[%s229 + $0x2c] sm:$0xf]
        %v242 = vld [vmem:[%s229 + $0x30] sm:$0xf]
        %v243 = vld [vmem:[%s229 + $0x34] sm:$0xf]
        %v244 = vld [vmem:[%s229 + $0x38] sm:$0xf]
        %v245 = vld [vmem:[%s229 + $0x3c] sm:$0xf]
        %v246 = vld [vmem:[%s229 + $0x40] sm:$0xf]
        %v247 = vld [vmem:[%s229 + $0x44] sm:$0xf]
        %v248 = vld [vmem:[%s229 + $0x48] sm:$0xf]
        %v249 = vld [vmem:[%s229 + $0x4c] sm:$0xf]
        %v250 = vld [vmem:[%s229 + $0x50] sm:$0xf]
        %v251 = vld [vmem:[%s229 + $0x54] sm:$0xf]
        %v252 = vld [vmem:[%s229 + $0x58] sm:$0xf]
        %v253 = vld [vmem:[%s229 + $0x5c] sm:$0xf]
        %v254 = vld [vmem:[%s229 + $0x60] sm:$0xf]
        %v255 = vld [vmem:[%s229 + $0x64] sm:$0xf]
        %v256 = vld [vmem:[%s229 + $0x68] sm:$0xf]
        %v257 = vld [vmem:[%s229 + $0x6c] sm:$0xf]
        %v258 = vld [vmem:[%s229 + $0x70] sm:$0xf]
        %v259 = vld [vmem:[%s229 + $0x74] sm:$0xf]
        %v260 = vld [vmem:[%s229 + $0x78] sm:$0xf]
        %v261 = vld [vmem:[%s229 + $0x7c] sm:$0xf]
        %s262 = scalar_lea.vmem %s1, 48
        %v263 = vld [vmem:[%s262] sm:$0xf]
        %v264 = vld [vmem:[%s262 + $0x4] sm:$0xf]
        %v265 = vld [vmem:[%s262 + $0x8] sm:$0xf]
        %v266 = vld [vmem:[%s262 + $0xc] sm:$0xf]
        %v267 = vld [vmem:[%s262 + $0x10] sm:$0xf]
        %v268 = vld [vmem:[%s262 + $0x14] sm:$0xf]
        %v269 = vld [vmem:[%s262 + $0x18] sm:$0xf]
        %v270 = vld [vmem:[%s262 + $0x1c] sm:$0xf]
        %v271 = vld [vmem:[%s262 + $0x20] sm:$0xf]
        %v272 = vld [vmem:[%s262 + $0x24] sm:$0xf]
        %v273 = vld [vmem:[%s262 + $0x28] sm:$0xf]
        %v274 = vld [vmem:[%s262 + $0x2c] sm:$0xf]
        %v307 = vunpack.c.l.b16 %v230
        %v308 = vunpack.c.l.b16 %v231
        %v309 = vunpack.c.l.b16 %v232
        %v310 = vunpack.c.l.b16 %v233
        %v311 = vunpack.c.l.b16 %v234
        %v312 = vunpack.c.l.b16 %v235
        %v313 = vunpack.c.l.b16 %v236
        %v314 = vunpack.c.l.b16 %v237
        %v315 = vunpack.c.l.b16 %v238
        %v316 = vunpack.c.l.b16 %v239
        %v317 = vunpack.c.l.b16 %v240
        %v318 = vunpack.c.l.b16 %v241
        %v319 = vunpack.c.l.b16 %v242
        %v320 = vunpack.c.l.b16 %v243
        %v321 = vunpack.c.l.b16 %v244
        %v322 = vunpack.c.l.b16 %v245
        %v323 = vunpack.c.l.b16 %v246
        %v324 = vunpack.c.l.b16 %v247
        %v325 = vunpack.c.l.b16 %v248
        %v326 = vunpack.c.l.b16 %v249
        %v327 = vunpack.c.l.b16 %v250
        %v328 = vunpack.c.l.b16 %v251
        %v329 = vunpack.c.l.b16 %v252
        %v330 = vunpack.c.l.b16 %v253
        %v331 = vunpack.c.l.b16 %v254
        %v332 = vunpack.c.l.b16 %v255
        %v333 = vunpack.c.l.b16 %v256
        %v334 = vunpack.c.l.b16 %v257
        %v335 = vunpack.c.l.b16 %v258
        %v336 = vunpack.c.l.b16 %v259
        %v337 = vunpack.c.l.b16 %v260
        %v338 = vunpack.c.l.b16 %v261
        %v339 = vpack.c.b16 %v308, %v307
        %v340 = vpack.c.b16 %v310, %v309
        %v341 = vpack.c.b16 %v312, %v311
        %v342 = vpack.c.b16 %v314, %v313
        %v343 = vpack.c.b16 %v316, %v315
        %v344 = vpack.c.b16 %v318, %v317
        %v345 = vpack.c.b16 %v320, %v319
        %v346 = vpack.c.b16 %v322, %v321
        %v347 = vpack.c.b16 %v324, %v323
        %v348 = vpack.c.b16 %v326, %v325
        %v349 = vpack.c.b16 %v328, %v327
        %v350 = vpack.c.b16 %v330, %v329
        %v351 = vpack.c.b16 %v332, %v331
        %v352 = vpack.c.b16 %v334, %v333
        %v353 = vpack.c.b16 %v336, %v335
        %v354 = vpack.c.b16 %v338, %v337
        %v367 = vunpack.c.l.b16 %v263
        %v368 = vunpack.c.l.b16 %v264
        %v369 = vunpack.c.l.b16 %v265
        %v370 = vunpack.c.l.b16 %v266
        %v371 = vunpack.c.l.b16 %v267
        %v372 = vunpack.c.l.b16 %v268
        %v373 = vunpack.c.l.b16 %v269
        %v374 = vunpack.c.l.b16 %v270
        %v375 = vunpack.c.l.b16 %v271
        %v376 = vunpack.c.l.b16 %v272
        %v377 = vunpack.c.l.b16 %v273
        %v378 = vunpack.c.l.b16 %v274
        %v379 = vpack.c.b16 %v368, %v367
        %v380 = vpack.c.b16 %v370, %v369
        %v381 = vpack.c.b16 %v372, %v371
        %v382 = vpack.c.b16 %v374, %v373
        %v383 = vpack.c.b16 %v376, %v375
        %v384 = vpack.c.b16 %v378, %v377
        %vm391 = vcmask 785408
        %v393 = vsel %vm391, %v339, 0
        %v396 = vsel %vm391, %v340, 0
        %v399 = vsel %vm391, %v341, 0
        %v402 = vsel %vm391, %v342, 0
        %v405 = vsel %vm391, %v343, 0
        %v408 = vsel %vm391, %v344, 0
        %v411 = vsel %vm391, %v345, 0
        %v414 = vsel %vm391, %v346, 0
        %v417 = vsel %vm391, %v347, 0
        %v420 = vsel %vm391, %v348, 0
        %v423 = vsel %vm391, %v349, 0
        %v426 = vsel %vm391, %v350, 0
        %v429 = vsel %vm391, %v351, 0
        %v432 = vsel %vm391, %v352, 0
        %v435 = vsel %vm391, %v353, 0
        %v438 = vsel %vm391, %v354, 0
        %440 = vmatpush.bf16.msra.mxu0 0
        %441 = vmatpush.bf16.msra.mxu0 0
        %442 = vmatpush.bf16.msra.mxu0 %v384
        %443 = vmatpush.bf16.msra.mxu0 %v383
        %444 = vmatpush.bf16.msra.mxu0 %v382
        %445 = vmatpush.bf16.msra.mxu0 %v381
        %446 = vmatpush.bf16.msra.mxu0 %v380
        %447 = vmatpush.bf16.msra.mxu0 %v379
        %448 = vmatmul.bf16.gmra.mxu0 %v393
        %v449 = vpop.f32.mrf.mxu0
        %v450 = vadd.f32 0.0, %v449
        %v451 = vpop.f32.mrf.mxu0
        %v452 = vadd.f32 0.0, %v451
        %453 = vmatmul.bf16.gmra.mxu0 %v396
        %v454 = vpop.f32.mrf.mxu0
        %v455 = vadd.f32 0.0, %v454
        %v456 = vpop.f32.mrf.mxu0
        %v457 = vadd.f32 0.0, %v456
        %458 = vmatmul.bf16.gmra.mxu0 %v399
        %v459 = vpop.f32.mrf.mxu0
        %v460 = vadd.f32 0.0, %v459
        %v461 = vpop.f32.mrf.mxu0
        %v462 = vadd.f32 0.0, %v461
        %463 = vmatmul.bf16.gmra.mxu0 %v402
        %v464 = vpop.f32.mrf.mxu0
        %v465 = vadd.f32 0.0, %v464
        %v466 = vpop.f32.mrf.mxu0
        %v467 = vadd.f32 0.0, %v466
        %468 = vmatmul.bf16.gmra.mxu0 %v405
        %v469 = vpop.f32.mrf.mxu0
        %v470 = vadd.f32 0.0, %v469
        %v471 = vpop.f32.mrf.mxu0
        %v472 = vadd.f32 0.0, %v471
        %473 = vmatmul.bf16.gmra.mxu0 %v408
        %v474 = vpop.f32.mrf.mxu0
        %v475 = vadd.f32 0.0, %v474
        %v476 = vpop.f32.mrf.mxu0
        %v477 = vadd.f32 0.0, %v476
        %478 = vmatmul.bf16.gmra.mxu0 %v411
        %v479 = vpop.f32.mrf.mxu0
        %v480 = vadd.f32 0.0, %v479
        %v481 = vpop.f32.mrf.mxu0
        %v482 = vadd.f32 0.0, %v481
        %483 = vmatmul.bf16.gmra.mxu0 %v414
        %v484 = vpop.f32.mrf.mxu0
        %v485 = vadd.f32 0.0, %v484
        %v486 = vpop.f32.mrf.mxu0
        %v487 = vadd.f32 0.0, %v486
        %488 = vmatmul.bf16.gmra.mxu0 %v417
        %v489 = vpop.f32.mrf.mxu0
        %v490 = vadd.f32 0.0, %v489
        %v491 = vpop.f32.mrf.mxu0
        %v492 = vadd.f32 0.0, %v491
        %493 = vmatmul.bf16.gmra.mxu0 %v420
        %v494 = vpop.f32.mrf.mxu0
        %v495 = vadd.f32 0.0, %v494
        %v496 = vpop.f32.mrf.mxu0
        %v497 = vadd.f32 0.0, %v496
        %498 = vmatmul.bf16.gmra.mxu0 %v423
        %v499 = vpop.f32.mrf.mxu0
        %v500 = vadd.f32 0.0, %v499
        %v501 = vpop.f32.mrf.mxu0
        %v502 = vadd.f32 0.0, %v501
        %503 = vmatmul.bf16.gmra.mxu0 %v426
        %v504 = vpop.f32.mrf.mxu0
        %v505 = vadd.f32 0.0, %v504
        %v506 = vpop.f32.mrf.mxu0
        %v507 = vadd.f32 0.0, %v506
        %508 = vmatmul.bf16.gmra.mxu0 %v429
        %v509 = vpop.f32.mrf.mxu0
        %v510 = vadd.f32 0.0, %v509
        %v511 = vpop.f32.mrf.mxu0
        %v512 = vadd.f32 0.0, %v511
        %513 = vmatmul.bf16.gmra.mxu0 %v432
        %v514 = vpop.f32.mrf.mxu0
        %v515 = vadd.f32 0.0, %v514
        %v516 = vpop.f32.mrf.mxu0
        %v517 = vadd.f32 0.0, %v516
        %518 = vmatmul.bf16.gmra.mxu0 %v435
        %v519 = vpop.f32.mrf.mxu0
        %v520 = vadd.f32 0.0, %v519
        %v521 = vpop.f32.mrf.mxu0
        %v522 = vadd.f32 0.0, %v521
        %523 = vmatmul.bf16.gmra.mxu0 %v438
        %v524 = vpop.f32.mrf.mxu0
        %v525 = vadd.f32 0.0, %v524
        %v526 = vpop.f32.mrf.mxu0
        %v527 = vadd.f32 0.0, %v526
        %528 = vdwg.mxu0
        %v561 = vunpack.c.l.b16 %v182
        %v562 = vunpack.c.l.b16 %v183
        %v563 = vunpack.c.l.b16 %v184
        %v564 = vunpack.c.l.b16 %v185
        %v565 = vunpack.c.l.b16 %v186
        %v566 = vunpack.c.l.b16 %v187
        %v567 = vunpack.c.l.b16 %v188
        %v568 = vunpack.c.l.b16 %v189
        %v569 = vunpack.c.l.b16 %v190
        %v570 = vunpack.c.l.b16 %v191
        %v571 = vunpack.c.l.b16 %v192
        %v572 = vunpack.c.l.b16 %v193
        %v573 = vunpack.c.l.b16 %v194
        %v574 = vunpack.c.l.b16 %v195
        %v575 = vunpack.c.l.b16 %v196
        %v576 = vunpack.c.l.b16 %v197
        %v577 = vunpack.c.l.b16 %v198
        %v578 = vunpack.c.l.b16 %v199
        %v579 = vunpack.c.l.b16 %v200
        %v580 = vunpack.c.l.b16 %v201
        %v581 = vunpack.c.l.b16 %v202
        %v582 = vunpack.c.l.b16 %v203
        %v583 = vunpack.c.l.b16 %v204
        %v584 = vunpack.c.l.b16 %v205
        %v585 = vunpack.c.l.b16 %v206
        %v586 = vunpack.c.l.b16 %v207
        %v587 = vunpack.c.l.b16 %v208
        %v588 = vunpack.c.l.b16 %v209
        %v589 = vunpack.c.l.b16 %v210
        %v590 = vunpack.c.l.b16 %v211
        %v591 = vunpack.c.l.b16 %v212
        %v592 = vunpack.c.l.b16 %v213
        %v593 = vpack.c.b16 %v562, %v561
        %v594 = vpack.c.b16 %v564, %v563
        %v595 = vpack.c.b16 %v566, %v565
        %v596 = vpack.c.b16 %v568, %v567
        %v597 = vpack.c.b16 %v570, %v569
        %v598 = vpack.c.b16 %v572, %v571
        %v599 = vpack.c.b16 %v574, %v573
        %v600 = vpack.c.b16 %v576, %v575
        %v601 = vpack.c.b16 %v578, %v577
        %v602 = vpack.c.b16 %v580, %v579
        %v603 = vpack.c.b16 %v582, %v581
        %v604 = vpack.c.b16 %v584, %v583
        %v605 = vpack.c.b16 %v586, %v585
        %v606 = vpack.c.b16 %v588, %v587
        %v607 = vpack.c.b16 %v590, %v589
        %v608 = vpack.c.b16 %v592, %v591
        %v621 = vunpack.c.l.b16 %v214
        %v622 = vunpack.c.l.b16 %v215
        %v623 = vunpack.c.l.b16 %v216
        %v624 = vunpack.c.l.b16 %v217
        %v625 = vunpack.c.l.b16 %v218
        %v626 = vunpack.c.l.b16 %v219
        %v627 = vunpack.c.l.b16 %v220
        %v628 = vunpack.c.l.b16 %v221
        %v629 = vunpack.c.l.b16 %v222
        %v630 = vunpack.c.l.b16 %v223
        %v631 = vunpack.c.l.b16 %v224
        %v632 = vunpack.c.l.b16 %v225
        %v633 = vpack.c.b16 %v622, %v621
        %v634 = vpack.c.b16 %v624, %v623
        %v635 = vpack.c.b16 %v626, %v625
        %v636 = vpack.c.b16 %v628, %v627
        %v637 = vpack.c.b16 %v630, %v629
        %v638 = vpack.c.b16 %v632, %v631
        %v646 = vsel %vm391, %v593, 0
        %v649 = vsel %vm391, %v594, 0
        %v652 = vsel %vm391, %v595, 0
        %v655 = vsel %vm391, %v596, 0
        %v658 = vsel %vm391, %v597, 0
        %v661 = vsel %vm391, %v598, 0
        %v664 = vsel %vm391, %v599, 0
        %v667 = vsel %vm391, %v600, 0
        %v670 = vsel %vm391, %v601, 0
        %v673 = vsel %vm391, %v602, 0
        %v676 = vsel %vm391, %v603, 0
        %v679 = vsel %vm391, %v604, 0
        %v682 = vsel %vm391, %v605, 0
        %v685 = vsel %vm391, %v606, 0
        %v688 = vsel %vm391, %v607, 0
        %v691 = vsel %vm391, %v608, 0
        %693 = vmatpush.bf16.msra.mxu0 0
        %694 = vmatpush.bf16.msra.mxu0 0
        %695 = vmatpush.bf16.msra.mxu0 %v638
        %696 = vmatpush.bf16.msra.mxu0 %v637
        %697 = vmatpush.bf16.msra.mxu0 %v636
        %698 = vmatpush.bf16.msra.mxu0 %v635
        %699 = vmatpush.bf16.msra.mxu0 %v634
        %700 = vmatpush.bf16.msra.mxu0 %v633
        %701 = vmatmul.bf16.gmra.mxu0 %v646
        %v702 = vpop.f32.mrf.mxu0
        %v703 = vadd.f32 %v450, %v702
        %v704 = vpop.f32.mrf.mxu0
        %v705 = vadd.f32 %v452, %v704
        %706 = vmatmul.bf16.gmra.mxu0 %v649
        %v707 = vpop.f32.mrf.mxu0
        %v708 = vadd.f32 %v455, %v707
        %v709 = vpop.f32.mrf.mxu0
        %v710 = vadd.f32 %v457, %v709
        %711 = vmatmul.bf16.gmra.mxu0 %v652
        %v712 = vpop.f32.mrf.mxu0
        %v713 = vadd.f32 %v460, %v712
        %v714 = vpop.f32.mrf.mxu0
        %v715 = vadd.f32 %v462, %v714
        %716 = vmatmul.bf16.gmra.mxu0 %v655
        %v717 = vpop.f32.mrf.mxu0
        %v718 = vadd.f32 %v465, %v717
        %v719 = vpop.f32.mrf.mxu0
        %v720 = vadd.f32 %v467, %v719
        %721 = vmatmul.bf16.gmra.mxu0 %v658
        %v722 = vpop.f32.mrf.mxu0
        %v723 = vadd.f32 %v470, %v722
        %v724 = vpop.f32.mrf.mxu0
        %v725 = vadd.f32 %v472, %v724
        %726 = vmatmul.bf16.gmra.mxu0 %v661
        %v727 = vpop.f32.mrf.mxu0
        %v728 = vadd.f32 %v475, %v727
        %v729 = vpop.f32.mrf.mxu0
        %v730 = vadd.f32 %v477, %v729
        %731 = vmatmul.bf16.gmra.mxu0 %v664
        %v732 = vpop.f32.mrf.mxu0
        %v733 = vadd.f32 %v480, %v732
        %v734 = vpop.f32.mrf.mxu0
        %v735 = vadd.f32 %v482, %v734
        %736 = vmatmul.bf16.gmra.mxu0 %v667
        %v737 = vpop.f32.mrf.mxu0
        %v738 = vadd.f32 %v485, %v737
        %v739 = vpop.f32.mrf.mxu0
        %v740 = vadd.f32 %v487, %v739
        %741 = vmatmul.bf16.gmra.mxu0 %v670
        %v742 = vpop.f32.mrf.mxu0
        %v743 = vadd.f32 %v490, %v742
        %v744 = vpop.f32.mrf.mxu0
        %v745 = vadd.f32 %v492, %v744
        %746 = vmatmul.bf16.gmra.mxu0 %v673
        %v747 = vpop.f32.mrf.mxu0
        %v748 = vadd.f32 %v495, %v747
        %v749 = vpop.f32.mrf.mxu0
        %v750 = vadd.f32 %v497, %v749
        %751 = vmatmul.bf16.gmra.mxu0 %v676
        %v752 = vpop.f32.mrf.mxu0
        %v753 = vadd.f32 %v500, %v752
        %v754 = vpop.f32.mrf.mxu0
        %v755 = vadd.f32 %v502, %v754
        %756 = vmatmul.bf16.gmra.mxu0 %v679
        %v757 = vpop.f32.mrf.mxu0
        %v758 = vadd.f32 %v505, %v757
        %v759 = vpop.f32.mrf.mxu0
        %v760 = vadd.f32 %v507, %v759
        %761 = vmatmul.bf16.gmra.mxu0 %v682
        %v762 = vpop.f32.mrf.mxu0
        %v763 = vadd.f32 %v510, %v762
        %v764 = vpop.f32.mrf.mxu0
        %v765 = vadd.f32 %v512, %v764
        %766 = vmatmul.bf16.gmra.mxu0 %v685
        %v767 = vpop.f32.mrf.mxu0
        %v768 = vadd.f32 %v515, %v767
        %v769 = vpop.f32.mrf.mxu0
        %v770 = vadd.f32 %v517, %v769
        %771 = vmatmul.bf16.gmra.mxu0 %v688
        %v772 = vpop.f32.mrf.mxu0
        %v773 = vadd.f32 %v520, %v772
        %v774 = vpop.f32.mrf.mxu0
        %v775 = vadd.f32 %v522, %v774
        %776 = vmatmul.bf16.gmra.mxu0 %v691
        %v777 = vpop.f32.mrf.mxu0
        %v778 = vadd.f32 %v525, %v777
        %v779 = vpop.f32.mrf.mxu0
        %v780 = vadd.f32 %v527, %v779
        %781 = vdwg.mxu0
        %s782 = sadd.s32 %s178, 2
        %s783 = smul.u32 %s782, 4
        %s784 = smul.addr %s783, 4
        %s785 = scalar_lea.vmem %s165, %s784
        %v786 = vld [vmem:[%s785] sm:$0xf]
        %v787 = vld [vmem:[%s785 + $0x4] sm:$0xf]
        %v788 = vld [vmem:[%s785 + $0x8] sm:$0xf]
        %v789 = vld [vmem:[%s785 + $0xc] sm:$0xf]
        %v790 = vld [vmem:[%s785 + $0x10] sm:$0xf]
        %v791 = vld [vmem:[%s785 + $0x14] sm:$0xf]
        %v792 = vld [vmem:[%s785 + $0x18] sm:$0xf]
        %v793 = vld [vmem:[%s785 + $0x1c] sm:$0xf]
        %v794 = vld [vmem:[%s785 + $0x20] sm:$0xf]
        %v795 = vld [vmem:[%s785 + $0x24] sm:$0xf]
        %v796 = vld [vmem:[%s785 + $0x28] sm:$0xf]
        %v797 = vld [vmem:[%s785 + $0x2c] sm:$0xf]
        %v798 = vld [vmem:[%s785 + $0x30] sm:$0xf]
        %v799 = vld [vmem:[%s785 + $0x34] sm:$0xf]
        %v800 = vld [vmem:[%s785 + $0x38] sm:$0xf]
        %v801 = vld [vmem:[%s785 + $0x3c] sm:$0xf]
        %v802 = vld [vmem:[%s785 + $0x40] sm:$0xf]
        %v803 = vld [vmem:[%s785 + $0x44] sm:$0xf]
        %v804 = vld [vmem:[%s785 + $0x48] sm:$0xf]
        %v805 = vld [vmem:[%s785 + $0x4c] sm:$0xf]
        %v806 = vld [vmem:[%s785 + $0x50] sm:$0xf]
        %v807 = vld [vmem:[%s785 + $0x54] sm:$0xf]
        %v808 = vld [vmem:[%s785 + $0x58] sm:$0xf]
        %v809 = vld [vmem:[%s785 + $0x5c] sm:$0xf]
        %v810 = vld [vmem:[%s785 + $0x60] sm:$0xf]
        %v811 = vld [vmem:[%s785 + $0x64] sm:$0xf]
        %v812 = vld [vmem:[%s785 + $0x68] sm:$0xf]
        %v813 = vld [vmem:[%s785 + $0x6c] sm:$0xf]
        %v814 = vld [vmem:[%s785 + $0x70] sm:$0xf]
        %v815 = vld [vmem:[%s785 + $0x74] sm:$0xf]
        %v816 = vld [vmem:[%s785 + $0x78] sm:$0xf]
        %v817 = vld [vmem:[%s785 + $0x7c] sm:$0xf]
        %s818 = scalar_lea.vmem %s1, 96
        %v819 = vld [vmem:[%s818] sm:$0xf]
        %v820 = vld [vmem:[%s818 + $0x4] sm:$0xf]
        %v821 = vld [vmem:[%s818 + $0x8] sm:$0xf]
        %v822 = vld [vmem:[%s818 + $0xc] sm:$0xf]
        %v823 = vld [vmem:[%s818 + $0x10] sm:$0xf]
        %v824 = vld [vmem:[%s818 + $0x14] sm:$0xf]
        %v825 = vld [vmem:[%s818 + $0x18] sm:$0xf]
        %v826 = vld [vmem:[%s818 + $0x1c] sm:$0xf]
        %v827 = vld [vmem:[%s818 + $0x20] sm:$0xf]
        %v828 = vld [vmem:[%s818 + $0x24] sm:$0xf]
        %v829 = vld [vmem:[%s818 + $0x28] sm:$0xf]
        %v830 = vld [vmem:[%s818 + $0x2c] sm:$0xf]
        %v863 = vunpack.c.l.b16 %v786
        %v864 = vunpack.c.l.b16 %v787
        %v865 = vunpack.c.l.b16 %v788
        %v866 = vunpack.c.l.b16 %v789
        %v867 = vunpack.c.l.b16 %v790
        %v868 = vunpack.c.l.b16 %v791
        %v869 = vunpack.c.l.b16 %v792
        %v870 = vunpack.c.l.b16 %v793
        %v871 = vunpack.c.l.b16 %v794
        %v872 = vunpack.c.l.b16 %v795
        %v873 = vunpack.c.l.b16 %v796
        %v874 = vunpack.c.l.b16 %v797
        %v875 = vunpack.c.l.b16 %v798
        %v876 = vunpack.c.l.b16 %v799
        %v877 = vunpack.c.l.b16 %v800
        %v878 = vunpack.c.l.b16 %v801
        %v879 = vunpack.c.l.b16 %v802
        %v880 = vunpack.c.l.b16 %v803
        %v881 = vunpack.c.l.b16 %v804
        %v882 = vunpack.c.l.b16 %v805
        %v883 = vunpack.c.l.b16 %v806
        %v884 = vunpack.c.l.b16 %v807
        %v885 = vunpack.c.l.b16 %v808
        %v886 = vunpack.c.l.b16 %v809
        %v887 = vunpack.c.l.b16 %v810
        %v888 = vunpack.c.l.b16 %v811
        %v889 = vunpack.c.l.b16 %v812
        %v890 = vunpack.c.l.b16 %v813
        %v891 = vunpack.c.l.b16 %v814
        %v892 = vunpack.c.l.b16 %v815
        %v893 = vunpack.c.l.b16 %v816
        %v894 = vunpack.c.l.b16 %v817
        %v895 = vpack.c.b16 %v864, %v863
        %v896 = vpack.c.b16 %v866, %v865
        %v897 = vpack.c.b16 %v868, %v867
        %v898 = vpack.c.b16 %v870, %v869
        %v899 = vpack.c.b16 %v872, %v871
        %v900 = vpack.c.b16 %v874, %v873
        %v901 = vpack.c.b16 %v876, %v875
        %v902 = vpack.c.b16 %v878, %v877
        %v903 = vpack.c.b16 %v880, %v879
        %v904 = vpack.c.b16 %v882, %v881
        %v905 = vpack.c.b16 %v884, %v883
        %v906 = vpack.c.b16 %v886, %v885
        %v907 = vpack.c.b16 %v888, %v887
        %v908 = vpack.c.b16 %v890, %v889
        %v909 = vpack.c.b16 %v892, %v891
        %v910 = vpack.c.b16 %v894, %v893
        %v923 = vunpack.c.l.b16 %v819
        %v924 = vunpack.c.l.b16 %v820
        %v925 = vunpack.c.l.b16 %v821
        %v926 = vunpack.c.l.b16 %v822
        %v927 = vunpack.c.l.b16 %v823
        %v928 = vunpack.c.l.b16 %v824
        %v929 = vunpack.c.l.b16 %v825
        %v930 = vunpack.c.l.b16 %v826
        %v931 = vunpack.c.l.b16 %v827
        %v932 = vunpack.c.l.b16 %v828
        %v933 = vunpack.c.l.b16 %v829
        %v934 = vunpack.c.l.b16 %v830
        %v935 = vpack.c.b16 %v924, %v923
        %v936 = vpack.c.b16 %v926, %v925
        %v937 = vpack.c.b16 %v928, %v927
        %v938 = vpack.c.b16 %v930, %v929
        %v939 = vpack.c.b16 %v932, %v931
        %v940 = vpack.c.b16 %v934, %v933
        %v948 = vsel %vm391, %v895, 0
        %v951 = vsel %vm391, %v896, 0
        %v954 = vsel %vm391, %v897, 0
        %v957 = vsel %vm391, %v898, 0
        %v960 = vsel %vm391, %v899, 0
        %v963 = vsel %vm391, %v900, 0
        %v966 = vsel %vm391, %v901, 0
        %v969 = vsel %vm391, %v902, 0
        %v972 = vsel %vm391, %v903, 0
        %v975 = vsel %vm391, %v904, 0
        %v978 = vsel %vm391, %v905, 0
        %v981 = vsel %vm391, %v906, 0
        %v984 = vsel %vm391, %v907, 0
        %v987 = vsel %vm391, %v908, 0
        %v990 = vsel %vm391, %v909, 0
        %v993 = vsel %vm391, %v910, 0
        %995 = vmatpush.bf16.msra.mxu0 0
        %996 = vmatpush.bf16.msra.mxu0 0
        %997 = vmatpush.bf16.msra.mxu0 %v940
        %998 = vmatpush.bf16.msra.mxu0 %v939
        %999 = vmatpush.bf16.msra.mxu0 %v938
        %1000 = vmatpush.bf16.msra.mxu0 %v937
        %1001 = vmatpush.bf16.msra.mxu0 %v936
        %1002 = vmatpush.bf16.msra.mxu0 %v935
        %1003 = vmatmul.bf16.gmra.mxu0 %v948
        %v1004 = vpop.f32.mrf.mxu0
        %v1005 = vadd.f32 0.0, %v1004
        %v1006 = vpop.f32.mrf.mxu0
        %v1007 = vadd.f32 0.0, %v1006
        %1008 = vmatmul.bf16.gmra.mxu0 %v951
        %v1009 = vpop.f32.mrf.mxu0
        %v1010 = vadd.f32 0.0, %v1009
        %v1011 = vpop.f32.mrf.mxu0
        %v1012 = vadd.f32 0.0, %v1011
        %1013 = vmatmul.bf16.gmra.mxu0 %v954
        %v1014 = vpop.f32.mrf.mxu0
        %v1015 = vadd.f32 0.0, %v1014
        %v1016 = vpop.f32.mrf.mxu0
        %v1017 = vadd.f32 0.0, %v1016
        %1018 = vmatmul.bf16.gmra.mxu0 %v957
        %v1019 = vpop.f32.mrf.mxu0
        %v1020 = vadd.f32 0.0, %v1019
        %v1021 = vpop.f32.mrf.mxu0
        %v1022 = vadd.f32 0.0, %v1021
        %1023 = vmatmul.bf16.gmra.mxu0 %v960
        %v1024 = vpop.f32.mrf.mxu0
        %v1025 = vadd.f32 0.0, %v1024
        %v1026 = vpop.f32.mrf.mxu0
        %v1027 = vadd.f32 0.0, %v1026
        %1028 = vmatmul.bf16.gmra.mxu0 %v963
        %v1029 = vpop.f32.mrf.mxu0
        %v1030 = vadd.f32 0.0, %v1029
        %v1031 = vpop.f32.mrf.mxu0
        %v1032 = vadd.f32 0.0, %v1031
        %1033 = vmatmul.bf16.gmra.mxu0 %v966
        %v1034 = vpop.f32.mrf.mxu0
        %v1035 = vadd.f32 0.0, %v1034
        %v1036 = vpop.f32.mrf.mxu0
        %v1037 = vadd.f32 0.0, %v1036
        %1038 = vmatmul.bf16.gmra.mxu0 %v969
        %v1039 = vpop.f32.mrf.mxu0
        %v1040 = vadd.f32 0.0, %v1039
        %v1041 = vpop.f32.mrf.mxu0
        %v1042 = vadd.f32 0.0, %v1041
        %1043 = vmatmul.bf16.gmra.mxu0 %v972
        %v1044 = vpop.f32.mrf.mxu0
        %v1045 = vadd.f32 0.0, %v1044
        %v1046 = vpop.f32.mrf.mxu0
        %v1047 = vadd.f32 0.0, %v1046
        %1048 = vmatmul.bf16.gmra.mxu0 %v975
        %v1049 = vpop.f32.mrf.mxu0
        %v1050 = vadd.f32 0.0, %v1049
        %v1051 = vpop.f32.mrf.mxu0
        %v1052 = vadd.f32 0.0, %v1051
        %1053 = vmatmul.bf16.gmra.mxu0 %v978
        %v1054 = vpop.f32.mrf.mxu0
        %v1055 = vadd.f32 0.0, %v1054
        %v1056 = vpop.f32.mrf.mxu0
        %v1057 = vadd.f32 0.0, %v1056
        %1058 = vmatmul.bf16.gmra.mxu0 %v981
        %v1059 = vpop.f32.mrf.mxu0
        %v1060 = vadd.f32 0.0, %v1059
        %v1061 = vpop.f32.mrf.mxu0
        %v1062 = vadd.f32 0.0, %v1061
        %1063 = vmatmul.bf16.gmra.mxu0 %v984
        %v1064 = vpop.f32.mrf.mxu0
        %v1065 = vadd.f32 0.0, %v1064
        %v1066 = vpop.f32.mrf.mxu0
        %v1067 = vadd.f32 0.0, %v1066
        %1068 = vmatmul.bf16.gmra.mxu0 %v987
        %v1069 = vpop.f32.mrf.mxu0
        %v1070 = vadd.f32 0.0, %v1069
        %v1071 = vpop.f32.mrf.mxu0
        %v1072 = vadd.f32 0.0, %v1071
        %1073 = vmatmul.bf16.gmra.mxu0 %v990
        %v1074 = vpop.f32.mrf.mxu0
        %v1075 = vadd.f32 0.0, %v1074
        %v1076 = vpop.f32.mrf.mxu0
        %v1077 = vadd.f32 0.0, %v1076
        %1078 = vmatmul.bf16.gmra.mxu0 %v993
        %v1079 = vpop.f32.mrf.mxu0
        %v1080 = vadd.f32 0.0, %v1079
        %v1081 = vpop.f32.mrf.mxu0
        %v1082 = vadd.f32 0.0, %v1081
        %1083 = vdwg.mxu0
        %v1084 = vadd.f32 %v703, %v1005
        %v1085 = vadd.f32 %v705, %v1007
        %v1086 = vadd.f32 %v708, %v1010
        %v1087 = vadd.f32 %v710, %v1012
        %v1088 = vadd.f32 %v713, %v1015
        %v1089 = vadd.f32 %v715, %v1017
        %v1090 = vadd.f32 %v718, %v1020
        %v1091 = vadd.f32 %v720, %v1022
        %v1092 = vadd.f32 %v723, %v1025
        %v1093 = vadd.f32 %v725, %v1027
        %v1094 = vadd.f32 %v728, %v1030
        %v1095 = vadd.f32 %v730, %v1032
        %v1096 = vadd.f32 %v733, %v1035
        %v1097 = vadd.f32 %v735, %v1037
        %v1098 = vadd.f32 %v738, %v1040
        %v1099 = vadd.f32 %v740, %v1042
        %v1100 = vadd.f32 %v743, %v1045
        %v1101 = vadd.f32 %v745, %v1047
        %v1102 = vadd.f32 %v748, %v1050
        %v1103 = vadd.f32 %v750, %v1052
        %v1104 = vadd.f32 %v753, %v1055
        %v1105 = vadd.f32 %v755, %v1057
        %v1106 = vadd.f32 %v758, %v1060
        %v1107 = vadd.f32 %v760, %v1062
        %v1108 = vadd.f32 %v763, %v1065
        %v1109 = vadd.f32 %v765, %v1067
        %v1110 = vadd.f32 %v768, %v1070
        %v1111 = vadd.f32 %v770, %v1072
        %v1112 = vadd.f32 %v773, %v1075
        %v1113 = vadd.f32 %v775, %v1077
        %v1114 = vadd.f32 %v778, %v1080
        %v1115 = vadd.f32 %v780, %v1082
        %v1116 = vmax.f32 %v1084, %v1088
        %v1117 = vmax.f32 %v1085, %v1089
        %v1118 = vmax.f32 %v1086, %v1090
        %v1119 = vmax.f32 %v1087, %v1091
        %v1120 = vmax.f32 %v1092, %v1096
        %v1121 = vmax.f32 %v1093, %v1097
        %v1122 = vmax.f32 %v1094, %v1098
        %v1123 = vmax.f32 %v1095, %v1099
        %v1124 = vmax.f32 %v1100, %v1104
        %v1125 = vmax.f32 %v1101, %v1105
        %v1126 = vmax.f32 %v1102, %v1106
        %v1127 = vmax.f32 %v1103, %v1107
        %v1128 = vmax.f32 %v1108, %v1112
        %v1129 = vmax.f32 %v1109, %v1113
        %v1130 = vmax.f32 %v1110, %v1114
        %v1131 = vmax.f32 %v1111, %v1115
        %vm1132 = vcmask 523264
        %1133 = vst.msk [vmem:[#allocation2] sm:$0xff] %vm1132, %v1116
        %1134 = vst.msk [vmem:[#allocation2 + $0x8] sm:$0xff] %vm1132, %v1117
        %1135 = vst.msk [vmem:[#allocation2 + $0x10] sm:$0xff] %vm1132, %v1118
        %1136 = vst.msk [vmem:[#allocation2 + $0x18] sm:$0xff] %vm1132, %v1119
        %1137 = vst.msk [vmem:[#allocation2 + $0x20] sm:$0xff] %vm1132, %v1120
        %1138 = vst.msk [vmem:[#allocation2 + $0x28] sm:$0xff] %vm1132, %v1121
        %1139 = vst.msk [vmem:[#allocation2 + $0x30] sm:$0xff] %vm1132, %v1122
        %1140 = vst.msk [vmem:[#allocation2 + $0x38] sm:$0xff] %vm1132, %v1123
        %1141 = vst.msk [vmem:[#allocation2 + $0x40] sm:$0xff] %vm1132, %v1124
        %1142 = vst.msk [vmem:[#allocation2 + $0x48] sm:$0xff] %vm1132, %v1125
        %1143 = vst.msk [vmem:[#allocation2 + $0x50] sm:$0xff] %vm1132, %v1126
        %1144 = vst.msk [vmem:[#allocation2 + $0x58] sm:$0xff] %vm1132, %v1127
        %1145 = vst.msk [vmem:[#allocation2 + $0x60] sm:$0xff] %vm1132, %v1128
        %1146 = vst.msk [vmem:[#allocation2 + $0x68] sm:$0xff] %vm1132, %v1129
        %1147 = vst.msk [vmem:[#allocation2 + $0x70] sm:$0xff] %vm1132, %v1130
        %1148 = vst.msk [vmem:[#allocation2 + $0x78] sm:$0xff] %vm1132, %v1131
        %v1149 = vld [vmem:[#allocation2] ss:$2 sm:$0xff]
        %s1150 = scalar_lea.vmem [#allocation2], 16
        %v1151 = vld [vmem:[%s1150] ss:$2 sm:$0xff]
        %s1152 = scalar_lea.vmem [#allocation2], 32
        %v1153 = vld [vmem:[%s1152] ss:$2 sm:$0xff]
        %s1154 = scalar_lea.vmem [#allocation2], 48
        %v1155 = vld [vmem:[%s1154] ss:$2 sm:$0xff]
        %s1156 = scalar_lea.vmem [#allocation2], 64
        %v1157 = vld [vmem:[%s1156] ss:$2 sm:$0xff]
        %s1158 = scalar_lea.vmem [#allocation2], 80
        %v1159 = vld [vmem:[%s1158] ss:$2 sm:$0xff]
        %s1160 = scalar_lea.vmem [#allocation2], 96
        %v1161 = vld [vmem:[%s1160] ss:$2 sm:$0xff]
        %s1162 = scalar_lea.vmem [#allocation2], 112
        %v1163 = vld [vmem:[%s1162] ss:$2 sm:$0xff]
        %s1164 = scalar_lea.vmem [#allocation2], 1
        %v1165 = vld [vmem:[%s1164] ss:$2 sm:$0xff]
        %s1166 = scalar_lea.vmem [#allocation2], 17
        %v1167 = vld [vmem:[%s1166] ss:$2 sm:$0xff]
        %s1168 = scalar_lea.vmem [#allocation2], 33
        %v1169 = vld [vmem:[%s1168] ss:$2 sm:$0xff]
        %s1170 = scalar_lea.vmem [#allocation2], 49
        %v1171 = vld [vmem:[%s1170] ss:$2 sm:$0xff]
        %s1172 = scalar_lea.vmem [#allocation2], 65
        %v1173 = vld [vmem:[%s1172] ss:$2 sm:$0xff]
        %s1174 = scalar_lea.vmem [#allocation2], 81
        %v1175 = vld [vmem:[%s1174] ss:$2 sm:$0xff]
        %s1176 = scalar_lea.vmem [#allocation2], 97
        %v1177 = vld [vmem:[%s1176] ss:$2 sm:$0xff]
        %s1178 = scalar_lea.vmem [#allocation2], 113
        %v1179 = vld [vmem:[%s1178] ss:$2 sm:$0xff]
        %v1180 = vmax.f32 %v1149, %v1165
        %v1181 = vmax.f32 %v1151, %v1167
        %v1182 = vmax.f32 %v1153, %v1169
        %v1183 = vmax.f32 %v1155, %v1171
        %v1184 = vmax.f32 %v1157, %v1173
        %v1185 = vmax.f32 %v1159, %v1175
        %v1186 = vmax.f32 %v1161, %v1177
        %v1187 = vmax.f32 %v1163, %v1179
        %v1188 = vld [vmem:[%s2] sm:$0x1]
        %v1190 = vperm.slane %v1188, 0
        %v1192 = vadd.f32 %v1180, %v1190
        %v1193 = vadd.f32 %v1181, %v1190
        %v1194 = vadd.f32 %v1182, %v1190
        %v1195 = vadd.f32 %v1183, %v1190
        %v1196 = vadd.f32 %v1184, %v1190
        %v1197 = vadd.f32 %v1185, %v1190
        %v1198 = vadd.f32 %v1186, %v1190
        %v1199 = vadd.f32 %v1187, %v1190
        %v1200 = vmax.f32 %v1192, 0.0
        %v1201 = vmax.f32 %v1193, 0.0
        %v1202 = vmax.f32 %v1194, 0.0
        %v1203 = vmax.f32 %v1195, 0.0
        %v1204 = vmax.f32 %v1196, 0.0
        %v1205 = vmax.f32 %v1197, 0.0
        %v1206 = vmax.f32 %v1198, 0.0
        %v1207 = vmax.f32 %v1199, 0.0
        %v1208 = vpack.c.bf16 %v1200, %v1200
        %v1209 = vpack.c.bf16 %v1201, %v1201
        %v1210 = vpack.c.bf16 %v1202, %v1202
        %v1211 = vpack.c.bf16 %v1203, %v1203
        %v1212 = vpack.c.bf16 %v1204, %v1204
        %v1213 = vpack.c.bf16 %v1205, %v1205
        %v1214 = vpack.c.bf16 %v1206, %v1206
        %v1215 = vpack.c.bf16 %v1207, %v1207
        %s1216 = smul.u32 %s173, 4
        %s1217 = smul.u32 %s1216, 2
        %s1218 = smul.addr %s1217, 4
        %s1219 = scalar_lea.vmem %s170, %s1218
        %vm1220 = vcmask 519168
        %1221 = vst.msk [vmem:[%s1219] sm:$0xf] %vm1220, %v1208
        %1222 = vst.msk [vmem:[%s1219 + $0x4] sm:$0xf] %vm1220, %v1209
        %1223 = vst.msk [vmem:[%s1219 + $0x8] sm:$0xf] %vm1220, %v1210
        %1224 = vst.msk [vmem:[%s1219 + $0xc] sm:$0xf] %vm1220, %v1211
        %1225 = vst.msk [vmem:[%s1219 + $0x10] sm:$0xf] %vm1220, %v1212
        %1226 = vst.msk [vmem:[%s1219 + $0x14] sm:$0xf] %vm1220, %v1213
        %1227 = vst.msk [vmem:[%s1219 + $0x18] sm:$0xf] %vm1220, %v1214
        %1228 = vst.msk [vmem:[%s1219 + $0x1c] sm:$0xf] %vm1220, %v1215
      $region37: #{emotion_net_forward.5} parent=31 // loop_footer
        %s177 = sadd.s32 1, %s173
      $region38: #{emotion_net_forward.5} parent=31 // loop_footer_branch
        %172 = sbr.rel target = $region34
      $region39: #{emotion_net_forward.5} parent=31 // loop_exit
        _
      %p1229 = scmp.lt.s32.totalorder %s14, 1
      %s1230 = scalar_select %p1229, %s14, 1
      %s1231 = smul.addr %s1230, 32
      %s1232 = smul.addr %s1231, 4
      %s1233 = scalar_lea.vmem %s3, %s1232
      // Predicated region
      $region40: #{emotion_net_forward.5} parent=31 // pred_check
        %p1234 = pneg %p100
      $region41: #{emotion_net_forward.5} parent=31 // pred_check_branch
        %1236 = sbr.rel (%p1234) target = $region43
      $region42: #{emotion_net_forward.5} parent=31 // pred_region
        _
      $region43: #{emotion_net_forward.5} parent=31 // pred_fallthru
        _
    $region32: #{emotion_net_forward.5} parent=5 // pred_fallthru
      _
    %p1237 = scmp.le.s32.totalorder 2, %s9
    // Predicated region
    $region44: #{emotion_net_forward.5} parent=5 // pred_check
      %p1238 = pneg %p1237
    $region45: #{emotion_net_forward.5} parent=5 // pred_check_branch
      %1240 = sbr.rel (%p1238) target = $region47
    $region46: #{emotion_net_forward.5} parent=5 // pred_region
      %s1241 = ssub.s32 %s9, 2
      // Predicated region
      $region48: #{emotion_net_forward.5} parent=46 // pred_check
        %p1242 = pneg %p106
      $region49: #{emotion_net_forward.5} parent=46 // pred_check_branch
        %1244 = sbr.rel (%p1242) target = $region51
      $region50: #{emotion_net_forward.5} parent=46 // pred_region
        %p1245 = scmp.lt.s32.totalorder %s15, 1
        %s1246 = scalar_select %p1245, %s15, 1
        %s1247 = smul.addr %s1246, 32
        %s1248 = smul.addr %s1247, 4
        %s1249 = scalar_lea.vmem %s3, %s1248
      $region51: #{emotion_net_forward.5} parent=46 // pred_fallthru
        _
    $region47: #{emotion_net_forward.5} parent=5 // pred_fallthru
      _
  $region6: #{emotion_net_forward.5} parent=0 // loop_footer
    %s13 = sadd.s32 1, %s9
  $region7: #{emotion_net_forward.5} parent=0 // loop_footer_branch
    %8 = sbr.rel target = $region3
  $region8: #{emotion_net_forward.5} parent=0 // loop_exit
    _

// kernel: emotion_net_forward.6
$region0: #{emotion_net_forward.6}
  #allocation0 [shape = 'u32[]', space=smem, size = 0x4, offset = 0x4, fixed_abs, tag = 'smem constant byte address 0x4 - core index']
  #allocation1 [shape = 'u32[72,128]{1,0:T(1,128)}', space=vmem, size = 0x9000, scoped, tag = 'internal scratch']
  #allocation2 [shape = 'f32[64,128]{1,0:T(8,128)}', space=vmem, size = 0x8000, scoped, tag = 'scratch operand']
  %s0 = inlined_call_operand.vmem [shape: bf16[2,18,16,192], index: 0, kind: input, shape index: {}]
  %s1 = inlined_call_operand.vmem [shape: bf16[3,192,128], index: 1, kind: input, shape index: {}]
  %s2 = inlined_call_operand.vmem [shape: f32[1,128], index: 2, kind: input, shape index: {}]
  %s3 = inlined_call_operand.vmem [shape: bf16[2,8,8,128], index: 3, kind: output, shape index: {}]
  %s4 = sld [smem:[#allocation0]]
  $region52: #{emotion_net_forward.6} parent=0
    _
  %s6 = ssub.s32 1, %s4
  %s7 = scalar_select 0, %s6, %s4
  loop: start=0, step=1, limit=4
  $region2: #{emotion_net_forward.6} parent=0 // loop_pre_header
    _
  $region3: #{emotion_net_forward.6} parent=0 // loop_header
    %s9 = sphi 0, %s13
    %p10 = scmp.ge.s32.totalorder %s9, 4
    %s19 = sphi 0, %s21
    %s22 = sphi 0, %s19
    %s23 = sphi 0, %s22
    %s39 = sphi 0, %s23
    %s43 = sphi 0, %s43
    %s45 = sphi 0, %s43
    %s46 = sphi 0, %s45
    %s60 = sphi 0, %s46
    %s64 = sphi 0, %s64
    %s66 = sphi 0, %s64
    %s67 = sphi 0, %s66
    %s81 = sphi 0, %s67
    %s87 = sphi 0, %s89
    %s90 = sphi 0, %s87
    %s91 = sphi 0, %s90
    %s107 = sphi 0, %s91
  $region4: #{emotion_net_forward.6} parent=0 // loop_header_branch
    %12 = sbr.rel (%p10) target = $region8
  $region5: #{emotion_net_forward.6} parent=0 // loop_body
    %s14 = ssub.s32 %s9, 1
    %s15 = ssub.s32 %s9, 2
    %s16 = sadd.s32 %s9, 1
    %s17 = ssub.s32 %s9, %s16
    %p18 = scmp.eq.s32.totalorder %s17, 0
    %s20 = sadd.s32 %s19, 1
    %s21 = scalar_select %p18, %s19, %s20
    %p24 = pneg %p18
    %p25 = scmp.eq.s32.totalorder %s9, 1
    %p26 = por %p24, %p25
    %p27 = scmp.ne.s32.totalorder %s19, %s22
    %p28 = scmp.eq.s32.totalorder %s9, 0
    %p29 = por %p27, %p28
    %p30 = scmp.ne.s32.totalorder %s19, %s22
    %p31 = scmp.eq.s32.totalorder %s14, 1
    %p32 = por %p30, %p31
    %p33 = scmp.ne.s32.totalorder %s22, %s23
    %p34 = scmp.eq.s32.totalorder %s14, 0
    %p35 = por %p33, %p34
    %p36 = scmp.ne.s32.totalorder %s22, %s23
    %p37 = scmp.eq.s32.totalorder %s15, 1
    %p38 = por %p36, %p37
    %p40 = scmp.ne.s32.totalorder %s23, %s39
    %p41 = scmp.eq.s32.totalorder %s15, 0
    %p42 = por %p40, %p41
    %s44 = sadd.s32 %s43, 1
    %p47 = scmp.eq.s32.totalorder %s9, 1
    %p48 = scmp.ne.s32.totalorder %s43, %s45
    %p49 = scmp.eq.s32.totalorder %s9, 0
    %p50 = por %p48, %p49
    %p51 = scmp.ne.s32.totalorder %s43, %s45
    %p52 = scmp.eq.s32.totalorder %s14, 1
    %p53 = por %p51, %p52
    %p54 = scmp.ne.s32.totalorder %s45, %s46
    %p55 = scmp.eq.s32.totalorder %s14, 0
    %p56 = por %p54, %p55
    %p57 = scmp.ne.s32.totalorder %s45, %s46
    %p58 = scmp.eq.s32.totalorder %s15, 1
    %p59 = por %p57, %p58
    %p61 = scmp.ne.s32.totalorder %s46, %s60
    %p62 = scmp.eq.s32.totalorder %s15, 0
    %p63 = por %p61, %p62
    %s65 = sadd.s32 %s64, 1
    %p68 = scmp.eq.s32.totalorder %s9, 1
    %p69 = scmp.ne.s32.totalorder %s64, %s66
    %p70 = scmp.eq.s32.totalorder %s9, 0
    %p71 = por %p69, %p70
    %p72 = scmp.ne.s32.totalorder %s64, %s66
    %p73 = scmp.eq.s32.totalorder %s14, 1
    %p74 = por %p72, %p73
    %p75 = scmp.ne.s32.totalorder %s66, %s67
    %p76 = scmp.eq.s32.totalorder %s14, 0
    %p77 = por %p75, %p76
    %p78 = scmp.ne.s32.totalorder %s66, %s67
    %p79 = scmp.eq.s32.totalorder %s15, 1
    %p80 = por %p78, %p79
    %p82 = scmp.ne.s32.totalorder %s67, %s81
    %p83 = scmp.eq.s32.totalorder %s15, 0
    %p84 = por %p82, %p83
    %s85 = ssub.s32 %s9, %s16
    %p86 = scmp.eq.s32.totalorder %s85, 0
    %s88 = sadd.s32 %s87, 1
    %s89 = scalar_select %p86, %s87, %s88
    %p92 = pneg %p86
    %p93 = scmp.eq.s32.totalorder %s9, 1
    %p94 = por %p92, %p93
    %p95 = scmp.ne.s32.totalorder %s87, %s90
    %p96 = scmp.eq.s32.totalorder %s9, 0
    %p97 = por %p95, %p96
    %p98 = scmp.ne.s32.totalorder %s87, %s90
    %p99 = scmp.eq.s32.totalorder %s14, 1
    %p100 = por %p98, %p99
    %p101 = scmp.ne.s32.totalorder %s90, %s91
    %p102 = scmp.eq.s32.totalorder %s14, 0
    %p103 = por %p101, %p102
    %p104 = scmp.ne.s32.totalorder %s90, %s91
    %p105 = scmp.eq.s32.totalorder %s15, 1
    %p106 = por %p104, %p105
    %p108 = scmp.ne.s32.totalorder %s91, %s107
    %p109 = scmp.eq.s32.totalorder %s15, 0
    %p110 = por %p108, %p109
    %p111 = scmp.le.s32.totalorder 1, %s9
    %p112 = scmp.lt.s32.totalorder %s9, 3
    %p113 = pnand %p111, %p112
    %p114 = pneg %p113
    // Predicated region
    $region9: #{emotion_net_forward.6} parent=5 // pred_check
      _
    $region10: #{emotion_net_forward.6} parent=5 // pred_check_branch
      %116 = sbr.rel (%p113) target = $region12
    $region11: #{emotion_net_forward.6} parent=5 // pred_region
      %s117 = ssub.s32 %s9, 1
      // Predicated region
      $region13: #{emotion_net_forward.6} parent=11 // pred_check
        %p118 = pneg %p56
      $region14: #{emotion_net_forward.6} parent=11 // pred_check_branch
        %120 = sbr.rel (%p118) target = $region16
      $region15: #{emotion_net_forward.6} parent=11 // pred_region
        _
      $region16: #{emotion_net_forward.6} parent=11 // pred_fallthru
        _
      // Predicated region
      $region17: #{emotion_net_forward.6} parent=11 // pred_check
        %p121 = pneg %p77
      $region18: #{emotion_net_forward.6} parent=11 // pred_check_branch
        %123 = sbr.rel (%p121) target = $region20
      $region19: #{emotion_net_forward.6} parent=11 // pred_region
        _
      $region20: #{emotion_net_forward.6} parent=11 // pred_fallthru
        _
    $region12: #{emotion_net_forward.6} parent=5 // pred_fallthru
      _
    %p124 = scmp.lt.s32.totalorder %s9, 2
    // Predicated region
    $region21: #{emotion_net_forward.6} parent=5 // pred_check
      %p125 = pneg %p124
    $region22: #{emotion_net_forward.6} parent=5 // pred_check_branch
      %127 = sbr.rel (%p125) target = $region24
    $region23: #{emotion_net_forward.6} parent=5 // pred_region
      // Predicated region
      $region25: #{emotion_net_forward.6} parent=23 // pred_check
        %p128 = pneg %p29
      $region26: #{emotion_net_forward.6} parent=23 // pred_check_branch
        %130 = sbr.rel (%p128) target = $region28
      $region27: #{emotion_net_forward.6} parent=23 // pred_region
        %p131 = scmp.lt.s32.totalorder %s9, 1
        %s132 = scalar_select %p131, %s9, 1
        %s133 = smul.addr %s132, 72
        %s134 = smul.addr %s133, 4
        %s135 = scalar_lea.vmem %s0, %s134
      $region28: #{emotion_net_forward.6} parent=23 // pred_fallthru
        _
    $region24: #{emotion_net_forward.6} parent=5 // pred_fallthru
      _
    %p136 = scmp.le.s32.totalorder 1, %s9
    %p137 = scmp.lt.s32.totalorder %s9, 3
    %p138 = pnand %p136, %p137
    %p139 = pneg %p138
    // Predicated region
    $region29: #{emotion_net_forward.6} parent=5 // pred_check
      _
    $region30: #{emotion_net_forward.6} parent=5 // pred_check_branch
      %141 = sbr.rel (%p138) target = $region32
    $region31: #{emotion_net_forward.6} parent=5 // pred_region
      %s142 = ssub.s32 %s9, 1
      %p143 = scmp.lt.s32.totalorder %s14, 1
      %s144 = scalar_select %p143, %s14, 1
      %s145 = smul.addr %s144, 72
      %s146 = smul.addr %s145, 4
      %s147 = scalar_lea.vmem %s0, %s146
      %p148 = pneg %p35
      %p149 = pneg %p32
      %p150 = pneg %p56
      %p151 = pneg %p53
      %p152 = pneg %p77
      %p153 = pneg %p74
      %p154 = pneg %p103
      %p155 = pneg %p100
      %p156 = scmp.lt.s32.totalorder %s14, 1
      %s157 = scalar_select %p156, %s14, 1
      %s158 = smul.addr %s157, 8
      %s159 = smul.addr %s158, 4
      %s160 = scalar_lea.vmem %s3, %s159
      %p161 = scmp.lt.s32.totalorder %s14, 1
      %s162 = scalar_select %p161, %s14, 1
      %s163 = smul.addr %s162, 72
      %s164 = smul.addr %s163, 4
      %s165 = scalar_lea.vmem %s0, %s164
      %p166 = scmp.lt.s32.totalorder %s14, 1
      %s167 = scalar_select %p166, %s14, 1
      %s168 = smul.addr %s167, 8
      %s169 = smul.addr %s168, 4
      %s170 = scalar_lea.vmem %s3, %s169
      loop: start=0, step=1, limit=2
      $region33: #{emotion_net_forward.6} parent=31 // loop_pre_header
        _
      $region34: #{emotion_net_forward.6} parent=31 // loop_header
        %s173 = sphi 0, %s177
        %p174 = scmp.ge.s32.totalorder %s173, 2
      $region35: #{emotion_net_forward.6} parent=31 // loop_header_branch
        %176 = sbr.rel (%p174) target = $region39
      $region36: #{emotion_net_forward.6} parent=31 // loop_body
        %s178 = smul.u32 %s173, 8
        %s179 = smul.u32 %s178, 4
        %s180 = smul.addr %s179, 4
        %s181 = scalar_lea.vmem %s165, %s180
        %v182 = vld [vmem:[%s181] sm:$0xff]
        %v183 = vld [vmem:[%s181 + $0x8] sm:$0xff]
        %v184 = vld [vmem:[%s181 + $0x10] sm:$0xff]
        %v185 = vld [vmem:[%s181 + $0x18] sm:$0xff]
        %v186 = vld [vmem:[%s181 + $0x20] sm:$0xff]
        %v187 = vld [vmem:[%s181 + $0x28] sm:$0xff]
        %v188 = vld [vmem:[%s181 + $0x30] sm:$0xff]
        %v189 = vld [vmem:[%s181 + $0x38] sm:$0xff]
        %v190 = vld [vmem:[%s181 + $0x40] sm:$0xff]
        %v191 = vld [vmem:[%s181 + $0x48] sm:$0xff]
        %v192 = vld [vmem:[%s181 + $0x50] sm:$0xff]
        %v193 = vld [vmem:[%s181 + $0x58] sm:$0xff]
        %v194 = vld [vmem:[%s181 + $0x60] sm:$0xff]
        %v195 = vld [vmem:[%s181 + $0x68] sm:$0xff]
        %v196 = vld [vmem:[%s181 + $0x70] sm:$0xff]
        %v197 = vld [vmem:[%s181 + $0x78] sm:$0xff]
        %v198 = vld [vmem:[%s1] sm:$0xf]
        %v199 = vld [vmem:[%s1 + $0x4] sm:$0xf]
        %v200 = vld [vmem:[%s1 + $0x8] sm:$0xf]
        %v201 = vld [vmem:[%s1 + $0xc] sm:$0xf]
        %v202 = vld [vmem:[%s1 + $0x10] sm:$0xf]
        %v203 = vld [vmem:[%s1 + $0x14] sm:$0xf]
        %v204 = vld [vmem:[%s1 + $0x18] sm:$0xf]
        %v205 = vld [vmem:[%s1 + $0x1c] sm:$0xf]
        %v206 = vld [vmem:[%s1 + $0x20] sm:$0xf]
        %v207 = vld [vmem:[%s1 + $0x24] sm:$0xf]
        %v208 = vld [vmem:[%s1 + $0x28] sm:$0xf]
        %v209 = vld [vmem:[%s1 + $0x2c] sm:$0xf]
        %v210 = vld [vmem:[%s1 + $0x30] sm:$0xf]
        %v211 = vld [vmem:[%s1 + $0x34] sm:$0xf]
        %v212 = vld [vmem:[%s1 + $0x38] sm:$0xf]
        %v213 = vld [vmem:[%s1 + $0x3c] sm:$0xf]
        %v214 = vld [vmem:[%s1 + $0x40] sm:$0xf]
        %v215 = vld [vmem:[%s1 + $0x44] sm:$0xf]
        %v216 = vld [vmem:[%s1 + $0x48] sm:$0xf]
        %v217 = vld [vmem:[%s1 + $0x4c] sm:$0xf]
        %v218 = vld [vmem:[%s1 + $0x50] sm:$0xf]
        %v219 = vld [vmem:[%s1 + $0x54] sm:$0xf]
        %v220 = vld [vmem:[%s1 + $0x58] sm:$0xf]
        %v221 = vld [vmem:[%s1 + $0x5c] sm:$0xf]
        %s222 = sadd.s32 %s178, 1
        %s223 = smul.u32 %s222, 4
        %s224 = smul.addr %s223, 4
        %s225 = scalar_lea.vmem %s165, %s224
        %v226 = vld [vmem:[%s225] sm:$0xff]
        %v227 = vld [vmem:[%s225 + $0x8] sm:$0xff]
        %v228 = vld [vmem:[%s225 + $0x10] sm:$0xff]
        %v229 = vld [vmem:[%s225 + $0x18] sm:$0xff]
        %v230 = vld [vmem:[%s225 + $0x20] sm:$0xff]
        %v231 = vld [vmem:[%s225 + $0x28] sm:$0xff]
        %v232 = vld [vmem:[%s225 + $0x30] sm:$0xff]
        %v233 = vld [vmem:[%s225 + $0x38] sm:$0xff]
        %v234 = vld [vmem:[%s225 + $0x40] sm:$0xff]
        %v235 = vld [vmem:[%s225 + $0x48] sm:$0xff]
        %v236 = vld [vmem:[%s225 + $0x50] sm:$0xff]
        %v237 = vld [vmem:[%s225 + $0x58] sm:$0xff]
        %v238 = vld [vmem:[%s225 + $0x60] sm:$0xff]
        %v239 = vld [vmem:[%s225 + $0x68] sm:$0xff]
        %v240 = vld [vmem:[%s225 + $0x70] sm:$0xff]
        %v241 = vld [vmem:[%s225 + $0x78] sm:$0xff]
        %s242 = scalar_lea.vmem %s1, 96
        %v243 = vld [vmem:[%s242] sm:$0xf]
        %v244 = vld [vmem:[%s242 + $0x4] sm:$0xf]
        %v245 = vld [vmem:[%s242 + $0x8] sm:$0xf]
        %v246 = vld [vmem:[%s242 + $0xc] sm:$0xf]
        %v247 = vld [vmem:[%s242 + $0x10] sm:$0xf]
        %v248 = vld [vmem:[%s242 + $0x14] sm:$0xf]
        %v249 = vld [vmem:[%s242 + $0x18] sm:$0xf]
        %v250 = vld [vmem:[%s242 + $0x1c] sm:$0xf]
        %v251 = vld [vmem:[%s242 + $0x20] sm:$0xf]
        %v252 = vld [vmem:[%s242 + $0x24] sm:$0xf]
        %v253 = vld [vmem:[%s242 + $0x28] sm:$0xf]
        %v254 = vld [vmem:[%s242 + $0x2c] sm:$0xf]
        %v255 = vld [vmem:[%s242 + $0x30] sm:$0xf]
        %v256 = vld [vmem:[%s242 + $0x34] sm:$0xf]
        %v257 = vld [vmem:[%s242 + $0x38] sm:$0xf]
        %v258 = vld [vmem:[%s242 + $0x3c] sm:$0xf]
        %v259 = vld [vmem:[%s242 + $0x40] sm:$0xf]
        %v260 = vld [vmem:[%s242 + $0x44] sm:$0xf]
        %v261 = vld [vmem:[%s242 + $0x48] sm:$0xf]
        %v262 = vld [vmem:[%s242 + $0x4c] sm:$0xf]
        %v263 = vld [vmem:[%s242 + $0x50] sm:$0xf]
        %v264 = vld [vmem:[%s242 + $0x54] sm:$0xf]
        %v265 = vld [vmem:[%s242 + $0x58] sm:$0xf]
        %v266 = vld [vmem:[%s242 + $0x5c] sm:$0xf]
        %v283 = vunpack.c.l.b16 %v226
        %v284 = vunpack.c.h.b16 %v226
        %v285 = vunpack.c.l.b16 %v227
        %v286 = vunpack.c.h.b16 %v227
        %v287 = vunpack.c.l.b16 %v228
        %v288 = vunpack.c.h.b16 %v228
        %v289 = vunpack.c.l.b16 %v229
        %v290 = vunpack.c.h.b16 %v229
        %v291 = vunpack.c.l.b16 %v230
        %v292 = vunpack.c.h.b16 %v230
        %v293 = vunpack.c.l.b16 %v231
        %v294 = vunpack.c.h.b16 %v231
        %v295 = vunpack.c.l.b16 %v232
        %v296 = vunpack.c.h.b16 %v232
        %v297 = vunpack.c.l.b16 %v233
        %v298 = vunpack.c.h.b16 %v233
        %v299 = vunpack.c.l.b16 %v234
        %v300 = vunpack.c.h.b16 %v234
        %v301 = vunpack.c.l.b16 %v235
        %v302 = vunpack.c.h.b16 %v235
        %v303 = vunpack.c.l.b16 %v236
        %v304 = vunpack.c.h.b16 %v236
        %v305 = vunpack.c.l.b16 %v237
        %v306 = vunpack.c.h.b16 %v237
        %v307 = vunpack.c.l.b16 %v238
        %v308 = vunpack.c.h.b16 %v238
        %v309 = vunpack.c.l.b16 %v239
        %v310 = vunpack.c.h.b16 %v239
        %v311 = vunpack.c.l.b16 %v240
        %v312 = vunpack.c.h.b16 %v240
        %v313 = vunpack.c.l.b16 %v241
        %v314 = vunpack.c.h.b16 %v241
        %v315 = vpack.c.b16 %v285, %v283
        %v316 = vpack.c.b16 %v286, %v284
        %v317 = vpack.c.b16 %v289, %v287
        %v318 = vpack.c.b16 %v290, %v288
        %v319 = vpack.c.b16 %v293, %v291
        %v320 = vpack.c.b16 %v294, %v292
        %v321 = vpack.c.b16 %v297, %v295
        %v322 = vpack.c.b16 %v298, %v296
        %v323 = vpack.c.b16 %v301, %v299
        %v324 = vpack.c.b16 %v302, %v300
        %v325 = vpack.c.b16 %v305, %v303
        %v326 = vpack.c.b16 %v306, %v304
        %v327 = vpack.c.b16 %v309, %v307
        %v328 = vpack.c.b16 %v310, %v308
        %v329 = vpack.c.b16 %v313, %v311
        %v330 = vpack.c.b16 %v314, %v312
        %v363 = vunpack.c.l.b16 %v243
        %v364 = vunpack.c.l.b16 %v244
        %v365 = vunpack.c.l.b16 %v245
        %v366 = vunpack.c.l.b16 %v246
        %v367 = vunpack.c.l.b16 %v247
        %v368 = vunpack.c.l.b16 %v248
        %v369 = vunpack.c.l.b16 %v249
        %v370 = vunpack.c.l.b16 %v250
        %v371 = vunpack.c.l.b16 %v251
        %v372 = vunpack.c.l.b16 %v252
        %v373 = vunpack.c.l.b16 %v253
        %v374 = vunpack.c.l.b16 %v254
        %v375 = vunpack.c.l.b16 %v255
        %v376 = vunpack.c.l.b16 %v256
        %v377 = vunpack.c.l.b16 %v257
        %v378 = vunpack.c.l.b16 %v258
        %v379 = vunpack.c.l.b16 %v259
        %v380 = vunpack.c.l.b16 %v260
        %v381 = vunpack.c.l.b16 %v261
        %v382 = vunpack.c.l.b16 %v262
        %v383 = vunpack.c.l.b16 %v263
        %v384 = vunpack.c.l.b16 %v264
        %v385 = vunpack.c.l.b16 %v265
        %v386 = vunpack.c.l.b16 %v266
        %v387 = vpack.c.b16 %v364, %v363
        %v388 = vpack.c.b16 %v366, %v365
        %v389 = vpack.c.b16 %v368, %v367
        %v390 = vpack.c.b16 %v370, %v369
        %v391 = vpack.c.b16 %v372, %v371
        %v392 = vpack.c.b16 %v374, %v373
        %v393 = vpack.c.b16 %v376, %v375
        %v394 = vpack.c.b16 %v378, %v377
        %v395 = vpack.c.b16 %v380, %v379
        %v396 = vpack.c.b16 %v382, %v381
        %v397 = vpack.c.b16 %v384, %v383
        %v398 = vpack.c.b16 %v386, %v385
        %vm411 = vcmask 523264
        %v413 = vsel %vm411, %v316, 0
        %v416 = vsel %vm411, %v318, 0
        %v419 = vsel %vm411, %v320, 0
        %v422 = vsel %vm411, %v322, 0
        %v425 = vsel %vm411, %v324, 0
        %v428 = vsel %vm411, %v326, 0
        %v431 = vsel %vm411, %v328, 0
        %v434 = vsel %vm411, %v330, 0
        %436 = vmatpush.bf16.msra.mxu0 %v394
        %437 = vmatpush.bf16.msra.mxu0 %v393
        %438 = vmatpush.bf16.msra.mxu0 %v392
        %439 = vmatpush.bf16.msra.mxu0 %v391
        %440 = vmatpush.bf16.msra.mxu0 %v390
        %441 = vmatpush.bf16.msra.mxu0 %v389
        %442 = vmatpush.bf16.msra.mxu0 %v388
        %443 = vmatpush.bf16.msra.mxu0 %v387
        %444 = vmatmul.bf16.gmra.mxu0 %v315
        %v445 = vpop.f32.mrf.mxu0
        %v446 = vadd.f32 0.0, %v445
        %v447 = vpop.f32.mrf.mxu0
        %v448 = vadd.f32 0.0, %v447
        %449 = vmatmul.bf16.gmra.mxu0 %v317
        %v450 = vpop.f32.mrf.mxu0
        %v451 = vadd.f32 0.0, %v450
        %v452 = vpop.f32.mrf.mxu0
        %v453 = vadd.f32 0.0, %v452
        %454 = vmatmul.bf16.gmra.mxu0 %v319
        %v455 = vpop.f32.mrf.mxu0
        %v456 = vadd.f32 0.0, %v455
        %v457 = vpop.f32.mrf.mxu0
        %v458 = vadd.f32 0.0, %v457
        %459 = vmatmul.bf16.gmra.mxu0 %v321
        %v460 = vpop.f32.mrf.mxu0
        %v461 = vadd.f32 0.0, %v460
        %v462 = vpop.f32.mrf.mxu0
        %v463 = vadd.f32 0.0, %v462
        %464 = vmatmul.bf16.gmra.mxu0 %v323
        %v465 = vpop.f32.mrf.mxu0
        %v466 = vadd.f32 0.0, %v465
        %v467 = vpop.f32.mrf.mxu0
        %v468 = vadd.f32 0.0, %v467
        %469 = vmatmul.bf16.gmra.mxu0 %v325
        %v470 = vpop.f32.mrf.mxu0
        %v471 = vadd.f32 0.0, %v470
        %v472 = vpop.f32.mrf.mxu0
        %v473 = vadd.f32 0.0, %v472
        %474 = vmatmul.bf16.gmra.mxu0 %v327
        %v475 = vpop.f32.mrf.mxu0
        %v476 = vadd.f32 0.0, %v475
        %v477 = vpop.f32.mrf.mxu0
        %v478 = vadd.f32 0.0, %v477
        %479 = vmatmul.bf16.gmra.mxu0 %v329
        %v480 = vpop.f32.mrf.mxu0
        %v481 = vadd.f32 0.0, %v480
        %v482 = vpop.f32.mrf.mxu0
        %v483 = vadd.f32 0.0, %v482
        %484 = vdwg.mxu0
        %485 = vmatpush.bf16.msra.mxu0 0
        %486 = vmatpush.bf16.msra.mxu0 0
        %487 = vmatpush.bf16.msra.mxu0 0
        %488 = vmatpush.bf16.msra.mxu0 0
        %489 = vmatpush.bf16.msra.mxu0 %v398
        %490 = vmatpush.bf16.msra.mxu0 %v397
        %491 = vmatpush.bf16.msra.mxu0 %v396
        %492 = vmatpush.bf16.msra.mxu0 %v395
        %493 = vmatmul.bf16.gmra.mxu0 %v413
        %v494 = vpop.f32.mrf.mxu0
        %v495 = vadd.f32 %v446, %v494
        %v496 = vpop.f32.mrf.mxu0
        %v497 = vadd.f32 %v448, %v496
        %498 = vmatmul.bf16.gmra.mxu0 %v416
        %v499 = vpop.f32.mrf.mxu0
        %v500 = vadd.f32 %v451, %v499
        %v501 = vpop.f32.mrf.mxu0
        %v502 = vadd.f32 %v453, %v501
        %503 = vmatmul.bf16.gmra.mxu0 %v419
        %v504 = vpop.f32.mrf.mxu0
        %v505 = vadd.f32 %v456, %v504
        %v506 = vpop.f32.mrf.mxu0
        %v507 = vadd.f32 %v458, %v506
        %508 = vmatmul.bf16.gmra.mxu0 %v422
        %v509 = vpop.f32.mrf.mxu0
        %v510 = vadd.f32 %v461, %v509
        %v511 = vpop.f32.mrf.mxu0
        %v512 = vadd.f32 %v463, %v511
        %513 = vmatmul.bf16.gmra.mxu0 %v425
        %v514 = vpop.f32.mrf.mxu0
        %v515 = vadd.f32 %v466, %v514
        %v516 = vpop.f32.mrf.mxu0
        %v517 = vadd.f32 %v468, %v516
        %518 = vmatmul.bf16.gmra.mxu0 %v428
        %v519 = vpop.f32.mrf.mxu0
        %v520 = vadd.f32 %v471, %v519
        %v521 = vpop.f32.mrf.mxu0
        %v522 = vadd.f32 %v473, %v521
        %523 = vmatmul.bf16.gmra.mxu0 %v431
        %v524 = vpop.f32.mrf.mxu0
        %v525 = vadd.f32 %v476, %v524
        %v526 = vpop.f32.mrf.mxu0
        %v527 = vadd.f32 %v478, %v526
        %528 = vmatmul.bf16.gmra.mxu0 %v434
        %v529 = vpop.f32.mrf.mxu0
        %v530 = vadd.f32 %v481, %v529
        %v531 = vpop.f32.mrf.mxu0
        %v532 = vadd.f32 %v483, %v531
        %533 = vdwg.mxu0
        %v550 = vunpack.c.l.b16 %v182
        %v551 = vunpack.c.h.b16 %v182
        %v552 = vunpack.c.l.b16 %v183
        %v553 = vunpack.c.h.b16 %v183
        %v554 = vunpack.c.l.b16 %v184
        %v555 = vunpack.c.h.b16 %v184
        %v556 = vunpack.c.l.b16 %v185
        %v557 = vunpack.c.h.b16 %v185
        %v558 = vunpack.c.l.b16 %v186
        %v559 = vunpack.c.h.b16 %v186
        %v560 = vunpack.c.l.b16 %v187
        %v561 = vunpack.c.h.b16 %v187
        %v562 = vunpack.c.l.b16 %v188
        %v563 = vunpack.c.h.b16 %v188
        %v564 = vunpack.c.l.b16 %v189
        %v565 = vunpack.c.h.b16 %v189
        %v566 = vunpack.c.l.b16 %v190
        %v567 = vunpack.c.h.b16 %v190
        %v568 = vunpack.c.l.b16 %v191
        %v569 = vunpack.c.h.b16 %v191
        %v570 = vunpack.c.l.b16 %v192
        %v571 = vunpack.c.h.b16 %v192
        %v572 = vunpack.c.l.b16 %v193
        %v573 = vunpack.c.h.b16 %v193
        %v574 = vunpack.c.l.b16 %v194
        %v575 = vunpack.c.h.b16 %v194
        %v576 = vunpack.c.l.b16 %v195
        %v577 = vunpack.c.h.b16 %v195
        %v578 = vunpack.c.l.b16 %v196
        %v579 = vunpack.c.h.b16 %v196
        %v580 = vunpack.c.l.b16 %v197
        %v581 = vunpack.c.h.b16 %v197
        %v582 = vpack.c.b16 %v552, %v550
        %v583 = vpack.c.b16 %v553, %v551
        %v584 = vpack.c.b16 %v556, %v554
        %v585 = vpack.c.b16 %v557, %v555
        %v586 = vpack.c.b16 %v560, %v558
        %v587 = vpack.c.b16 %v561, %v559
        %v588 = vpack.c.b16 %v564, %v562
        %v589 = vpack.c.b16 %v565, %v563
        %v590 = vpack.c.b16 %v568, %v566
        %v591 = vpack.c.b16 %v569, %v567
        %v592 = vpack.c.b16 %v572, %v570
        %v593 = vpack.c.b16 %v573, %v571
        %v594 = vpack.c.b16 %v576, %v574
        %v595 = vpack.c.b16 %v577, %v575
        %v596 = vpack.c.b16 %v580, %v578
        %v597 = vpack.c.b16 %v581, %v579
        %v630 = vunpack.c.l.b16 %v198
        %v631 = vunpack.c.l.b16 %v199
        %v632 = vunpack.c.l.b16 %v200
        %v633 = vunpack.c.l.b16 %v201
        %v634 = vunpack.c.l.b16 %v202
        %v635 = vunpack.c.l.b16 %v203
        %v636 = vunpack.c.l.b16 %v204
        %v637 = vunpack.c.l.b16 %v205
        %v638 = vunpack.c.l.b16 %v206
        %v639 = vunpack.c.l.b16 %v207
        %v640 = vunpack.c.l.b16 %v208
        %v641 = vunpack.c.l.b16 %v209
        %v642 = vunpack.c.l.b16 %v210
        %v643 = vunpack.c.l.b16 %v211
        %v644 = vunpack.c.l.b16 %v212
        %v645 = vunpack.c.l.b16 %v213
        %v646 = vunpack.c.l.b16 %v214
        %v647 = vunpack.c.l.b16 %v215
        %v648 = vunpack.c.l.b16 %v216
        %v649 = vunpack.c.l.b16 %v217
        %v650 = vunpack.c.l.b16 %v218
        %v651 = vunpack.c.l.b16 %v219
        %v652 = vunpack.c.l.b16 %v220
        %v653 = vunpack.c.l.b16 %v221
        %v654 = vpack.c.b16 %v631, %v630
        %v655 = vpack.c.b16 %v633, %v632
        %v656 = vpack.c.b16 %v635, %v634
        %v657 = vpack.c.b16 %v637, %v636
        %v658 = vpack.c.b16 %v639, %v638
        %v659 = vpack.c.b16 %v641, %v640
        %v660 = vpack.c.b16 %v643, %v642
        %v661 = vpack.c.b16 %v645, %v644
        %v662 = vpack.c.b16 %v647, %v646
        %v663 = vpack.c.b16 %v649, %v648
        %v664 = vpack.c.b16 %v651, %v650
        %v665 = vpack.c.b16 %v653, %v652
        %v679 = vsel %vm411, %v583, 0
        %v682 = vsel %vm411, %v585, 0
        %v685 = vsel %vm411, %v587, 0
        %v688 = vsel %vm411, %v589, 0
        %v691 = vsel %vm411, %v591, 0
        %v694 = vsel %vm411, %v593, 0
        %v697 = vsel %vm411, %v595, 0
        %v700 = vsel %vm411, %v597, 0
        %702 = vmatpush.bf16.msra.mxu0 %v661
        %703 = vmatpush.bf16.msra.mxu0 %v660
        %704 = vmatpush.bf16.msra.mxu0 %v659
        %705 = vmatpush.bf16.msra.mxu0 %v658
        %706 = vmatpush.bf16.msra.mxu0 %v657
        %707 = vmatpush.bf16.msra.mxu0 %v656
        %708 = vmatpush.bf16.msra.mxu0 %v655
        %709 = vmatpush.bf16.msra.mxu0 %v654
        %710 = vmatmul.bf16.gmra.mxu0 %v582
        %v711 = vpop.f32.mrf.mxu0
        %v712 = vadd.f32 %v495, %v711
        %v713 = vpop.f32.mrf.mxu0
        %v714 = vadd.f32 %v497, %v713
        %715 = vmatmul.bf16.gmra.mxu0 %v584
        %v716 = vpop.f32.mrf.mxu0
        %v717 = vadd.f32 %v500, %v716
        %v718 = vpop.f32.mrf.mxu0
        %v719 = vadd.f32 %v502, %v718
        %720 = vmatmul.bf16.gmra.mxu0 %v586
        %v721 = vpop.f32.mrf.mxu0
        %v722 = vadd.f32 %v505, %v721
        %v723 = vpop.f32.mrf.mxu0
        %v724 = vadd.f32 %v507, %v723
        %725 = vmatmul.bf16.gmra.mxu0 %v588
        %v726 = vpop.f32.mrf.mxu0
        %v727 = vadd.f32 %v510, %v726
        %v728 = vpop.f32.mrf.mxu0
        %v729 = vadd.f32 %v512, %v728
        %730 = vmatmul.bf16.gmra.mxu0 %v590
        %v731 = vpop.f32.mrf.mxu0
        %v732 = vadd.f32 %v515, %v731
        %v733 = vpop.f32.mrf.mxu0
        %v734 = vadd.f32 %v517, %v733
        %735 = vmatmul.bf16.gmra.mxu0 %v592
        %v736 = vpop.f32.mrf.mxu0
        %v737 = vadd.f32 %v520, %v736
        %v738 = vpop.f32.mrf.mxu0
        %v739 = vadd.f32 %v522, %v738
        %740 = vmatmul.bf16.gmra.mxu0 %v594
        %v741 = vpop.f32.mrf.mxu0
        %v742 = vadd.f32 %v525, %v741
        %v743 = vpop.f32.mrf.mxu0
        %v744 = vadd.f32 %v527, %v743
        %745 = vmatmul.bf16.gmra.mxu0 %v596
        %v746 = vpop.f32.mrf.mxu0
        %v747 = vadd.f32 %v530, %v746
        %v748 = vpop.f32.mrf.mxu0
        %v749 = vadd.f32 %v532, %v748
        %750 = vdwg.mxu0
        %751 = vmatpush.bf16.msra.mxu0 0
        %752 = vmatpush.bf16.msra.mxu0 0
        %753 = vmatpush.bf16.msra.mxu0 0
        %754 = vmatpush.bf16.msra.mxu0 0
        %755 = vmatpush.bf16.msra.mxu0 %v665
        %756 = vmatpush.bf16.msra.mxu0 %v664
        %757 = vmatpush.bf16.msra.mxu0 %v663
        %758 = vmatpush.bf16.msra.mxu0 %v662
        %759 = vmatmul.bf16.gmra.mxu0 %v679
        %v760 = vpop.f32.mrf.mxu0
        %v761 = vadd.f32 %v712, %v760
        %v762 = vpop.f32.mrf.mxu0
        %v763 = vadd.f32 %v714, %v762
        %764 = vmatmul.bf16.gmra.mxu0 %v682
        %v765 = vpop.f32.mrf.mxu0
        %v766 = vadd.f32 %v717, %v765
        %v767 = vpop.f32.mrf.mxu0
        %v768 = vadd.f32 %v719, %v767
        %769 = vmatmul.bf16.gmra.mxu0 %v685
        %v770 = vpop.f32.mrf.mxu0
        %v771 = vadd.f32 %v722, %v770
        %v772 = vpop.f32.mrf.mxu0
        %v773 = vadd.f32 %v724, %v772
        %774 = vmatmul.bf16.gmra.mxu0 %v688
        %v775 = vpop.f32.mrf.mxu0
        %v776 = vadd.f32 %v727, %v775
        %v777 = vpop.f32.mrf.mxu0
        %v778 = vadd.f32 %v729, %v777
        %779 = vmatmul.bf16.gmra.mxu0 %v691
        %v780 = vpop.f32.mrf.mxu0
        %v781 = vadd.f32 %v732, %v780
        %v782 = vpop.f32.mrf.mxu0
        %v783 = vadd.f32 %v734, %v782
        %784 = vmatmul.bf16.gmra.mxu0 %v694
        %v785 = vpop.f32.mrf.mxu0
        %v786 = vadd.f32 %v737, %v785
        %v787 = vpop.f32.mrf.mxu0
        %v788 = vadd.f32 %v739, %v787
        %789 = vmatmul.bf16.gmra.mxu0 %v697
        %v790 = vpop.f32.mrf.mxu0
        %v791 = vadd.f32 %v742, %v790
        %v792 = vpop.f32.mrf.mxu0
        %v793 = vadd.f32 %v744, %v792
        %794 = vmatmul.bf16.gmra.mxu0 %v700
        %v795 = vpop.f32.mrf.mxu0
        %v796 = vadd.f32 %v747, %v795
        %v797 = vpop.f32.mrf.mxu0
        %v798 = vadd.f32 %v749, %v797
        %799 = vdwg.mxu0
        %s800 = sadd.s32 %s178, 2
        %s801 = smul.u32 %s800, 4
        %s802 = smul.addr %s801, 4
        %s803 = scalar_lea.vmem %s165, %s802
        %v804 = vld [vmem:[%s803] sm:$0xff]
        %v805 = vld [vmem:[%s803 + $0x8] sm:$0xff]
        %v806 = vld [vmem:[%s803 + $0x10] sm:$0xff]
        %v807 = vld [vmem:[%s803 + $0x18] sm:$0xff]
        %v808 = vld [vmem:[%s803 + $0x20] sm:$0xff]
        %v809 = vld [vmem:[%s803 + $0x28] sm:$0xff]
        %v810 = vld [vmem:[%s803 + $0x30] sm:$0xff]
        %v811 = vld [vmem:[%s803 + $0x38] sm:$0xff]
        %v812 = vld [vmem:[%s803 + $0x40] sm:$0xff]
        %v813 = vld [vmem:[%s803 + $0x48] sm:$0xff]
        %v814 = vld [vmem:[%s803 + $0x50] sm:$0xff]
        %v815 = vld [vmem:[%s803 + $0x58] sm:$0xff]
        %v816 = vld [vmem:[%s803 + $0x60] sm:$0xff]
        %v817 = vld [vmem:[%s803 + $0x68] sm:$0xff]
        %v818 = vld [vmem:[%s803 + $0x70] sm:$0xff]
        %v819 = vld [vmem:[%s803 + $0x78] sm:$0xff]
        %s820 = scalar_lea.vmem %s1, 192
        %v821 = vld [vmem:[%s820] sm:$0xf]
        %v822 = vld [vmem:[%s820 + $0x4] sm:$0xf]
        %v823 = vld [vmem:[%s820 + $0x8] sm:$0xf]
        %v824 = vld [vmem:[%s820 + $0xc] sm:$0xf]
        %v825 = vld [vmem:[%s820 + $0x10] sm:$0xf]
        %v826 = vld [vmem:[%s820 + $0x14] sm:$0xf]
        %v827 = vld [vmem:[%s820 + $0x18] sm:$0xf]
        %v828 = vld [vmem:[%s820 + $0x1c] sm:$0xf]
        %v829 = vld [vmem:[%s820 + $0x20] sm:$0xf]
        %v830 = vld [vmem:[%s820 + $0x24] sm:$0xf]
        %v831 = vld [vmem:[%s820 + $0x28] sm:$0xf]
        %v832 = vld [vmem:[%s820 + $0x2c] sm:$0xf]
        %v833 = vld [vmem:[%s820 + $0x30] sm:$0xf]
        %v834 = vld [vmem:[%s820 + $0x34] sm:$0xf]
        %v835 = vld [vmem:[%s820 + $0x38] sm:$0xf]
        %v836 = vld [vmem:[%s820 + $0x3c] sm:$0xf]
        %v837 = vld [vmem:[%s820 + $0x40] sm:$0xf]
        %v838 = vld [vmem:[%s820 + $0x44] sm:$0xf]
        %v839 = vld [vmem:[%s820 + $0x48] sm:$0xf]
        %v840 = vld [vmem:[%s820 + $0x4c] sm:$0xf]
        %v841 = vld [vmem:[%s820 + $0x50] sm:$0xf]
        %v842 = vld [vmem:[%s820 + $0x54] sm:$0xf]
        %v843 = vld [vmem:[%s820 + $0x58] sm:$0xf]
        %v844 = vld [vmem:[%s820 + $0x5c] sm:$0xf]
        %v861 = vunpack.c.l.b16 %v804
        %v862 = vunpack.c.h.b16 %v804
        %v863 = vunpack.c.l.b16 %v805
        %v864 = vunpack.c.h.b16 %v805
        %v865 = vunpack.c.l.b16 %v806
        %v866 = vunpack.c.h.b16 %v806
        %v867 = vunpack.c.l.b16 %v807
        %v868 = vunpack.c.h.b16 %v807
        %v869 = vunpack.c.l.b16 %v808
        %v870 = vunpack.c.h.b16 %v808
        %v871 = vunpack.c.l.b16 %v809
        %v872 = vunpack.c.h.b16 %v809
        %v873 = vunpack.c.l.b16 %v810
        %v874 = vunpack.c.h.b16 %v810
        %v875 = vunpack.c.l.b16 %v811
        %v876 = vunpack.c.h.b16 %v811
        %v877 = vunpack.c.l.b16 %v812
        %v878 = vunpack.c.h.b16 %v812
        %v879 = vunpack.c.l.b16 %v813
        %v880 = vunpack.c.h.b16 %v813
        %v881 = vunpack.c.l.b16 %v814
        %v882 = vunpack.c.h.b16 %v814
        %v883 = vunpack.c.l.b16 %v815
        %v884 = vunpack.c.h.b16 %v815
        %v885 = vunpack.c.l.b16 %v816
        %v886 = vunpack.c.h.b16 %v816
        %v887 = vunpack.c.l.b16 %v817
        %v888 = vunpack.c.h.b16 %v817
        %v889 = vunpack.c.l.b16 %v818
        %v890 = vunpack.c.h.b16 %v818
        %v891 = vunpack.c.l.b16 %v819
        %v892 = vunpack.c.h.b16 %v819
        %v893 = vpack.c.b16 %v863, %v861
        %v894 = vpack.c.b16 %v864, %v862
        %v895 = vpack.c.b16 %v867, %v865
        %v896 = vpack.c.b16 %v868, %v866
        %v897 = vpack.c.b16 %v871, %v869
        %v898 = vpack.c.b16 %v872, %v870
        %v899 = vpack.c.b16 %v875, %v873
        %v900 = vpack.c.b16 %v876, %v874
        %v901 = vpack.c.b16 %v879, %v877
        %v902 = vpack.c.b16 %v880, %v878
        %v903 = vpack.c.b16 %v883, %v881
        %v904 = vpack.c.b16 %v884, %v882
        %v905 = vpack.c.b16 %v887, %v885
        %v906 = vpack.c.b16 %v888, %v886
        %v907 = vpack.c.b16 %v891, %v889
        %v908 = vpack.c.b16 %v892, %v890
        %v941 = vunpack.c.l.b16 %v821
        %v942 = vunpack.c.l.b16 %v822
        %v943 = vunpack.c.l.b16 %v823
        %v944 = vunpack.c.l.b16 %v824
        %v945 = vunpack.c.l.b16 %v825
        %v946 = vunpack.c.l.b16 %v826
        %v947 = vunpack.c.l.b16 %v827
        %v948 = vunpack.c.l.b16 %v828
        %v949 = vunpack.c.l.b16 %v829
        %v950 = vunpack.c.l.b16 %v830
        %v951 = vunpack.c.l.b16 %v831
        %v952 = vunpack.c.l.b16 %v832
        %v953 = vunpack.c.l.b16 %v833
        %v954 = vunpack.c.l.b16 %v834
        %v955 = vunpack.c.l.b16 %v835
        %v956 = vunpack.c.l.b16 %v836
        %v957 = vunpack.c.l.b16 %v837
        %v958 = vunpack.c.l.b16 %v838
        %v959 = vunpack.c.l.b16 %v839
        %v960 = vunpack.c.l.b16 %v840
        %v961 = vunpack.c.l.b16 %v841
        %v962 = vunpack.c.l.b16 %v842
        %v963 = vunpack.c.l.b16 %v843
        %v964 = vunpack.c.l.b16 %v844
        %v965 = vpack.c.b16 %v942, %v941
        %v966 = vpack.c.b16 %v944, %v943
        %v967 = vpack.c.b16 %v946, %v945
        %v968 = vpack.c.b16 %v948, %v947
        %v969 = vpack.c.b16 %v950, %v949
        %v970 = vpack.c.b16 %v952, %v951
        %v971 = vpack.c.b16 %v954, %v953
        %v972 = vpack.c.b16 %v956, %v955
        %v973 = vpack.c.b16 %v958, %v957
        %v974 = vpack.c.b16 %v960, %v959
        %v975 = vpack.c.b16 %v962, %v961
        %v976 = vpack.c.b16 %v964, %v963
        %v990 = vsel %vm411, %v894, 0
        %v993 = vsel %vm411, %v896, 0
        %v996 = vsel %vm411, %v898, 0
        %v999 = vsel %vm411, %v900, 0
        %v1002 = vsel %vm411, %v902, 0
        %v1005 = vsel %vm411, %v904, 0
        %v1008 = vsel %vm411, %v906, 0
        %v1011 = vsel %vm411, %v908, 0
        %1013 = vmatpush.bf16.msra.mxu0 %v972
        %1014 = vmatpush.bf16.msra.mxu0 %v971
        %1015 = vmatpush.bf16.msra.mxu0 %v970
        %1016 = vmatpush.bf16.msra.mxu0 %v969
        %1017 = vmatpush.bf16.msra.mxu0 %v968
        %1018 = vmatpush.bf16.msra.mxu0 %v967
        %1019 = vmatpush.bf16.msra.mxu0 %v966
        %1020 = vmatpush.bf16.msra.mxu0 %v965
        %1021 = vmatmul.bf16.gmra.mxu0 %v893
        %v1022 = vpop.f32.mrf.mxu0
        %v1023 = vadd.f32 0.0, %v1022
        %v1024 = vpop.f32.mrf.mxu0
        %v1025 = vadd.f32 0.0, %v1024
        %1026 = vmatmul.bf16.gmra.mxu0 %v895
        %v1027 = vpop.f32.mrf.mxu0
        %v1028 = vadd.f32 0.0, %v1027
        %v1029 = vpop.f32.mrf.mxu0
        %v1030 = vadd.f32 0.0, %v1029
        %1031 = vmatmul.bf16.gmra.mxu0 %v897
        %v1032 = vpop.f32.mrf.mxu0
        %v1033 = vadd.f32 0.0, %v1032
        %v1034 = vpop.f32.mrf.mxu0
        %v1035 = vadd.f32 0.0, %v1034
        %1036 = vmatmul.bf16.gmra.mxu0 %v899
        %v1037 = vpop.f32.mrf.mxu0
        %v1038 = vadd.f32 0.0, %v1037
        %v1039 = vpop.f32.mrf.mxu0
        %v1040 = vadd.f32 0.0, %v1039
        %1041 = vmatmul.bf16.gmra.mxu0 %v901
        %v1042 = vpop.f32.mrf.mxu0
        %v1043 = vadd.f32 0.0, %v1042
        %v1044 = vpop.f32.mrf.mxu0
        %v1045 = vadd.f32 0.0, %v1044
        %1046 = vmatmul.bf16.gmra.mxu0 %v903
        %v1047 = vpop.f32.mrf.mxu0
        %v1048 = vadd.f32 0.0, %v1047
        %v1049 = vpop.f32.mrf.mxu0
        %v1050 = vadd.f32 0.0, %v1049
        %1051 = vmatmul.bf16.gmra.mxu0 %v905
        %v1052 = vpop.f32.mrf.mxu0
        %v1053 = vadd.f32 0.0, %v1052
        %v1054 = vpop.f32.mrf.mxu0
        %v1055 = vadd.f32 0.0, %v1054
        %1056 = vmatmul.bf16.gmra.mxu0 %v907
        %v1057 = vpop.f32.mrf.mxu0
        %v1058 = vadd.f32 0.0, %v1057
        %v1059 = vpop.f32.mrf.mxu0
        %v1060 = vadd.f32 0.0, %v1059
        %1061 = vdwg.mxu0
        %1062 = vmatpush.bf16.msra.mxu0 0
        %1063 = vmatpush.bf16.msra.mxu0 0
        %1064 = vmatpush.bf16.msra.mxu0 0
        %1065 = vmatpush.bf16.msra.mxu0 0
        %1066 = vmatpush.bf16.msra.mxu0 %v976
        %1067 = vmatpush.bf16.msra.mxu0 %v975
        %1068 = vmatpush.bf16.msra.mxu0 %v974
        %1069 = vmatpush.bf16.msra.mxu0 %v973
        %1070 = vmatmul.bf16.gmra.mxu0 %v990
        %v1071 = vpop.f32.mrf.mxu0
        %v1072 = vadd.f32 %v1023, %v1071
        %v1073 = vpop.f32.mrf.mxu0
        %v1074 = vadd.f32 %v1025, %v1073
        %1075 = vmatmul.bf16.gmra.mxu0 %v993
        %v1076 = vpop.f32.mrf.mxu0
        %v1077 = vadd.f32 %v1028, %v1076
        %v1078 = vpop.f32.mrf.mxu0
        %v1079 = vadd.f32 %v1030, %v1078
        %1080 = vmatmul.bf16.gmra.mxu0 %v996
        %v1081 = vpop.f32.mrf.mxu0
        %v1082 = vadd.f32 %v1033, %v1081
        %v1083 = vpop.f32.mrf.mxu0
        %v1084 = vadd.f32 %v1035, %v1083
        %1085 = vmatmul.bf16.gmra.mxu0 %v999
        %v1086 = vpop.f32.mrf.mxu0
        %v1087 = vadd.f32 %v1038, %v1086
        %v1088 = vpop.f32.mrf.mxu0
        %v1089 = vadd.f32 %v1040, %v1088
        %1090 = vmatmul.bf16.gmra.mxu0 %v1002
        %v1091 = vpop.f32.mrf.mxu0
        %v1092 = vadd.f32 %v1043, %v1091
        %v1093 = vpop.f32.mrf.mxu0
        %v1094 = vadd.f32 %v1045, %v1093
        %1095 = vmatmul.bf16.gmra.mxu0 %v1005
        %v1096 = vpop.f32.mrf.mxu0
        %v1097 = vadd.f32 %v1048, %v1096
        %v1098 = vpop.f32.mrf.mxu0
        %v1099 = vadd.f32 %v1050, %v1098
        %1100 = vmatmul.bf16.gmra.mxu0 %v1008
        %v1101 = vpop.f32.mrf.mxu0
        %v1102 = vadd.f32 %v1053, %v1101
        %v1103 = vpop.f32.mrf.mxu0
        %v1104 = vadd.f32 %v1055, %v1103
        %1105 = vmatmul.bf16.gmra.mxu0 %v1011
        %v1106 = vpop.f32.mrf.mxu0
        %v1107 = vadd.f32 %v1058, %v1106
        %v1108 = vpop.f32.mrf.mxu0
        %v1109 = vadd.f32 %v1060, %v1108
        %1110 = vdwg.mxu0
        %v1111 = vadd.f32 %v761, %v1072
        %v1112 = vadd.f32 %v763, %v1074
        %v1113 = vadd.f32 %v766, %v1077
        %v1114 = vadd.f32 %v768, %v1079
        %v1115 = vadd.f32 %v771, %v1082
        %v1116 = vadd.f32 %v773, %v1084
        %v1117 = vadd.f32 %v776, %v1087
        %v1118 = vadd.f32 %v778, %v1089
        %v1119 = vadd.f32 %v781, %v1092
        %v1120 = vadd.f32 %v783, %v1094
        %v1121 = vadd.f32 %v786, %v1097
        %v1122 = vadd.f32 %v788, %v1099
        %v1123 = vadd.f32 %v791, %v1102
        %v1124 = vadd.f32 %v793, %v1104
        %v1125 = vadd.f32 %v796, %v1107
        %v1126 = vadd.f32 %v798, %v1109
        %v1127 = vmax.f32 %v1111, %v1113
        %v1128 = vmax.f32 %v1112, %v1114
        %v1129 = vmax.f32 %v1115, %v1117
        %v1130 = vmax.f32 %v1116, %v1118
        %v1131 = vmax.f32 %v1119, %v1121
        %v1132 = vmax.f32 %v1120, %v1122
        %v1133 = vmax.f32 %v1123, %v1125
        %v1134 = vmax.f32 %v1124, %v1126
        %1135 = vst [vmem:[#allocation2] sm:$0xff] %v1127
        %1136 = vst [vmem:[#allocation2 + $0x8] sm:$0xff] %v1128
        %1137 = vst [vmem:[#allocation2 + $0x10] sm:$0xff] %v1129
        %1138 = vst [vmem:[#allocation2 + $0x18] sm:$0xff] %v1130
        %1139 = vst [vmem:[#allocation2 + $0x20] sm:$0xff] %v1131
        %1140 = vst [vmem:[#allocation2 + $0x28] sm:$0xff] %v1132
        %1141 = vst [vmem:[#allocation2 + $0x30] sm:$0xff] %v1133
        %1142 = vst [vmem:[#allocation2 + $0x38] sm:$0xff] %v1134
        %v1143 = vld [vmem:[#allocation2] ss:$2 sm:$0xff]
        %s1144 = scalar_lea.vmem [#allocation2], 16
        %v1145 = vld [vmem:[%s1144] ss:$2 sm:$0xff]
        %s1146 = scalar_lea.vmem [#allocation2], 32
        %v1147 = vld [vmem:[%s1146] ss:$2 sm:$0xff]
        %s1148 = scalar_lea.vmem [#allocation2], 48
        %v1149 = vld [vmem:[%s1148] ss:$2 sm:$0xff]
        %s1150 = scalar_lea.vmem [#allocation2], 1
        %v1151 = vld [vmem:[%s1150] ss:$2 sm:$0xff]
        %s1152 = scalar_lea.vmem [#allocation2], 17
        %v1153 = vld [vmem:[%s1152] ss:$2 sm:$0xff]
        %s1154 = scalar_lea.vmem [#allocation2], 33
        %v1155 = vld [vmem:[%s1154] ss:$2 sm:$0xff]
        %s1156 = scalar_lea.vmem [#allocation2], 49
        %v1157 = vld [vmem:[%s1156] ss:$2 sm:$0xff]
        %v1158 = vmax.f32 %v1143, %v1151
        %v1159 = vmax.f32 %v1145, %v1153
        %v1160 = vmax.f32 %v1147, %v1155
        %v1161 = vmax.f32 %v1149, %v1157
        %v1162 = vld [vmem:[%s2] sm:$0x1]
        %v1164 = vperm.slane %v1162, 0
        %v1166 = vadd.f32 %v1158, %v1164
        %v1167 = vadd.f32 %v1159, %v1164
        %v1168 = vadd.f32 %v1160, %v1164
        %v1169 = vadd.f32 %v1161, %v1164
        %v1170 = vmax.f32 %v1166, 0.0
        %v1171 = vmax.f32 %v1167, 0.0
        %v1172 = vmax.f32 %v1168, 0.0
        %v1173 = vmax.f32 %v1169, 0.0
        %v1174 = vpack.c.bf16 %v1170, %v1170
        %v1175 = vpack.c.bf16 %v1171, %v1171
        %v1176 = vpack.c.bf16 %v1172, %v1172
        %v1177 = vpack.c.bf16 %v1173, %v1173
        %s1178 = smul.u32 %s173, 4
        %s1179 = smul.addr %s1178, 4
        %s1180 = scalar_lea.vmem %s170, %s1179
        %1181 = vst [vmem:[%s1180] sm:$0xf] %v1174
        %1182 = vst [vmem:[%s1180 + $0x4] sm:$0xf] %v1175
        %1183 = vst [vmem:[%s1180 + $0x8] sm:$0xf] %v1176
        %1184 = vst [vmem:[%s1180 + $0xc] sm:$0xf] %v1177
      $region37: #{emotion_net_forward.6} parent=31 // loop_footer
        %s177 = sadd.s32 1, %s173
      $region38: #{emotion_net_forward.6} parent=31 // loop_footer_branch
        %172 = sbr.rel target = $region34
      $region39: #{emotion_net_forward.6} parent=31 // loop_exit
        _
      %p1185 = scmp.lt.s32.totalorder %s14, 1
      %s1186 = scalar_select %p1185, %s14, 1
      %s1187 = smul.addr %s1186, 8
      %s1188 = smul.addr %s1187, 4
      %s1189 = scalar_lea.vmem %s3, %s1188
      // Predicated region
      $region40: #{emotion_net_forward.6} parent=31 // pred_check
        %p1190 = pneg %p100
      $region41: #{emotion_net_forward.6} parent=31 // pred_check_branch
        %1192 = sbr.rel (%p1190) target = $region43
      $region42: #{emotion_net_forward.6} parent=31 // pred_region
        _
      $region43: #{emotion_net_forward.6} parent=31 // pred_fallthru
        _
    $region32: #{emotion_net_forward.6} parent=5 // pred_fallthru
      _
    %p1193 = scmp.le.s32.totalorder 2, %s9
    // Predicated region
    $region44: #{emotion_net_forward.6} parent=5 // pred_check
      %p1194 = pneg %p1193
    $region45: #{emotion_net_forward.6} parent=5 // pred_check_branch
      %1196 = sbr.rel (%p1194) target = $region47
    $region46: #{emotion_net_forward.6} parent=5 // pred_region
      %s1197 = ssub.s32 %s9, 2
      // Predicated region
      $region48: #{emotion_net_forward.6} parent=46 // pred_check
        %p1198 = pneg %p106
      $region49: #{emotion_net_forward.6} parent=46 // pred_check_branch
        %1200 = sbr.rel (%p1198) target = $region51
      $region50: #{emotion_net_forward.6} parent=46 // pred_region
        %p1201 = scmp.lt.s32.totalorder %s15, 1
        %s1202 = scalar_select %p1201, %s15, 1
        %s1203 = smul.addr %s1202, 8
        %s1204 = smul.addr %s1203, 4
        %s1205 = scalar_lea.vmem %s3, %s1204
      $region51: #{emotion_net_forward.6} parent=46 // pred_fallthru
        _
    $region47: #{emotion_net_forward.6} parent=5 // pred_fallthru
      _
  $region6: #{emotion_net_forward.6} parent=0 // loop_footer
    %s13 = sadd.s32 1, %s9
  $region7: #{emotion_net_forward.6} parent=0 // loop_footer_branch
    %8 = sbr.rel target = $region3
  $region8: #{emotion_net_forward.6} parent=0 // loop_exit
    _

// kernel: emotion_net_forward.7
$region0: #{emotion_net_forward.7}
  #allocation0 [shape = 'u32[]', space=smem, size = 0x4, offset = 0x4, fixed_abs, tag = 'smem constant byte address 0x4 - core index']
  #allocation1 [shape = 'u32[72,128]{1,0:T(1,128)}', space=vmem, size = 0x9000, scoped, tag = 'internal scratch']
  #allocation2 [shape = 'f32[2,512]{1,0:T(2,128)}', space=vmem, size = 0x1000, scoped, tag = 'scratch operand']
  %s0 = inlined_call_operand.vmem [shape: bf16[2,8192], index: 0, kind: input, shape index: {}]
  %s1 = inlined_call_operand.vmem [shape: bf16[8192,512], index: 1, kind: input, shape index: {}]
  %s2 = inlined_call_operand.vmem [shape: f32[1,512], index: 2, kind: input, shape index: {}]
  %s3 = inlined_call_operand.vmem [shape: f32[512,128], index: 3, kind: input, shape index: {}]
  %s4 = inlined_call_operand.vmem [shape: f32[1,128], index: 4, kind: input, shape index: {}]
  %s5 = inlined_call_operand.vmem [shape: f32[128,4], index: 5, kind: input, shape index: {}]
  %s6 = inlined_call_operand.vmem [shape: f32[1,4], index: 6, kind: input, shape index: {}]
  %s7 = inlined_call_operand.hbm [shape: f32[2,4], index: 7, kind: output, shape index: {}]
  %s8 = sld [smem:[#allocation0]]
  $region69: #{emotion_net_forward.7} parent=0
    _
  %s10 = ssub.s32 1, %s8
  %s11 = scalar_select 0, %s10, %s8
  $region1: #{emotion_net_forward.7} parent=0
    #allocation3 [shape = 'u8[1024]{0}', space=vmem, size = 0x400, scoped, tag = 'output window, operand 0, single buffered']
    #allocation4 [shape = 's32[2]{0}', space=sflag, size = 0x8, scoped, tag = 'scoped memory for emotion_net_forward.7']
    %12 = vsyncpa [#allocation4], 0
    loop: start=0, step=1, limit=4
    $region2: #{emotion_net_forward.7} parent=1 // loop_pre_header
      _
    $region3: #{emotion_net_forward.7} parent=1 // loop_header
      %s14 = sphi 0, %s18
      %p15 = scmp.ge.s32.totalorder %s14, 4
      %s24 = sphi 0, %s26
      %s27 = sphi 0, %s24
      %s28 = sphi 0, %s27
      %s44 = sphi 0, %s28
      %s50 = sphi 0, %s52
      %s53 = sphi 0, %s50
      %s54 = sphi 0, %s53
      %s70 = sphi 0, %s54
      %s74 = sphi 0, %s74
      %s76 = sphi 0, %s74
      %s77 = sphi 0, %s76
      %s91 = sphi 0, %s77
      %s95 = sphi 0, %s95
      %s97 = sphi 0, %s95
      %s98 = sphi 0, %s97
      %s112 = sphi 0, %s98
      %s116 = sphi 0, %s116
      %s118 = sphi 0, %s116
      %s119 = sphi 0, %s118
      %s133 = sphi 0, %s119
      %s137 = sphi 0, %s137
      %s139 = sphi 0, %s137
      %s140 = sphi 0, %s139
      %s154 = sphi 0, %s140
      %s158 = sphi 0, %s158
      %s160 = sphi 0, %s158
      %s161 = sphi 0, %s160
      %s175 = sphi 0, %s161
      %s179 = sphi 0, %s179
      %s181 = sphi 0, %s179
      %s182 = sphi 0, %s181
      %s196 = sphi 0, %s182
    $region4: #{emotion_net_forward.7} parent=1 // loop_header_branch
      %17 = sbr.rel (%p15) target = $region8
    $region5: #{emotion_net_forward.7} parent=1 // loop_body
      %s19 = ssub.s32 %s14, 1
      %s20 = ssub.s32 %s14, 2
      %s21 = sadd.s32 %s14, 1
      %s22 = ssub.s32 %s14, %s21
      %p23 = scmp.eq.s32.totalorder %s22, 0
      %s25 = sadd.s32 %s24, 1
      %s26 = scalar_select %p23, %s24, %s25
      %p29 = pneg %p23
      %p30 = scmp.eq.s32.totalorder %s14, 1
      %p31 = por %p29, %p30
      %p32 = scmp.ne.s32.totalorder %s24, %s27
      %p33 = scmp.eq.s32.totalorder %s14, 0
      %p34 = por %p32, %p33
      %p35 = scmp.ne.s32.totalorder %s24, %s27
      %p36 = scmp.eq.s32.totalorder %s19, 1
      %p37 = por %p35, %p36
      %p38 = scmp.ne.s32.totalorder %s27, %s28
      %p39 = scmp.eq.s32.totalorder %s19, 0
      %p40 = por %p38, %p39
      %p41 = scmp.ne.s32.totalorder %s27, %s28
      %p42 = scmp.eq.s32.totalorder %s20, 1
      %p43 = por %p41, %p42
      %p45 = scmp.ne.s32.totalorder %s28, %s44
      %p46 = scmp.eq.s32.totalorder %s20, 0
      %p47 = por %p45, %p46
      %s48 = ssub.s32 %s14, %s21
      %p49 = scmp.eq.s32.totalorder %s48, 0
      %s51 = sadd.s32 %s50, 1
      %s52 = scalar_select %p49, %s50, %s51
      %p55 = pneg %p49
      %p56 = scmp.eq.s32.totalorder %s14, 1
      %p57 = por %p55, %p56
      %p58 = scmp.ne.s32.totalorder %s50, %s53
      %p59 = scmp.eq.s32.totalorder %s14, 0
      %p60 = por %p58, %p59
      %p61 = scmp.ne.s32.totalorder %s50, %s53
      %p62 = scmp.eq.s32.totalorder %s19, 1
      %p63 = por %p61, %p62
      %p64 = scmp.ne.s32.totalorder %s53, %s54
      %p65 = scmp.eq.s32.totalorder %s19, 0
      %p66 = por %p64, %p65
      %p67 = scmp.ne.s32.totalorder %s53, %s54
      %p68 = scmp.eq.s32.totalorder %s20, 1
      %p69 = por %p67, %p68
      %p71 = scmp.ne.s32.totalorder %s54, %s70
      %p72 = scmp.eq.s32.totalorder %s20, 0
      %p73 = por %p71, %p72
      %s75 = sadd.s32 %s74, 1
      %p78 = scmp.eq.s32.totalorder %s14, 1
      %p79 = scmp.ne.s32.totalorder %s74, %s76
      %p80 = scmp.eq.s32.totalorder %s14, 0
      %p81 = por %p79, %p80
      %p82 = scmp.ne.s32.totalorder %s74, %s76
      %p83 = scmp.eq.s32.totalorder %s19, 1
      %p84 = por %p82, %p83
      %p85 = scmp.ne.s32.totalorder %s76, %s77
      %p86 = scmp.eq.s32.totalorder %s19, 0
      %p87 = por %p85, %p86
      %p88 = scmp.ne.s32.totalorder %s76, %s77
      %p89 = scmp.eq.s32.totalorder %s20, 1
      %p90 = por %p88, %p89
      %p92 = scmp.ne.s32.totalorder %s77, %s91
      %p93 = scmp.eq.s32.totalorder %s20, 0
      %p94 = por %p92, %p93
      %s96 = sadd.s32 %s95, 1
      %p99 = scmp.eq.s32.totalorder %s14, 1
      %p100 = scmp.ne.s32.totalorder %s95, %s97
      %p101 = scmp.eq.s32.totalorder %s14, 0
      %p102 = por %p100, %p101
      %p103 = scmp.ne.s32.totalorder %s95, %s97
      %p104 = scmp.eq.s32.totalorder %s19, 1
      %p105 = por %p103, %p104
      %p106 = scmp.ne.s32.totalorder %s97, %s98
      %p107 = scmp.eq.s32.totalorder %s19, 0
      %p108 = por %p106, %p107
      %p109 = scmp.ne.s32.totalorder %s97, %s98
      %p110 = scmp.eq.s32.totalorder %s20, 1
      %p111 = por %p109, %p110
      %p113 = scmp.ne.s32.totalorder %s98, %s112
      %p114 = scmp.eq.s32.totalorder %s20, 0
      %p115 = por %p113, %p114
      %s117 = sadd.s32 %s116, 1
      %p120 = scmp.eq.s32.totalorder %s14, 1
      %p121 = scmp.ne.s32.totalorder %s116, %s118
      %p122 = scmp.eq.s32.totalorder %s14, 0
      %p123 = por %p121, %p122
      %p124 = scmp.ne.s32.totalorder %s116, %s118
      %p125 = scmp.eq.s32.totalorder %s19, 1
      %p126 = por %p124, %p125
      %p127 = scmp.ne.s32.totalorder %s118, %s119
      %p128 = scmp.eq.s32.totalorder %s19, 0
      %p129 = por %p127, %p128
      %p130 = scmp.ne.s32.totalorder %s118, %s119
      %p131 = scmp.eq.s32.totalorder %s20, 1
      %p132 = por %p130, %p131
      %p134 = scmp.ne.s32.totalorder %s119, %s133
      %p135 = scmp.eq.s32.totalorder %s20, 0
      %p136 = por %p134, %p135
      %s138 = sadd.s32 %s137, 1
      %p141 = scmp.eq.s32.totalorder %s14, 1
      %p142 = scmp.ne.s32.totalorder %s137, %s139
      %p143 = scmp.eq.s32.totalorder %s14, 0
      %p144 = por %p142, %p143
      %p145 = scmp.ne.s32.totalorder %s137, %s139
      %p146 = scmp.eq.s32.totalorder %s19, 1
      %p147 = por %p145, %p146
      %p148 = scmp.ne.s32.totalorder %s139, %s140
      %p149 = scmp.eq.s32.totalorder %s19, 0
      %p150 = por %p148, %p149
      %p151 = scmp.ne.s32.totalorder %s139, %s140
      %p152 = scmp.eq.s32.totalorder %s20, 1
      %p153 = por %p151, %p152
      %p155 = scmp.ne.s32.totalorder %s140, %s154
      %p156 = scmp.eq.s32.totalorder %s20, 0
      %p157 = por %p155, %p156
      %s159 = sadd.s32 %s158, 1
      %p162 = scmp.eq.s32.totalorder %s14, 1
      %p163 = scmp.ne.s32.totalorder %s158, %s160
      %p164 = scmp.eq.s32.totalorder %s14, 0
      %p165 = por %p163, %p164
      %p166 = scmp.ne.s32.totalorder %s158, %s160
      %p167 = scmp.eq.s32.totalorder %s19, 1
      %p168 = por %p166, %p167
      %p169 = scmp.ne.s32.totalorder %s160, %s161
      %p170 = scmp.eq.s32.totalorder %s19, 0
      %p171 = por %p169, %p170
      %p172 = scmp.ne.s32.totalorder %s160, %s161
      %p173 = scmp.eq.s32.totalorder %s20, 1
      %p174 = por %p172, %p173
      %p176 = scmp.ne.s32.totalorder %s161, %s175
      %p177 = scmp.eq.s32.totalorder %s20, 0
      %p178 = por %p176, %p177
      %s180 = sadd.s32 %s179, 1
      %p183 = scmp.eq.s32.totalorder %s14, 1
      %p184 = scmp.ne.s32.totalorder %s179, %s181
      %p185 = scmp.eq.s32.totalorder %s14, 0
      %p186 = por %p184, %p185
      %p187 = scmp.ne.s32.totalorder %s179, %s181
      %p188 = scmp.eq.s32.totalorder %s19, 1
      %p189 = por %p187, %p188
      %p190 = scmp.ne.s32.totalorder %s181, %s182
      %p191 = scmp.eq.s32.totalorder %s19, 0
      %p192 = por %p190, %p191
      %p193 = scmp.ne.s32.totalorder %s181, %s182
      %p194 = scmp.eq.s32.totalorder %s20, 1
      %p195 = por %p193, %p194
      %p197 = scmp.ne.s32.totalorder %s182, %s196
      %p198 = scmp.eq.s32.totalorder %s20, 0
      %p199 = por %p197, %p198
      %p200 = scmp.le.s32.totalorder 1, %s14
      %p201 = scmp.lt.s32.totalorder %s14, 3
      %p202 = pnand %p200, %p201
      %p203 = pneg %p202
      // Predicated region
      $region9: #{emotion_net_forward.7} parent=5 // pred_check
        _
      $region10: #{emotion_net_forward.7} parent=5 // pred_check_branch
        %205 = sbr.rel (%p202) target = $region12
      $region11: #{emotion_net_forward.7} parent=5 // pred_region
        %s206 = ssub.s32 %s14, 1
        // Predicated region
        $region13: #{emotion_net_forward.7} parent=11 // pred_check
          %p207 = pneg %p87
        $region14: #{emotion_net_forward.7} parent=11 // pred_check_branch
          %209 = sbr.rel (%p207) target = $region16
        $region15: #{emotion_net_forward.7} parent=11 // pred_region
          _
        $region16: #{emotion_net_forward.7} parent=11 // pred_fallthru
          _
        // Predicated region
        $region17: #{emotion_net_forward.7} parent=11 // pred_check
          %p210 = pneg %p108
        $region18: #{emotion_net_forward.7} parent=11 // pred_check_branch
          %212 = sbr.rel (%p210) target = $region20
        $region19: #{emotion_net_forward.7} parent=11 // pred_region
          _
        $region20: #{emotion_net_forward.7} parent=11 // pred_fallthru
          _
        // Predicated region
        $region21: #{emotion_net_forward.7} parent=11 // pred_check
          %p213 = pneg %p129
        $region22: #{emotion_net_forward.7} parent=11 // pred_check_branch
          %215 = sbr.rel (%p213) target = $region24
        $region23: #{emotion_net_forward.7} parent=11 // pred_region
          _
        $region24: #{emotion_net_forward.7} parent=11 // pred_fallthru
          _
        // Predicated region
        $region25: #{emotion_net_forward.7} parent=11 // pred_check
          %p216 = pneg %p150
        $region26: #{emotion_net_forward.7} parent=11 // pred_check_branch
          %218 = sbr.rel (%p216) target = $region28
        $region27: #{emotion_net_forward.7} parent=11 // pred_region
          _
        $region28: #{emotion_net_forward.7} parent=11 // pred_fallthru
          _
        // Predicated region
        $region29: #{emotion_net_forward.7} parent=11 // pred_check
          %p219 = pneg %p171
        $region30: #{emotion_net_forward.7} parent=11 // pred_check_branch
          %221 = sbr.rel (%p219) target = $region32
        $region31: #{emotion_net_forward.7} parent=11 // pred_region
          _
        $region32: #{emotion_net_forward.7} parent=11 // pred_fallthru
          _
      $region12: #{emotion_net_forward.7} parent=5 // pred_fallthru
        _
      %p222 = scmp.lt.s32.totalorder %s14, 2
      // Predicated region
      $region33: #{emotion_net_forward.7} parent=5 // pred_check
        %p223 = pneg %p222
      $region34: #{emotion_net_forward.7} parent=5 // pred_check_branch
        %225 = sbr.rel (%p223) target = $region36
      $region35: #{emotion_net_forward.7} parent=5 // pred_region
        // Predicated region
        $region37: #{emotion_net_forward.7} parent=35 // pred_check
          %p226 = pneg %p34
        $region38: #{emotion_net_forward.7} parent=35 // pred_check_branch
          %228 = sbr.rel (%p226) target = $region40
        $region39: #{emotion_net_forward.7} parent=35 // pred_region
          %s229 = smul.u32 32, %s14
          %p230 = scmp.lt.s32.totalorder %s229, 63
          %s231 = scalar_select %p230, %s229, 63
          %s232 = scalar_lea.vmem %s0, %s231
          %s233 = smul.u32 32, %s14
        $region40: #{emotion_net_forward.7} parent=35 // pred_fallthru
          _
        // Predicated region
        $region41: #{emotion_net_forward.7} parent=35 // pred_check
          %p234 = pneg %p60
        $region42: #{emotion_net_forward.7} parent=35 // pred_check_branch
          %236 = sbr.rel (%p234) target = $region44
        $region43: #{emotion_net_forward.7} parent=35 // pred_region
          %s237 = smul.u32 512, %s14
          %p238 = scmp.lt.s32.totalorder %s237, 1023
          %s239 = scalar_select %p238, %s237, 1023
          %s240 = smul.addr %s239, 4
          %s241 = smul.addr %s240, 4
          %s242 = scalar_lea.vmem %s1, %s241
          %s243 = smul.u32 512, %s14
        $region44: #{emotion_net_forward.7} parent=35 // pred_fallthru
          _
      $region36: #{emotion_net_forward.7} parent=5 // pred_fallthru
        _
      %p244 = scmp.le.s32.totalorder 1, %s14
      %p245 = scmp.lt.s32.totalorder %s14, 3
      %p246 = pnand %p244, %p245
      %p247 = pneg %p246
      // Predicated region
      $region45: #{emotion_net_forward.7} parent=5 // pred_check
        _
      $region46: #{emotion_net_forward.7} parent=5 // pred_check_branch
        %249 = sbr.rel (%p246) target = $region48
      $region47: #{emotion_net_forward.7} parent=5 // pred_region
        %s250 = ssub.s32 %s14, 1
        %s251 = smul.u32 32, %s19
        %p252 = scmp.lt.s32.totalorder %s251, 63
        %s253 = scalar_select %p252, %s251, 63
        %s254 = scalar_lea.vmem %s0, %s253
        %p255 = pneg %p40
        %p256 = pneg %p37
        %s257 = smul.u32 512, %s19
        %p258 = scmp.lt.s32.totalorder %s257, 1023
        %s259 = scalar_select %p258, %s257, 1023
        %s260 = smul.addr %s259, 4
        %s261 = smul.addr %s260, 4
        %s262 = scalar_lea.vmem %s1, %s261
        %p263 = pneg %p66
        %p264 = pneg %p63
        %p265 = pneg %p87
        %p266 = pneg %p84
        %p267 = pneg %p108
        %p268 = pneg %p105
        %p269 = pneg %p129
        %p270 = pneg %p126
        %p271 = pneg %p150
        %p272 = pneg %p147
        %p273 = pneg %p171
        %p274 = pneg %p168
        %p275 = pneg %p192
        %p276 = pneg %p189
        %s277 = smul.u32 32, %s19
        %p278 = scmp.lt.s32.totalorder %s277, 63
        %s279 = scalar_select %p278, %s277, 63
        %s280 = scalar_lea.vmem %s0, %s279
        %s281 = smul.u32 32, %s19
        %s282 = smul.u32 512, %s19
        %p283 = scmp.lt.s32.totalorder %s282, 1023
        %s284 = scalar_select %p283, %s282, 1023
        %s285 = smul.addr %s284, 4
        %s286 = smul.addr %s285, 4
        %s287 = scalar_lea.vmem %s1, %s286
        %s288 = smul.u32 512, %s19
        %p289 = scmp.eq.s32.totalorder %s19, 0
        // Predicated region
        $region49: #{emotion_net_forward.7} parent=47 // pred_check
          %p290 = pneg %p289
        $region50: #{emotion_net_forward.7} parent=47 // pred_check_branch
          %292 = sbr.rel (%p290) target = $region52
        $region51: #{emotion_net_forward.7} parent=47 // pred_region
          %293 = vst [vmem:[#allocation2] sm:$0xff] 0.0
        $region52: #{emotion_net_forward.7} parent=47 // pred_fallthru
          _
        %v294 = vld [vmem:[#allocation2] sm:$0xff]
        %v295 = vld [vmem:[%s280] sm:$0xff]
        %v296 = vld [vmem:[%s280 + $0x8] sm:$0xff]
        %v297 = vld [vmem:[%s280 + $0x10] sm:$0xff]
        %v298 = vld [vmem:[%s280 + $0x18] sm:$0xff]
        %v299 = vld [vmem:[%s287] sm:$0xff]
        %v300 = vld [vmem:[%s287 + $0x8] sm:$0xff]
        %v301 = vld [vmem:[%s287 + $0x10] sm:$0xff]
        %v302 = vld [vmem:[%s287 + $0x18] sm:$0xff]
        %v303 = vld [vmem:[%s287 + $0x20] sm:$0xff]
        %v304 = vld [vmem:[%s287 + $0x28] sm:$0xff]
        %v305 = vld [vmem:[%s287 + $0x30] sm:$0xff]
        %v306 = vld [vmem:[%s287 + $0x38] sm:$0xff]
        %v307 = vld [vmem:[%s287 + $0x40] sm:$0xff]
        %v308 = vld [vmem:[%s287 + $0x48] sm:$0xff]
        %v309 = vld [vmem:[%s287 + $0x50] sm:$0xff]
        %v310 = vld [vmem:[%s287 + $0x58] sm:$0xff]
        %v311 = vld [vmem:[%s287 + $0x60] sm:$0xff]
        %v312 = vld [vmem:[%s287 + $0x68] sm:$0xff]
        %v313 = vld [vmem:[%s287 + $0x70] sm:$0xff]
        %v314 = vld [vmem:[%s287 + $0x78] sm:$0xff]
        %v315 = vld [vmem:[%s287 + $0x80] sm:$0xff]
        %v316 = vld [vmem:[%s287 + $0x88] sm:$0xff]
        %v317 = vld [vmem:[%s287 + $0x90] sm:$0xff]
        %v318 = vld [vmem:[%s287 + $0x98] sm:$0xff]
        %v319 = vld [vmem:[%s287 + $0xa0] sm:$0xff]
        %v320 = vld [vmem:[%s287 + $0xa8] sm:$0xff]
        %v321 = vld [vmem:[%s287 + $0xb0] sm:$0xff]
        %v322 = vld [vmem:[%s287 + $0xb8] sm:$0xff]
        %v323 = vld [vmem:[%s287 + $0xc0] sm:$0xff]
        %v324 = vld [vmem:[%s287 + $0xc8] sm:$0xff]
        %v325 = vld [vmem:[%s287 + $0xd0] sm:$0xff]
        %v326 = vld [vmem:[%s287 + $0xd8] sm:$0xff]
        %v327 = vld [vmem:[%s287 + $0xe0] sm:$0xff]
        %v328 = vld [vmem:[%s287 + $0xe8] sm:$0xff]
        %v329 = vld [vmem:[%s287 + $0xf0] sm:$0xff]
        %v330 = vld [vmem:[%s287 + $0xf8] sm:$0xff]
        %v331 = vld [vmem:[%s287 + $0x100] sm:$0xff]
        %v332 = vld [vmem:[%s287 + $0x108] sm:$0xff]
        %v333 = vld [vmem:[%s287 + $0x110] sm:$0xff]
        %v334 = vld [vmem:[%s287 + $0x118] sm:$0xff]
        %v335 = vld [vmem:[%s287 + $0x120] sm:$0xff]
        %v336 = vld [vmem:[%s287 + $0x128] sm:$0xff]
        %v337 = vld [vmem:[%s287 + $0x130] sm:$0xff]
        %v338 = vld [vmem:[%s287 + $0x138] sm:$0xff]
        %v339 = vld [vmem:[%s287 + $0x140] sm:$0xff]
        %v340 = vld [vmem:[%s287 + $0x148] sm:$0xff]
        %v341 = vld [vmem:[%s287 + $0x150] sm:$0xff]
        %v342 = vld [vmem:[%s287 + $0x158] sm:$0xff]
        %v343 = vld [vmem:[%s287 + $0x160] sm:$0xff]
        %v344 = vld [vmem:[%s287 + $0x168] sm:$0xff]
        %v345 = vld [vmem:[%s287 + $0x170] sm:$0xff]
        %v346 = vld [vmem:[%s287 + $0x178] sm:$0xff]
        %v347 = vld [vmem:[%s287 + $0x180] sm:$0xff]
        %v348 = vld [vmem:[%s287 + $0x188] sm:$0xff]
        %v349 = vld [vmem:[%s287 + $0x190] sm:$0xff]
        %v350 = vld [vmem:[%s287 + $0x198] sm:$0xff]
        %v351 = vld [vmem:[%s287 + $0x1a0] sm:$0xff]
        %v352 = vld [vmem:[%s287 + $0x1a8] sm:$0xff]
        %v353 = vld [vmem:[%s287 + $0x1b0] sm:$0xff]
        %v354 = vld [vmem:[%s287 + $0x1b8] sm:$0xff]
        %v355 = vld [vmem:[%s287 + $0x1c0] sm:$0xff]
        %v356 = vld [vmem:[%s287 + $0x1c8] sm:$0xff]
        %v357 = vld [vmem:[%s287 + $0x1d0] sm:$0xff]
        %v358 = vld [vmem:[%s287 + $0x1d8] sm:$0xff]
        %v359 = vld [vmem:[%s287 + $0x1e0] sm:$0xff]
        %v360 = vld [vmem:[%s287 + $0x1e8] sm:$0xff]
        %v361 = vld [vmem:[%s287 + $0x1f0] sm:$0xff]
        %v362 = vld [vmem:[%s287 + $0x1f8] sm:$0xff]
        %v363 = vld [vmem:[%s287 + $0x200] sm:$0xff]
        %v364 = vld [vmem:[%s287 + $0x208] sm:$0xff]
        %v365 = vld [vmem:[%s287 + $0x210] sm:$0xff]
        %v366 = vld [vmem:[%s287 + $0x218] sm:$0xff]
        %v367 = vld [vmem:[%s287 + $0x220] sm:$0xff]
        %v368 = vld [vmem:[%s287 + $0x228] sm:$0xff]
        %v369 = vld [vmem:[%s287 + $0x230] sm:$0xff]
        %v370 = vld [vmem:[%s287 + $0x238] sm:$0xff]
        %v371 = vld [vmem:[%s287 + $0x240] sm:$0xff]
        %v372 = vld [vmem:[%s287 + $0x248] sm:$0xff]
        %v373 = vld [vmem:[%s287 + $0x250] sm:$0xff]
        %v374 = vld [vmem:[%s287 + $0x258] sm:$0xff]
        %v375 = vld [vmem:[%s287 + $0x260] sm:$0xff]
        %v376 = vld [vmem:[%s287 + $0x268] sm:$0xff]
        %v377 = vld [vmem:[%s287 + $0x270] sm:$0xff]
        %v378 = vld [vmem:[%s287 + $0x278] sm:$0xff]
        %v379 = vld [vmem:[%s287 + $0x280] sm:$0xff]
        %v380 = vld [vmem:[%s287 + $0x288] sm:$0xff]
        %v381 = vld [vmem:[%s287 + $0x290] sm:$0xff]
        %v382 = vld [vmem:[%s287 + $0x298] sm:$0xff]
        %v383 = vld [vmem:[%s287 + $0x2a0] sm:$0xff]
        %v384 = vld [vmem:[%s287 + $0x2a8] sm:$0xff]
        %v385 = vld [vmem:[%s287 + $0x2b0] sm:$0xff]
        %v386 = vld [vmem:[%s287 + $0x2b8] sm:$0xff]
        %v387 = vld [vmem:[%s287 + $0x2c0] sm:$0xff]
        %v388 = vld [vmem:[%s287 + $0x2c8] sm:$0xff]
        %v389 = vld [vmem:[%s287 + $0x2d0] sm:$0xff]
        %v390 = vld [vmem:[%s287 + $0x2d8] sm:$0xff]
        %v391 = vld [vmem:[%s287 + $0x2e0] sm:$0xff]
        %v392 = vld [vmem:[%s287 + $0x2e8] sm:$0xff]
        %v393 = vld [vmem:[%s287 + $0x2f0] sm:$0xff]
        %v394 = vld [vmem:[%s287 + $0x2f8] sm:$0xff]
        %v395 = vld [vmem:[%s287 + $0x300] sm:$0xff]
        %v396 = vld [vmem:[%s287 + $0x308] sm:$0xff]
        %v397 = vld [vmem:[%s287 + $0x310] sm:$0xff]
        %v398 = vld [vmem:[%s287 + $0x318] sm:$0xff]
        %v399 = vld [vmem:[%s287 + $0x320] sm:$0xff]
        %v400 = vld [vmem:[%s287 + $0x328] sm:$0xff]
        %v401 = vld [vmem:[%s287 + $0x330] sm:$0xff]
        %v402 = vld [vmem:[%s287 + $0x338] sm:$0xff]
        %v403 = vld [vmem:[%s287 + $0x340] sm:$0xff]
        %v404 = vld [vmem:[%s287 + $0x348] sm:$0xff]
        %v405 = vld [vmem:[%s287 + $0x350] sm:$0xff]
        %v406 = vld [vmem:[%s287 + $0x358] sm:$0xff]
        %v407 = vld [vmem:[%s287 + $0x360] sm:$0xff]
        %v408 = vld [vmem:[%s287 + $0x368] sm:$0xff]
        %v409 = vld [vmem:[%s287 + $0x370] sm:$0xff]
        %v410 = vld [vmem:[%s287 + $0x378] sm:$0xff]
        %v411 = vld [vmem:[%s287 + $0x380] sm:$0xff]
        %v412 = vld [vmem:[%s287 + $0x388] sm:$0xff]
        %v413 = vld [vmem:[%s287 + $0x390] sm:$0xff]
        %v414 = vld [vmem:[%s287 + $0x398] sm:$0xff]
        %v415 = vld [vmem:[%s287 + $0x3a0] sm:$0xff]
        %v416 = vld [vmem:[%s287 + $0x3a8] sm:$0xff]
        %v417 = vld [vmem:[%s287 + $0x3b0] sm:$0xff]
        %v418 = vld [vmem:[%s287 + $0x3b8] sm:$0xff]
        %v419 = vld [vmem:[%s287 + $0x3c0] sm:$0xff]
        %v420 = vld [vmem:[%s287 + $0x3c8] sm:$0xff]
        %v421 = vld [vmem:[%s287 + $0x3d0] sm:$0xff]
        %v422 = vld [vmem:[%s287 + $0x3d8] sm:$0xff]
        %v423 = vld [vmem:[%s287 + $0x3e0] sm:$0xff]
        %v424 = vld [vmem:[%s287 + $0x3e8] sm:$0xff]
        %v425 = vld [vmem:[%s287 + $0x3f0] sm:$0xff]
        %v426 = vld [vmem:[%s287 + $0x3f8] sm:$0xff]
        %v427 = vld [vmem:[%s287 + $0x400] sm:$0xff]
        %v428 = vld [vmem:[%s287 + $0x408] sm:$0xff]
        %v429 = vld [vmem:[%s287 + $0x410] sm:$0xff]
        %v430 = vld [vmem:[%s287 + $0x418] sm:$0xff]
        %v431 = vld [vmem:[%s287 + $0x420] sm:$0xff]
        %v432 = vld [vmem:[%s287 + $0x428] sm:$0xff]
        %v433 = vld [vmem:[%s287 + $0x430] sm:$0xff]
        %v434 = vld [vmem:[%s287 + $0x438] sm:$0xff]
        %v435 = vld [vmem:[%s287 + $0x440] sm:$0xff]
        %v436 = vld [vmem:[%s287 + $0x448] sm:$0xff]
        %v437 = vld [vmem:[%s287 + $0x450] sm:$0xff]
        %v438 = vld [vmem:[%s287 + $0x458] sm:$0xff]
        %v439 = vld [vmem:[%s287 + $0x460] sm:$0xff]
        %v440 = vld [vmem:[%s287 + $0x468] sm:$0xff]
        %v441 = vld [vmem:[%s287 + $0x470] sm:$0xff]
        %v442 = vld [vmem:[%s287 + $0x478] sm:$0xff]
        %v443 = vld [vmem:[%s287 + $0x480] sm:$0xff]
        %v444 = vld [vmem:[%s287 + $0x488] sm:$0xff]
        %v445 = vld [vmem:[%s287 + $0x490] sm:$0xff]
        %v446 = vld [vmem:[%s287 + $0x498] sm:$0xff]
        %v447 = vld [vmem:[%s287 + $0x4a0] sm:$0xff]
        %v448 = vld [vmem:[%s287 + $0x4a8] sm:$0xff]
        %v449 = vld [vmem:[%s287 + $0x4b0] sm:$0xff]
        %v450 = vld [vmem:[%s287 + $0x4b8] sm:$0xff]
        %v451 = vld [vmem:[%s287 + $0x4c0] sm:$0xff]
        %v452 = vld [vmem:[%s287 + $0x4c8] sm:$0xff]
        %v453 = vld [vmem:[%s287 + $0x4d0] sm:$0xff]
        %v454 = vld [vmem:[%s287 + $0x4d8] sm:$0xff]
        %v455 = vld [vmem:[%s287 + $0x4e0] sm:$0xff]
        %v456 = vld [vmem:[%s287 + $0x4e8] sm:$0xff]
        %v457 = vld [vmem:[%s287 + $0x4f0] sm:$0xff]
        %v458 = vld [vmem:[%s287 + $0x4f8] sm:$0xff]
        %v459 = vld [vmem:[%s287 + $0x500] sm:$0xff]
        %v460 = vld [vmem:[%s287 + $0x508] sm:$0xff]
        %v461 = vld [vmem:[%s287 + $0x510] sm:$0xff]
        %v462 = vld [vmem:[%s287 + $0x518] sm:$0xff]
        %v463 = vld [vmem:[%s287 + $0x520] sm:$0xff]
        %v464 = vld [vmem:[%s287 + $0x528] sm:$0xff]
        %v465 = vld [vmem:[%s287 + $0x530] sm:$0xff]
        %v466 = vld [vmem:[%s287 + $0x538] sm:$0xff]
        %v467 = vld [vmem:[%s287 + $0x540] sm:$0xff]
        %v468 = vld [vmem:[%s287 + $0x548] sm:$0xff]
        %v469 = vld [vmem:[%s287 + $0x550] sm:$0xff]
        %v470 = vld [vmem:[%s287 + $0x558] sm:$0xff]
        %v471 = vld [vmem:[%s287 + $0x560] sm:$0xff]
        %v472 = vld [vmem:[%s287 + $0x568] sm:$0xff]
        %v473 = vld [vmem:[%s287 + $0x570] sm:$0xff]
        %v474 = vld [vmem:[%s287 + $0x578] sm:$0xff]
        %v475 = vld [vmem:[%s287 + $0x580] sm:$0xff]
        %v476 = vld [vmem:[%s287 + $0x588] sm:$0xff]
        %v477 = vld [vmem:[%s287 + $0x590] sm:$0xff]
        %v478 = vld [vmem:[%s287 + $0x598] sm:$0xff]
        %v479 = vld [vmem:[%s287 + $0x5a0] sm:$0xff]
        %v480 = vld [vmem:[%s287 + $0x5a8] sm:$0xff]
        %v481 = vld [vmem:[%s287 + $0x5b0] sm:$0xff]
        %v482 = vld [vmem:[%s287 + $0x5b8] sm:$0xff]
        %v483 = vld [vmem:[%s287 + $0x5c0] sm:$0xff]
        %v484 = vld [vmem:[%s287 + $0x5c8] sm:$0xff]
        %v485 = vld [vmem:[%s287 + $0x5d0] sm:$0xff]
        %v486 = vld [vmem:[%s287 + $0x5d8] sm:$0xff]
        %v487 = vld [vmem:[%s287 + $0x5e0] sm:$0xff]
        %v488 = vld [vmem:[%s287 + $0x5e8] sm:$0xff]
        %v489 = vld [vmem:[%s287 + $0x5f0] sm:$0xff]
        %v490 = vld [vmem:[%s287 + $0x5f8] sm:$0xff]
        %v491 = vld [vmem:[%s287 + $0x600] sm:$0xff]
        %v492 = vld [vmem:[%s287 + $0x608] sm:$0xff]
        %v493 = vld [vmem:[%s287 + $0x610] sm:$0xff]
        %v494 = vld [vmem:[%s287 + $0x618] sm:$0xff]
        %v495 = vld [vmem:[%s287 + $0x620] sm:$0xff]
        %v496 = vld [vmem:[%s287 + $0x628] sm:$0xff]
        %v497 = vld [vmem:[%s287 + $0x630] sm:$0xff]
        %v498 = vld [vmem:[%s287 + $0x638] sm:$0xff]
        %v499 = vld [vmem:[%s287 + $0x640] sm:$0xff]
        %v500 = vld [vmem:[%s287 + $0x648] sm:$0xff]
        %v501 = vld [vmem:[%s287 + $0x650] sm:$0xff]
        %v502 = vld [vmem:[%s287 + $0x658] sm:$0xff]
        %v503 = vld [vmem:[%s287 + $0x660] sm:$0xff]
        %v504 = vld [vmem:[%s287 + $0x668] sm:$0xff]
        %v505 = vld [vmem:[%s287 + $0x670] sm:$0xff]
        %v506 = vld [vmem:[%s287 + $0x678] sm:$0xff]
        %v507 = vld [vmem:[%s287 + $0x680] sm:$0xff]
        %v508 = vld [vmem:[%s287 + $0x688] sm:$0xff]
        %v509 = vld [vmem:[%s287 + $0x690] sm:$0xff]
        %v510 = vld [vmem:[%s287 + $0x698] sm:$0xff]
        %v511 = vld [vmem:[%s287 + $0x6a0] sm:$0xff]
        %v512 = vld [vmem:[%s287 + $0x6a8] sm:$0xff]
        %v513 = vld [vmem:[%s287 + $0x6b0] sm:$0xff]
        %v514 = vld [vmem:[%s287 + $0x6b8] sm:$0xff]
        %v515 = vld [vmem:[%s287 + $0x6c0] sm:$0xff]
        %v516 = vld [vmem:[%s287 + $0x6c8] sm:$0xff]
        %v517 = vld [vmem:[%s287 + $0x6d0] sm:$0xff]
        %v518 = vld [vmem:[%s287 + $0x6d8] sm:$0xff]
        %v519 = vld [vmem:[%s287 + $0x6e0] sm:$0xff]
        %v520 = vld [vmem:[%s287 + $0x6e8] sm:$0xff]
        %v521 = vld [vmem:[%s287 + $0x6f0] sm:$0xff]
        %v522 = vld [vmem:[%s287 + $0x6f8] sm:$0xff]
        %v523 = vld [vmem:[%s287 + $0x700] sm:$0xff]
        %v524 = vld [vmem:[%s287 + $0x708] sm:$0xff]
        %v525 = vld [vmem:[%s287 + $0x710] sm:$0xff]
        %v526 = vld [vmem:[%s287 + $0x718] sm:$0xff]
        %v527 = vld [vmem:[%s287 + $0x720] sm:$0xff]
        %v528 = vld [vmem:[%s287 + $0x728] sm:$0xff]
        %v529 = vld [vmem:[%s287 + $0x730] sm:$0xff]
        %v530 = vld [vmem:[%s287 + $0x738] sm:$0xff]
        %v531 = vld [vmem:[%s287 + $0x740] sm:$0xff]
        %v532 = vld [vmem:[%s287 + $0x748] sm:$0xff]
        %v533 = vld [vmem:[%s287 + $0x750] sm:$0xff]
        %v534 = vld [vmem:[%s287 + $0x758] sm:$0xff]
        %v535 = vld [vmem:[%s287 + $0x760] sm:$0xff]
        %v536 = vld [vmem:[%s287 + $0x768] sm:$0xff]
        %v537 = vld [vmem:[%s287 + $0x770] sm:$0xff]
        %v538 = vld [vmem:[%s287 + $0x778] sm:$0xff]
        %v539 = vld [vmem:[%s287 + $0x780] sm:$0xff]
        %v540 = vld [vmem:[%s287 + $0x788] sm:$0xff]
        %v541 = vld [vmem:[%s287 + $0x790] sm:$0xff]
        %v542 = vld [vmem:[%s287 + $0x798] sm:$0xff]
        %v543 = vld [vmem:[%s287 + $0x7a0] sm:$0xff]
        %v544 = vld [vmem:[%s287 + $0x7a8] sm:$0xff]
        %v545 = vld [vmem:[%s287 + $0x7b0] sm:$0xff]
        %v546 = vld [vmem:[%s287 + $0x7b8] sm:$0xff]
        %v547 = vld [vmem:[%s287 + $0x7c0] sm:$0xff]
        %v548 = vld [vmem:[%s287 + $0x7c8] sm:$0xff]
        %v549 = vld [vmem:[%s287 + $0x7d0] sm:$0xff]
        %v550 = vld [vmem:[%s287 + $0x7d8] sm:$0xff]
        %v551 = vld [vmem:[%s287 + $0x7e0] sm:$0xff]
        %v552 = vld [vmem:[%s287 + $0x7e8] sm:$0xff]
        %v553 = vld [vmem:[%s287 + $0x7f0] sm:$0xff]
        %v554 = vld [vmem:[%s287 + $0x7f8] sm:$0xff]
        %v555 = vld [vmem:[%s287 + $0x800] sm:$0xff]
        %v556 = vld [vmem:[%s287 + $0x808] sm:$0xff]
        %v557 = vld [vmem:[%s287 + $0x810] sm:$0xff]
        %v558 = vld [vmem:[%s287 + $0x818] sm:$0xff]
        %v559 = vld [vmem:[%s287 + $0x820] sm:$0xff]
        %v560 = vld [vmem:[%s287 + $0x828] sm:$0xff]
        %v561 = vld [vmem:[%s287 + $0x830] sm:$0xff]
        %v562 = vld [vmem:[%s287 + $0x838] sm:$0xff]
        %v563 = vld [vmem:[%s287 + $0x840] sm:$0xff]
        %v564 = vld [vmem:[%s287 + $0x848] sm:$0xff]
        %v565 = vld [vmem:[%s287 + $0x850] sm:$0xff]
        %v566 = vld [vmem:[%s287 + $0x858] sm:$0xff]
        %v567 = vld [vmem:[%s287 + $0x860] sm:$0xff]
        %v568 = vld [vmem:[%s287 + $0x868] sm:$0xff]
        %v569 = vld [vmem:[%s287 + $0x870] sm:$0xff]
        %v570 = vld [vmem:[%s287 + $0x878] sm:$0xff]
        %v571 = vld [vmem:[%s287 + $0x880] sm:$0xff]
        %v572 = vld [vmem:[%s287 + $0x888] sm:$0xff]
        %v573 = vld [vmem:[%s287 + $0x890] sm:$0xff]
        %v574 = vld [vmem:[%s287 + $0x898] sm:$0xff]
        %v575 = vld [vmem:[%s287 + $0x8a0] sm:$0xff]
        %v576 = vld [vmem:[%s287 + $0x8a8] sm:$0xff]
        %v577 = vld [vmem:[%s287 + $0x8b0] sm:$0xff]
        %v578 = vld [vmem:[%s287 + $0x8b8] sm:$0xff]
        %v579 = vld [vmem:[%s287 + $0x8c0] sm:$0xff]
        %v580 = vld [vmem:[%s287 + $0x8c8] sm:$0xff]
        %v581 = vld [vmem:[%s287 + $0x8d0] sm:$0xff]
        %v582 = vld [vmem:[%s287 + $0x8d8] sm:$0xff]
        %v583 = vld [vmem:[%s287 + $0x8e0] sm:$0xff]
        %v584 = vld [vmem:[%s287 + $0x8e8] sm:$0xff]
        %v585 = vld [vmem:[%s287 + $0x8f0] sm:$0xff]
        %v586 = vld [vmem:[%s287 + $0x8f8] sm:$0xff]
        %v587 = vld [vmem:[%s287 + $0x900] sm:$0xff]
        %v588 = vld [vmem:[%s287 + $0x908] sm:$0xff]
        %v589 = vld [vmem:[%s287 + $0x910] sm:$0xff]
        %v590 = vld [vmem:[%s287 + $0x918] sm:$0xff]
        %v591 = vld [vmem:[%s287 + $0x920] sm:$0xff]
        %v592 = vld [vmem:[%s287 + $0x928] sm:$0xff]
        %v593 = vld [vmem:[%s287 + $0x930] sm:$0xff]
        %v594 = vld [vmem:[%s287 + $0x938] sm:$0xff]
        %v595 = vld [vmem:[%s287 + $0x940] sm:$0xff]
        %v596 = vld [vmem:[%s287 + $0x948] sm:$0xff]
        %v597 = vld [vmem:[%s287 + $0x950] sm:$0xff]
        %v598 = vld [vmem:[%s287 + $0x958] sm:$0xff]
        %v599 = vld [vmem:[%s287 + $0x960] sm:$0xff]
        %v600 = vld [vmem:[%s287 + $0x968] sm:$0xff]
        %v601 = vld [vmem:[%s287 + $0x970] sm:$0xff]
        %v602 = vld [vmem:[%s287 + $0x978] sm:$0xff]
        %v603 = vld [vmem:[%s287 + $0x980] sm:$0xff]
        %v604 = vld [vmem:[%s287 + $0x988] sm:$0xff]
        %v605 = vld [vmem:[%s287 + $0x990] sm:$0xff]
        %v606 = vld [vmem:[%s287 + $0x998] sm:$0xff]
        %v607 = vld [vmem:[%s287 + $0x9a0] sm:$0xff]
        %v608 = vld [vmem:[%s287 + $0x9a8] sm:$0xff]
        %v609 = vld [vmem:[%s287 + $0x9b0] sm:$0xff]
        %v610 = vld [vmem:[%s287 + $0x9b8] sm:$0xff]
        %v611 = vld [vmem:[%s287 + $0x9c0] sm:$0xff]
        %v612 = vld [vmem:[%s287 + $0x9c8] sm:$0xff]
        %v613 = vld [vmem:[%s287 + $0x9d0] sm:$0xff]
        %v614 = vld [vmem:[%s287 + $0x9d8] sm:$0xff]
        %v615 = vld [vmem:[%s287 + $0x9e0] sm:$0xff]
        %v616 = vld [vmem:[%s287 + $0x9e8] sm:$0xff]
        %v617 = vld [vmem:[%s287 + $0x9f0] sm:$0xff]
        %v618 = vld [vmem:[%s287 + $0x9f8] sm:$0xff]
        %v619 = vld [vmem:[%s287 + $0xa00] sm:$0xff]
        %v620 = vld [vmem:[%s287 + $0xa08] sm:$0xff]
        %v621 = vld [vmem:[%s287 + $0xa10] sm:$0xff]
        %v622 = vld [vmem:[%s287 + $0xa18] sm:$0xff]
        %v623 = vld [vmem:[%s287 + $0xa20] sm:$0xff]
        %v624 = vld [vmem:[%s287 + $0xa28] sm:$0xff]
        %v625 = vld [vmem:[%s287 + $0xa30] sm:$0xff]
        %v626 = vld [vmem:[%s287 + $0xa38] sm:$0xff]
        %v627 = vld [vmem:[%s287 + $0xa40] sm:$0xff]
        %v628 = vld [vmem:[%s287 + $0xa48] sm:$0xff]
        %v629 = vld [vmem:[%s287 + $0xa50] sm:$0xff]
        %v630 = vld [vmem:[%s287 + $0xa58] sm:$0xff]
        %v631 = vld [vmem:[%s287 + $0xa60] sm:$0xff]
        %v632 = vld [vmem:[%s287 + $0xa68] sm:$0xff]
        %v633 = vld [vmem:[%s287 + $0xa70] sm:$0xff]
        %v634 = vld [vmem:[%s287 + $0xa78] sm:$0xff]
        %v635 = vld [vmem:[%s287 + $0xa80] sm:$0xff]
        %v636 = vld [vmem:[%s287 + $0xa88] sm:$0xff]
        %v637 = vld [vmem:[%s287 + $0xa90] sm:$0xff]
        %v638 = vld [vmem:[%s287 + $0xa98] sm:$0xff]
        %v639 = vld [vmem:[%s287 + $0xaa0] sm:$0xff]
        %v640 = vld [vmem:[%s287 + $0xaa8] sm:$0xff]
        %v641 = vld [vmem:[%s287 + $0xab0] sm:$0xff]
        %v642 = vld [vmem:[%s287 + $0xab8] sm:$0xff]
        %v643 = vld [vmem:[%s287 + $0xac0] sm:$0xff]
        %v644 = vld [vmem:[%s287 + $0xac8] sm:$0xff]
        %v645 = vld [vmem:[%s287 + $0xad0] sm:$0xff]
        %v646 = vld [vmem:[%s287 + $0xad8] sm:$0xff]
        %v647 = vld [vmem:[%s287 + $0xae0] sm:$0xff]
        %v648 = vld [vmem:[%s287 + $0xae8] sm:$0xff]
        %v649 = vld [vmem:[%s287 + $0xaf0] sm:$0xff]
        %v650 = vld [vmem:[%s287 + $0xaf8] sm:$0xff]
        %v651 = vld [vmem:[%s287 + $0xb00] sm:$0xff]
        %v652 = vld [vmem:[%s287 + $0xb08] sm:$0xff]
        %v653 = vld [vmem:[%s287 + $0xb10] sm:$0xff]
        %v654 = vld [vmem:[%s287 + $0xb18] sm:$0xff]
        %v655 = vld [vmem:[%s287 + $0xb20] sm:$0xff]
        %v656 = vld [vmem:[%s287 + $0xb28] sm:$0xff]
        %v657 = vld [vmem:[%s287 + $0xb30] sm:$0xff]
        %v658 = vld [vmem:[%s287 + $0xb38] sm:$0xff]
        %v659 = vld [vmem:[%s287 + $0xb40] sm:$0xff]
        %v660 = vld [vmem:[%s287 + $0xb48] sm:$0xff]
        %v661 = vld [vmem:[%s287 + $0xb50] sm:$0xff]
        %v662 = vld [vmem:[%s287 + $0xb58] sm:$0xff]
        %v663 = vld [vmem:[%s287 + $0xb60] sm:$0xff]
        %v664 = vld [vmem:[%s287 + $0xb68] sm:$0xff]
        %v665 = vld [vmem:[%s287 + $0xb70] sm:$0xff]
        %v666 = vld [vmem:[%s287 + $0xb78] sm:$0xff]
        %v667 = vld [vmem:[%s287 + $0xb80] sm:$0xff]
        %v668 = vld [vmem:[%s287 + $0xb88] sm:$0xff]
        %v669 = vld [vmem:[%s287 + $0xb90] sm:$0xff]
        %v670 = vld [vmem:[%s287 + $0xb98] sm:$0xff]
        %v671 = vld [vmem:[%s287 + $0xba0] sm:$0xff]
        %v672 = vld [vmem:[%s287 + $0xba8] sm:$0xff]
        %v673 = vld [vmem:[%s287 + $0xbb0] sm:$0xff]
        %v674 = vld [vmem:[%s287 + $0xbb8] sm:$0xff]
        %v675 = vld [vmem:[%s287 + $0xbc0] sm:$0xff]
        %v676 = vld [vmem:[%s287 + $0xbc8] sm:$0xff]
        %v677 = vld [vmem:[%s287 + $0xbd0] sm:$0xff]
        %v678 = vld [vmem:[%s287 + $0xbd8] sm:$0xff]
        %v679 = vld [vmem:[%s287 + $0xbe0] sm:$0xff]
        %v680 = vld [vmem:[%s287 + $0xbe8] sm:$0xff]
        %v681 = vld [vmem:[%s287 + $0xbf0] sm:$0xff]
        %v682 = vld [vmem:[%s287 + $0xbf8] sm:$0xff]
        %v683 = vld [vmem:[%s287 + $0xc00] sm:$0xff]
        %v684 = vld [vmem:[%s287 + $0xc08] sm:$0xff]
        %v685 = vld [vmem:[%s287 + $0xc10] sm:$0xff]
        %v686 = vld [vmem:[%s287 + $0xc18] sm:$0xff]
        %v687 = vld [vmem:[%s287 + $0xc20] sm:$0xff]
        %v688 = vld [vmem:[%s287 + $0xc28] sm:$0xff]
        %v689 = vld [vmem:[%s287 + $0xc30] sm:$0xff]
        %v690 = vld [vmem:[%s287 + $0xc38] sm:$0xff]
        %v691 = vld [vmem:[%s287 + $0xc40] sm:$0xff]
        %v692 = vld [vmem:[%s287 + $0xc48] sm:$0xff]
        %v693 = vld [vmem:[%s287 + $0xc50] sm:$0xff]
        %v694 = vld [vmem:[%s287 + $0xc58] sm:$0xff]
        %v695 = vld [vmem:[%s287 + $0xc60] sm:$0xff]
        %v696 = vld [vmem:[%s287 + $0xc68] sm:$0xff]
        %v697 = vld [vmem:[%s287 + $0xc70] sm:$0xff]
        %v698 = vld [vmem:[%s287 + $0xc78] sm:$0xff]
        %v699 = vld [vmem:[%s287 + $0xc80] sm:$0xff]
        %v700 = vld [vmem:[%s287 + $0xc88] sm:$0xff]
        %v701 = vld [vmem:[%s287 + $0xc90] sm:$0xff]
        %v702 = vld [vmem:[%s287 + $0xc98] sm:$0xff]
        %v703 = vld [vmem:[%s287 + $0xca0] sm:$0xff]
        %v704 = vld [vmem:[%s287 + $0xca8] sm:$0xff]
        %v705 = vld [vmem:[%s287 + $0xcb0] sm:$0xff]
        %v706 = vld [vmem:[%s287 + $0xcb8] sm:$0xff]
        %v707 = vld [vmem:[%s287 + $0xcc0] sm:$0xff]
        %v708 = vld [vmem:[%s287 + $0xcc8] sm:$0xff]
        %v709 = vld [vmem:[%s287 + $0xcd0] sm:$0xff]
        %v710 = vld [vmem:[%s287 + $0xcd8] sm:$0xff]
        %v711 = vld [vmem:[%s287 + $0xce0] sm:$0xff]
        %v712 = vld [vmem:[%s287 + $0xce8] sm:$0xff]
        %v713 = vld [vmem:[%s287 + $0xcf0] sm:$0xff]
        %v714 = vld [vmem:[%s287 + $0xcf8] sm:$0xff]
        %v715 = vld [vmem:[%s287 + $0xd00] sm:$0xff]
        %v716 = vld [vmem:[%s287 + $0xd08] sm:$0xff]
        %v717 = vld [vmem:[%s287 + $0xd10] sm:$0xff]
        %v718 = vld [vmem:[%s287 + $0xd18] sm:$0xff]
        %v719 = vld [vmem:[%s287 + $0xd20] sm:$0xff]
        %v720 = vld [vmem:[%s287 + $0xd28] sm:$0xff]
        %v721 = vld [vmem:[%s287 + $0xd30] sm:$0xff]
        %v722 = vld [vmem:[%s287 + $0xd38] sm:$0xff]
        %v723 = vld [vmem:[%s287 + $0xd40] sm:$0xff]
        %v724 = vld [vmem:[%s287 + $0xd48] sm:$0xff]
        %v725 = vld [vmem:[%s287 + $0xd50] sm:$0xff]
        %v726 = vld [vmem:[%s287 + $0xd58] sm:$0xff]
        %v727 = vld [vmem:[%s287 + $0xd60] sm:$0xff]
        %v728 = vld [vmem:[%s287 + $0xd68] sm:$0xff]
        %v729 = vld [vmem:[%s287 + $0xd70] sm:$0xff]
        %v730 = vld [vmem:[%s287 + $0xd78] sm:$0xff]
        %v731 = vld [vmem:[%s287 + $0xd80] sm:$0xff]
        %v732 = vld [vmem:[%s287 + $0xd88] sm:$0xff]
        %v733 = vld [vmem:[%s287 + $0xd90] sm:$0xff]
        %v734 = vld [vmem:[%s287 + $0xd98] sm:$0xff]
        %v735 = vld [vmem:[%s287 + $0xda0] sm:$0xff]
        %v736 = vld [vmem:[%s287 + $0xda8] sm:$0xff]
        %v737 = vld [vmem:[%s287 + $0xdb0] sm:$0xff]
        %v738 = vld [vmem:[%s287 + $0xdb8] sm:$0xff]
        %v739 = vld [vmem:[%s287 + $0xdc0] sm:$0xff]
        %v740 = vld [vmem:[%s287 + $0xdc8] sm:$0xff]
        %v741 = vld [vmem:[%s287 + $0xdd0] sm:$0xff]
        %v742 = vld [vmem:[%s287 + $0xdd8] sm:$0xff]
        %v743 = vld [vmem:[%s287 + $0xde0] sm:$0xff]
        %v744 = vld [vmem:[%s287 + $0xde8] sm:$0xff]
        %v745 = vld [vmem:[%s287 + $0xdf0] sm:$0xff]
        %v746 = vld [vmem:[%s287 + $0xdf8] sm:$0xff]
        %v747 = vld [vmem:[%s287 + $0xe00] sm:$0xff]
        %v748 = vld [vmem:[%s287 + $0xe08] sm:$0xff]
        %v749 = vld [vmem:[%s287 + $0xe10] sm:$0xff]
        %v750 = vld [vmem:[%s287 + $0xe18] sm:$0xff]
        %v751 = vld [vmem:[%s287 + $0xe20] sm:$0xff]
        %v752 = vld [vmem:[%s287 + $0xe28] sm:$0xff]
        %v753 = vld [vmem:[%s287 + $0xe30] sm:$0xff]
        %v754 = vld [vmem:[%s287 + $0xe38] sm:$0xff]
        %v755 = vld [vmem:[%s287 + $0xe40] sm:$0xff]
        %v756 = vld [vmem:[%s287 + $0xe48] sm:$0xff]
        %v757 = vld [vmem:[%s287 + $0xe50] sm:$0xff]
        %v758 = vld [vmem:[%s287 + $0xe58] sm:$0xff]
        %v759 = vld [vmem:[%s287 + $0xe60] sm:$0xff]
        %v760 = vld [vmem:[%s287 + $0xe68] sm:$0xff]
        %v761 = vld [vmem:[%s287 + $0xe70] sm:$0xff]
        %v762 = vld [vmem:[%s287 + $0xe78] sm:$0xff]
        %v763 = vld [vmem:[%s287 + $0xe80] sm:$0xff]
        %v764 = vld [vmem:[%s287 + $0xe88] sm:$0xff]
        %v765 = vld [vmem:[%s287 + $0xe90] sm:$0xff]
        %v766 = vld [vmem:[%s287 + $0xe98] sm:$0xff]
        %v767 = vld [vmem:[%s287 + $0xea0] sm:$0xff]
        %v768 = vld [vmem:[%s287 + $0xea8] sm:$0xff]
        %v769 = vld [vmem:[%s287 + $0xeb0] sm:$0xff]
        %v770 = vld [vmem:[%s287 + $0xeb8] sm:$0xff]
        %v771 = vld [vmem:[%s287 + $0xec0] sm:$0xff]
        %v772 = vld [vmem:[%s287 + $0xec8] sm:$0xff]
        %v773 = vld [vmem:[%s287 + $0xed0] sm:$0xff]
        %v774 = vld [vmem:[%s287 + $0xed8] sm:$0xff]
        %v775 = vld [vmem:[%s287 + $0xee0] sm:$0xff]
        %v776 = vld [vmem:[%s287 + $0xee8] sm:$0xff]
        %v777 = vld [vmem:[%s287 + $0xef0] sm:$0xff]
        %v778 = vld [vmem:[%s287 + $0xef8] sm:$0xff]
        %v779 = vld [vmem:[%s287 + $0xf00] sm:$0xff]
        %v780 = vld [vmem:[%s287 + $0xf08] sm:$0xff]
        %v781 = vld [vmem:[%s287 + $0xf10] sm:$0xff]
        %v782 = vld [vmem:[%s287 + $0xf18] sm:$0xff]
        %v783 = vld [vmem:[%s287 + $0xf20] sm:$0xff]
        %v784 = vld [vmem:[%s287 + $0xf28] sm:$0xff]
        %v785 = vld [vmem:[%s287 + $0xf30] sm:$0xff]
        %v786 = vld [vmem:[%s287 + $0xf38] sm:$0xff]
        %v787 = vld [vmem:[%s287 + $0xf40] sm:$0xff]
        %v788 = vld [vmem:[%s287 + $0xf48] sm:$0xff]
        %v789 = vld [vmem:[%s287 + $0xf50] sm:$0xff]
        %v790 = vld [vmem:[%s287 + $0xf58] sm:$0xff]
        %v791 = vld [vmem:[%s287 + $0xf60] sm:$0xff]
        %v792 = vld [vmem:[%s287 + $0xf68] sm:$0xff]
        %v793 = vld [vmem:[%s287 + $0xf70] sm:$0xff]
        %v794 = vld [vmem:[%s287 + $0xf78] sm:$0xff]
        %v795 = vld [vmem:[%s287 + $0xf80] sm:$0xff]
        %v796 = vld [vmem:[%s287 + $0xf88] sm:$0xff]
        %v797 = vld [vmem:[%s287 + $0xf90] sm:$0xff]
        %v798 = vld [vmem:[%s287 + $0xf98] sm:$0xff]
        %v799 = vld [vmem:[%s287 + $0xfa0] sm:$0xff]
        %v800 = vld [vmem:[%s287 + $0xfa8] sm:$0xff]
        %v801 = vld [vmem:[%s287 + $0xfb0] sm:$0xff]
        %v802 = vld [vmem:[%s287 + $0xfb8] sm:$0xff]
        %v803 = vld [vmem:[%s287 + $0xfc0] sm:$0xff]
        %v804 = vld [vmem:[%s287 + $0xfc8] sm:$0xff]
        %v805 = vld [vmem:[%s287 + $0xfd0] sm:$0xff]
        %v806 = vld [vmem:[%s287 + $0xfd8] sm:$0xff]
        %v807 = vld [vmem:[%s287 + $0xfe0] sm:$0xff]
        %v808 = vld [vmem:[%s287 + $0xfe8] sm:$0xff]
        %v809 = vld [vmem:[%s287 + $0xff0] sm:$0xff]
        %v810 = vld [vmem:[%s287 + $0xff8] sm:$0xff]
        %v811 = vld [vmem:[%s287 + $0x1000] sm:$0xff]
        %v812 = vld [vmem:[%s287 + $0x1008] sm:$0xff]
        %v813 = vld [vmem:[%s287 + $0x1010] sm:$0xff]
        %v814 = vld [vmem:[%s287 + $0x1018] sm:$0xff]
        %v815 = vld [vmem:[%s287 + $0x1020] sm:$0xff]
        %v816 = vld [vmem:[%s287 + $0x1028] sm:$0xff]
        %v817 = vld [vmem:[%s287 + $0x1030] sm:$0xff]
        %v818 = vld [vmem:[%s287 + $0x1038] sm:$0xff]
        %v819 = vld [vmem:[%s287 + $0x1040] sm:$0xff]
        %v820 = vld [vmem:[%s287 + $0x1048] sm:$0xff]
        %v821 = vld [vmem:[%s287 + $0x1050] sm:$0xff]
        %v822 = vld [vmem:[%s287 + $0x1058] sm:$0xff]
        %v823 = vld [vmem:[%s287 + $0x1060] sm:$0xff]
        %v824 = vld [vmem:[%s287 + $0x1068] sm:$0xff]
        %v825 = vld [vmem:[%s287 + $0x1070] sm:$0xff]
        %v826 = vld [vmem:[%s287 + $0x1078] sm:$0xff]
        %v827 = vld [vmem:[%s287 + $0x1080] sm:$0xff]
        %v828 = vld [vmem:[%s287 + $0x1088] sm:$0xff]
        %v829 = vld [vmem:[%s287 + $0x1090] sm:$0xff]
        %v830 = vld [vmem:[%s287 + $0x1098] sm:$0xff]
        %v831 = vld [vmem:[%s287 + $0x10a0] sm:$0xff]
        %v832 = vld [vmem:[%s287 + $0x10a8] sm:$0xff]
        %v833 = vld [vmem:[%s287 + $0x10b0] sm:$0xff]
        %v834 = vld [vmem:[%s287 + $0x10b8] sm:$0xff]
        %v835 = vld [vmem:[%s287 + $0x10c0] sm:$0xff]
        %v836 = vld [vmem:[%s287 + $0x10c8] sm:$0xff]
        %v837 = vld [vmem:[%s287 + $0x10d0] sm:$0xff]
        %v838 = vld [vmem:[%s287 + $0x10d8] sm:$0xff]
        %v839 = vld [vmem:[%s287 + $0x10e0] sm:$0xff]
        %v840 = vld [vmem:[%s287 + $0x10e8] sm:$0xff]
        %v841 = vld [vmem:[%s287 + $0x10f0] sm:$0xff]
        %v842 = vld [vmem:[%s287 + $0x10f8] sm:$0xff]
        %v843 = vld [vmem:[%s287 + $0x1100] sm:$0xff]
        %v844 = vld [vmem:[%s287 + $0x1108] sm:$0xff]
        %v845 = vld [vmem:[%s287 + $0x1110] sm:$0xff]
        %v846 = vld [vmem:[%s287 + $0x1118] sm:$0xff]
        %v847 = vld [vmem:[%s287 + $0x1120] sm:$0xff]
        %v848 = vld [vmem:[%s287 + $0x1128] sm:$0xff]
        %v849 = vld [vmem:[%s287 + $0x1130] sm:$0xff]
        %v850 = vld [vmem:[%s287 + $0x1138] sm:$0xff]
        %v851 = vld [vmem:[%s287 + $0x1140] sm:$0xff]
        %v852 = vld [vmem:[%s287 + $0x1148] sm:$0xff]
        %v853 = vld [vmem:[%s287 + $0x1150] sm:$0xff]
        %v854 = vld [vmem:[%s287 + $0x1158] sm:$0xff]
        %v855 = vld [vmem:[%s287 + $0x1160] sm:$0xff]
        %v856 = vld [vmem:[%s287 + $0x1168] sm:$0xff]
        %v857 = vld [vmem:[%s287 + $0x1170] sm:$0xff]
        %v858 = vld [vmem:[%s287 + $0x1178] sm:$0xff]
        %v859 = vld [vmem:[%s287 + $0x1180] sm:$0xff]
        %v860 = vld [vmem:[%s287 + $0x1188] sm:$0xff]
        %v861 = vld [vmem:[%s287 + $0x1190] sm:$0xff]
        %v862 = vld [vmem:[%s287 + $0x1198] sm:$0xff]
        %v863 = vld [vmem:[%s287 + $0x11a0] sm:$0xff]
        %v864 = vld [vmem:[%s287 + $0x11a8] sm:$0xff]
        %v865 = vld [vmem:[%s287 + $0x11b0] sm:$0xff]
        %v866 = vld [vmem:[%s287 + $0x11b8] sm:$0xff]
        %v867 = vld [vmem:[%s287 + $0x11c0] sm:$0xff]
        %v868 = vld [vmem:[%s287 + $0x11c8] sm:$0xff]
        %v869 = vld [vmem:[%s287 + $0x11d0] sm:$0xff]
        %v870 = vld [vmem:[%s287 + $0x11d8] sm:$0xff]
        %v871 = vld [vmem:[%s287 + $0x11e0] sm:$0xff]
        %v872 = vld [vmem:[%s287 + $0x11e8] sm:$0xff]
        %v873 = vld [vmem:[%s287 + $0x11f0] sm:$0xff]
        %v874 = vld [vmem:[%s287 + $0x11f8] sm:$0xff]
        %v875 = vld [vmem:[%s287 + $0x1200] sm:$0xff]
        %v876 = vld [vmem:[%s287 + $0x1208] sm:$0xff]
        %v877 = vld [vmem:[%s287 + $0x1210] sm:$0xff]
        %v878 = vld [vmem:[%s287 + $0x1218] sm:$0xff]
        %v879 = vld [vmem:[%s287 + $0x1220] sm:$0xff]
        %v880 = vld [vmem:[%s287 + $0x1228] sm:$0xff]
        %v881 = vld [vmem:[%s287 + $0x1230] sm:$0xff]
        %v882 = vld [vmem:[%s287 + $0x1238] sm:$0xff]
        %v883 = vld [vmem:[%s287 + $0x1240] sm:$0xff]
        %v884 = vld [vmem:[%s287 + $0x1248] sm:$0xff]
        %v885 = vld [vmem:[%s287 + $0x1250] sm:$0xff]
        %v886 = vld [vmem:[%s287 + $0x1258] sm:$0xff]
        %v887 = vld [vmem:[%s287 + $0x1260] sm:$0xff]
        %v888 = vld [vmem:[%s287 + $0x1268] sm:$0xff]
        %v889 = vld [vmem:[%s287 + $0x1270] sm:$0xff]
        %v890 = vld [vmem:[%s287 + $0x1278] sm:$0xff]
        %v891 = vld [vmem:[%s287 + $0x1280] sm:$0xff]
        %v892 = vld [vmem:[%s287 + $0x1288] sm:$0xff]
        %v893 = vld [vmem:[%s287 + $0x1290] sm:$0xff]
        %v894 = vld [vmem:[%s287 + $0x1298] sm:$0xff]
        %v895 = vld [vmem:[%s287 + $0x12a0] sm:$0xff]
        %v896 = vld [vmem:[%s287 + $0x12a8] sm:$0xff]
        %v897 = vld [vmem:[%s287 + $0x12b0] sm:$0xff]
        %v898 = vld [vmem:[%s287 + $0x12b8] sm:$0xff]
        %v899 = vld [vmem:[%s287 + $0x12c0] sm:$0xff]
        %v900 = vld [vmem:[%s287 + $0x12c8] sm:$0xff]
        %v901 = vld [vmem:[%s287 + $0x12d0] sm:$0xff]
        %v902 = vld [vmem:[%s287 + $0x12d8] sm:$0xff]
        %v903 = vld [vmem:[%s287 + $0x12e0] sm:$0xff]
        %v904 = vld [vmem:[%s287 + $0x12e8] sm:$0xff]
        %v905 = vld [vmem:[%s287 + $0x12f0] sm:$0xff]
        %v906 = vld [vmem:[%s287 + $0x12f8] sm:$0xff]
        %v907 = vld [vmem:[%s287 + $0x1300] sm:$0xff]
        %v908 = vld [vmem:[%s287 + $0x1308] sm:$0xff]
        %v909 = vld [vmem:[%s287 + $0x1310] sm:$0xff]
        %v910 = vld [vmem:[%s287 + $0x1318] sm:$0xff]
        %v911 = vld [vmem:[%s287 + $0x1320] sm:$0xff]
        %v912 = vld [vmem:[%s287 + $0x1328] sm:$0xff]
        %v913 = vld [vmem:[%s287 + $0x1330] sm:$0xff]
        %v914 = vld [vmem:[%s287 + $0x1338] sm:$0xff]
        %v915 = vld [vmem:[%s287 + $0x1340] sm:$0xff]
        %v916 = vld [vmem:[%s287 + $0x1348] sm:$0xff]
        %v917 = vld [vmem:[%s287 + $0x1350] sm:$0xff]
        %v918 = vld [vmem:[%s287 + $0x1358] sm:$0xff]
        %v919 = vld [vmem:[%s287 + $0x1360] sm:$0xff]
        %v920 = vld [vmem:[%s287 + $0x1368] sm:$0xff]
        %v921 = vld [vmem:[%s287 + $0x1370] sm:$0xff]
        %v922 = vld [vmem:[%s287 + $0x1378] sm:$0xff]
        %v923 = vld [vmem:[%s287 + $0x1380] sm:$0xff]
        %v924 = vld [vmem:[%s287 + $0x1388] sm:$0xff]
        %v925 = vld [vmem:[%s287 + $0x1390] sm:$0xff]
        %v926 = vld [vmem:[%s287 + $0x1398] sm:$0xff]
        %v927 = vld [vmem:[%s287 + $0x13a0] sm:$0xff]
        %v928 = vld [vmem:[%s287 + $0x13a8] sm:$0xff]
        %v929 = vld [vmem:[%s287 + $0x13b0] sm:$0xff]
        %v930 = vld [vmem:[%s287 + $0x13b8] sm:$0xff]
        %v931 = vld [vmem:[%s287 + $0x13c0] sm:$0xff]
        %v932 = vld [vmem:[%s287 + $0x13c8] sm:$0xff]
        %v933 = vld [vmem:[%s287 + $0x13d0] sm:$0xff]
        %v934 = vld [vmem:[%s287 + $0x13d8] sm:$0xff]
        %v935 = vld [vmem:[%s287 + $0x13e0] sm:$0xff]
        %v936 = vld [vmem:[%s287 + $0x13e8] sm:$0xff]
        %v937 = vld [vmem:[%s287 + $0x13f0] sm:$0xff]
        %v938 = vld [vmem:[%s287 + $0x13f8] sm:$0xff]
        %v939 = vld [vmem:[%s287 + $0x1400] sm:$0xff]
        %v940 = vld [vmem:[%s287 + $0x1408] sm:$0xff]
        %v941 = vld [vmem:[%s287 + $0x1410] sm:$0xff]
        %v942 = vld [vmem:[%s287 + $0x1418] sm:$0xff]
        %v943 = vld [vmem:[%s287 + $0x1420] sm:$0xff]
        %v944 = vld [vmem:[%s287 + $0x1428] sm:$0xff]
        %v945 = vld [vmem:[%s287 + $0x1430] sm:$0xff]
        %v946 = vld [vmem:[%s287 + $0x1438] sm:$0xff]
        %v947 = vld [vmem:[%s287 + $0x1440] sm:$0xff]
        %v948 = vld [vmem:[%s287 + $0x1448] sm:$0xff]
        %v949 = vld [vmem:[%s287 + $0x1450] sm:$0xff]
        %v950 = vld [vmem:[%s287 + $0x1458] sm:$0xff]
        %v951 = vld [vmem:[%s287 + $0x1460] sm:$0xff]
        %v952 = vld [vmem:[%s287 + $0x1468] sm:$0xff]
        %v953 = vld [vmem:[%s287 + $0x1470] sm:$0xff]
        %v954 = vld [vmem:[%s287 + $0x1478] sm:$0xff]
        %v955 = vld [vmem:[%s287 + $0x1480] sm:$0xff]
        %v956 = vld [vmem:[%s287 + $0x1488] sm:$0xff]
        %v957 = vld [vmem:[%s287 + $0x1490] sm:$0xff]
        %v958 = vld [vmem:[%s287 + $0x1498] sm:$0xff]
        %v959 = vld [vmem:[%s287 + $0x14a0] sm:$0xff]
        %v960 = vld [vmem:[%s287 + $0x14a8] sm:$0xff]
        %v961 = vld [vmem:[%s287 + $0x14b0] sm:$0xff]
        %v962 = vld [vmem:[%s287 + $0x14b8] sm:$0xff]
        %v963 = vld [vmem:[%s287 + $0x14c0] sm:$0xff]
        %v964 = vld [vmem:[%s287 + $0x14c8] sm:$0xff]
        %v965 = vld [vmem:[%s287 + $0x14d0] sm:$0xff]
        %v966 = vld [vmem:[%s287 + $0x14d8] sm:$0xff]
        %v967 = vld [vmem:[%s287 + $0x14e0] sm:$0xff]
        %v968 = vld [vmem:[%s287 + $0x14e8] sm:$0xff]
        %v969 = vld [vmem:[%s287 + $0x14f0] sm:$0xff]
        %v970 = vld [vmem:[%s287 + $0x14f8] sm:$0xff]
        %v971 = vld [vmem:[%s287 + $0x1500] sm:$0xff]
        %v972 = vld [vmem:[%s287 + $0x1508] sm:$0xff]
        %v973 = vld [vmem:[%s287 + $0x1510] sm:$0xff]
        %v974 = vld [vmem:[%s287 + $0x1518] sm:$0xff]
        %v975 = vld [vmem:[%s287 + $0x1520] sm:$0xff]
        %v976 = vld [vmem:[%s287 + $0x1528] sm:$0xff]
        %v977 = vld [vmem:[%s287 + $0x1530] sm:$0xff]
        %v978 = vld [vmem:[%s287 + $0x1538] sm:$0xff]
        %v979 = vld [vmem:[%s287 + $0x1540] sm:$0xff]
        %v980 = vld [vmem:[%s287 + $0x1548] sm:$0xff]
        %v981 = vld [vmem:[%s287 + $0x1550] sm:$0xff]
        %v982 = vld [vmem:[%s287 + $0x1558] sm:$0xff]
        %v983 = vld [vmem:[%s287 + $0x1560] sm:$0xff]
        %v984 = vld [vmem:[%s287 + $0x1568] sm:$0xff]
        %v985 = vld [vmem:[%s287 + $0x1570] sm:$0xff]
        %v986 = vld [vmem:[%s287 + $0x1578] sm:$0xff]
        %v987 = vld [vmem:[%s287 + $0x1580] sm:$0xff]
        %v988 = vld [vmem:[%s287 + $0x1588] sm:$0xff]
        %v989 = vld [vmem:[%s287 + $0x1590] sm:$0xff]
        %v990 = vld [vmem:[%s287 + $0x1598] sm:$0xff]
        %v991 = vld [vmem:[%s287 + $0x15a0] sm:$0xff]
        %v992 = vld [vmem:[%s287 + $0x15a8] sm:$0xff]
        %v993 = vld [vmem:[%s287 + $0x15b0] sm:$0xff]
        %v994 = vld [vmem:[%s287 + $0x15b8] sm:$0xff]
        %v995 = vld [vmem:[%s287 + $0x15c0] sm:$0xff]
        %v996 = vld [vmem:[%s287 + $0x15c8] sm:$0xff]
        %v997 = vld [vmem:[%s287 + $0x15d0] sm:$0xff]
        %v998 = vld [vmem:[%s287 + $0x15d8] sm:$0xff]
        %v999 = vld [vmem:[%s287 + $0x15e0] sm:$0xff]
        %v1000 = vld [vmem:[%s287 + $0x15e8] sm:$0xff]
        %v1001 = vld [vmem:[%s287 + $0x15f0] sm:$0xff]
        %v1002 = vld [vmem:[%s287 + $0x15f8] sm:$0xff]
        %v1003 = vld [vmem:[%s287 + $0x1600] sm:$0xff]
        %v1004 = vld [vmem:[%s287 + $0x1608] sm:$0xff]
        %v1005 = vld [vmem:[%s287 + $0x1610] sm:$0xff]
        %v1006 = vld [vmem:[%s287 + $0x1618] sm:$0xff]
        %v1007 = vld [vmem:[%s287 + $0x1620] sm:$0xff]
        %v1008 = vld [vmem:[%s287 + $0x1628] sm:$0xff]
        %v1009 = vld [vmem:[%s287 + $0x1630] sm:$0xff]
        %v1010 = vld [vmem:[%s287 + $0x1638] sm:$0xff]
        %v1011 = vld [vmem:[%s287 + $0x1640] sm:$0xff]
        %v1012 = vld [vmem:[%s287 + $0x1648] sm:$0xff]
        %v1013 = vld [vmem:[%s287 + $0x1650] sm:$0xff]
        %v1014 = vld [vmem:[%s287 + $0x1658] sm:$0xff]
        %v1015 = vld [vmem:[%s287 + $0x1660] sm:$0xff]
        %v1016 = vld [vmem:[%s287 + $0x1668] sm:$0xff]
        %v1017 = vld [vmem:[%s287 + $0x1670] sm:$0xff]
        %v1018 = vld [vmem:[%s287 + $0x1678] sm:$0xff]
        %v1019 = vld [vmem:[%s287 + $0x1680] sm:$0xff]
        %v1020 = vld [vmem:[%s287 + $0x1688] sm:$0xff]
        %v1021 = vld [vmem:[%s287 + $0x1690] sm:$0xff]
        %v1022 = vld [vmem:[%s287 + $0x1698] sm:$0xff]
        %v1023 = vld [vmem:[%s287 + $0x16a0] sm:$0xff]
        %v1024 = vld [vmem:[%s287 + $0x16a8] sm:$0xff]
        %v1025 = vld [vmem:[%s287 + $0x16b0] sm:$0xff]
        %v1026 = vld [vmem:[%s287 + $0x16b8] sm:$0xff]
        %v1027 = vld [vmem:[%s287 + $0x16c0] sm:$0xff]
        %v1028 = vld [vmem:[%s287 + $0x16c8] sm:$0xff]
        %v1029 = vld [vmem:[%s287 + $0x16d0] sm:$0xff]
        %v1030 = vld [vmem:[%s287 + $0x16d8] sm:$0xff]
        %v1031 = vld [vmem:[%s287 + $0x16e0] sm:$0xff]
        %v1032 = vld [vmem:[%s287 + $0x16e8] sm:$0xff]
        %v1033 = vld [vmem:[%s287 + $0x16f0] sm:$0xff]
        %v1034 = vld [vmem:[%s287 + $0x16f8] sm:$0xff]
        %v1035 = vld [vmem:[%s287 + $0x1700] sm:$0xff]
        %v1036 = vld [vmem:[%s287 + $0x1708] sm:$0xff]
        %v1037 = vld [vmem:[%s287 + $0x1710] sm:$0xff]
        %v1038 = vld [vmem:[%s287 + $0x1718] sm:$0xff]
        %v1039 = vld [vmem:[%s287 + $0x1720] sm:$0xff]
        %v1040 = vld [vmem:[%s287 + $0x1728] sm:$0xff]
        %v1041 = vld [vmem:[%s287 + $0x1730] sm:$0xff]
        %v1042 = vld [vmem:[%s287 + $0x1738] sm:$0xff]
        %v1043 = vld [vmem:[%s287 + $0x1740] sm:$0xff]
        %v1044 = vld [vmem:[%s287 + $0x1748] sm:$0xff]
        %v1045 = vld [vmem:[%s287 + $0x1750] sm:$0xff]
        %v1046 = vld [vmem:[%s287 + $0x1758] sm:$0xff]
        %v1047 = vld [vmem:[%s287 + $0x1760] sm:$0xff]
        %v1048 = vld [vmem:[%s287 + $0x1768] sm:$0xff]
        %v1049 = vld [vmem:[%s287 + $0x1770] sm:$0xff]
        %v1050 = vld [vmem:[%s287 + $0x1778] sm:$0xff]
        %v1051 = vld [vmem:[%s287 + $0x1780] sm:$0xff]
        %v1052 = vld [vmem:[%s287 + $0x1788] sm:$0xff]
        %v1053 = vld [vmem:[%s287 + $0x1790] sm:$0xff]
        %v1054 = vld [vmem:[%s287 + $0x1798] sm:$0xff]
        %v1055 = vld [vmem:[%s287 + $0x17a0] sm:$0xff]
        %v1056 = vld [vmem:[%s287 + $0x17a8] sm:$0xff]
        %v1057 = vld [vmem:[%s287 + $0x17b0] sm:$0xff]
        %v1058 = vld [vmem:[%s287 + $0x17b8] sm:$0xff]
        %v1059 = vld [vmem:[%s287 + $0x17c0] sm:$0xff]
        %v1060 = vld [vmem:[%s287 + $0x17c8] sm:$0xff]
        %v1061 = vld [vmem:[%s287 + $0x17d0] sm:$0xff]
        %v1062 = vld [vmem:[%s287 + $0x17d8] sm:$0xff]
        %v1063 = vld [vmem:[%s287 + $0x17e0] sm:$0xff]
        %v1064 = vld [vmem:[%s287 + $0x17e8] sm:$0xff]
        %v1065 = vld [vmem:[%s287 + $0x17f0] sm:$0xff]
        %v1066 = vld [vmem:[%s287 + $0x17f8] sm:$0xff]
        %v1067 = vld [vmem:[%s287 + $0x1800] sm:$0xff]
        %v1068 = vld [vmem:[%s287 + $0x1808] sm:$0xff]
        %v1069 = vld [vmem:[%s287 + $0x1810] sm:$0xff]
        %v1070 = vld [vmem:[%s287 + $0x1818] sm:$0xff]
        %v1071 = vld [vmem:[%s287 + $0x1820] sm:$0xff]
        %v1072 = vld [vmem:[%s287 + $0x1828] sm:$0xff]
        %v1073 = vld [vmem:[%s287 + $0x1830] sm:$0xff]
        %v1074 = vld [vmem:[%s287 + $0x1838] sm:$0xff]
        %v1075 = vld [vmem:[%s287 + $0x1840] sm:$0xff]
        %v1076 = vld [vmem:[%s287 + $0x1848] sm:$0xff]
        %v1077 = vld [vmem:[%s287 + $0x1850] sm:$0xff]
        %v1078 = vld [vmem:[%s287 + $0x1858] sm:$0xff]
        %v1079 = vld [vmem:[%s287 + $0x1860] sm:$0xff]
        %v1080 = vld [vmem:[%s287 + $0x1868] sm:$0xff]
        %v1081 = vld [vmem:[%s287 + $0x1870] sm:$0xff]
        %v1082 = vld [vmem:[%s287 + $0x1878] sm:$0xff]
        %v1083 = vld [vmem:[%s287 + $0x1880] sm:$0xff]
        %v1084 = vld [vmem:[%s287 + $0x1888] sm:$0xff]
        %v1085 = vld [vmem:[%s287 + $0x1890] sm:$0xff]
        %v1086 = vld [vmem:[%s287 + $0x1898] sm:$0xff]
        %v1087 = vld [vmem:[%s287 + $0x18a0] sm:$0xff]
        %v1088 = vld [vmem:[%s287 + $0x18a8] sm:$0xff]
        %v1089 = vld [vmem:[%s287 + $0x18b0] sm:$0xff]
        %v1090 = vld [vmem:[%s287 + $0x18b8] sm:$0xff]
        %v1091 = vld [vmem:[%s287 + $0x18c0] sm:$0xff]
        %v1092 = vld [vmem:[%s287 + $0x18c8] sm:$0xff]
        %v1093 = vld [vmem:[%s287 + $0x18d0] sm:$0xff]
        %v1094 = vld [vmem:[%s287 + $0x18d8] sm:$0xff]
        %v1095 = vld [vmem:[%s287 + $0x18e0] sm:$0xff]
        %v1096 = vld [vmem:[%s287 + $0x18e8] sm:$0xff]
        %v1097 = vld [vmem:[%s287 + $0x18f0] sm:$0xff]
        %v1098 = vld [vmem:[%s287 + $0x18f8] sm:$0xff]
        %v1099 = vld [vmem:[%s287 + $0x1900] sm:$0xff]
        %v1100 = vld [vmem:[%s287 + $0x1908] sm:$0xff]
        %v1101 = vld [vmem:[%s287 + $0x1910] sm:$0xff]
        %v1102 = vld [vmem:[%s287 + $0x1918] sm:$0xff]
        %v1103 = vld [vmem:[%s287 + $0x1920] sm:$0xff]
        %v1104 = vld [vmem:[%s287 + $0x1928] sm:$0xff]
        %v1105 = vld [vmem:[%s287 + $0x1930] sm:$0xff]
        %v1106 = vld [vmem:[%s287 + $0x1938] sm:$0xff]
        %v1107 = vld [vmem:[%s287 + $0x1940] sm:$0xff]
        %v1108 = vld [vmem:[%s287 + $0x1948] sm:$0xff]
        %v1109 = vld [vmem:[%s287 + $0x1950] sm:$0xff]
        %v1110 = vld [vmem:[%s287 + $0x1958] sm:$0xff]
        %v1111 = vld [vmem:[%s287 + $0x1960] sm:$0xff]
        %v1112 = vld [vmem:[%s287 + $0x1968] sm:$0xff]
        %v1113 = vld [vmem:[%s287 + $0x1970] sm:$0xff]
        %v1114 = vld [vmem:[%s287 + $0x1978] sm:$0xff]
        %v1115 = vld [vmem:[%s287 + $0x1980] sm:$0xff]
        %v1116 = vld [vmem:[%s287 + $0x1988] sm:$0xff]
        %v1117 = vld [vmem:[%s287 + $0x1990] sm:$0xff]
        %v1118 = vld [vmem:[%s287 + $0x1998] sm:$0xff]
        %v1119 = vld [vmem:[%s287 + $0x19a0] sm:$0xff]
        %v1120 = vld [vmem:[%s287 + $0x19a8] sm:$0xff]
        %v1121 = vld [vmem:[%s287 + $0x19b0] sm:$0xff]
        %v1122 = vld [vmem:[%s287 + $0x19b8] sm:$0xff]
        %v1123 = vld [vmem:[%s287 + $0x19c0] sm:$0xff]
        %v1124 = vld [vmem:[%s287 + $0x19c8] sm:$0xff]
        %v1125 = vld [vmem:[%s287 + $0x19d0] sm:$0xff]
        %v1126 = vld [vmem:[%s287 + $0x19d8] sm:$0xff]
        %v1127 = vld [vmem:[%s287 + $0x19e0] sm:$0xff]
        %v1128 = vld [vmem:[%s287 + $0x19e8] sm:$0xff]
        %v1129 = vld [vmem:[%s287 + $0x19f0] sm:$0xff]
        %v1130 = vld [vmem:[%s287 + $0x19f8] sm:$0xff]
        %v1131 = vld [vmem:[%s287 + $0x1a00] sm:$0xff]
        %v1132 = vld [vmem:[%s287 + $0x1a08] sm:$0xff]
        %v1133 = vld [vmem:[%s287 + $0x1a10] sm:$0xff]
        %v1134 = vld [vmem:[%s287 + $0x1a18] sm:$0xff]
        %v1135 = vld [vmem:[%s287 + $0x1a20] sm:$0xff]
        %v1136 = vld [vmem:[%s287 + $0x1a28] sm:$0xff]
        %v1137 = vld [vmem:[%s287 + $0x1a30] sm:$0xff]
        %v1138 = vld [vmem:[%s287 + $0x1a38] sm:$0xff]
        %v1139 = vld [vmem:[%s287 + $0x1a40] sm:$0xff]
        %v1140 = vld [vmem:[%s287 + $0x1a48] sm:$0xff]
        %v1141 = vld [vmem:[%s287 + $0x1a50] sm:$0xff]
        %v1142 = vld [vmem:[%s287 + $0x1a58] sm:$0xff]
        %v1143 = vld [vmem:[%s287 + $0x1a60] sm:$0xff]
        %v1144 = vld [vmem:[%s287 + $0x1a68] sm:$0xff]
        %v1145 = vld [vmem:[%s287 + $0x1a70] sm:$0xff]
        %v1146 = vld [vmem:[%s287 + $0x1a78] sm:$0xff]
        %v1147 = vld [vmem:[%s287 + $0x1a80] sm:$0xff]
        %v1148 = vld [vmem:[%s287 + $0x1a88] sm:$0xff]
        %v1149 = vld [vmem:[%s287 + $0x1a90] sm:$0xff]
        %v1150 = vld [vmem:[%s287 + $0x1a98] sm:$0xff]
        %v1151 = vld [vmem:[%s287 + $0x1aa0] sm:$0xff]
        %v1152 = vld [vmem:[%s287 + $0x1aa8] sm:$0xff]
        %v1153 = vld [vmem:[%s287 + $0x1ab0] sm:$0xff]
        %v1154 = vld [vmem:[%s287 + $0x1ab8] sm:$0xff]
        %v1155 = vld [vmem:[%s287 + $0x1ac0] sm:$0xff]
        %v1156 = vld [vmem:[%s287 + $0x1ac8] sm:$0xff]
        %v1157 = vld [vmem:[%s287 + $0x1ad0] sm:$0xff]
        %v1158 = vld [vmem:[%s287 + $0x1ad8] sm:$0xff]
        %v1159 = vld [vmem:[%s287 + $0x1ae0] sm:$0xff]
        %v1160 = vld [vmem:[%s287 + $0x1ae8] sm:$0xff]
        %v1161 = vld [vmem:[%s287 + $0x1af0] sm:$0xff]
        %v1162 = vld [vmem:[%s287 + $0x1af8] sm:$0xff]
        %v1163 = vld [vmem:[%s287 + $0x1b00] sm:$0xff]
        %v1164 = vld [vmem:[%s287 + $0x1b08] sm:$0xff]
        %v1165 = vld [vmem:[%s287 + $0x1b10] sm:$0xff]
        %v1166 = vld [vmem:[%s287 + $0x1b18] sm:$0xff]
        %v1167 = vld [vmem:[%s287 + $0x1b20] sm:$0xff]
        %v1168 = vld [vmem:[%s287 + $0x1b28] sm:$0xff]
        %v1169 = vld [vmem:[%s287 + $0x1b30] sm:$0xff]
        %v1170 = vld [vmem:[%s287 + $0x1b38] sm:$0xff]
        %v1171 = vld [vmem:[%s287 + $0x1b40] sm:$0xff]
        %v1172 = vld [vmem:[%s287 + $0x1b48] sm:$0xff]
        %v1173 = vld [vmem:[%s287 + $0x1b50] sm:$0xff]
        %v1174 = vld [vmem:[%s287 + $0x1b58] sm:$0xff]
        %v1175 = vld [vmem:[%s287 + $0x1b60] sm:$0xff]
        %v1176 = vld [vmem:[%s287 + $0x1b68] sm:$0xff]
        %v1177 = vld [vmem:[%s287 + $0x1b70] sm:$0xff]
        %v1178 = vld [vmem:[%s287 + $0x1b78] sm:$0xff]
        %v1179 = vld [vmem:[%s287 + $0x1b80] sm:$0xff]
        %v1180 = vld [vmem:[%s287 + $0x1b88] sm:$0xff]
        %v1181 = vld [vmem:[%s287 + $0x1b90] sm:$0xff]
        %v1182 = vld [vmem:[%s287 + $0x1b98] sm:$0xff]
        %v1183 = vld [vmem:[%s287 + $0x1ba0] sm:$0xff]
        %v1184 = vld [vmem:[%s287 + $0x1ba8] sm:$0xff]
        %v1185 = vld [vmem:[%s287 + $0x1bb0] sm:$0xff]
        %v1186 = vld [vmem:[%s287 + $0x1bb8] sm:$0xff]
        %v1187 = vld [vmem:[%s287 + $0x1bc0] sm:$0xff]
        %v1188 = vld [vmem:[%s287 + $0x1bc8] sm:$0xff]
        %v1189 = vld [vmem:[%s287 + $0x1bd0] sm:$0xff]
        %v1190 = vld [vmem:[%s287 + $0x1bd8] sm:$0xff]
        %v1191 = vld [vmem:[%s287 + $0x1be0] sm:$0xff]
        %v1192 = vld [vmem:[%s287 + $0x1be8] sm:$0xff]
        %v1193 = vld [vmem:[%s287 + $0x1bf0] sm:$0xff]
        %v1194 = vld [vmem:[%s287 + $0x1bf8] sm:$0xff]
        %v1195 = vld [vmem:[%s287 + $0x1c00] sm:$0xff]
        %v1196 = vld [vmem:[%s287 + $0x1c08] sm:$0xff]
        %v1197 = vld [vmem:[%s287 + $0x1c10] sm:$0xff]
        %v1198 = vld [vmem:[%s287 + $0x1c18] sm:$0xff]
        %v1199 = vld [vmem:[%s287 + $0x1c20] sm:$0xff]
        %v1200 = vld [vmem:[%s287 + $0x1c28] sm:$0xff]
        %v1201 = vld [vmem:[%s287 + $0x1c30] sm:$0xff]
        %v1202 = vld [vmem:[%s287 + $0x1c38] sm:$0xff]
        %v1203 = vld [vmem:[%s287 + $0x1c40] sm:$0xff]
        %v1204 = vld [vmem:[%s287 + $0x1c48] sm:$0xff]
        %v1205 = vld [vmem:[%s287 + $0x1c50] sm:$0xff]
        %v1206 = vld [vmem:[%s287 + $0x1c58] sm:$0xff]
        %v1207 = vld [vmem:[%s287 + $0x1c60] sm:$0xff]
        %v1208 = vld [vmem:[%s287 + $0x1c68] sm:$0xff]
        %v1209 = vld [vmem:[%s287 + $0x1c70] sm:$0xff]
        %v1210 = vld [vmem:[%s287 + $0x1c78] sm:$0xff]
        %v1211 = vld [vmem:[%s287 + $0x1c80] sm:$0xff]
        %v1212 = vld [vmem:[%s287 + $0x1c88] sm:$0xff]
        %v1213 = vld [vmem:[%s287 + $0x1c90] sm:$0xff]
        %v1214 = vld [vmem:[%s287 + $0x1c98] sm:$0xff]
        %v1215 = vld [vmem:[%s287 + $0x1ca0] sm:$0xff]
        %v1216 = vld [vmem:[%s287 + $0x1ca8] sm:$0xff]
        %v1217 = vld [vmem:[%s287 + $0x1cb0] sm:$0xff]
        %v1218 = vld [vmem:[%s287 + $0x1cb8] sm:$0xff]
        %v1219 = vld [vmem:[%s287 + $0x1cc0] sm:$0xff]
        %v1220 = vld [vmem:[%s287 + $0x1cc8] sm:$0xff]
        %v1221 = vld [vmem:[%s287 + $0x1cd0] sm:$0xff]
        %v1222 = vld [vmem:[%s287 + $0x1cd8] sm:$0xff]
        %v1223 = vld [vmem:[%s287 + $0x1ce0] sm:$0xff]
        %v1224 = vld [vmem:[%s287 + $0x1ce8] sm:$0xff]
        %v1225 = vld [vmem:[%s287 + $0x1cf0] sm:$0xff]
        %v1226 = vld [vmem:[%s287 + $0x1cf8] sm:$0xff]
        %v1227 = vld [vmem:[%s287 + $0x1d00] sm:$0xff]
        %v1228 = vld [vmem:[%s287 + $0x1d08] sm:$0xff]
        %v1229 = vld [vmem:[%s287 + $0x1d10] sm:$0xff]
        %v1230 = vld [vmem:[%s287 + $0x1d18] sm:$0xff]
        %v1231 = vld [vmem:[%s287 + $0x1d20] sm:$0xff]
        %v1232 = vld [vmem:[%s287 + $0x1d28] sm:$0xff]
        %v1233 = vld [vmem:[%s287 + $0x1d30] sm:$0xff]
        %v1234 = vld [vmem:[%s287 + $0x1d38] sm:$0xff]
        %v1235 = vld [vmem:[%s287 + $0x1d40] sm:$0xff]
        %v1236 = vld [vmem:[%s287 + $0x1d48] sm:$0xff]
        %v1237 = vld [vmem:[%s287 + $0x1d50] sm:$0xff]
        %v1238 = vld [vmem:[%s287 + $0x1d58] sm:$0xff]
        %v1239 = vld [vmem:[%s287 + $0x1d60] sm:$0xff]
        %v1240 = vld [vmem:[%s287 + $0x1d68] sm:$0xff]
        %v1241 = vld [vmem:[%s287 + $0x1d70] sm:$0xff]
        %v1242 = vld [vmem:[%s287 + $0x1d78] sm:$0xff]
        %v1243 = vld [vmem:[%s287 + $0x1d80] sm:$0xff]
        %v1244 = vld [vmem:[%s287 + $0x1d88] sm:$0xff]
        %v1245 = vld [vmem:[%s287 + $0x1d90] sm:$0xff]
        %v1246 = vld [vmem:[%s287 + $0x1d98] sm:$0xff]
        %v1247 = vld [vmem:[%s287 + $0x1da0] sm:$0xff]
        %v1248 = vld [vmem:[%s287 + $0x1da8] sm:$0xff]
        %v1249 = vld [vmem:[%s287 + $0x1db0] sm:$0xff]
        %v1250 = vld [vmem:[%s287 + $0x1db8] sm:$0xff]
        %v1251 = vld [vmem:[%s287 + $0x1dc0] sm:$0xff]
        %v1252 = vld [vmem:[%s287 + $0x1dc8] sm:$0xff]
        %v1253 = vld [vmem:[%s287 + $0x1dd0] sm:$0xff]
        %v1254 = vld [vmem:[%s287 + $0x1dd8] sm:$0xff]
        %v1255 = vld [vmem:[%s287 + $0x1de0] sm:$0xff]
        %v1256 = vld [vmem:[%s287 + $0x1de8] sm:$0xff]
        %v1257 = vld [vmem:[%s287 + $0x1df0] sm:$0xff]
        %v1258 = vld [vmem:[%s287 + $0x1df8] sm:$0xff]
        %v1259 = vld [vmem:[%s287 + $0x1e00] sm:$0xff]
        %v1260 = vld [vmem:[%s287 + $0x1e08] sm:$0xff]
        %v1261 = vld [vmem:[%s287 + $0x1e10] sm:$0xff]
        %v1262 = vld [vmem:[%s287 + $0x1e18] sm:$0xff]
        %v1263 = vld [vmem:[%s287 + $0x1e20] sm:$0xff]
        %v1264 = vld [vmem:[%s287 + $0x1e28] sm:$0xff]
        %v1265 = vld [vmem:[%s287 + $0x1e30] sm:$0xff]
        %v1266 = vld [vmem:[%s287 + $0x1e38] sm:$0xff]
        %v1267 = vld [vmem:[%s287 + $0x1e40] sm:$0xff]
        %v1268 = vld [vmem:[%s287 + $0x1e48] sm:$0xff]
        %v1269 = vld [vmem:[%s287 + $0x1e50] sm:$0xff]
        %v1270 = vld [vmem:[%s287 + $0x1e58] sm:$0xff]
        %v1271 = vld [vmem:[%s287 + $0x1e60] sm:$0xff]
        %v1272 = vld [vmem:[%s287 + $0x1e68] sm:$0xff]
        %v1273 = vld [vmem:[%s287 + $0x1e70] sm:$0xff]
        %v1274 = vld [vmem:[%s287 + $0x1e78] sm:$0xff]
        %v1275 = vld [vmem:[%s287 + $0x1e80] sm:$0xff]
        %v1276 = vld [vmem:[%s287 + $0x1e88] sm:$0xff]
        %v1277 = vld [vmem:[%s287 + $0x1e90] sm:$0xff]
        %v1278 = vld [vmem:[%s287 + $0x1e98] sm:$0xff]
        %v1279 = vld [vmem:[%s287 + $0x1ea0] sm:$0xff]
        %v1280 = vld [vmem:[%s287 + $0x1ea8] sm:$0xff]
        %v1281 = vld [vmem:[%s287 + $0x1eb0] sm:$0xff]
        %v1282 = vld [vmem:[%s287 + $0x1eb8] sm:$0xff]
        %v1283 = vld [vmem:[%s287 + $0x1ec0] sm:$0xff]
        %v1284 = vld [vmem:[%s287 + $0x1ec8] sm:$0xff]
        %v1285 = vld [vmem:[%s287 + $0x1ed0] sm:$0xff]
        %v1286 = vld [vmem:[%s287 + $0x1ed8] sm:$0xff]
        %v1287 = vld [vmem:[%s287 + $0x1ee0] sm:$0xff]
        %v1288 = vld [vmem:[%s287 + $0x1ee8] sm:$0xff]
        %v1289 = vld [vmem:[%s287 + $0x1ef0] sm:$0xff]
        %v1290 = vld [vmem:[%s287 + $0x1ef8] sm:$0xff]
        %v1291 = vld [vmem:[%s287 + $0x1f00] sm:$0xff]
        %v1292 = vld [vmem:[%s287 + $0x1f08] sm:$0xff]
        %v1293 = vld [vmem:[%s287 + $0x1f10] sm:$0xff]
        %v1294 = vld [vmem:[%s287 + $0x1f18] sm:$0xff]
        %v1295 = vld [vmem:[%s287 + $0x1f20] sm:$0xff]
        %v1296 = vld [vmem:[%s287 + $0x1f28] sm:$0xff]
        %v1297 = vld [vmem:[%s287 + $0x1f30] sm:$0xff]
        %v1298 = vld [vmem:[%s287 + $0x1f38] sm:$0xff]
        %v1299 = vld [vmem:[%s287 + $0x1f40] sm:$0xff]
        %v1300 = vld [vmem:[%s287 + $0x1f48] sm:$0xff]
        %v1301 = vld [vmem:[%s287 + $0x1f50] sm:$0xff]
        %v1302 = vld [vmem:[%s287 + $0x1f58] sm:$0xff]
        %v1303 = vld [vmem:[%s287 + $0x1f60] sm:$0xff]
        %v1304 = vld [vmem:[%s287 + $0x1f68] sm:$0xff]
        %v1305 = vld [vmem:[%s287 + $0x1f70] sm:$0xff]
        %v1306 = vld [vmem:[%s287 + $0x1f78] sm:$0xff]
        %v1307 = vld [vmem:[%s287 + $0x1f80] sm:$0xff]
        %v1308 = vld [vmem:[%s287 + $0x1f88] sm:$0xff]
        %v1309 = vld [vmem:[%s287 + $0x1f90] sm:$0xff]
        %v1310 = vld [vmem:[%s287 + $0x1f98] sm:$0xff]
        %v1311 = vld [vmem:[%s287 + $0x1fa0] sm:$0xff]
        %v1312 = vld [vmem:[%s287 + $0x1fa8] sm:$0xff]
        %v1313 = vld [vmem:[%s287 + $0x1fb0] sm:$0xff]
        %v1314 = vld [vmem:[%s287 + $0x1fb8] sm:$0xff]
        %v1315 = vld [vmem:[%s287 + $0x1fc0] sm:$0xff]
        %v1316 = vld [vmem:[%s287 + $0x1fc8] sm:$0xff]
        %v1317 = vld [vmem:[%s287 + $0x1fd0] sm:$0xff]
        %v1318 = vld [vmem:[%s287 + $0x1fd8] sm:$0xff]
        %v1319 = vld [vmem:[%s287 + $0x1fe0] sm:$0xff]
        %v1320 = vld [vmem:[%s287 + $0x1fe8] sm:$0xff]
        %v1321 = vld [vmem:[%s287 + $0x1ff0] sm:$0xff]
        %v1322 = vld [vmem:[%s287 + $0x1ff8] sm:$0xff]
        %1324 = vst [vmem:[#allocation1] ss:$9 sm:$0xff] %v295
        %v1325 = vld [vmem:[#allocation1] sm:$0xff]
        %v1326 = vld [vmem:[#allocation1 + $0x9] sm:$0xff]
        %v1327 = vld [vmem:[#allocation1 + $0x12] sm:$0xff]
        %v1328 = vld [vmem:[#allocation1 + $0x1b] sm:$0xff]
        %v1329 = vld [vmem:[#allocation1 + $0x24] sm:$0xff]
        %v1330 = vld [vmem:[#allocation1 + $0x2d] sm:$0xff]
        %v1331 = vld [vmem:[#allocation1 + $0x36] sm:$0xff]
        %v1332 = vld [vmem:[#allocation1 + $0x3f] sm:$0xff]
        %1334 = vst [vmem:[#allocation1] ss:$9 sm:$0xff] %v296
        %v1335 = vld [vmem:[#allocation1] sm:$0xff]
        %v1336 = vld [vmem:[#allocation1 + $0x9] sm:$0xff]
        %v1337 = vld [vmem:[#allocation1 + $0x12] sm:$0xff]
        %v1338 = vld [vmem:[#allocation1 + $0x1b] sm:$0xff]
        %v1339 = vld [vmem:[#allocation1 + $0x24] sm:$0xff]
        %v1340 = vld [vmem:[#allocation1 + $0x2d] sm:$0xff]
        %v1341 = vld [vmem:[#allocation1 + $0x36] sm:$0xff]
        %v1342 = vld [vmem:[#allocation1 + $0x3f] sm:$0xff]
        %1344 = vst [vmem:[#allocation1] ss:$9 sm:$0xff] %v297
        %v1345 = vld [vmem:[#allocation1] sm:$0xff]
        %v1346 = vld [vmem:[#allocation1 + $0x9] sm:$0xff]
        %v1347 = vld [vmem:[#allocation1 + $0x12] sm:$0xff]
        %v1348 = vld [vmem:[#allocation1 + $0x1b] sm:$0xff]
        %v1349 = vld [vmem:[#allocation1 + $0x24] sm:$0xff]
        %v1350 = vld [vmem:[#allocation1 + $0x2d] sm:$0xff]
        %v1351 = vld [vmem:[#allocation1 + $0x36] sm:$0xff]
        %v1352 = vld [vmem:[#allocation1 + $0x3f] sm:$0xff]
        %1354 = vst [vmem:[#allocation1] ss:$9 sm:$0xff] %v298
        %v1355 = vld [vmem:[#allocation1] sm:$0xff]
        %v1356 = vld [vmem:[#allocation1 + $0x9] sm:$0xff]
        %v1357 = vld [vmem:[#allocation1 + $0x12] sm:$0xff]
        %v1358 = vld [vmem:[#allocation1 + $0x1b] sm:$0xff]
        %v1359 = vld [vmem:[#allocation1 + $0x24] sm:$0xff]
        %v1360 = vld [vmem:[#allocation1 + $0x2d] sm:$0xff]
        %v1361 = vld [vmem:[#allocation1 + $0x36] sm:$0xff]
        %v1362 = vld [vmem:[#allocation1 + $0x3f] sm:$0xff]
        %v2419 = vunpack.c.l.b16 %v299
        %v2420 = vunpack.c.h.b16 %v299
        %v2421 = vunpack.c.l.b16 %v300
        %v2422 = vunpack.c.h.b16 %v300
        %v2423 = vunpack.c.l.b16 %v301
        %v2424 = vunpack.c.h.b16 %v301
        %v2425 = vunpack.c.l.b16 %v302
        %v2426 = vunpack.c.h.b16 %v302
        %v2427 = vunpack.c.l.b16 %v303
        %v2428 = vunpack.c.h.b16 %v303
        %v2429 = vunpack.c.l.b16 %v304
        %v2430 = vunpack.c.h.b16 %v304
        %v2431 = vunpack.c.l.b16 %v305
        %v2432 = vunpack.c.h.b16 %v305
        %v2433 = vunpack.c.l.b16 %v306
        %v2434 = vunpack.c.h.b16 %v306
        %v2435 = vunpack.c.l.b16 %v307
        %v2436 = vunpack.c.h.b16 %v307
        %v2437 = vunpack.c.l.b16 %v308
        %v2438 = vunpack.c.h.b16 %v308
        %v2439 = vunpack.c.l.b16 %v309
        %v2440 = vunpack.c.h.b16 %v309
        %v2441 = vunpack.c.l.b16 %v310
        %v2442 = vunpack.c.h.b16 %v310
        %v2443 = vunpack.c.l.b16 %v311
        %v2444 = vunpack.c.h.b16 %v311
        %v2445 = vunpack.c.l.b16 %v312
        %v2446 = vunpack.c.h.b16 %v312
        %v2447 = vunpack.c.l.b16 %v313
        %v2448 = vunpack.c.h.b16 %v313
        %v2449 = vunpack.c.l.b16 %v314
        %v2450 = vunpack.c.h.b16 %v314
        %v2451 = vunpack.c.l.b16 %v315
        %v2452 = vunpack.c.h.b16 %v315
        %v2453 = vunpack.c.l.b16 %v316
        %v2454 = vunpack.c.h.b16 %v316
        %v2455 = vunpack.c.l.b16 %v317
        %v2456 = vunpack.c.h.b16 %v317
        %v2457 = vunpack.c.l.b16 %v318
        %v2458 = vunpack.c.h.b16 %v318
        %v2459 = vunpack.c.l.b16 %v319
        %v2460 = vunpack.c.h.b16 %v319
        %v2461 = vunpack.c.l.b16 %v320
        %v2462 = vunpack.c.h.b16 %v320
        %v2463 = vunpack.c.l.b16 %v321
        %v2464 = vunpack.c.h.b16 %v321
        %v2465 = vunpack.c.l.b16 %v322
        %v2466 = vunpack.c.h.b16 %v322
        %v2467 = vunpack.c.l.b16 %v323
        %v2468 = vunpack.c.h.b16 %v323
        %v2469 = vunpack.c.l.b16 %v324
        %v2470 = vunpack.c.h.b16 %v324
        %v2471 = vunpack.c.l.b16 %v325
        %v2472 = vunpack.c.h.b16 %v325
        %v2473 = vunpack.c.l.b16 %v326
        %v2474 = vunpack.c.h.b16 %v326
        %v2475 = vunpack.c.l.b16 %v327
        %v2476 = vunpack.c.h.b16 %v327
        %v2477 = vunpack.c.l.b16 %v328
        %v2478 = vunpack.c.h.b16 %v328
        %v2479 = vunpack.c.l.b16 %v329
        %v2480 = vunpack.c.h.b16 %v329
        %v2481 = vunpack.c.l.b16 %v330
        %v2482 = vunpack.c.h.b16 %v330
        %v2483 = vunpack.c.l.b16 %v331
        %v2484 = vunpack.c.h.b16 %v331
        %v2485 = vunpack.c.l.b16 %v332
        %v2486 = vunpack.c.h.b16 %v332
        %v2487 = vunpack.c.l.b16 %v333
        %v2488 = vunpack.c.h.b16 %v333
        %v2489 = vunpack.c.l.b16 %v334
        %v2490 = vunpack.c.h.b16 %v334
        %v2491 = vunpack.c.l.b16 %v335
        %v2492 = vunpack.c.h.b16 %v335
        %v2493 = vunpack.c.l.b16 %v336
        %v2494 = vunpack.c.h.b16 %v336
        %v2495 = vunpack.c.l.b16 %v337
        %v2496 = vunpack.c.h.b16 %v337
        %v2497 = vunpack.c.l.b16 %v338
        %v2498 = vunpack.c.h.b16 %v338
        %v2499 = vunpack.c.l.b16 %v339
        %v2500 = vunpack.c.h.b16 %v339
        %v2501 = vunpack.c.l.b16 %v340
        %v2502 = vunpack.c.h.b16 %v340
        %v2503 = vunpack.c.l.b16 %v341
        %v2504 = vunpack.c.h.b16 %v341
        %v2505 = vunpack.c.l.b16 %v342
        %v2506 = vunpack.c.h.b16 %v342
        %v2507 = vunpack.c.l.b16 %v343
        %v2508 = vunpack.c.h.b16 %v343
        %v2509 = vunpack.c.l.b16 %v344
        %v2510 = vunpack.c.h.b16 %v344
        %v2511 = vunpack.c.l.b16 %v345
        %v2512 = vunpack.c.h.b16 %v345
        %v2513 = vunpack.c.l.b16 %v346
        %v2514 = vunpack.c.h.b16 %v346
        %v2515 = vunpack.c.l.b16 %v347
        %v2516 = vunpack.c.h.b16 %v347
        %v2517 = vunpack.c.l.b16 %v348
        %v2518 = vunpack.c.h.b16 %v348
        %v2519 = vunpack.c.l.b16 %v349
        %v2520 = vunpack.c.h.b16 %v349
        %v2521 = vunpack.c.l.b16 %v350
        %v2522 = vunpack.c.h.b16 %v350
        %v2523 = vunpack.c.l.b16 %v351
        %v2524 = vunpack.c.h.b16 %v351
        %v2525 = vunpack.c.l.b16 %v352
        %v2526 = vunpack.c.h.b16 %v352
        %v2527 = vunpack.c.l.b16 %v353
        %v2528 = vunpack.c.h.b16 %v353
        %v2529 = vunpack.c.l.b16 %v354
        %v2530 = vunpack.c.h.b16 %v354
        %v2531 = vunpack.c.l.b16 %v355
        %v2532 = vunpack.c.h.b16 %v355
        %v2533 = vunpack.c.l.b16 %v356
        %v2534 = vunpack.c.h.b16 %v356
        %v2535 = vunpack.c.l.b16 %v357
        %v2536 = vunpack.c.h.b16 %v357
        %v2537 = vunpack.c.l.b16 %v358
        %v2538 = vunpack.c.h.b16 %v358
        %v2539 = vunpack.c.l.b16 %v359
        %v2540 = vunpack.c.h.b16 %v359
        %v2541 = vunpack.c.l.b16 %v360
        %v2542 = vunpack.c.h.b16 %v360
        %v2543 = vunpack.c.l.b16 %v361
        %v2544 = vunpack.c.h.b16 %v361
        %v2545 = vunpack.c.l.b16 %v362
        %v2546 = vunpack.c.h.b16 %v362
        %v2547 = vunpack.c.l.b16 %v363
        %v2548 = vunpack.c.h.b16 %v363
        %v2549 = vunpack.c.l.b16 %v364
        %v2550 = vunpack.c.h.b16 %v364
        %v2551 = vunpack.c.l.b16 %v365
        %v2552 = vunpack.c.h.b16 %v365
        %v2553 = vunpack.c.l.b16 %v366
        %v2554 = vunpack.c.h.b16 %v366
        %v2555 = vunpack.c.l.b16 %v367
        %v2556 = vunpack.c.h.b16 %v367
        %v2557 = vunpack.c.l.b16 %v368
        %v2558 = vunpack.c.h.b16 %v368
        %v2559 = vunpack.c.l.b16 %v369
        %v2560 = vunpack.c.h.b16 %v369
        %v2561 = vunpack.c.l.b16 %v370
        %v2562 = vunpack.c.h.b16 %v370
        %v2563 = vunpack.c.l.b16 %v371
        %v2564 = vunpack.c.h.b16 %v371
        %v2565 = vunpack.c.l.b16 %v372
        %v2566 = vunpack.c.h.b16 %v372
        %v2567 = vunpack.c.l.b16 %v373
        %v2568 = vunpack.c.h.b16 %v373
        %v2569 = vunpack.c.l.b16 %v374
        %v2570 = vunpack.c.h.b16 %v374
        %v2571 = vunpack.c.l.b16 %v375
        %v2572 = vunpack.c.h.b16 %v375
        %v2573 = vunpack.c.l.b16 %v376
        %v2574 = vunpack.c.h.b16 %v376
        %v2575 = vunpack.c.l.b16 %v377
        %v2576 = vunpack.c.h.b16 %v377
        %v2577 = vunpack.c.l.b16 %v378
        %v2578 = vunpack.c.h.b16 %v378
        %v2579 = vunpack.c.l.b16 %v379
        %v2580 = vunpack.c.h.b16 %v379
        %v2581 = vunpack.c.l.b16 %v380
        %v2582 = vunpack.c.h.b16 %v380
        %v2583 = vunpack.c.l.b16 %v381
        %v2584 = vunpack.c.h.b16 %v381
        %v2585 = vunpack.c.l.b16 %v382
        %v2586 = vunpack.c.h.b16 %v382
        %v2587 = vunpack.c.l.b16 %v383
        %v2588 = vunpack.c.h.b16 %v383
        %v2589 = vunpack.c.l.b16 %v384
        %v2590 = vunpack.c.h.b16 %v384
        %v2591 = vunpack.c.l.b16 %v385
        %v2592 = vunpack.c.h.b16 %v385
        %v2593 = vunpack.c.l.b16 %v386
        %v2594 = vunpack.c.h.b16 %v386
        %v2595 = vunpack.c.l.b16 %v387
        %v2596 = vunpack.c.h.b16 %v387
        %v2597 = vunpack.c.l.b16 %v388
        %v2598 = vunpack.c.h.b16 %v388
        %v2599 = vunpack.c.l.b16 %v389
        %v2600 = vunpack.c.h.b16 %v389
        %v2601 = vunpack.c.l.b16 %v390
        %v2602 = vunpack.c.h.b16 %v390
        %v2603 = vunpack.c.l.b16 %v391
        %v2604 = vunpack.c.h.b16 %v391
        %v2605 = vunpack.c.l.b16 %v392
        %v2606 = vunpack.c.h.b16 %v392
        %v2607 = vunpack.c.l.b16 %v393
        %v2608 = vunpack.c.h.b16 %v393
        %v2609 = vunpack.c.l.b16 %v394
        %v2610 = vunpack.c.h.b16 %v394
        %v2611 = vunpack.c.l.b16 %v395
        %v2612 = vunpack.c.h.b16 %v395
        %v2613 = vunpack.c.l.b16 %v396
        %v2614 = vunpack.c.h.b16 %v396
        %v2615 = vunpack.c.l.b16 %v397
        %v2616 = vunpack.c.h.b16 %v397
        %v2617 = vunpack.c.l.b16 %v398
        %v2618 = vunpack.c.h.b16 %v398
        %v2619 = vunpack.c.l.b16 %v399
        %v2620 = vunpack.c.h.b16 %v399
        %v2621 = vunpack.c.l.b16 %v400
        %v2622 = vunpack.c.h.b16 %v400
        %v2623 = vunpack.c.l.b16 %v401
        %v2624 = vunpack.c.h.b16 %v401
        %v2625 = vunpack.c.l.b16 %v402
        %v2626 = vunpack.c.h.b16 %v402
        %v2627 = vunpack.c.l.b16 %v403
        %v2628 = vunpack.c.h.b16 %v403
        %v2629 = vunpack.c.l.b16 %v404
        %v2630 = vunpack.c.h.b16 %v404
        %v2631 = vunpack.c.l.b16 %v405
        %v2632 = vunpack.c.h.b16 %v405
        %v2633 = vunpack.c.l.b16 %v406
        %v2634 = vunpack.c.h.b16 %v406
        %v2635 = vunpack.c.l.b16 %v407
        %v2636 = vunpack.c.h.b16 %v407
        %v2637 = vunpack.c.l.b16 %v408
        %v2638 = vunpack.c.h.b16 %v408
        %v2639 = vunpack.c.l.b16 %v409
        %v2640 = vunpack.c.h.b16 %v409
        %v2641 = vunpack.c.l.b16 %v410
        %v2642 = vunpack.c.h.b16 %v410
        %v2643 = vunpack.c.l.b16 %v411
        %v2644 = vunpack.c.h.b16 %v411
        %v2645 = vunpack.c.l.b16 %v412
        %v2646 = vunpack.c.h.b16 %v412
        %v2647 = vunpack.c.l.b16 %v413
        %v2648 = vunpack.c.h.b16 %v413
        %v2649 = vunpack.c.l.b16 %v414
        %v2650 = vunpack.c.h.b16 %v414
        %v2651 = vunpack.c.l.b16 %v415
        %v2652 = vunpack.c.h.b16 %v415
        %v2653 = vunpack.c.l.b16 %v416
        %v2654 = vunpack.c.h.b16 %v416
        %v2655 = vunpack.c.l.b16 %v417
        %v2656 = vunpack.c.h.b16 %v417
        %v2657 = vunpack.c.l.b16 %v418
        %v2658 = vunpack.c.h.b16 %v418
        %v2659 = vunpack.c.l.b16 %v419
        %v2660 = vunpack.c.h.b16 %v419
        %v2661 = vunpack.c.l.b16 %v420
        %v2662 = vunpack.c.h.b16 %v420
        %v2663 = vunpack.c.l.b16 %v421
        %v2664 = vunpack.c.h.b16 %v421
        %v2665 = vunpack.c.l.b16 %v422
        %v2666 = vunpack.c.h.b16 %v422
        %v2667 = vunpack.c.l.b16 %v423
        %v2668 = vunpack.c.h.b16 %v423
        %v2669 = vunpack.c.l.b16 %v424
        %v2670 = vunpack.c.h.b16 %v424
        %v2671 = vunpack.c.l.b16 %v425
        %v2672 = vunpack.c.h.b16 %v425
        %v2673 = vunpack.c.l.b16 %v426
        %v2674 = vunpack.c.h.b16 %v426
        %v2675 = vunpack.c.l.b16 %v427
        %v2676 = vunpack.c.h.b16 %v427
        %v2677 = vunpack.c.l.b16 %v428
        %v2678 = vunpack.c.h.b16 %v428
        %v2679 = vunpack.c.l.b16 %v429
        %v2680 = vunpack.c.h.b16 %v429
        %v2681 = vunpack.c.l.b16 %v430
        %v2682 = vunpack.c.h.b16 %v430
        %v2683 = vunpack.c.l.b16 %v431
        %v2684 = vunpack.c.h.b16 %v431
        %v2685 = vunpack.c.l.b16 %v432
        %v2686 = vunpack.c.h.b16 %v432
        %v2687 = vunpack.c.l.b16 %v433
        %v2688 = vunpack.c.h.b16 %v433
        %v2689 = vunpack.c.l.b16 %v434
        %v2690 = vunpack.c.h.b16 %v434
        %v2691 = vunpack.c.l.b16 %v435
        %v2692 = vunpack.c.h.b16 %v435
        %v2693 = vunpack.c.l.b16 %v436
        %v2694 = vunpack.c.h.b16 %v436
        %v2695 = vunpack.c.l.b16 %v437
        %v2696 = vunpack.c.h.b16 %v437
        %v2697 = vunpack.c.l.b16 %v438
        %v2698 = vunpack.c.h.b16 %v438
        %v2699 = vunpack.c.l.b16 %v439
        %v2700 = vunpack.c.h.b16 %v439
        %v2701 = vunpack.c.l.b16 %v440
        %v2702 = vunpack.c.h.b16 %v440
        %v2703 = vunpack.c.l.b16 %v441
        %v2704 = vunpack.c.h.b16 %v441
        %v2705 = vunpack.c.l.b16 %v442
        %v2706 = vunpack.c.h.b16 %v442
        %v2707 = vunpack.c.l.b16 %v443
        %v2708 = vunpack.c.h.b16 %v443
        %v2709 = vunpack.c.l.b16 %v444
        %v2710 = vunpack.c.h.b16 %v444
        %v2711 = vunpack.c.l.b16 %v445
        %v2712 = vunpack.c.h.b16 %v445
        %v2713 = vunpack.c.l.b16 %v446
        %v2714 = vunpack.c.h.b16 %v446
        %v2715 = vunpack.c.l.b16 %v447
        %v2716 = vunpack.c.h.b16 %v447
        %v2717 = vunpack.c.l.b16 %v448
        %v2718 = vunpack.c.h.b16 %v448
        %v2719 = vunpack.c.l.b16 %v449
        %v2720 = vunpack.c.h.b16 %v449
        %v2721 = vunpack.c.l.b16 %v450
        %v2722 = vunpack.c.h.b16 %v450
        %v2723 = vunpack.c.l.b16 %v451
        %v2724 = vunpack.c.h.b16 %v451
        %v2725 = vunpack.c.l.b16 %v452
        %v2726 = vunpack.c.h.b16 %v452
        %v2727 = vunpack.c.l.b16 %v453
        %v2728 = vunpack.c.h.b16 %v453
        %v2729 = vunpack.c.l.b16 %v454
        %v2730 = vunpack.c.h.b16 %v454
        %v2731 = vunpack.c.l.b16 %v455
        %v2732 = vunpack.c.h.b16 %v455
        %v2733 = vunpack.c.l.b16 %v456
        %v2734 = vunpack.c.h.b16 %v456
        %v2735 = vunpack.c.l.b16 %v457
        %v2736 = vunpack.c.h.b16 %v457
        %v2737 = vunpack.c.l.b16 %v458
        %v2738 = vunpack.c.h.b16 %v458
        %v2739 = vunpack.c.l.b16 %v459
        %v2740 = vunpack.c.h.b16 %v459
        %v2741 = vunpack.c.l.b16 %v460
        %v2742 = vunpack.c.h.b16 %v460
        %v2743 = vunpack.c.l.b16 %v461
        %v2744 = vunpack.c.h.b16 %v461
        %v2745 = vunpack.c.l.b16 %v462
        %v2746 = vunpack.c.h.b16 %v462
        %v2747 = vunpack.c.l.b16 %v463
        %v2748 = vunpack.c.h.b16 %v463
        %v2749 = vunpack.c.l.b16 %v464
        %v2750 = vunpack.c.h.b16 %v464
        %v2751 = vunpack.c.l.b16 %v465
        %v2752 = vunpack.c.h.b16 %v465
        %v2753 = vunpack.c.l.b16 %v466
        %v2754 = vunpack.c.h.b16 %v466
        %v2755 = vunpack.c.l.b16 %v467
        %v2756 = vunpack.c.h.b16 %v467
        %v2757 = vunpack.c.l.b16 %v468
        %v2758 = vunpack.c.h.b16 %v468
        %v2759 = vunpack.c.l.b16 %v469
        %v2760 = vunpack.c.h.b16 %v469
        %v2761 = vunpack.c.l.b16 %v470
        %v2762 = vunpack.c.h.b16 %v470
        %v2763 = vunpack.c.l.b16 %v471
        %v2764 = vunpack.c.h.b16 %v471
        %v2765 = vunpack.c.l.b16 %v472
        %v2766 = vunpack.c.h.b16 %v472
        %v2767 = vunpack.c.l.b16 %v473
        %v2768 = vunpack.c.h.b16 %v473
        %v2769 = vunpack.c.l.b16 %v474
        %v2770 = vunpack.c.h.b16 %v474
        %v2771 = vunpack.c.l.b16 %v475
        %v2772 = vunpack.c.h.b16 %v475
        %v2773 = vunpack.c.l.b16 %v476
        %v2774 = vunpack.c.h.b16 %v476
        %v2775 = vunpack.c.l.b16 %v477
        %v2776 = vunpack.c.h.b16 %v477
        %v2777 = vunpack.c.l.b16 %v478
        %v2778 = vunpack.c.h.b16 %v478
        %v2779 = vunpack.c.l.b16 %v479
        %v2780 = vunpack.c.h.b16 %v479
        %v2781 = vunpack.c.l.b16 %v480
        %v2782 = vunpack.c.h.b16 %v480
        %v2783 = vunpack.c.l.b16 %v481
        %v2784 = vunpack.c.h.b16 %v481
        %v2785 = vunpack.c.l.b16 %v482
        %v2786 = vunpack.c.h.b16 %v482
        %v2787 = vunpack.c.l.b16 %v483
        %v2788 = vunpack.c.h.b16 %v483
        %v2789 = vunpack.c.l.b16 %v484
        %v2790 = vunpack.c.h.b16 %v484
        %v2791 = vunpack.c.l.b16 %v485
        %v2792 = vunpack.c.h.b16 %v485
        %v2793 = vunpack.c.l.b16 %v486
        %v2794 = vunpack.c.h.b16 %v486
        %v2795 = vunpack.c.l.b16 %v487
        %v2796 = vunpack.c.h.b16 %v487
        %v2797 = vunpack.c.l.b16 %v488
        %v2798 = vunpack.c.h.b16 %v488
        %v2799 = vunpack.c.l.b16 %v489
        %v2800 = vunpack.c.h.b16 %v489
        %v2801 = vunpack.c.l.b16 %v490
        %v2802 = vunpack.c.h.b16 %v490
        %v2803 = vunpack.c.l.b16 %v491
        %v2804 = vunpack.c.h.b16 %v491
        %v2805 = vunpack.c.l.b16 %v492
        %v2806 = vunpack.c.h.b16 %v492
        %v2807 = vunpack.c.l.b16 %v493
        %v2808 = vunpack.c.h.b16 %v493
        %v2809 = vunpack.c.l.b16 %v494
        %v2810 = vunpack.c.h.b16 %v494
        %v2811 = vunpack.c.l.b16 %v495
        %v2812 = vunpack.c.h.b16 %v495
        %v2813 = vunpack.c.l.b16 %v496
        %v2814 = vunpack.c.h.b16 %v496
        %v2815 = vunpack.c.l.b16 %v497
        %v2816 = vunpack.c.h.b16 %v497
        %v2817 = vunpack.c.l.b16 %v498
        %v2818 = vunpack.c.h.b16 %v498
        %v2819 = vunpack.c.l.b16 %v499
        %v2820 = vunpack.c.h.b16 %v499
        %v2821 = vunpack.c.l.b16 %v500
        %v2822 = vunpack.c.h.b16 %v500
        %v2823 = vunpack.c.l.b16 %v501
        %v2824 = vunpack.c.h.b16 %v501
        %v2825 = vunpack.c.l.b16 %v502
        %v2826 = vunpack.c.h.b16 %v502
        %v2827 = vunpack.c.l.b16 %v503
        %v2828 = vunpack.c.h.b16 %v503
        %v2829 = vunpack.c.l.b16 %v504
        %v2830 = vunpack.c.h.b16 %v504
        %v2831 = vunpack.c.l.b16 %v505
        %v2832 = vunpack.c.h.b16 %v505
        %v2833 = vunpack.c.l.b16 %v506
        %v2834 = vunpack.c.h.b16 %v506
        %v2835 = vunpack.c.l.b16 %v507
        %v2836 = vunpack.c.h.b16 %v507
        %v2837 = vunpack.c.l.b16 %v508
        %v2838 = vunpack.c.h.b16 %v508
        %v2839 = vunpack.c.l.b16 %v509
        %v2840 = vunpack.c.h.b16 %v509
        %v2841 = vunpack.c.l.b16 %v510
        %v2842 = vunpack.c.h.b16 %v510
        %v2843 = vunpack.c.l.b16 %v511
        %v2844 = vunpack.c.h.b16 %v511
        %v2845 = vunpack.c.l.b16 %v512
        %v2846 = vunpack.c.h.b16 %v512
        %v2847 = vunpack.c.l.b16 %v513
        %v2848 = vunpack.c.h.b16 %v513
        %v2849 = vunpack.c.l.b16 %v514
        %v2850 = vunpack.c.h.b16 %v514
        %v2851 = vunpack.c.l.b16 %v515
        %v2852 = vunpack.c.h.b16 %v515
        %v2853 = vunpack.c.l.b16 %v516
        %v2854 = vunpack.c.h.b16 %v516
        %v2855 = vunpack.c.l.b16 %v517
        %v2856 = vunpack.c.h.b16 %v517
        %v2857 = vunpack.c.l.b16 %v518
        %v2858 = vunpack.c.h.b16 %v518
        %v2859 = vunpack.c.l.b16 %v519
        %v2860 = vunpack.c.h.b16 %v519
        %v2861 = vunpack.c.l.b16 %v520
        %v2862 = vunpack.c.h.b16 %v520
        %v2863 = vunpack.c.l.b16 %v521
        %v2864 = vunpack.c.h.b16 %v521
        %v2865 = vunpack.c.l.b16 %v522
        %v2866 = vunpack.c.h.b16 %v522
        %v2867 = vunpack.c.l.b16 %v523
        %v2868 = vunpack.c.h.b16 %v523
        %v2869 = vunpack.c.l.b16 %v524
        %v2870 = vunpack.c.h.b16 %v524
        %v2871 = vunpack.c.l.b16 %v525
        %v2872 = vunpack.c.h.b16 %v525
        %v2873 = vunpack.c.l.b16 %v526
        %v2874 = vunpack.c.h.b16 %v526
        %v2875 = vunpack.c.l.b16 %v527
        %v2876 = vunpack.c.h.b16 %v527
        %v2877 = vunpack.c.l.b16 %v528
        %v2878 = vunpack.c.h.b16 %v528
        %v2879 = vunpack.c.l.b16 %v529
        %v2880 = vunpack.c.h.b16 %v529
        %v2881 = vunpack.c.l.b16 %v530
        %v2882 = vunpack.c.h.b16 %v530
        %v2883 = vunpack.c.l.b16 %v531
        %v2884 = vunpack.c.h.b16 %v531
        %v2885 = vunpack.c.l.b16 %v532
        %v2886 = vunpack.c.h.b16 %v532
        %v2887 = vunpack.c.l.b16 %v533
        %v2888 = vunpack.c.h.b16 %v533
        %v2889 = vunpack.c.l.b16 %v534
        %v2890 = vunpack.c.h.b16 %v534
        %v2891 = vunpack.c.l.b16 %v535
        %v2892 = vunpack.c.h.b16 %v535
        %v2893 = vunpack.c.l.b16 %v536
        %v2894 = vunpack.c.h.b16 %v536
        %v2895 = vunpack.c.l.b16 %v537
        %v2896 = vunpack.c.h.b16 %v537
        %v2897 = vunpack.c.l.b16 %v538
        %v2898 = vunpack.c.h.b16 %v538
        %v2899 = vunpack.c.l.b16 %v539
        %v2900 = vunpack.c.h.b16 %v539
        %v2901 = vunpack.c.l.b16 %v540
        %v2902 = vunpack.c.h.b16 %v540
        %v2903 = vunpack.c.l.b16 %v541
        %v2904 = vunpack.c.h.b16 %v541
        %v2905 = vunpack.c.l.b16 %v542
        %v2906 = vunpack.c.h.b16 %v542
        %v2907 = vunpack.c.l.b16 %v543
        %v2908 = vunpack.c.h.b16 %v543
        %v2909 = vunpack.c.l.b16 %v544
        %v2910 = vunpack.c.h.b16 %v544
        %v2911 = vunpack.c.l.b16 %v545
        %v2912 = vunpack.c.h.b16 %v545
        %v2913 = vunpack.c.l.b16 %v546
        %v2914 = vunpack.c.h.b16 %v546
        %v2915 = vunpack.c.l.b16 %v547
        %v2916 = vunpack.c.h.b16 %v547
        %v2917 = vunpack.c.l.b16 %v548
        %v2918 = vunpack.c.h.b16 %v548
        %v2919 = vunpack.c.l.b16 %v549
        %v2920 = vunpack.c.h.b16 %v549
        %v2921 = vunpack.c.l.b16 %v550
        %v2922 = vunpack.c.h.b16 %v550
        %v2923 = vunpack.c.l.b16 %v551
        %v2924 = vunpack.c.h.b16 %v551
        %v2925 = vunpack.c.l.b16 %v552
        %v2926 = vunpack.c.h.b16 %v552
        %v2927 = vunpack.c.l.b16 %v553
        %v2928 = vunpack.c.h.b16 %v553
        %v2929 = vunpack.c.l.b16 %v554
        %v2930 = vunpack.c.h.b16 %v554
        %v2931 = vunpack.c.l.b16 %v555
        %v2932 = vunpack.c.h.b16 %v555
        %v2933 = vunpack.c.l.b16 %v556
        %v2934 = vunpack.c.h.b16 %v556
        %v2935 = vunpack.c.l.b16 %v557
        %v2936 = vunpack.c.h.b16 %v557
        %v2937 = vunpack.c.l.b16 %v558
        %v2938 = vunpack.c.h.b16 %v558
        %v2939 = vunpack.c.l.b16 %v559
        %v2940 = vunpack.c.h.b16 %v559
        %v2941 = vunpack.c.l.b16 %v560
        %v2942 = vunpack.c.h.b16 %v560
        %v2943 = vunpack.c.l.b16 %v561
        %v2944 = vunpack.c.h.b16 %v561
        %v2945 = vunpack.c.l.b16 %v562
        %v2946 = vunpack.c.h.b16 %v562
        %v2947 = vunpack.c.l.b16 %v563
        %v2948 = vunpack.c.h.b16 %v563
        %v2949 = vunpack.c.l.b16 %v564
        %v2950 = vunpack.c.h.b16 %v564
        %v2951 = vunpack.c.l.b16 %v565
        %v2952 = vunpack.c.h.b16 %v565
        %v2953 = vunpack.c.l.b16 %v566
        %v2954 = vunpack.c.h.b16 %v566
        %v2955 = vunpack.c.l.b16 %v567
        %v2956 = vunpack.c.h.b16 %v567
        %v2957 = vunpack.c.l.b16 %v568
        %v2958 = vunpack.c.h.b16 %v568
        %v2959 = vunpack.c.l.b16 %v569
        %v2960 = vunpack.c.h.b16 %v569
        %v2961 = vunpack.c.l.b16 %v570
        %v2962 = vunpack.c.h.b16 %v570
        %v2963 = vunpack.c.l.b16 %v571
        %v2964 = vunpack.c.h.b16 %v571
        %v2965 = vunpack.c.l.b16 %v572
        %v2966 = vunpack.c.h.b16 %v572
        %v2967 = vunpack.c.l.b16 %v573
        %v2968 = vunpack.c.h.b16 %v573
        %v2969 = vunpack.c.l.b16 %v574
        %v2970 = vunpack.c.h.b16 %v574
        %v2971 = vunpack.c.l.b16 %v575
        %v2972 = vunpack.c.h.b16 %v575
        %v2973 = vunpack.c.l.b16 %v576
        %v2974 = vunpack.c.h.b16 %v576
        %v2975 = vunpack.c.l.b16 %v577
        %v2976 = vunpack.c.h.b16 %v577
        %v2977 = vunpack.c.l.b16 %v578
        %v2978 = vunpack.c.h.b16 %v578
        %v2979 = vunpack.c.l.b16 %v579
        %v2980 = vunpack.c.h.b16 %v579
        %v2981 = vunpack.c.l.b16 %v580
        %v2982 = vunpack.c.h.b16 %v580
        %v2983 = vunpack.c.l.b16 %v581
        %v2984 = vunpack.c.h.b16 %v581
        %v2985 = vunpack.c.l.b16 %v582
        %v2986 = vunpack.c.h.b16 %v582
        %v2987 = vunpack.c.l.b16 %v583
        %v2988 = vunpack.c.h.b16 %v583
        %v2989 = vunpack.c.l.b16 %v584
        %v2990 = vunpack.c.h.b16 %v584
        %v2991 = vunpack.c.l.b16 %v585
        %v2992 = vunpack.c.h.b16 %v585
        %v2993 = vunpack.c.l.b16 %v586
        %v2994 = vunpack.c.h.b16 %v586
        %v2995 = vunpack.c.l.b16 %v587
        %v2996 = vunpack.c.h.b16 %v587
        %v2997 = vunpack.c.l.b16 %v588
        %v2998 = vunpack.c.h.b16 %v588
        %v2999 = vunpack.c.l.b16 %v589
        %v3000 = vunpack.c.h.b16 %v589
        %v3001 = vunpack.c.l.b16 %v590
        %v3002 = vunpack.c.h.b16 %v590
        %v3003 = vunpack.c.l.b16 %v591
        %v3004 = vunpack.c.h.b16 %v591
        %v3005 = vunpack.c.l.b16 %v592
        %v3006 = vunpack.c.h.b16 %v592
        %v3007 = vunpack.c.l.b16 %v593
        %v3008 = vunpack.c.h.b16 %v593
        %v3009 = vunpack.c.l.b16 %v594
        %v3010 = vunpack.c.h.b16 %v594
        %v3011 = vunpack.c.l.b16 %v595
        %v3012 = vunpack.c.h.b16 %v595
        %v3013 = vunpack.c.l.b16 %v596
        %v3014 = vunpack.c.h.b16 %v596
        %v3015 = vunpack.c.l.b16 %v597
        %v3016 = vunpack.c.h.b16 %v597
        %v3017 = vunpack.c.l.b16 %v598
        %v3018 = vunpack.c.h.b16 %v598
        %v3019 = vunpack.c.l.b16 %v599
        %v3020 = vunpack.c.h.b16 %v599
        %v3021 = vunpack.c.l.b16 %v600
        %v3022 = vunpack.c.h.b16 %v600
        %v3023 = vunpack.c.l.b16 %v601
        %v3024 = vunpack.c.h.b16 %v601
        %v3025 = vunpack.c.l.b16 %v602
        %v3026 = vunpack.c.h.b16 %v602
        %v3027 = vunpack.c.l.b16 %v603
        %v3028 = vunpack.c.h.b16 %v603
        %v3029 = vunpack.c.l.b16 %v604
        %v3030 = vunpack.c.h.b16 %v604
        %v3031 = vunpack.c.l.b16 %v605
        %v3032 = vunpack.c.h.b16 %v605
        %v3033 = vunpack.c.l.b16 %v606
        %v3034 = vunpack.c.h.b16 %v606
        %v3035 = vunpack.c.l.b16 %v607
        %v3036 = vunpack.c.h.b16 %v607
        %v3037 = vunpack.c.l.b16 %v608
        %v3038 = vunpack.c.h.b16 %v608
        %v3039 = vunpack.c.l.b16 %v609
        %v3040 = vunpack.c.h.b16 %v609
        %v3041 = vunpack.c.l.b16 %v610
        %v3042 = vunpack.c.h.b16 %v610
        %v3043 = vunpack.c.l.b16 %v611
        %v3044 = vunpack.c.h.b16 %v611
        %v3045 = vunpack.c.l.b16 %v612
        %v3046 = vunpack.c.h.b16 %v612
        %v3047 = vunpack.c.l.b16 %v613
        %v3048 = vunpack.c.h.b16 %v613
        %v3049 = vunpack.c.l.b16 %v614
        %v3050 = vunpack.c.h.b16 %v614
        %v3051 = vunpack.c.l.b16 %v615
        %v3052 = vunpack.c.h.b16 %v615
        %v3053 = vunpack.c.l.b16 %v616
        %v3054 = vunpack.c.h.b16 %v616
        %v3055 = vunpack.c.l.b16 %v617
        %v3056 = vunpack.c.h.b16 %v617
        %v3057 = vunpack.c.l.b16 %v618
        %v3058 = vunpack.c.h.b16 %v618
        %v3059 = vunpack.c.l.b16 %v619
        %v3060 = vunpack.c.h.b16 %v619
        %v3061 = vunpack.c.l.b16 %v620
        %v3062 = vunpack.c.h.b16 %v620
        %v3063 = vunpack.c.l.b16 %v621
        %v3064 = vunpack.c.h.b16 %v621
        %v3065 = vunpack.c.l.b16 %v622
        %v3066 = vunpack.c.h.b16 %v622
        %v3067 = vunpack.c.l.b16 %v623
        %v3068 = vunpack.c.h.b16 %v623
        %v3069 = vunpack.c.l.b16 %v624
        %v3070 = vunpack.c.h.b16 %v624
        %v3071 = vunpack.c.l.b16 %v625
        %v3072 = vunpack.c.h.b16 %v625
        %v3073 = vunpack.c.l.b16 %v626
        %v3074 = vunpack.c.h.b16 %v626
        %v3075 = vunpack.c.l.b16 %v627
        %v3076 = vunpack.c.h.b16 %v627
        %v3077 = vunpack.c.l.b16 %v628
        %v3078 = vunpack.c.h.b16 %v628
        %v3079 = vunpack.c.l.b16 %v629
        %v3080 = vunpack.c.h.b16 %v629
        %v3081 = vunpack.c.l.b16 %v630
        %v3082 = vunpack.c.h.b16 %v630
        %v3083 = vunpack.c.l.b16 %v631
        %v3084 = vunpack.c.h.b16 %v631
        %v3085 = vunpack.c.l.b16 %v632
        %v3086 = vunpack.c.h.b16 %v632
        %v3087 = vunpack.c.l.b16 %v633
        %v3088 = vunpack.c.h.b16 %v633
        %v3089 = vunpack.c.l.b16 %v634
        %v3090 = vunpack.c.h.b16 %v634
        %v3091 = vunpack.c.l.b16 %v635
        %v3092 = vunpack.c.h.b16 %v635
        %v3093 = vunpack.c.l.b16 %v636
        %v3094 = vunpack.c.h.b16 %v636
        %v3095 = vunpack.c.l.b16 %v637
        %v3096 = vunpack.c.h.b16 %v637
        %v3097 = vunpack.c.l.b16 %v638
        %v3098 = vunpack.c.h.b16 %v638
        %v3099 = vunpack.c.l.b16 %v639
        %v3100 = vunpack.c.h.b16 %v639
        %v3101 = vunpack.c.l.b16 %v640
        %v3102 = vunpack.c.h.b16 %v640
        %v3103 = vunpack.c.l.b16 %v641
        %v3104 = vunpack.c.h.b16 %v641
        %v3105 = vunpack.c.l.b16 %v642
        %v3106 = vunpack.c.h.b16 %v642
        %v3107 = vunpack.c.l.b16 %v643
        %v3108 = vunpack.c.h.b16 %v643
        %v3109 = vunpack.c.l.b16 %v644
        %v3110 = vunpack.c.h.b16 %v644
        %v3111 = vunpack.c.l.b16 %v645
        %v3112 = vunpack.c.h.b16 %v645
        %v3113 = vunpack.c.l.b16 %v646
        %v3114 = vunpack.c.h.b16 %v646
        %v3115 = vunpack.c.l.b16 %v647
        %v3116 = vunpack.c.h.b16 %v647
        %v3117 = vunpack.c.l.b16 %v648
        %v3118 = vunpack.c.h.b16 %v648
        %v3119 = vunpack.c.l.b16 %v649
        %v3120 = vunpack.c.h.b16 %v649
        %v3121 = vunpack.c.l.b16 %v650
        %v3122 = vunpack.c.h.b16 %v650
        %v3123 = vunpack.c.l.b16 %v651
        %v3124 = vunpack.c.h.b16 %v651
        %v3125 = vunpack.c.l.b16 %v652
        %v3126 = vunpack.c.h.b16 %v652
        %v3127 = vunpack.c.l.b16 %v653
        %v3128 = vunpack.c.h.b16 %v653
        %v3129 = vunpack.c.l.b16 %v654
        %v3130 = vunpack.c.h.b16 %v654
        %v3131 = vunpack.c.l.b16 %v655
        %v3132 = vunpack.c.h.b16 %v655
        %v3133 = vunpack.c.l.b16 %v656
        %v3134 = vunpack.c.h.b16 %v656
        %v3135 = vunpack.c.l.b16 %v657
        %v3136 = vunpack.c.h.b16 %v657
        %v3137 = vunpack.c.l.b16 %v658
        %v3138 = vunpack.c.h.b16 %v658
        %v3139 = vunpack.c.l.b16 %v659
        %v3140 = vunpack.c.h.b16 %v659
        %v3141 = vunpack.c.l.b16 %v660
        %v3142 = vunpack.c.h.b16 %v660
        %v3143 = vunpack.c.l.b16 %v661
        %v3144 = vunpack.c.h.b16 %v661
        %v3145 = vunpack.c.l.b16 %v662
        %v3146 = vunpack.c.h.b16 %v662
        %v3147 = vunpack.c.l.b16 %v663
        %v3148 = vunpack.c.h.b16 %v663
        %v3149 = vunpack.c.l.b16 %v664
        %v3150 = vunpack.c.h.b16 %v664
        %v3151 = vunpack.c.l.b16 %v665
        %v3152 = vunpack.c.h.b16 %v665
        %v3153 = vunpack.c.l.b16 %v666
        %v3154 = vunpack.c.h.b16 %v666
        %v3155 = vunpack.c.l.b16 %v667
        %v3156 = vunpack.c.h.b16 %v667
        %v3157 = vunpack.c.l.b16 %v668
        %v3158 = vunpack.c.h.b16 %v668
        %v3159 = vunpack.c.l.b16 %v669
        %v3160 = vunpack.c.h.b16 %v669
        %v3161 = vunpack.c.l.b16 %v670
        %v3162 = vunpack.c.h.b16 %v670
        %v3163 = vunpack.c.l.b16 %v671
        %v3164 = vunpack.c.h.b16 %v671
        %v3165 = vunpack.c.l.b16 %v672
        %v3166 = vunpack.c.h.b16 %v672
        %v3167 = vunpack.c.l.b16 %v673
        %v3168 = vunpack.c.h.b16 %v673
        %v3169 = vunpack.c.l.b16 %v674
        %v3170 = vunpack.c.h.b16 %v674
        %v3171 = vunpack.c.l.b16 %v675
        %v3172 = vunpack.c.h.b16 %v675
        %v3173 = vunpack.c.l.b16 %v676
        %v3174 = vunpack.c.h.b16 %v676
        %v3175 = vunpack.c.l.b16 %v677
        %v3176 = vunpack.c.h.b16 %v677
        %v3177 = vunpack.c.l.b16 %v678
        %v3178 = vunpack.c.h.b16 %v678
        %v3179 = vunpack.c.l.b16 %v679
        %v3180 = vunpack.c.h.b16 %v679
        %v3181 = vunpack.c.l.b16 %v680
        %v3182 = vunpack.c.h.b16 %v680
        %v3183 = vunpack.c.l.b16 %v681
        %v3184 = vunpack.c.h.b16 %v681
        %v3185 = vunpack.c.l.b16 %v682
        %v3186 = vunpack.c.h.b16 %v682
        %v3187 = vunpack.c.l.b16 %v683
        %v3188 = vunpack.c.h.b16 %v683
        %v3189 = vunpack.c.l.b16 %v684
        %v3190 = vunpack.c.h.b16 %v684
        %v3191 = vunpack.c.l.b16 %v685
        %v3192 = vunpack.c.h.b16 %v685
        %v3193 = vunpack.c.l.b16 %v686
        %v3194 = vunpack.c.h.b16 %v686
        %v3195 = vunpack.c.l.b16 %v687
        %v3196 = vunpack.c.h.b16 %v687
        %v3197 = vunpack.c.l.b16 %v688
        %v3198 = vunpack.c.h.b16 %v688
        %v3199 = vunpack.c.l.b16 %v689
        %v3200 = vunpack.c.h.b16 %v689
        %v3201 = vunpack.c.l.b16 %v690
        %v3202 = vunpack.c.h.b16 %v690
        %v3203 = vunpack.c.l.b16 %v691
        %v3204 = vunpack.c.h.b16 %v691
        %v3205 = vunpack.c.l.b16 %v692
        %v3206 = vunpack.c.h.b16 %v692
        %v3207 = vunpack.c.l.b16 %v693
        %v3208 = vunpack.c.h.b16 %v693
        %v3209 = vunpack.c.l.b16 %v694
        %v3210 = vunpack.c.h.b16 %v694
        %v3211 = vunpack.c.l.b16 %v695
        %v3212 = vunpack.c.h.b16 %v695
        %v3213 = vunpack.c.l.b16 %v696
        %v3214 = vunpack.c.h.b16 %v696
        %v3215 = vunpack.c.l.b16 %v697
        %v3216 = vunpack.c.h.b16 %v697
        %v3217 = vunpack.c.l.b16 %v698
        %v3218 = vunpack.c.h.b16 %v698
        %v3219 = vunpack.c.l.b16 %v699
        %v3220 = vunpack.c.h.b16 %v699
        %v3221 = vunpack.c.l.b16 %v700
        %v3222 = vunpack.c.h.b16 %v700
        %v3223 = vunpack.c.l.b16 %v701
        %v3224 = vunpack.c.h.b16 %v701
        %v3225 = vunpack.c.l.b16 %v702
        %v3226 = vunpack.c.h.b16 %v702
        %v3227 = vunpack.c.l.b16 %v703
        %v3228 = vunpack.c.h.b16 %v703
        %v3229 = vunpack.c.l.b16 %v704
        %v3230 = vunpack.c.h.b16 %v704
        %v3231 = vunpack.c.l.b16 %v705
        %v3232 = vunpack.c.h.b16 %v705
        %v3233 = vunpack.c.l.b16 %v706
        %v3234 = vunpack.c.h.b16 %v706
        %v3235 = vunpack.c.l.b16 %v707
        %v3236 = vunpack.c.h.b16 %v707
        %v3237 = vunpack.c.l.b16 %v708
        %v3238 = vunpack.c.h.b16 %v708
        %v3239 = vunpack.c.l.b16 %v709
        %v3240 = vunpack.c.h.b16 %v709
        %v3241 = vunpack.c.l.b16 %v710
        %v3242 = vunpack.c.h.b16 %v710
        %v3243 = vunpack.c.l.b16 %v711
        %v3244 = vunpack.c.h.b16 %v711
        %v3245 = vunpack.c.l.b16 %v712
        %v3246 = vunpack.c.h.b16 %v712
        %v3247 = vunpack.c.l.b16 %v713
        %v3248 = vunpack.c.h.b16 %v713
        %v3249 = vunpack.c.l.b16 %v714
        %v3250 = vunpack.c.h.b16 %v714
        %v3251 = vunpack.c.l.b16 %v715
        %v3252 = vunpack.c.h.b16 %v715
        %v3253 = vunpack.c.l.b16 %v716
        %v3254 = vunpack.c.h.b16 %v716
        %v3255 = vunpack.c.l.b16 %v717
        %v3256 = vunpack.c.h.b16 %v717
        %v3257 = vunpack.c.l.b16 %v718
        %v3258 = vunpack.c.h.b16 %v718
        %v3259 = vunpack.c.l.b16 %v719
        %v3260 = vunpack.c.h.b16 %v719
        %v3261 = vunpack.c.l.b16 %v720
        %v3262 = vunpack.c.h.b16 %v720
        %v3263 = vunpack.c.l.b16 %v721
        %v3264 = vunpack.c.h.b16 %v721
        %v3265 = vunpack.c.l.b16 %v722
        %v3266 = vunpack.c.h.b16 %v722
        %v3267 = vunpack.c.l.b16 %v723
        %v3268 = vunpack.c.h.b16 %v723
        %v3269 = vunpack.c.l.b16 %v724
        %v3270 = vunpack.c.h.b16 %v724
        %v3271 = vunpack.c.l.b16 %v725
        %v3272 = vunpack.c.h.b16 %v725
        %v3273 = vunpack.c.l.b16 %v726
        %v3274 = vunpack.c.h.b16 %v726
        %v3275 = vunpack.c.l.b16 %v727
        %v3276 = vunpack.c.h.b16 %v727
        %v3277 = vunpack.c.l.b16 %v728
        %v3278 = vunpack.c.h.b16 %v728
        %v3279 = vunpack.c.l.b16 %v729
        %v3280 = vunpack.c.h.b16 %v729
        %v3281 = vunpack.c.l.b16 %v730
        %v3282 = vunpack.c.h.b16 %v730
        %v3283 = vunpack.c.l.b16 %v731
        %v3284 = vunpack.c.h.b16 %v731
        %v3285 = vunpack.c.l.b16 %v732
        %v3286 = vunpack.c.h.b16 %v732
        %v3287 = vunpack.c.l.b16 %v733
        %v3288 = vunpack.c.h.b16 %v733
        %v3289 = vunpack.c.l.b16 %v734
        %v3290 = vunpack.c.h.b16 %v734
        %v3291 = vunpack.c.l.b16 %v735
        %v3292 = vunpack.c.h.b16 %v735
        %v3293 = vunpack.c.l.b16 %v736
        %v3294 = vunpack.c.h.b16 %v736
        %v3295 = vunpack.c.l.b16 %v737
        %v3296 = vunpack.c.h.b16 %v737
        %v3297 = vunpack.c.l.b16 %v738
        %v3298 = vunpack.c.h.b16 %v738
        %v3299 = vunpack.c.l.b16 %v739
        %v3300 = vunpack.c.h.b16 %v739
        %v3301 = vunpack.c.l.b16 %v740
        %v3302 = vunpack.c.h.b16 %v740
        %v3303 = vunpack.c.l.b16 %v741
        %v3304 = vunpack.c.h.b16 %v741
        %v3305 = vunpack.c.l.b16 %v742
        %v3306 = vunpack.c.h.b16 %v742
        %v3307 = vunpack.c.l.b16 %v743
        %v3308 = vunpack.c.h.b16 %v743
        %v3309 = vunpack.c.l.b16 %v744
        %v3310 = vunpack.c.h.b16 %v744
        %v3311 = vunpack.c.l.b16 %v745
        %v3312 = vunpack.c.h.b16 %v745
        %v3313 = vunpack.c.l.b16 %v746
        %v3314 = vunpack.c.h.b16 %v746
        %v3315 = vunpack.c.l.b16 %v747
        %v3316 = vunpack.c.h.b16 %v747
        %v3317 = vunpack.c.l.b16 %v748
        %v3318 = vunpack.c.h.b16 %v748
        %v3319 = vunpack.c.l.b16 %v749
        %v3320 = vunpack.c.h.b16 %v749
        %v3321 = vunpack.c.l.b16 %v750
        %v3322 = vunpack.c.h.b16 %v750
        %v3323 = vunpack.c.l.b16 %v751
        %v3324 = vunpack.c.h.b16 %v751
        %v3325 = vunpack.c.l.b16 %v752
        %v3326 = vunpack.c.h.b16 %v752
        %v3327 = vunpack.c.l.b16 %v753
        %v3328 = vunpack.c.h.b16 %v753
        %v3329 = vunpack.c.l.b16 %v754
        %v3330 = vunpack.c.h.b16 %v754
        %v3331 = vunpack.c.l.b16 %v755
        %v3332 = vunpack.c.h.b16 %v755
        %v3333 = vunpack.c.l.b16 %v756
        %v3334 = vunpack.c.h.b16 %v756
        %v3335 = vunpack.c.l.b16 %v757
        %v3336 = vunpack.c.h.b16 %v757
        %v3337 = vunpack.c.l.b16 %v758
        %v3338 = vunpack.c.h.b16 %v758
        %v3339 = vunpack.c.l.b16 %v759
        %v3340 = vunpack.c.h.b16 %v759
        %v3341 = vunpack.c.l.b16 %v760
        %v3342 = vunpack.c.h.b16 %v760
        %v3343 = vunpack.c.l.b16 %v761
        %v3344 = vunpack.c.h.b16 %v761
        %v3345 = vunpack.c.l.b16 %v762
        %v3346 = vunpack.c.h.b16 %v762
        %v3347 = vunpack.c.l.b16 %v763
        %v3348 = vunpack.c.h.b16 %v763
        %v3349 = vunpack.c.l.b16 %v764
        %v3350 = vunpack.c.h.b16 %v764
        %v3351 = vunpack.c.l.b16 %v765
        %v3352 = vunpack.c.h.b16 %v765
        %v3353 = vunpack.c.l.b16 %v766
        %v3354 = vunpack.c.h.b16 %v766
        %v3355 = vunpack.c.l.b16 %v767
        %v3356 = vunpack.c.h.b16 %v767
        %v3357 = vunpack.c.l.b16 %v768
        %v3358 = vunpack.c.h.b16 %v768
        %v3359 = vunpack.c.l.b16 %v769
        %v3360 = vunpack.c.h.b16 %v769
        %v3361 = vunpack.c.l.b16 %v770
        %v3362 = vunpack.c.h.b16 %v770
        %v3363 = vunpack.c.l.b16 %v771
        %v3364 = vunpack.c.h.b16 %v771
        %v3365 = vunpack.c.l.b16 %v772
        %v3366 = vunpack.c.h.b16 %v772
        %v3367 = vunpack.c.l.b16 %v773
        %v3368 = vunpack.c.h.b16 %v773
        %v3369 = vunpack.c.l.b16 %v774
        %v3370 = vunpack.c.h.b16 %v774
        %v3371 = vunpack.c.l.b16 %v775
        %v3372 = vunpack.c.h.b16 %v775
        %v3373 = vunpack.c.l.b16 %v776
        %v3374 = vunpack.c.h.b16 %v776
        %v3375 = vunpack.c.l.b16 %v777
        %v3376 = vunpack.c.h.b16 %v777
        %v3377 = vunpack.c.l.b16 %v778
        %v3378 = vunpack.c.h.b16 %v778
        %v3379 = vunpack.c.l.b16 %v779
        %v3380 = vunpack.c.h.b16 %v779
        %v3381 = vunpack.c.l.b16 %v780
        %v3382 = vunpack.c.h.b16 %v780
        %v3383 = vunpack.c.l.b16 %v781
        %v3384 = vunpack.c.h.b16 %v781
        %v3385 = vunpack.c.l.b16 %v782
        %v3386 = vunpack.c.h.b16 %v782
        %v3387 = vunpack.c.l.b16 %v783
        %v3388 = vunpack.c.h.b16 %v783
        %v3389 = vunpack.c.l.b16 %v784
        %v3390 = vunpack.c.h.b16 %v784
        %v3391 = vunpack.c.l.b16 %v785
        %v3392 = vunpack.c.h.b16 %v785
        %v3393 = vunpack.c.l.b16 %v786
        %v3394 = vunpack.c.h.b16 %v786
        %v3395 = vunpack.c.l.b16 %v787
        %v3396 = vunpack.c.h.b16 %v787
        %v3397 = vunpack.c.l.b16 %v788
        %v3398 = vunpack.c.h.b16 %v788
        %v3399 = vunpack.c.l.b16 %v789
        %v3400 = vunpack.c.h.b16 %v789
        %v3401 = vunpack.c.l.b16 %v790
        %v3402 = vunpack.c.h.b16 %v790
        %v3403 = vunpack.c.l.b16 %v791
        %v3404 = vunpack.c.h.b16 %v791
        %v3405 = vunpack.c.l.b16 %v792
        %v3406 = vunpack.c.h.b16 %v792
        %v3407 = vunpack.c.l.b16 %v793
        %v3408 = vunpack.c.h.b16 %v793
        %v3409 = vunpack.c.l.b16 %v794
        %v3410 = vunpack.c.h.b16 %v794
        %v3411 = vunpack.c.l.b16 %v795
        %v3412 = vunpack.c.h.b16 %v795
        %v3413 = vunpack.c.l.b16 %v796
        %v3414 = vunpack.c.h.b16 %v796
        %v3415 = vunpack.c.l.b16 %v797
        %v3416 = vunpack.c.h.b16 %v797
        %v3417 = vunpack.c.l.b16 %v798
        %v3418 = vunpack.c.h.b16 %v798
        %v3419 = vunpack.c.l.b16 %v799
        %v3420 = vunpack.c.h.b16 %v799
        %v3421 = vunpack.c.l.b16 %v800
        %v3422 = vunpack.c.h.b16 %v800
        %v3423 = vunpack.c.l.b16 %v801
        %v3424 = vunpack.c.h.b16 %v801
        %v3425 = vunpack.c.l.b16 %v802
        %v3426 = vunpack.c.h.b16 %v802
        %v3427 = vunpack.c.l.b16 %v803
        %v3428 = vunpack.c.h.b16 %v803
        %v3429 = vunpack.c.l.b16 %v804
        %v3430 = vunpack.c.h.b16 %v804
        %v3431 = vunpack.c.l.b16 %v805
        %v3432 = vunpack.c.h.b16 %v805
        %v3433 = vunpack.c.l.b16 %v806
        %v3434 = vunpack.c.h.b16 %v806
        %v3435 = vunpack.c.l.b16 %v807
        %v3436 = vunpack.c.h.b16 %v807
        %v3437 = vunpack.c.l.b16 %v808
        %v3438 = vunpack.c.h.b16 %v808
        %v3439 = vunpack.c.l.b16 %v809
        %v3440 = vunpack.c.h.b16 %v809
        %v3441 = vunpack.c.l.b16 %v810
        %v3442 = vunpack.c.h.b16 %v810
        %v3443 = vunpack.c.l.b16 %v811
        %v3444 = vunpack.c.h.b16 %v811
        %v3445 = vunpack.c.l.b16 %v812
        %v3446 = vunpack.c.h.b16 %v812
        %v3447 = vunpack.c.l.b16 %v813
        %v3448 = vunpack.c.h.b16 %v813
        %v3449 = vunpack.c.l.b16 %v814
        %v3450 = vunpack.c.h.b16 %v814
        %v3451 = vunpack.c.l.b16 %v815
        %v3452 = vunpack.c.h.b16 %v815
        %v3453 = vunpack.c.l.b16 %v816
        %v3454 = vunpack.c.h.b16 %v816
        %v3455 = vunpack.c.l.b16 %v817
        %v3456 = vunpack.c.h.b16 %v817
        %v3457 = vunpack.c.l.b16 %v818
        %v3458 = vunpack.c.h.b16 %v818
        %v3459 = vunpack.c.l.b16 %v819
        %v3460 = vunpack.c.h.b16 %v819
        %v3461 = vunpack.c.l.b16 %v820
        %v3462 = vunpack.c.h.b16 %v820
        %v3463 = vunpack.c.l.b16 %v821
        %v3464 = vunpack.c.h.b16 %v821
        %v3465 = vunpack.c.l.b16 %v822
        %v3466 = vunpack.c.h.b16 %v822
        %v3467 = vunpack.c.l.b16 %v823
        %v3468 = vunpack.c.h.b16 %v823
        %v3469 = vunpack.c.l.b16 %v824
        %v3470 = vunpack.c.h.b16 %v824
        %v3471 = vunpack.c.l.b16 %v825
        %v3472 = vunpack.c.h.b16 %v825
        %v3473 = vunpack.c.l.b16 %v826
        %v3474 = vunpack.c.h.b16 %v826
        %v3475 = vunpack.c.l.b16 %v827
        %v3476 = vunpack.c.h.b16 %v827
        %v3477 = vunpack.c.l.b16 %v828
        %v3478 = vunpack.c.h.b16 %v828
        %v3479 = vunpack.c.l.b16 %v829
        %v3480 = vunpack.c.h.b16 %v829
        %v3481 = vunpack.c.l.b16 %v830
        %v3482 = vunpack.c.h.b16 %v830
        %v3483 = vunpack.c.l.b16 %v831
        %v3484 = vunpack.c.h.b16 %v831
        %v3485 = vunpack.c.l.b16 %v832
        %v3486 = vunpack.c.h.b16 %v832
        %v3487 = vunpack.c.l.b16 %v833
        %v3488 = vunpack.c.h.b16 %v833
        %v3489 = vunpack.c.l.b16 %v834
        %v3490 = vunpack.c.h.b16 %v834
        %v3491 = vunpack.c.l.b16 %v835
        %v3492 = vunpack.c.h.b16 %v835
        %v3493 = vunpack.c.l.b16 %v836
        %v3494 = vunpack.c.h.b16 %v836
        %v3495 = vunpack.c.l.b16 %v837
        %v3496 = vunpack.c.h.b16 %v837
        %v3497 = vunpack.c.l.b16 %v838
        %v3498 = vunpack.c.h.b16 %v838
        %v3499 = vunpack.c.l.b16 %v839
        %v3500 = vunpack.c.h.b16 %v839
        %v3501 = vunpack.c.l.b16 %v840
        %v3502 = vunpack.c.h.b16 %v840
        %v3503 = vunpack.c.l.b16 %v841
        %v3504 = vunpack.c.h.b16 %v841
        %v3505 = vunpack.c.l.b16 %v842
        %v3506 = vunpack.c.h.b16 %v842
        %v3507 = vunpack.c.l.b16 %v843
        %v3508 = vunpack.c.h.b16 %v843
        %v3509 = vunpack.c.l.b16 %v844
        %v3510 = vunpack.c.h.b16 %v844
        %v3511 = vunpack.c.l.b16 %v845
        %v3512 = vunpack.c.h.b16 %v845
        %v3513 = vunpack.c.l.b16 %v846
        %v3514 = vunpack.c.h.b16 %v846
        %v3515 = vunpack.c.l.b16 %v847
        %v3516 = vunpack.c.h.b16 %v847
        %v3517 = vunpack.c.l.b16 %v848
        %v3518 = vunpack.c.h.b16 %v848
        %v3519 = vunpack.c.l.b16 %v849
        %v3520 = vunpack.c.h.b16 %v849
        %v3521 = vunpack.c.l.b16 %v850
        %v3522 = vunpack.c.h.b16 %v850
        %v3523 = vunpack.c.l.b16 %v851
        %v3524 = vunpack.c.h.b16 %v851
        %v3525 = vunpack.c.l.b16 %v852
        %v3526 = vunpack.c.h.b16 %v852
        %v3527 = vunpack.c.l.b16 %v853
        %v3528 = vunpack.c.h.b16 %v853
        %v3529 = vunpack.c.l.b16 %v854
        %v3530 = vunpack.c.h.b16 %v854
        %v3531 = vunpack.c.l.b16 %v855
        %v3532 = vunpack.c.h.b16 %v855
        %v3533 = vunpack.c.l.b16 %v856
        %v3534 = vunpack.c.h.b16 %v856
        %v3535 = vunpack.c.l.b16 %v857
        %v3536 = vunpack.c.h.b16 %v857
        %v3537 = vunpack.c.l.b16 %v858
        %v3538 = vunpack.c.h.b16 %v858
        %v3539 = vunpack.c.l.b16 %v859
        %v3540 = vunpack.c.h.b16 %v859
        %v3541 = vunpack.c.l.b16 %v860
        %v3542 = vunpack.c.h.b16 %v860
        %v3543 = vunpack.c.l.b16 %v861
        %v3544 = vunpack.c.h.b16 %v861
        %v3545 = vunpack.c.l.b16 %v862
        %v3546 = vunpack.c.h.b16 %v862
        %v3547 = vunpack.c.l.b16 %v863
        %v3548 = vunpack.c.h.b16 %v863
        %v3549 = vunpack.c.l.b16 %v864
        %v3550 = vunpack.c.h.b16 %v864
        %v3551 = vunpack.c.l.b16 %v865
        %v3552 = vunpack.c.h.b16 %v865
        %v3553 = vunpack.c.l.b16 %v866
        %v3554 = vunpack.c.h.b16 %v866
        %v3555 = vunpack.c.l.b16 %v867
        %v3556 = vunpack.c.h.b16 %v867
        %v3557 = vunpack.c.l.b16 %v868
        %v3558 = vunpack.c.h.b16 %v868
        %v3559 = vunpack.c.l.b16 %v869
        %v3560 = vunpack.c.h.b16 %v869
        %v3561 = vunpack.c.l.b16 %v870
        %v3562 = vunpack.c.h.b16 %v870
        %v3563 = vunpack.c.l.b16 %v871
        %v3564 = vunpack.c.h.b16 %v871
        %v3565 = vunpack.c.l.b16 %v872
        %v3566 = vunpack.c.h.b16 %v872
        %v3567 = vunpack.c.l.b16 %v873
        %v3568 = vunpack.c.h.b16 %v873
        %v3569 = vunpack.c.l.b16 %v874
        %v3570 = vunpack.c.h.b16 %v874
        %v3571 = vunpack.c.l.b16 %v875
        %v3572 = vunpack.c.h.b16 %v875
        %v3573 = vunpack.c.l.b16 %v876
        %v3574 = vunpack.c.h.b16 %v876
        %v3575 = vunpack.c.l.b16 %v877
        %v3576 = vunpack.c.h.b16 %v877
        %v3577 = vunpack.c.l.b16 %v878
        %v3578 = vunpack.c.h.b16 %v878
        %v3579 = vunpack.c.l.b16 %v879
        %v3580 = vunpack.c.h.b16 %v879
        %v3581 = vunpack.c.l.b16 %v880
        %v3582 = vunpack.c.h.b16 %v880
        %v3583 = vunpack.c.l.b16 %v881
        %v3584 = vunpack.c.h.b16 %v881
        %v3585 = vunpack.c.l.b16 %v882
        %v3586 = vunpack.c.h.b16 %v882
        %v3587 = vunpack.c.l.b16 %v883
        %v3588 = vunpack.c.h.b16 %v883
        %v3589 = vunpack.c.l.b16 %v884
        %v3590 = vunpack.c.h.b16 %v884
        %v3591 = vunpack.c.l.b16 %v885
        %v3592 = vunpack.c.h.b16 %v885
        %v3593 = vunpack.c.l.b16 %v886
        %v3594 = vunpack.c.h.b16 %v886
        %v3595 = vunpack.c.l.b16 %v887
        %v3596 = vunpack.c.h.b16 %v887
        %v3597 = vunpack.c.l.b16 %v888
        %v3598 = vunpack.c.h.b16 %v888
        %v3599 = vunpack.c.l.b16 %v889
        %v3600 = vunpack.c.h.b16 %v889
        %v3601 = vunpack.c.l.b16 %v890
        %v3602 = vunpack.c.h.b16 %v890
        %v3603 = vunpack.c.l.b16 %v891
        %v3604 = vunpack.c.h.b16 %v891
        %v3605 = vunpack.c.l.b16 %v892
        %v3606 = vunpack.c.h.b16 %v892
        %v3607 = vunpack.c.l.b16 %v893
        %v3608 = vunpack.c.h.b16 %v893
        %v3609 = vunpack.c.l.b16 %v894
        %v3610 = vunpack.c.h.b16 %v894
        %v3611 = vunpack.c.l.b16 %v895
        %v3612 = vunpack.c.h.b16 %v895
        %v3613 = vunpack.c.l.b16 %v896
        %v3614 = vunpack.c.h.b16 %v896
        %v3615 = vunpack.c.l.b16 %v897
        %v3616 = vunpack.c.h.b16 %v897
        %v3617 = vunpack.c.l.b16 %v898
        %v3618 = vunpack.c.h.b16 %v898
        %v3619 = vunpack.c.l.b16 %v899
        %v3620 = vunpack.c.h.b16 %v899
        %v3621 = vunpack.c.l.b16 %v900
        %v3622 = vunpack.c.h.b16 %v900
        %v3623 = vunpack.c.l.b16 %v901
        %v3624 = vunpack.c.h.b16 %v901
        %v3625 = vunpack.c.l.b16 %v902
        %v3626 = vunpack.c.h.b16 %v902
        %v3627 = vunpack.c.l.b16 %v903
        %v3628 = vunpack.c.h.b16 %v903
        %v3629 = vunpack.c.l.b16 %v904
        %v3630 = vunpack.c.h.b16 %v904
        %v3631 = vunpack.c.l.b16 %v905
        %v3632 = vunpack.c.h.b16 %v905
        %v3633 = vunpack.c.l.b16 %v906
        %v3634 = vunpack.c.h.b16 %v906
        %v3635 = vunpack.c.l.b16 %v907
        %v3636 = vunpack.c.h.b16 %v907
        %v3637 = vunpack.c.l.b16 %v908
        %v3638 = vunpack.c.h.b16 %v908
        %v3639 = vunpack.c.l.b16 %v909
        %v3640 = vunpack.c.h.b16 %v909
        %v3641 = vunpack.c.l.b16 %v910
        %v3642 = vunpack.c.h.b16 %v910
        %v3643 = vunpack.c.l.b16 %v911
        %v3644 = vunpack.c.h.b16 %v911
        %v3645 = vunpack.c.l.b16 %v912
        %v3646 = vunpack.c.h.b16 %v912
        %v3647 = vunpack.c.l.b16 %v913
        %v3648 = vunpack.c.h.b16 %v913
        %v3649 = vunpack.c.l.b16 %v914
        %v3650 = vunpack.c.h.b16 %v914
        %v3651 = vunpack.c.l.b16 %v915
        %v3652 = vunpack.c.h.b16 %v915
        %v3653 = vunpack.c.l.b16 %v916
        %v3654 = vunpack.c.h.b16 %v916
        %v3655 = vunpack.c.l.b16 %v917
        %v3656 = vunpack.c.h.b16 %v917
        %v3657 = vunpack.c.l.b16 %v918
        %v3658 = vunpack.c.h.b16 %v918
        %v3659 = vunpack.c.l.b16 %v919
        %v3660 = vunpack.c.h.b16 %v919
        %v3661 = vunpack.c.l.b16 %v920
        %v3662 = vunpack.c.h.b16 %v920
        %v3663 = vunpack.c.l.b16 %v921
        %v3664 = vunpack.c.h.b16 %v921
        %v3665 = vunpack.c.l.b16 %v922
        %v3666 = vunpack.c.h.b16 %v922
        %v3667 = vunpack.c.l.b16 %v923
        %v3668 = vunpack.c.h.b16 %v923
        %v3669 = vunpack.c.l.b16 %v924
        %v3670 = vunpack.c.h.b16 %v924
        %v3671 = vunpack.c.l.b16 %v925
        %v3672 = vunpack.c.h.b16 %v925
        %v3673 = vunpack.c.l.b16 %v926
        %v3674 = vunpack.c.h.b16 %v926
        %v3675 = vunpack.c.l.b16 %v927
        %v3676 = vunpack.c.h.b16 %v927
        %v3677 = vunpack.c.l.b16 %v928
        %v3678 = vunpack.c.h.b16 %v928
        %v3679 = vunpack.c.l.b16 %v929
        %v3680 = vunpack.c.h.b16 %v929
        %v3681 = vunpack.c.l.b16 %v930
        %v3682 = vunpack.c.h.b16 %v930
        %v3683 = vunpack.c.l.b16 %v931
        %v3684 = vunpack.c.h.b16 %v931
        %v3685 = vunpack.c.l.b16 %v932
        %v3686 = vunpack.c.h.b16 %v932
        %v3687 = vunpack.c.l.b16 %v933
        %v3688 = vunpack.c.h.b16 %v933
        %v3689 = vunpack.c.l.b16 %v934
        %v3690 = vunpack.c.h.b16 %v934
        %v3691 = vunpack.c.l.b16 %v935
        %v3692 = vunpack.c.h.b16 %v935
        %v3693 = vunpack.c.l.b16 %v936
        %v3694 = vunpack.c.h.b16 %v936
        %v3695 = vunpack.c.l.b16 %v937
        %v3696 = vunpack.c.h.b16 %v937
        %v3697 = vunpack.c.l.b16 %v938
        %v3698 = vunpack.c.h.b16 %v938
        %v3699 = vunpack.c.l.b16 %v939
        %v3700 = vunpack.c.h.b16 %v939
        %v3701 = vunpack.c.l.b16 %v940
        %v3702 = vunpack.c.h.b16 %v940
        %v3703 = vunpack.c.l.b16 %v941
        %v3704 = vunpack.c.h.b16 %v941
        %v3705 = vunpack.c.l.b16 %v942
        %v3706 = vunpack.c.h.b16 %v942
        %v3707 = vunpack.c.l.b16 %v943
        %v3708 = vunpack.c.h.b16 %v943
        %v3709 = vunpack.c.l.b16 %v944
        %v3710 = vunpack.c.h.b16 %v944
        %v3711 = vunpack.c.l.b16 %v945
        %v3712 = vunpack.c.h.b16 %v945
        %v3713 = vunpack.c.l.b16 %v946
        %v3714 = vunpack.c.h.b16 %v946
        %v3715 = vunpack.c.l.b16 %v947
        %v3716 = vunpack.c.h.b16 %v947
        %v3717 = vunpack.c.l.b16 %v948
        %v3718 = vunpack.c.h.b16 %v948
        %v3719 = vunpack.c.l.b16 %v949
        %v3720 = vunpack.c.h.b16 %v949
        %v3721 = vunpack.c.l.b16 %v950
        %v3722 = vunpack.c.h.b16 %v950
        %v3723 = vunpack.c.l.b16 %v951
        %v3724 = vunpack.c.h.b16 %v951
        %v3725 = vunpack.c.l.b16 %v952
        %v3726 = vunpack.c.h.b16 %v952
        %v3727 = vunpack.c.l.b16 %v953
        %v3728 = vunpack.c.h.b16 %v953
        %v3729 = vunpack.c.l.b16 %v954
        %v3730 = vunpack.c.h.b16 %v954
        %v3731 = vunpack.c.l.b16 %v955
        %v3732 = vunpack.c.h.b16 %v955
        %v3733 = vunpack.c.l.b16 %v956
        %v3734 = vunpack.c.h.b16 %v956
        %v3735 = vunpack.c.l.b16 %v957
        %v3736 = vunpack.c.h.b16 %v957
        %v3737 = vunpack.c.l.b16 %v958
        %v3738 = vunpack.c.h.b16 %v958
        %v3739 = vunpack.c.l.b16 %v959
        %v3740 = vunpack.c.h.b16 %v959
        %v3741 = vunpack.c.l.b16 %v960
        %v3742 = vunpack.c.h.b16 %v960
        %v3743 = vunpack.c.l.b16 %v961
        %v3744 = vunpack.c.h.b16 %v961
        %v3745 = vunpack.c.l.b16 %v962
        %v3746 = vunpack.c.h.b16 %v962
        %v3747 = vunpack.c.l.b16 %v963
        %v3748 = vunpack.c.h.b16 %v963
        %v3749 = vunpack.c.l.b16 %v964
        %v3750 = vunpack.c.h.b16 %v964
        %v3751 = vunpack.c.l.b16 %v965
        %v3752 = vunpack.c.h.b16 %v965
        %v3753 = vunpack.c.l.b16 %v966
        %v3754 = vunpack.c.h.b16 %v966
        %v3755 = vunpack.c.l.b16 %v967
        %v3756 = vunpack.c.h.b16 %v967
        %v3757 = vunpack.c.l.b16 %v968
        %v3758 = vunpack.c.h.b16 %v968
        %v3759 = vunpack.c.l.b16 %v969
        %v3760 = vunpack.c.h.b16 %v969
        %v3761 = vunpack.c.l.b16 %v970
        %v3762 = vunpack.c.h.b16 %v970
        %v3763 = vunpack.c.l.b16 %v971
        %v3764 = vunpack.c.h.b16 %v971
        %v3765 = vunpack.c.l.b16 %v972
        %v3766 = vunpack.c.h.b16 %v972
        %v3767 = vunpack.c.l.b16 %v973
        %v3768 = vunpack.c.h.b16 %v973
        %v3769 = vunpack.c.l.b16 %v974
        %v3770 = vunpack.c.h.b16 %v974
        %v3771 = vunpack.c.l.b16 %v975
        %v3772 = vunpack.c.h.b16 %v975
        %v3773 = vunpack.c.l.b16 %v976
        %v3774 = vunpack.c.h.b16 %v976
        %v3775 = vunpack.c.l.b16 %v977
        %v3776 = vunpack.c.h.b16 %v977
        %v3777 = vunpack.c.l.b16 %v978
        %v3778 = vunpack.c.h.b16 %v978
        %v3779 = vunpack.c.l.b16 %v979
        %v3780 = vunpack.c.h.b16 %v979
        %v3781 = vunpack.c.l.b16 %v980
        %v3782 = vunpack.c.h.b16 %v980
        %v3783 = vunpack.c.l.b16 %v981
        %v3784 = vunpack.c.h.b16 %v981
        %v3785 = vunpack.c.l.b16 %v982
        %v3786 = vunpack.c.h.b16 %v982
        %v3787 = vunpack.c.l.b16 %v983
        %v3788 = vunpack.c.h.b16 %v983
        %v3789 = vunpack.c.l.b16 %v984
        %v3790 = vunpack.c.h.b16 %v984
        %v3791 = vunpack.c.l.b16 %v985
        %v3792 = vunpack.c.h.b16 %v985
        %v3793 = vunpack.c.l.b16 %v986
        %v3794 = vunpack.c.h.b16 %v986
        %v3795 = vunpack.c.l.b16 %v987
        %v3796 = vunpack.c.h.b16 %v987
        %v3797 = vunpack.c.l.b16 %v988
        %v3798 = vunpack.c.h.b16 %v988
        %v3799 = vunpack.c.l.b16 %v989
        %v3800 = vunpack.c.h.b16 %v989
        %v3801 = vunpack.c.l.b16 %v990
        %v3802 = vunpack.c.h.b16 %v990
        %v3803 = vunpack.c.l.b16 %v991
        %v3804 = vunpack.c.h.b16 %v991
        %v3805 = vunpack.c.l.b16 %v992
        %v3806 = vunpack.c.h.b16 %v992
        %v3807 = vunpack.c.l.b16 %v993
        %v3808 = vunpack.c.h.b16 %v993
        %v3809 = vunpack.c.l.b16 %v994
        %v3810 = vunpack.c.h.b16 %v994
        %v3811 = vunpack.c.l.b16 %v995
        %v3812 = vunpack.c.h.b16 %v995
        %v3813 = vunpack.c.l.b16 %v996
        %v3814 = vunpack.c.h.b16 %v996
        %v3815 = vunpack.c.l.b16 %v997
        %v3816 = vunpack.c.h.b16 %v997
        %v3817 = vunpack.c.l.b16 %v998
        %v3818 = vunpack.c.h.b16 %v998
        %v3819 = vunpack.c.l.b16 %v999
        %v3820 = vunpack.c.h.b16 %v999
        %v3821 = vunpack.c.l.b16 %v1000
        %v3822 = vunpack.c.h.b16 %v1000
        %v3823 = vunpack.c.l.b16 %v1001
        %v3824 = vunpack.c.h.b16 %v1001
        %v3825 = vunpack.c.l.b16 %v1002
        %v3826 = vunpack.c.h.b16 %v1002
        %v3827 = vunpack.c.l.b16 %v1003
        %v3828 = vunpack.c.h.b16 %v1003
        %v3829 = vunpack.c.l.b16 %v1004
        %v3830 = vunpack.c.h.b16 %v1004
        %v3831 = vunpack.c.l.b16 %v1005
        %v3832 = vunpack.c.h.b16 %v1005
        %v3833 = vunpack.c.l.b16 %v1006
        %v3834 = vunpack.c.h.b16 %v1006
        %v3835 = vunpack.c.l.b16 %v1007
        %v3836 = vunpack.c.h.b16 %v1007
        %v3837 = vunpack.c.l.b16 %v1008
        %v3838 = vunpack.c.h.b16 %v1008
        %v3839 = vunpack.c.l.b16 %v1009
        %v3840 = vunpack.c.h.b16 %v1009
        %v3841 = vunpack.c.l.b16 %v1010
        %v3842 = vunpack.c.h.b16 %v1010
        %v3843 = vunpack.c.l.b16 %v1011
        %v3844 = vunpack.c.h.b16 %v1011
        %v3845 = vunpack.c.l.b16 %v1012
        %v3846 = vunpack.c.h.b16 %v1012
        %v3847 = vunpack.c.l.b16 %v1013
        %v3848 = vunpack.c.h.b16 %v1013
        %v3849 = vunpack.c.l.b16 %v1014
        %v3850 = vunpack.c.h.b16 %v1014
        %v3851 = vunpack.c.l.b16 %v1015
        %v3852 = vunpack.c.h.b16 %v1015
        %v3853 = vunpack.c.l.b16 %v1016
        %v3854 = vunpack.c.h.b16 %v1016
        %v3855 = vunpack.c.l.b16 %v1017
        %v3856 = vunpack.c.h.b16 %v1017
        %v3857 = vunpack.c.l.b16 %v1018
        %v3858 = vunpack.c.h.b16 %v1018
        %v3859 = vunpack.c.l.b16 %v1019
        %v3860 = vunpack.c.h.b16 %v1019
        %v3861 = vunpack.c.l.b16 %v1020
        %v3862 = vunpack.c.h.b16 %v1020
        %v3863 = vunpack.c.l.b16 %v1021
        %v3864 = vunpack.c.h.b16 %v1021
        %v3865 = vunpack.c.l.b16 %v1022
        %v3866 = vunpack.c.h.b16 %v1022
        %v3867 = vunpack.c.l.b16 %v1023
        %v3868 = vunpack.c.h.b16 %v1023
        %v3869 = vunpack.c.l.b16 %v1024
        %v3870 = vunpack.c.h.b16 %v1024
        %v3871 = vunpack.c.l.b16 %v1025
        %v3872 = vunpack.c.h.b16 %v1025
        %v3873 = vunpack.c.l.b16 %v1026
        %v3874 = vunpack.c.h.b16 %v1026
        %v3875 = vunpack.c.l.b16 %v1027
        %v3876 = vunpack.c.h.b16 %v1027
        %v3877 = vunpack.c.l.b16 %v1028
        %v3878 = vunpack.c.h.b16 %v1028
        %v3879 = vunpack.c.l.b16 %v1029
        %v3880 = vunpack.c.h.b16 %v1029
        %v3881 = vunpack.c.l.b16 %v1030
        %v3882 = vunpack.c.h.b16 %v1030
        %v3883 = vunpack.c.l.b16 %v1031
        %v3884 = vunpack.c.h.b16 %v1031
        %v3885 = vunpack.c.l.b16 %v1032
        %v3886 = vunpack.c.h.b16 %v1032
        %v3887 = vunpack.c.l.b16 %v1033
        %v3888 = vunpack.c.h.b16 %v1033
        %v3889 = vunpack.c.l.b16 %v1034
        %v3890 = vunpack.c.h.b16 %v1034
        %v3891 = vunpack.c.l.b16 %v1035
        %v3892 = vunpack.c.h.b16 %v1035
        %v3893 = vunpack.c.l.b16 %v1036
        %v3894 = vunpack.c.h.b16 %v1036
        %v3895 = vunpack.c.l.b16 %v1037
        %v3896 = vunpack.c.h.b16 %v1037
        %v3897 = vunpack.c.l.b16 %v1038
        %v3898 = vunpack.c.h.b16 %v1038
        %v3899 = vunpack.c.l.b16 %v1039
        %v3900 = vunpack.c.h.b16 %v1039
        %v3901 = vunpack.c.l.b16 %v1040
        %v3902 = vunpack.c.h.b16 %v1040
        %v3903 = vunpack.c.l.b16 %v1041
        %v3904 = vunpack.c.h.b16 %v1041
        %v3905 = vunpack.c.l.b16 %v1042
        %v3906 = vunpack.c.h.b16 %v1042
        %v3907 = vunpack.c.l.b16 %v1043
        %v3908 = vunpack.c.h.b16 %v1043
        %v3909 = vunpack.c.l.b16 %v1044
        %v3910 = vunpack.c.h.b16 %v1044
        %v3911 = vunpack.c.l.b16 %v1045
        %v3912 = vunpack.c.h.b16 %v1045
        %v3913 = vunpack.c.l.b16 %v1046
        %v3914 = vunpack.c.h.b16 %v1046
        %v3915 = vunpack.c.l.b16 %v1047
        %v3916 = vunpack.c.h.b16 %v1047
        %v3917 = vunpack.c.l.b16 %v1048
        %v3918 = vunpack.c.h.b16 %v1048
        %v3919 = vunpack.c.l.b16 %v1049
        %v3920 = vunpack.c.h.b16 %v1049
        %v3921 = vunpack.c.l.b16 %v1050
        %v3922 = vunpack.c.h.b16 %v1050
        %v3923 = vunpack.c.l.b16 %v1051
        %v3924 = vunpack.c.h.b16 %v1051
        %v3925 = vunpack.c.l.b16 %v1052
        %v3926 = vunpack.c.h.b16 %v1052
        %v3927 = vunpack.c.l.b16 %v1053
        %v3928 = vunpack.c.h.b16 %v1053
        %v3929 = vunpack.c.l.b16 %v1054
        %v3930 = vunpack.c.h.b16 %v1054
        %v3931 = vunpack.c.l.b16 %v1055
        %v3932 = vunpack.c.h.b16 %v1055
        %v3933 = vunpack.c.l.b16 %v1056
        %v3934 = vunpack.c.h.b16 %v1056
        %v3935 = vunpack.c.l.b16 %v1057
        %v3936 = vunpack.c.h.b16 %v1057
        %v3937 = vunpack.c.l.b16 %v1058
        %v3938 = vunpack.c.h.b16 %v1058
        %v3939 = vunpack.c.l.b16 %v1059
        %v3940 = vunpack.c.h.b16 %v1059
        %v3941 = vunpack.c.l.b16 %v1060
        %v3942 = vunpack.c.h.b16 %v1060
        %v3943 = vunpack.c.l.b16 %v1061
        %v3944 = vunpack.c.h.b16 %v1061
        %v3945 = vunpack.c.l.b16 %v1062
        %v3946 = vunpack.c.h.b16 %v1062
        %v3947 = vunpack.c.l.b16 %v1063
        %v3948 = vunpack.c.h.b16 %v1063
        %v3949 = vunpack.c.l.b16 %v1064
        %v3950 = vunpack.c.h.b16 %v1064
        %v3951 = vunpack.c.l.b16 %v1065
        %v3952 = vunpack.c.h.b16 %v1065
        %v3953 = vunpack.c.l.b16 %v1066
        %v3954 = vunpack.c.h.b16 %v1066
        %v3955 = vunpack.c.l.b16 %v1067
        %v3956 = vunpack.c.h.b16 %v1067
        %v3957 = vunpack.c.l.b16 %v1068
        %v3958 = vunpack.c.h.b16 %v1068
        %v3959 = vunpack.c.l.b16 %v1069
        %v3960 = vunpack.c.h.b16 %v1069
        %v3961 = vunpack.c.l.b16 %v1070
        %v3962 = vunpack.c.h.b16 %v1070
        %v3963 = vunpack.c.l.b16 %v1071
        %v3964 = vunpack.c.h.b16 %v1071
        %v3965 = vunpack.c.l.b16 %v1072
        %v3966 = vunpack.c.h.b16 %v1072
        %v3967 = vunpack.c.l.b16 %v1073
        %v3968 = vunpack.c.h.b16 %v1073
        %v3969 = vunpack.c.l.b16 %v1074
        %v3970 = vunpack.c.h.b16 %v1074
        %v3971 = vunpack.c.l.b16 %v1075
        %v3972 = vunpack.c.h.b16 %v1075
        %v3973 = vunpack.c.l.b16 %v1076
        %v3974 = vunpack.c.h.b16 %v1076
        %v3975 = vunpack.c.l.b16 %v1077
        %v3976 = vunpack.c.h.b16 %v1077
        %v3977 = vunpack.c.l.b16 %v1078
        %v3978 = vunpack.c.h.b16 %v1078
        %v3979 = vunpack.c.l.b16 %v1079
        %v3980 = vunpack.c.h.b16 %v1079
        %v3981 = vunpack.c.l.b16 %v1080
        %v3982 = vunpack.c.h.b16 %v1080
        %v3983 = vunpack.c.l.b16 %v1081
        %v3984 = vunpack.c.h.b16 %v1081
        %v3985 = vunpack.c.l.b16 %v1082
        %v3986 = vunpack.c.h.b16 %v1082
        %v3987 = vunpack.c.l.b16 %v1083
        %v3988 = vunpack.c.h.b16 %v1083
        %v3989 = vunpack.c.l.b16 %v1084
        %v3990 = vunpack.c.h.b16 %v1084
        %v3991 = vunpack.c.l.b16 %v1085
        %v3992 = vunpack.c.h.b16 %v1085
        %v3993 = vunpack.c.l.b16 %v1086
        %v3994 = vunpack.c.h.b16 %v1086
        %v3995 = vunpack.c.l.b16 %v1087
        %v3996 = vunpack.c.h.b16 %v1087
        %v3997 = vunpack.c.l.b16 %v1088
        %v3998 = vunpack.c.h.b16 %v1088
        %v3999 = vunpack.c.l.b16 %v1089
        %v4000 = vunpack.c.h.b16 %v1089
        %v4001 = vunpack.c.l.b16 %v1090
        %v4002 = vunpack.c.h.b16 %v1090
        %v4003 = vunpack.c.l.b16 %v1091
        %v4004 = vunpack.c.h.b16 %v1091
        %v4005 = vunpack.c.l.b16 %v1092
        %v4006 = vunpack.c.h.b16 %v1092
        %v4007 = vunpack.c.l.b16 %v1093
        %v4008 = vunpack.c.h.b16 %v1093
        %v4009 = vunpack.c.l.b16 %v1094
        %v4010 = vunpack.c.h.b16 %v1094
        %v4011 = vunpack.c.l.b16 %v1095
        %v4012 = vunpack.c.h.b16 %v1095
        %v4013 = vunpack.c.l.b16 %v1096
        %v4014 = vunpack.c.h.b16 %v1096
        %v4015 = vunpack.c.l.b16 %v1097
        %v4016 = vunpack.c.h.b16 %v1097
        %v4017 = vunpack.c.l.b16 %v1098
        %v4018 = vunpack.c.h.b16 %v1098
        %v4019 = vunpack.c.l.b16 %v1099
        %v4020 = vunpack.c.h.b16 %v1099
        %v4021 = vunpack.c.l.b16 %v1100
        %v4022 = vunpack.c.h.b16 %v1100
        %v4023 = vunpack.c.l.b16 %v1101
        %v4024 = vunpack.c.h.b16 %v1101
        %v4025 = vunpack.c.l.b16 %v1102
        %v4026 = vunpack.c.h.b16 %v1102
        %v4027 = vunpack.c.l.b16 %v1103
        %v4028 = vunpack.c.h.b16 %v1103
        %v4029 = vunpack.c.l.b16 %v1104
        %v4030 = vunpack.c.h.b16 %v1104
        %v4031 = vunpack.c.l.b16 %v1105
        %v4032 = vunpack.c.h.b16 %v1105
        %v4033 = vunpack.c.l.b16 %v1106
        %v4034 = vunpack.c.h.b16 %v1106
        %v4035 = vunpack.c.l.b16 %v1107
        %v4036 = vunpack.c.h.b16 %v1107
        %v4037 = vunpack.c.l.b16 %v1108
        %v4038 = vunpack.c.h.b16 %v1108
        %v4039 = vunpack.c.l.b16 %v1109
        %v4040 = vunpack.c.h.b16 %v1109
        %v4041 = vunpack.c.l.b16 %v1110
        %v4042 = vunpack.c.h.b16 %v1110
        %v4043 = vunpack.c.l.b16 %v1111
        %v4044 = vunpack.c.h.b16 %v1111
        %v4045 = vunpack.c.l.b16 %v1112
        %v4046 = vunpack.c.h.b16 %v1112
        %v4047 = vunpack.c.l.b16 %v1113
        %v4048 = vunpack.c.h.b16 %v1113
        %v4049 = vunpack.c.l.b16 %v1114
        %v4050 = vunpack.c.h.b16 %v1114
        %v4051 = vunpack.c.l.b16 %v1115
        %v4052 = vunpack.c.h.b16 %v1115
        %v4053 = vunpack.c.l.b16 %v1116
        %v4054 = vunpack.c.h.b16 %v1116
        %v4055 = vunpack.c.l.b16 %v1117
        %v4056 = vunpack.c.h.b16 %v1117
        %v4057 = vunpack.c.l.b16 %v1118
        %v4058 = vunpack.c.h.b16 %v1118
        %v4059 = vunpack.c.l.b16 %v1119
        %v4060 = vunpack.c.h.b16 %v1119
        %v4061 = vunpack.c.l.b16 %v1120
        %v4062 = vunpack.c.h.b16 %v1120
        %v4063 = vunpack.c.l.b16 %v1121
        %v4064 = vunpack.c.h.b16 %v1121
        %v4065 = vunpack.c.l.b16 %v1122
        %v4066 = vunpack.c.h.b16 %v1122
        %v4067 = vunpack.c.l.b16 %v1123
        %v4068 = vunpack.c.h.b16 %v1123
        %v4069 = vunpack.c.l.b16 %v1124
        %v4070 = vunpack.c.h.b16 %v1124
        %v4071 = vunpack.c.l.b16 %v1125
        %v4072 = vunpack.c.h.b16 %v1125
        %v4073 = vunpack.c.l.b16 %v1126
        %v4074 = vunpack.c.h.b16 %v1126
        %v4075 = vunpack.c.l.b16 %v1127
        %v4076 = vunpack.c.h.b16 %v1127
        %v4077 = vunpack.c.l.b16 %v1128
        %v4078 = vunpack.c.h.b16 %v1128
        %v4079 = vunpack.c.l.b16 %v1129
        %v4080 = vunpack.c.h.b16 %v1129
        %v4081 = vunpack.c.l.b16 %v1130
        %v4082 = vunpack.c.h.b16 %v1130
        %v4083 = vunpack.c.l.b16 %v1131
        %v4084 = vunpack.c.h.b16 %v1131
        %v4085 = vunpack.c.l.b16 %v1132
        %v4086 = vunpack.c.h.b16 %v1132
        %v4087 = vunpack.c.l.b16 %v1133
        %v4088 = vunpack.c.h.b16 %v1133
        %v4089 = vunpack.c.l.b16 %v1134
        %v4090 = vunpack.c.h.b16 %v1134
        %v4091 = vunpack.c.l.b16 %v1135
        %v4092 = vunpack.c.h.b16 %v1135
        %v4093 = vunpack.c.l.b16 %v1136
        %v4094 = vunpack.c.h.b16 %v1136
        %v4095 = vunpack.c.l.b16 %v1137
        %v4096 = vunpack.c.h.b16 %v1137
        %v4097 = vunpack.c.l.b16 %v1138
        %v4098 = vunpack.c.h.b16 %v1138
        %v4099 = vunpack.c.l.b16 %v1139
        %v4100 = vunpack.c.h.b16 %v1139
        %v4101 = vunpack.c.l.b16 %v1140
        %v4102 = vunpack.c.h.b16 %v1140
        %v4103 = vunpack.c.l.b16 %v1141
        %v4104 = vunpack.c.h.b16 %v1141
        %v4105 = vunpack.c.l.b16 %v1142
        %v4106 = vunpack.c.h.b16 %v1142
        %v4107 = vunpack.c.l.b16 %v1143
        %v4108 = vunpack.c.h.b16 %v1143
        %v4109 = vunpack.c.l.b16 %v1144
        %v4110 = vunpack.c.h.b16 %v1144
        %v4111 = vunpack.c.l.b16 %v1145
        %v4112 = vunpack.c.h.b16 %v1145
        %v4113 = vunpack.c.l.b16 %v1146
        %v4114 = vunpack.c.h.b16 %v1146
        %v4115 = vunpack.c.l.b16 %v1147
        %v4116 = vunpack.c.h.b16 %v1147
        %v4117 = vunpack.c.l.b16 %v1148
        %v4118 = vunpack.c.h.b16 %v1148
        %v4119 = vunpack.c.l.b16 %v1149
        %v4120 = vunpack.c.h.b16 %v1149
        %v4121 = vunpack.c.l.b16 %v1150
        %v4122 = vunpack.c.h.b16 %v1150
        %v4123 = vunpack.c.l.b16 %v1151
        %v4124 = vunpack.c.h.b16 %v1151
        %v4125 = vunpack.c.l.b16 %v1152
        %v4126 = vunpack.c.h.b16 %v1152
        %v4127 = vunpack.c.l.b16 %v1153
        %v4128 = vunpack.c.h.b16 %v1153
        %v4129 = vunpack.c.l.b16 %v1154
        %v4130 = vunpack.c.h.b16 %v1154
        %v4131 = vunpack.c.l.b16 %v1155
        %v4132 = vunpack.c.h.b16 %v1155
        %v4133 = vunpack.c.l.b16 %v1156
        %v4134 = vunpack.c.h.b16 %v1156
        %v4135 = vunpack.c.l.b16 %v1157
        %v4136 = vunpack.c.h.b16 %v1157
        %v4137 = vunpack.c.l.b16 %v1158
        %v4138 = vunpack.c.h.b16 %v1158
        %v4139 = vunpack.c.l.b16 %v1159
        %v4140 = vunpack.c.h.b16 %v1159
        %v4141 = vunpack.c.l.b16 %v1160
        %v4142 = vunpack.c.h.b16 %v1160
        %v4143 = vunpack.c.l.b16 %v1161
        %v4144 = vunpack.c.h.b16 %v1161
        %v4145 = vunpack.c.l.b16 %v1162
        %v4146 = vunpack.c.h.b16 %v1162
        %v4147 = vunpack.c.l.b16 %v1163
        %v4148 = vunpack.c.h.b16 %v1163
        %v4149 = vunpack.c.l.b16 %v1164
        %v4150 = vunpack.c.h.b16 %v1164
        %v4151 = vunpack.c.l.b16 %v1165
        %v4152 = vunpack.c.h.b16 %v1165
        %v4153 = vunpack.c.l.b16 %v1166
        %v4154 = vunpack.c.h.b16 %v1166
        %v4155 = vunpack.c.l.b16 %v1167
        %v4156 = vunpack.c.h.b16 %v1167
        %v4157 = vunpack.c.l.b16 %v1168
        %v4158 = vunpack.c.h.b16 %v1168
        %v4159 = vunpack.c.l.b16 %v1169
        %v4160 = vunpack.c.h.b16 %v1169
        %v4161 = vunpack.c.l.b16 %v1170
        %v4162 = vunpack.c.h.b16 %v1170
        %v4163 = vunpack.c.l.b16 %v1171
        %v4164 = vunpack.c.h.b16 %v1171
        %v4165 = vunpack.c.l.b16 %v1172
        %v4166 = vunpack.c.h.b16 %v1172
        %v4167 = vunpack.c.l.b16 %v1173
        %v4168 = vunpack.c.h.b16 %v1173
        %v4169 = vunpack.c.l.b16 %v1174
        %v4170 = vunpack.c.h.b16 %v1174
        %v4171 = vunpack.c.l.b16 %v1175
        %v4172 = vunpack.c.h.b16 %v1175
        %v4173 = vunpack.c.l.b16 %v1176
        %v4174 = vunpack.c.h.b16 %v1176
        %v4175 = vunpack.c.l.b16 %v1177
        %v4176 = vunpack.c.h.b16 %v1177
        %v4177 = vunpack.c.l.b16 %v1178
        %v4178 = vunpack.c.h.b16 %v1178
        %v4179 = vunpack.c.l.b16 %v1179
        %v4180 = vunpack.c.h.b16 %v1179
        %v4181 = vunpack.c.l.b16 %v1180
        %v4182 = vunpack.c.h.b16 %v1180
        %v4183 = vunpack.c.l.b16 %v1181
        %v4184 = vunpack.c.h.b16 %v1181
        %v4185 = vunpack.c.l.b16 %v1182
        %v4186 = vunpack.c.h.b16 %v1182
        %v4187 = vunpack.c.l.b16 %v1183
        %v4188 = vunpack.c.h.b16 %v1183
        %v4189 = vunpack.c.l.b16 %v1184
        %v4190 = vunpack.c.h.b16 %v1184
        %v4191 = vunpack.c.l.b16 %v1185
        %v4192 = vunpack.c.h.b16 %v1185
        %v4193 = vunpack.c.l.b16 %v1186
        %v4194 = vunpack.c.h.b16 %v1186
        %v4195 = vunpack.c.l.b16 %v1187
        %v4196 = vunpack.c.h.b16 %v1187
        %v4197 = vunpack.c.l.b16 %v1188
        %v4198 = vunpack.c.h.b16 %v1188
        %v4199 = vunpack.c.l.b16 %v1189
        %v4200 = vunpack.c.h.b16 %v1189
        %v4201 = vunpack.c.l.b16 %v1190
        %v4202 = vunpack.c.h.b16 %v1190
        %v4203 = vunpack.c.l.b16 %v1191
        %v4204 = vunpack.c.h.b16 %v1191
        %v4205 = vunpack.c.l.b16 %v1192
        %v4206 = vunpack.c.h.b16 %v1192
        %v4207 = vunpack.c.l.b16 %v1193
        %v4208 = vunpack.c.h.b16 %v1193
        %v4209 = vunpack.c.l.b16 %v1194
        %v4210 = vunpack.c.h.b16 %v1194
        %v4211 = vunpack.c.l.b16 %v1195
        %v4212 = vunpack.c.h.b16 %v1195
        %v4213 = vunpack.c.l.b16 %v1196
        %v4214 = vunpack.c.h.b16 %v1196
        %v4215 = vunpack.c.l.b16 %v1197
        %v4216 = vunpack.c.h.b16 %v1197
        %v4217 = vunpack.c.l.b16 %v1198
        %v4218 = vunpack.c.h.b16 %v1198
        %v4219 = vunpack.c.l.b16 %v1199
        %v4220 = vunpack.c.h.b16 %v1199
        %v4221 = vunpack.c.l.b16 %v1200
        %v4222 = vunpack.c.h.b16 %v1200
        %v4223 = vunpack.c.l.b16 %v1201
        %v4224 = vunpack.c.h.b16 %v1201
        %v4225 = vunpack.c.l.b16 %v1202
        %v4226 = vunpack.c.h.b16 %v1202
        %v4227 = vunpack.c.l.b16 %v1203
        %v4228 = vunpack.c.h.b16 %v1203
        %v4229 = vunpack.c.l.b16 %v1204
        %v4230 = vunpack.c.h.b16 %v1204
        %v4231 = vunpack.c.l.b16 %v1205
        %v4232 = vunpack.c.h.b16 %v1205
        %v4233 = vunpack.c.l.b16 %v1206
        %v4234 = vunpack.c.h.b16 %v1206
        %v4235 = vunpack.c.l.b16 %v1207
        %v4236 = vunpack.c.h.b16 %v1207
        %v4237 = vunpack.c.l.b16 %v1208
        %v4238 = vunpack.c.h.b16 %v1208
        %v4239 = vunpack.c.l.b16 %v1209
        %v4240 = vunpack.c.h.b16 %v1209
        %v4241 = vunpack.c.l.b16 %v1210
        %v4242 = vunpack.c.h.b16 %v1210
        %v4243 = vunpack.c.l.b16 %v1211
        %v4244 = vunpack.c.h.b16 %v1211
        %v4245 = vunpack.c.l.b16 %v1212
        %v4246 = vunpack.c.h.b16 %v1212
        %v4247 = vunpack.c.l.b16 %v1213
        %v4248 = vunpack.c.h.b16 %v1213
        %v4249 = vunpack.c.l.b16 %v1214
        %v4250 = vunpack.c.h.b16 %v1214
        %v4251 = vunpack.c.l.b16 %v1215
        %v4252 = vunpack.c.h.b16 %v1215
        %v4253 = vunpack.c.l.b16 %v1216
        %v4254 = vunpack.c.h.b16 %v1216
        %v4255 = vunpack.c.l.b16 %v1217
        %v4256 = vunpack.c.h.b16 %v1217
        %v4257 = vunpack.c.l.b16 %v1218
        %v4258 = vunpack.c.h.b16 %v1218
        %v4259 = vunpack.c.l.b16 %v1219
        %v4260 = vunpack.c.h.b16 %v1219
        %v4261 = vunpack.c.l.b16 %v1220
        %v4262 = vunpack.c.h.b16 %v1220
        %v4263 = vunpack.c.l.b16 %v1221
        %v4264 = vunpack.c.h.b16 %v1221
        %v4265 = vunpack.c.l.b16 %v1222
        %v4266 = vunpack.c.h.b16 %v1222
        %v4267 = vunpack.c.l.b16 %v1223
        %v4268 = vunpack.c.h.b16 %v1223
        %v4269 = vunpack.c.l.b16 %v1224
        %v4270 = vunpack.c.h.b16 %v1224
        %v4271 = vunpack.c.l.b16 %v1225
        %v4272 = vunpack.c.h.b16 %v1225
        %v4273 = vunpack.c.l.b16 %v1226
        %v4274 = vunpack.c.h.b16 %v1226
        %v4275 = vunpack.c.l.b16 %v1227
        %v4276 = vunpack.c.h.b16 %v1227
        %v4277 = vunpack.c.l.b16 %v1228
        %v4278 = vunpack.c.h.b16 %v1228
        %v4279 = vunpack.c.l.b16 %v1229
        %v4280 = vunpack.c.h.b16 %v1229
        %v4281 = vunpack.c.l.b16 %v1230
        %v4282 = vunpack.c.h.b16 %v1230
        %v4283 = vunpack.c.l.b16 %v1231
        %v4284 = vunpack.c.h.b16 %v1231
        %v4285 = vunpack.c.l.b16 %v1232
        %v4286 = vunpack.c.h.b16 %v1232
        %v4287 = vunpack.c.l.b16 %v1233
        %v4288 = vunpack.c.h.b16 %v1233
        %v4289 = vunpack.c.l.b16 %v1234
        %v4290 = vunpack.c.h.b16 %v1234
        %v4291 = vunpack.c.l.b16 %v1235
        %v4292 = vunpack.c.h.b16 %v1235
        %v4293 = vunpack.c.l.b16 %v1236
        %v4294 = vunpack.c.h.b16 %v1236
        %v4295 = vunpack.c.l.b16 %v1237
        %v4296 = vunpack.c.h.b16 %v1237
        %v4297 = vunpack.c.l.b16 %v1238
        %v4298 = vunpack.c.h.b16 %v1238
        %v4299 = vunpack.c.l.b16 %v1239
        %v4300 = vunpack.c.h.b16 %v1239
        %v4301 = vunpack.c.l.b16 %v1240
        %v4302 = vunpack.c.h.b16 %v1240
        %v4303 = vunpack.c.l.b16 %v1241
        %v4304 = vunpack.c.h.b16 %v1241
        %v4305 = vunpack.c.l.b16 %v1242
        %v4306 = vunpack.c.h.b16 %v1242
        %v4307 = vunpack.c.l.b16 %v1243
        %v4308 = vunpack.c.h.b16 %v1243
        %v4309 = vunpack.c.l.b16 %v1244
        %v4310 = vunpack.c.h.b16 %v1244
        %v4311 = vunpack.c.l.b16 %v1245
        %v4312 = vunpack.c.h.b16 %v1245
        %v4313 = vunpack.c.l.b16 %v1246
        %v4314 = vunpack.c.h.b16 %v1246
        %v4315 = vunpack.c.l.b16 %v1247
        %v4316 = vunpack.c.h.b16 %v1247
        %v4317 = vunpack.c.l.b16 %v1248
        %v4318 = vunpack.c.h.b16 %v1248
        %v4319 = vunpack.c.l.b16 %v1249
        %v4320 = vunpack.c.h.b16 %v1249
        %v4321 = vunpack.c.l.b16 %v1250
        %v4322 = vunpack.c.h.b16 %v1250
        %v4323 = vunpack.c.l.b16 %v1251
        %v4324 = vunpack.c.h.b16 %v1251
        %v4325 = vunpack.c.l.b16 %v1252
        %v4326 = vunpack.c.h.b16 %v1252
        %v4327 = vunpack.c.l.b16 %v1253
        %v4328 = vunpack.c.h.b16 %v1253
        %v4329 = vunpack.c.l.b16 %v1254
        %v4330 = vunpack.c.h.b16 %v1254
        %v4331 = vunpack.c.l.b16 %v1255
        %v4332 = vunpack.c.h.b16 %v1255
        %v4333 = vunpack.c.l.b16 %v1256
        %v4334 = vunpack.c.h.b16 %v1256
        %v4335 = vunpack.c.l.b16 %v1257
        %v4336 = vunpack.c.h.b16 %v1257
        %v4337 = vunpack.c.l.b16 %v1258
        %v4338 = vunpack.c.h.b16 %v1258
        %v4339 = vunpack.c.l.b16 %v1259
        %v4340 = vunpack.c.h.b16 %v1259
        %v4341 = vunpack.c.l.b16 %v1260
        %v4342 = vunpack.c.h.b16 %v1260
        %v4343 = vunpack.c.l.b16 %v1261
        %v4344 = vunpack.c.h.b16 %v1261
        %v4345 = vunpack.c.l.b16 %v1262
        %v4346 = vunpack.c.h.b16 %v1262
        %v4347 = vunpack.c.l.b16 %v1263
        %v4348 = vunpack.c.h.b16 %v1263
        %v4349 = vunpack.c.l.b16 %v1264
        %v4350 = vunpack.c.h.b16 %v1264
        %v4351 = vunpack.c.l.b16 %v1265
        %v4352 = vunpack.c.h.b16 %v1265
        %v4353 = vunpack.c.l.b16 %v1266
        %v4354 = vunpack.c.h.b16 %v1266
        %v4355 = vunpack.c.l.b16 %v1267
        %v4356 = vunpack.c.h.b16 %v1267
        %v4357 = vunpack.c.l.b16 %v1268
        %v4358 = vunpack.c.h.b16 %v1268
        %v4359 = vunpack.c.l.b16 %v1269
        %v4360 = vunpack.c.h.b16 %v1269
        %v4361 = vunpack.c.l.b16 %v1270
        %v4362 = vunpack.c.h.b16 %v1270
        %v4363 = vunpack.c.l.b16 %v1271
        %v4364 = vunpack.c.h.b16 %v1271
        %v4365 = vunpack.c.l.b16 %v1272
        %v4366 = vunpack.c.h.b16 %v1272
        %v4367 = vunpack.c.l.b16 %v1273
        %v4368 = vunpack.c.h.b16 %v1273
        %v4369 = vunpack.c.l.b16 %v1274
        %v4370 = vunpack.c.h.b16 %v1274
        %v4371 = vunpack.c.l.b16 %v1275
        %v4372 = vunpack.c.h.b16 %v1275
        %v4373 = vunpack.c.l.b16 %v1276
        %v4374 = vunpack.c.h.b16 %v1276
        %v4375 = vunpack.c.l.b16 %v1277
        %v4376 = vunpack.c.h.b16 %v1277
        %v4377 = vunpack.c.l.b16 %v1278
        %v4378 = vunpack.c.h.b16 %v1278
        %v4379 = vunpack.c.l.b16 %v1279
        %v4380 = vunpack.c.h.b16 %v1279
        %v4381 = vunpack.c.l.b16 %v1280
        %v4382 = vunpack.c.h.b16 %v1280
        %v4383 = vunpack.c.l.b16 %v1281
        %v4384 = vunpack.c.h.b16 %v1281
        %v4385 = vunpack.c.l.b16 %v1282
        %v4386 = vunpack.c.h.b16 %v1282
        %v4387 = vunpack.c.l.b16 %v1283
        %v4388 = vunpack.c.h.b16 %v1283
        %v4389 = vunpack.c.l.b16 %v1284
        %v4390 = vunpack.c.h.b16 %v1284
        %v4391 = vunpack.c.l.b16 %v1285
        %v4392 = vunpack.c.h.b16 %v1285
        %v4393 = vunpack.c.l.b16 %v1286
        %v4394 = vunpack.c.h.b16 %v1286
        %v4395 = vunpack.c.l.b16 %v1287
        %v4396 = vunpack.c.h.b16 %v1287
        %v4397 = vunpack.c.l.b16 %v1288
        %v4398 = vunpack.c.h.b16 %v1288
        %v4399 = vunpack.c.l.b16 %v1289
        %v4400 = vunpack.c.h.b16 %v1289
        %v4401 = vunpack.c.l.b16 %v1290
        %v4402 = vunpack.c.h.b16 %v1290
        %v4403 = vunpack.c.l.b16 %v1291
        %v4404 = vunpack.c.h.b16 %v1291
        %v4405 = vunpack.c.l.b16 %v1292
        %v4406 = vunpack.c.h.b16 %v1292
        %v4407 = vunpack.c.l.b16 %v1293
        %v4408 = vunpack.c.h.b16 %v1293
        %v4409 = vunpack.c.l.b16 %v1294
        %v4410 = vunpack.c.h.b16 %v1294
        %v4411 = vunpack.c.l.b16 %v1295
        %v4412 = vunpack.c.h.b16 %v1295
        %v4413 = vunpack.c.l.b16 %v1296
        %v4414 = vunpack.c.h.b16 %v1296
        %v4415 = vunpack.c.l.b16 %v1297
        %v4416 = vunpack.c.h.b16 %v1297
        %v4417 = vunpack.c.l.b16 %v1298
        %v4418 = vunpack.c.h.b16 %v1298
        %v4419 = vunpack.c.l.b16 %v1299
        %v4420 = vunpack.c.h.b16 %v1299
        %v4421 = vunpack.c.l.b16 %v1300
        %v4422 = vunpack.c.h.b16 %v1300
        %v4423 = vunpack.c.l.b16 %v1301
        %v4424 = vunpack.c.h.b16 %v1301
        %v4425 = vunpack.c.l.b16 %v1302
        %v4426 = vunpack.c.h.b16 %v1302
        %v4427 = vunpack.c.l.b16 %v1303
        %v4428 = vunpack.c.h.b16 %v1303
        %v4429 = vunpack.c.l.b16 %v1304
        %v4430 = vunpack.c.h.b16 %v1304
        %v4431 = vunpack.c.l.b16 %v1305
        %v4432 = vunpack.c.h.b16 %v1305
        %v4433 = vunpack.c.l.b16 %v1306
        %v4434 = vunpack.c.h.b16 %v1306
        %v4435 = vunpack.c.l.b16 %v1307
        %v4436 = vunpack.c.h.b16 %v1307
        %v4437 = vunpack.c.l.b16 %v1308
        %v4438 = vunpack.c.h.b16 %v1308
        %v4439 = vunpack.c.l.b16 %v1309
        %v4440 = vunpack.c.h.b16 %v1309
        %v4441 = vunpack.c.l.b16 %v1310
        %v4442 = vunpack.c.h.b16 %v1310
        %v4443 = vunpack.c.l.b16 %v1311
        %v4444 = vunpack.c.h.b16 %v1311
        %v4445 = vunpack.c.l.b16 %v1312
        %v4446 = vunpack.c.h.b16 %v1312
        %v4447 = vunpack.c.l.b16 %v1313
        %v4448 = vunpack.c.h.b16 %v1313
        %v4449 = vunpack.c.l.b16 %v1314
        %v4450 = vunpack.c.h.b16 %v1314
        %v4451 = vunpack.c.l.b16 %v1315
        %v4452 = vunpack.c.h.b16 %v1315
        %v4453 = vunpack.c.l.b16 %v1316
        %v4454 = vunpack.c.h.b16 %v1316
        %v4455 = vunpack.c.l.b16 %v1317
        %v4456 = vunpack.c.h.b16 %v1317
        %v4457 = vunpack.c.l.b16 %v1318
        %v4458 = vunpack.c.h.b16 %v1318
        %v4459 = vunpack.c.l.b16 %v1319
        %v4460 = vunpack.c.h.b16 %v1319
        %v4461 = vunpack.c.l.b16 %v1320
        %v4462 = vunpack.c.h.b16 %v1320
        %v4463 = vunpack.c.l.b16 %v1321
        %v4464 = vunpack.c.h.b16 %v1321
        %v4465 = vunpack.c.l.b16 %v1322
        %v4466 = vunpack.c.h.b16 %v1322
        %v4467 = vpack.c.b16 %v2423, %v2419
        %v4468 = vpack.c.b16 %v2424, %v2420
        %v4469 = vpack.c.b16 %v2425, %v2421
        %v4470 = vpack.c.b16 %v2426, %v2422
        %v4471 = vpack.c.b16 %v2431, %v2427
        %v4472 = vpack.c.b16 %v2432, %v2428
        %v4473 = vpack.c.b16 %v2433, %v2429
        %v4474 = vpack.c.b16 %v2434, %v2430
        %v4475 = vpack.c.b16 %v2439, %v2435
        %v4476 = vpack.c.b16 %v2440, %v2436
        %v4477 = vpack.c.b16 %v2441, %v2437
        %v4478 = vpack.c.b16 %v2442, %v2438
        %v4479 = vpack.c.b16 %v2447, %v2443
        %v4480 = vpack.c.b16 %v2448, %v2444
        %v4481 = vpack.c.b16 %v2449, %v2445
        %v4482 = vpack.c.b16 %v2450, %v2446
        %v4483 = vpack.c.b16 %v2455, %v2451
        %v4484 = vpack.c.b16 %v2456, %v2452
        %v4485 = vpack.c.b16 %v2457, %v2453
        %v4486 = vpack.c.b16 %v2458, %v2454
        %v4487 = vpack.c.b16 %v2463, %v2459
        %v4488 = vpack.c.b16 %v2464, %v2460
        %v4489 = vpack.c.b16 %v2465, %v2461
        %v4490 = vpack.c.b16 %v2466, %v2462
        %v4491 = vpack.c.b16 %v2471, %v2467
        %v4492 = vpack.c.b16 %v2472, %v2468
        %v4493 = vpack.c.b16 %v2473, %v2469
        %v4494 = vpack.c.b16 %v2474, %v2470
        %v4495 = vpack.c.b16 %v2479, %v2475
        %v4496 = vpack.c.b16 %v2480, %v2476
        %v4497 = vpack.c.b16 %v2481, %v2477
        %v4498 = vpack.c.b16 %v2482, %v2478
        %v4499 = vpack.c.b16 %v2487, %v2483
        %v4500 = vpack.c.b16 %v2488, %v2484
        %v4501 = vpack.c.b16 %v2489, %v2485
        %v4502 = vpack.c.b16 %v2490, %v2486
        %v4503 = vpack.c.b16 %v2495, %v2491
        %v4504 = vpack.c.b16 %v2496, %v2492
        %v4505 = vpack.c.b16 %v2497, %v2493
        %v4506 = vpack.c.b16 %v2498, %v2494
        %v4507 = vpack.c.b16 %v2503, %v2499
        %v4508 = vpack.c.b16 %v2504, %v2500
        %v4509 = vpack.c.b16 %v2505, %v2501
        %v4510 = vpack.c.b16 %v2506, %v2502
        %v4511 = vpack.c.b16 %v2511, %v2507
        %v4512 = vpack.c.b16 %v2512, %v2508
        %v4513 = vpack.c.b16 %v2513, %v2509
        %v4514 = vpack.c.b16 %v2514, %v2510
        %v4515 = vpack.c.b16 %v2519, %v2515
        %v4516 = vpack.c.b16 %v2520, %v2516
        %v4517 = vpack.c.b16 %v2521, %v2517
        %v4518 = vpack.c.b16 %v2522, %v2518
        %v4519 = vpack.c.b16 %v2527, %v2523
        %v4520 = vpack.c.b16 %v2528, %v2524
        %v4521 = vpack.c.b16 %v2529, %v2525
        %v4522 = vpack.c.b16 %v2530, %v2526
        %v4523 = vpack.c.b16 %v2535, %v2531
        %v4524 = vpack.c.b16 %v2536, %v2532
        %v4525 = vpack.c.b16 %v2537, %v2533
        %v4526 = vpack.c.b16 %v2538, %v2534
        %v4527 = vpack.c.b16 %v2543, %v2539
        %v4528 = vpack.c.b16 %v2544, %v2540
        %v4529 = vpack.c.b16 %v2545, %v2541
        %v4530 = vpack.c.b16 %v2546, %v2542
        %v4531 = vpack.c.b16 %v2551, %v2547
        %v4532 = vpack.c.b16 %v2552, %v2548
        %v4533 = vpack.c.b16 %v2553, %v2549
        %v4534 = vpack.c.b16 %v2554, %v2550
        %v4535 = vpack.c.b16 %v2559, %v2555
        %v4536 = vpack.c.b16 %v2560, %v2556
        %v4537 = vpack.c.b16 %v2561, %v2557
        %v4538 = vpack.c.b16 %v2562, %v2558
        %v4539 = vpack.c.b16 %v2567, %v2563
        %v4540 = vpack.c.b16 %v2568, %v2564
        %v4541 = vpack.c.b16 %v2569, %v2565
        %v4542 = vpack.c.b16 %v2570, %v2566
        %v4543 = vpack.c.b16 %v2575, %v2571
        %v4544 = vpack.c.b16 %v2576, %v2572
        %v4545 = vpack.c.b16 %v2577, %v2573
        %v4546 = vpack.c.b16 %v2578, %v2574
        %v4547 = vpack.c.b16 %v2583, %v2579
        %v4548 = vpack.c.b16 %v2584, %v2580
        %v4549 = vpack.c.b16 %v2585, %v2581
        %v4550 = vpack.c.b16 %v2586, %v2582
        %v4551 = vpack.c.b16 %v2591, %v2587
        %v4552 = vpack.c.b16 %v2592, %v2588
        %v4553 = vpack.c.b16 %v2593, %v2589
        %v4554 = vpack.c.b16 %v2594, %v2590
        %v4555 = vpack.c.b16 %v2599, %v2595
        %v4556 = vpack.c.b16 %v2600, %v2596
        %v4557 = vpack.c.b16 %v2601, %v2597
        %v4558 = vpack.c.b16 %v2602, %v2598
        %v4559 = vpack.c.b16 %v2607, %v2603
        %v4560 = vpack.c.b16 %v2608, %v2604
        %v4561 = vpack.c.b16 %v2609, %v2605
        %v4562 = vpack.c.b16 %v2610, %v2606
        %v4563 = vpack.c.b16 %v2615, %v2611
        %v4564 = vpack.c.b16 %v2616, %v2612
        %v4565 = vpack.c.b16 %v2617, %v2613
        %v4566 = vpack.c.b16 %v2618, %v2614
        %v4567 = vpack.c.b16 %v2623, %v2619
        %v4568 = vpack.c.b16 %v2624, %v2620
        %v4569 = vpack.c.b16 %v2625, %v2621
        %v4570 = vpack.c.b16 %v2626, %v2622
        %v4571 = vpack.c.b16 %v2631, %v2627
        %v4572 = vpack.c.b16 %v2632, %v2628
        %v4573 = vpack.c.b16 %v2633, %v2629
        %v4574 = vpack.c.b16 %v2634, %v2630
        %v4575 = vpack.c.b16 %v2639, %v2635
        %v4576 = vpack.c.b16 %v2640, %v2636
        %v4577 = vpack.c.b16 %v2641, %v2637
        %v4578 = vpack.c.b16 %v2642, %v2638
        %v4579 = vpack.c.b16 %v2647, %v2643
        %v4580 = vpack.c.b16 %v2648, %v2644
        %v4581 = vpack.c.b16 %v2649, %v2645
        %v4582 = vpack.c.b16 %v2650, %v2646
        %v4583 = vpack.c.b16 %v2655, %v2651
        %v4584 = vpack.c.b16 %v2656, %v2652
        %v4585 = vpack.c.b16 %v2657, %v2653
        %v4586 = vpack.c.b16 %v2658, %v2654
        %v4587 = vpack.c.b16 %v2663, %v2659
        %v4588 = vpack.c.b16 %v2664, %v2660
        %v4589 = vpack.c.b16 %v2665, %v2661
        %v4590 = vpack.c.b16 %v2666, %v2662
        %v4591 = vpack.c.b16 %v2671, %v2667
        %v4592 = vpack.c.b16 %v2672, %v2668
        %v4593 = vpack.c.b16 %v2673, %v2669
        %v4594 = vpack.c.b16 %v2674, %v2670
        %v4595 = vpack.c.b16 %v2679, %v2675
        %v4596 = vpack.c.b16 %v2680, %v2676
        %v4597 = vpack.c.b16 %v2681, %v2677
        %v4598 = vpack.c.b16 %v2682, %v2678
        %v4599 = vpack.c.b16 %v2687, %v2683
        %v4600 = vpack.c.b16 %v2688, %v2684
        %v4601 = vpack.c.b16 %v2689, %v2685
        %v4602 = vpack.c.b16 %v2690, %v2686
        %v4603 = vpack.c.b16 %v2695, %v2691
        %v4604 = vpack.c.b16 %v2696, %v2692
        %v4605 = vpack.c.b16 %v2697, %v2693
        %v4606 = vpack.c.b16 %v2698, %v2694
        %v4607 = vpack.c.b16 %v2703, %v2699
        %v4608 = vpack.c.b16 %v2704, %v2700
        %v4609 = vpack.c.b16 %v2705, %v2701
        %v4610 = vpack.c.b16 %v2706, %v2702
        %v4611 = vpack.c.b16 %v2711, %v2707
        %v4612 = vpack.c.b16 %v2712, %v2708
        %v4613 = vpack.c.b16 %v2713, %v2709
        %v4614 = vpack.c.b16 %v2714, %v2710
        %v4615 = vpack.c.b16 %v2719, %v2715
        %v4616 = vpack.c.b16 %v2720, %v2716
        %v4617 = vpack.c.b16 %v2721, %v2717
        %v4618 = vpack.c.b16 %v2722, %v2718
        %v4619 = vpack.c.b16 %v2727, %v2723
        %v4620 = vpack.c.b16 %v2728, %v2724
        %v4621 = vpack.c.b16 %v2729, %v2725
        %v4622 = vpack.c.b16 %v2730, %v2726
        %v4623 = vpack.c.b16 %v2735, %v2731
        %v4624 = vpack.c.b16 %v2736, %v2732
        %v4625 = vpack.c.b16 %v2737, %v2733
        %v4626 = vpack.c.b16 %v2738, %v2734
        %v4627 = vpack.c.b16 %v2743, %v2739
        %v4628 = vpack.c.b16 %v2744, %v2740
        %v4629 = vpack.c.b16 %v2745, %v2741
        %v4630 = vpack.c.b16 %v2746, %v2742
        %v4631 = vpack.c.b16 %v2751, %v2747
        %v4632 = vpack.c.b16 %v2752, %v2748
        %v4633 = vpack.c.b16 %v2753, %v2749
        %v4634 = vpack.c.b16 %v2754, %v2750
        %v4635 = vpack.c.b16 %v2759, %v2755
        %v4636 = vpack.c.b16 %v2760, %v2756
        %v4637 = vpack.c.b16 %v2761, %v2757
        %v4638 = vpack.c.b16 %v2762, %v2758
        %v4639 = vpack.c.b16 %v2767, %v2763
        %v4640 = vpack.c.b16 %v2768, %v2764
        %v4641 = vpack.c.b16 %v2769, %v2765
        %v4642 = vpack.c.b16 %v2770, %v2766
        %v4643 = vpack.c.b16 %v2775, %v2771
        %v4644 = vpack.c.b16 %v2776, %v2772
        %v4645 = vpack.c.b16 %v2777, %v2773
        %v4646 = vpack.c.b16 %v2778, %v2774
        %v4647 = vpack.c.b16 %v2783, %v2779
        %v4648 = vpack.c.b16 %v2784, %v2780
        %v4649 = vpack.c.b16 %v2785, %v2781
        %v4650 = vpack.c.b16 %v2786, %v2782
        %v4651 = vpack.c.b16 %v2791, %v2787
        %v4652 = vpack.c.b16 %v2792, %v2788
        %v4653 = vpack.c.b16 %v2793, %v2789
        %v4654 = vpack.c.b16 %v2794, %v2790
        %v4655 = vpack.c.b16 %v2799, %v2795
        %v4656 = vpack.c.b16 %v2800, %v2796
        %v4657 = vpack.c.b16 %v2801, %v2797
        %v4658 = vpack.c.b16 %v2802, %v2798
        %v4659 = vpack.c.b16 %v2807, %v2803
        %v4660 = vpack.c.b16 %v2808, %v2804
        %v4661 = vpack.c.b16 %v2809, %v2805
        %v4662 = vpack.c.b16 %v2810, %v2806
        %v4663 = vpack.c.b16 %v2815, %v2811
        %v4664 = vpack.c.b16 %v2816, %v2812
        %v4665 = vpack.c.b16 %v2817, %v2813
        %v4666 = vpack.c.b16 %v2818, %v2814
        %v4667 = vpack.c.b16 %v2823, %v2819
        %v4668 = vpack.c.b16 %v2824, %v2820
        %v4669 = vpack.c.b16 %v2825, %v2821
        %v4670 = vpack.c.b16 %v2826, %v2822
        %v4671 = vpack.c.b16 %v2831, %v2827
        %v4672 = vpack.c.b16 %v2832, %v2828
        %v4673 = vpack.c.b16 %v2833, %v2829
        %v4674 = vpack.c.b16 %v2834, %v2830
        %v4675 = vpack.c.b16 %v2839, %v2835
        %v4676 = vpack.c.b16 %v2840, %v2836
        %v4677 = vpack.c.b16 %v2841, %v2837
        %v4678 = vpack.c.b16 %v2842, %v2838
        %v4679 = vpack.c.b16 %v2847, %v2843
        %v4680 = vpack.c.b16 %v2848, %v2844
        %v4681 = vpack.c.b16 %v2849, %v2845
        %v4682 = vpack.c.b16 %v2850, %v2846
        %v4683 = vpack.c.b16 %v2855, %v2851
        %v4684 = vpack.c.b16 %v2856, %v2852
        %v4685 = vpack.c.b16 %v2857, %v2853
        %v4686 = vpack.c.b16 %v2858, %v2854
        %v4687 = vpack.c.b16 %v2863, %v2859
        %v4688 = vpack.c.b16 %v2864, %v2860
        %v4689 = vpack.c.b16 %v2865, %v2861
        %v4690 = vpack.c.b16 %v2866, %v2862
        %v4691 = vpack.c.b16 %v2871, %v2867
        %v4692 = vpack.c.b16 %v2872, %v2868
        %v4693 = vpack.c.b16 %v2873, %v2869
        %v4694 = vpack.c.b16 %v2874, %v2870
        %v4695 = vpack.c.b16 %v2879, %v2875
        %v4696 = vpack.c.b16 %v2880, %v2876
        %v4697 = vpack.c.b16 %v2881, %v2877
        %v4698 = vpack.c.b16 %v2882, %v2878
        %v4699 = vpack.c.b16 %v2887, %v2883
        %v4700 = vpack.c.b16 %v2888, %v2884
        %v4701 = vpack.c.b16 %v2889, %v2885
        %v4702 = vpack.c.b16 %v2890, %v2886
        %v4703 = vpack.c.b16 %v2895, %v2891
        %v4704 = vpack.c.b16 %v2896, %v2892
        %v4705 = vpack.c.b16 %v2897, %v2893
        %v4706 = vpack.c.b16 %v2898, %v2894
        %v4707 = vpack.c.b16 %v2903, %v2899
        %v4708 = vpack.c.b16 %v2904, %v2900
        %v4709 = vpack.c.b16 %v2905, %v2901
        %v4710 = vpack.c.b16 %v2906, %v2902
        %v4711 = vpack.c.b16 %v2911, %v2907
        %v4712 = vpack.c.b16 %v2912, %v2908
        %v4713 = vpack.c.b16 %v2913, %v2909
        %v4714 = vpack.c.b16 %v2914, %v2910
        %v4715 = vpack.c.b16 %v2919, %v2915
        %v4716 = vpack.c.b16 %v2920, %v2916
        %v4717 = vpack.c.b16 %v2921, %v2917
        %v4718 = vpack.c.b16 %v2922, %v2918
        %v4719 = vpack.c.b16 %v2927, %v2923
        %v4720 = vpack.c.b16 %v2928, %v2924
        %v4721 = vpack.c.b16 %v2929, %v2925
        %v4722 = vpack.c.b16 %v2930, %v2926
        %v4723 = vpack.c.b16 %v2935, %v2931
        %v4724 = vpack.c.b16 %v2936, %v2932
        %v4725 = vpack.c.b16 %v2937, %v2933
        %v4726 = vpack.c.b16 %v2938, %v2934
        %v4727 = vpack.c.b16 %v2943, %v2939
        %v4728 = vpack.c.b16 %v2944, %v2940
        %v4729 = vpack.c.b16 %v2945, %v2941
        %v4730 = vpack.c.b16 %v2946, %v2942
        %v4731 = vpack.c.b16 %v2951, %v2947
        %v4732 = vpack.c.b16 %v2952, %v2948
        %v4733 = vpack.c.b16 %v2953, %v2949
        %v4734 = vpack.c.b16 %v2954, %v2950
        %v4735 = vpack.c.b16 %v2959, %v2955
        %v4736 = vpack.c.b16 %v2960, %v2956
        %v4737 = vpack.c.b16 %v2961, %v2957
        %v4738 = vpack.c.b16 %v2962, %v2958
        %v4739 = vpack.c.b16 %v2967, %v2963
        %v4740 = vpack.c.b16 %v2968, %v2964
        %v4741 = vpack.c.b16 %v2969, %v2965
        %v4742 = vpack.c.b16 %v2970, %v2966
        %v4743 = vpack.c.b16 %v2975, %v2971
        %v4744 = vpack.c.b16 %v2976, %v2972
        %v4745 = vpack.c.b16 %v2977, %v2973
        %v4746 = vpack.c.b16 %v2978, %v2974
        %v4747 = vpack.c.b16 %v2983, %v2979
        %v4748 = vpack.c.b16 %v2984, %v2980
        %v4749 = vpack.c.b16 %v2985, %v2981
        %v4750 = vpack.c.b16 %v2986, %v2982
        %v4751 = vpack.c.b16 %v2991, %v2987
        %v4752 = vpack.c.b16 %v2992, %v2988
        %v4753 = vpack.c.b16 %v2993, %v2989
        %v4754 = vpack.c.b16 %v2994, %v2990
        %v4755 = vpack.c.b16 %v2999, %v2995
        %v4756 = vpack.c.b16 %v3000, %v2996
        %v4757 = vpack.c.b16 %v3001, %v2997
        %v4758 = vpack.c.b16 %v3002, %v2998
        %v4759 = vpack.c.b16 %v3007, %v3003
        %v4760 = vpack.c.b16 %v3008, %v3004
        %v4761 = vpack.c.b16 %v3009, %v3005
        %v4762 = vpack.c.b16 %v3010, %v3006
        %v4763 = vpack.c.b16 %v3015, %v3011
        %v4764 = vpack.c.b16 %v3016, %v3012
        %v4765 = vpack.c.b16 %v3017, %v3013
        %v4766 = vpack.c.b16 %v3018, %v3014
        %v4767 = vpack.c.b16 %v3023, %v3019
        %v4768 = vpack.c.b16 %v3024, %v3020
        %v4769 = vpack.c.b16 %v3025, %v3021
        %v4770 = vpack.c.b16 %v3026, %v3022
        %v4771 = vpack.c.b16 %v3031, %v3027
        %v4772 = vpack.c.b16 %v3032, %v3028
        %v4773 = vpack.c.b16 %v3033, %v3029
        %v4774 = vpack.c.b16 %v3034, %v3030
        %v4775 = vpack.c.b16 %v3039, %v3035
        %v4776 = vpack.c.b16 %v3040, %v3036
        %v4777 = vpack.c.b16 %v3041, %v3037
        %v4778 = vpack.c.b16 %v3042, %v3038
        %v4779 = vpack.c.b16 %v3047, %v3043
        %v4780 = vpack.c.b16 %v3048, %v3044
        %v4781 = vpack.c.b16 %v3049, %v3045
        %v4782 = vpack.c.b16 %v3050, %v3046
        %v4783 = vpack.c.b16 %v3055, %v3051
        %v4784 = vpack.c.b16 %v3056, %v3052
        %v4785 = vpack.c.b16 %v3057, %v3053
        %v4786 = vpack.c.b16 %v3058, %v3054
        %v4787 = vpack.c.b16 %v3063, %v3059
        %v4788 = vpack.c.b16 %v3064, %v3060
        %v4789 = vpack.c.b16 %v3065, %v3061
        %v4790 = vpack.c.b16 %v3066, %v3062
        %v4791 = vpack.c.b16 %v3071, %v3067
        %v4792 = vpack.c.b16 %v3072, %v3068
        %v4793 = vpack.c.b16 %v3073, %v3069
        %v4794 = vpack.c.b16 %v3074, %v3070
        %v4795 = vpack.c.b16 %v3079, %v3075
        %v4796 = vpack.c.b16 %v3080, %v3076
        %v4797 = vpack.c.b16 %v3081, %v3077
        %v4798 = vpack.c.b16 %v3082, %v3078
        %v4799 = vpack.c.b16 %v3087, %v3083
        %v4800 = vpack.c.b16 %v3088, %v3084
        %v4801 = vpack.c.b16 %v3089, %v3085
        %v4802 = vpack.c.b16 %v3090, %v3086
        %v4803 = vpack.c.b16 %v3095, %v3091
        %v4804 = vpack.c.b16 %v3096, %v3092
        %v4805 = vpack.c.b16 %v3097, %v3093
        %v4806 = vpack.c.b16 %v3098, %v3094
        %v4807 = vpack.c.b16 %v3103, %v3099
        %v4808 = vpack.c.b16 %v3104, %v3100
        %v4809 = vpack.c.b16 %v3105, %v3101
        %v4810 = vpack.c.b16 %v3106, %v3102
        %v4811 = vpack.c.b16 %v3111, %v3107
        %v4812 = vpack.c.b16 %v3112, %v3108
        %v4813 = vpack.c.b16 %v3113, %v3109
        %v4814 = vpack.c.b16 %v3114, %v3110
        %v4815 = vpack.c.b16 %v3119, %v3115
        %v4816 = vpack.c.b16 %v3120, %v3116
        %v4817 = vpack.c.b16 %v3121, %v3117
        %v4818 = vpack.c.b16 %v3122, %v3118
        %v4819 = vpack.c.b16 %v3127, %v3123
        %v4820 = vpack.c.b16 %v3128, %v3124
        %v4821 = vpack.c.b16 %v3129, %v3125
        %v4822 = vpack.c.b16 %v3130, %v3126
        %v4823 = vpack.c.b16 %v3135, %v3131
        %v4824 = vpack.c.b16 %v3136, %v3132
        %v4825 = vpack.c.b16 %v3137, %v3133
        %v4826 = vpack.c.b16 %v3138, %v3134
        %v4827 = vpack.c.b16 %v3143, %v3139
        %v4828 = vpack.c.b16 %v3144, %v3140
        %v4829 = vpack.c.b16 %v3145, %v3141
        %v4830 = vpack.c.b16 %v3146, %v3142
        %v4831 = vpack.c.b16 %v3151, %v3147
        %v4832 = vpack.c.b16 %v3152, %v3148
        %v4833 = vpack.c.b16 %v3153, %v3149
        %v4834 = vpack.c.b16 %v3154, %v3150
        %v4835 = vpack.c.b16 %v3159, %v3155
        %v4836 = vpack.c.b16 %v3160, %v3156
        %v4837 = vpack.c.b16 %v3161, %v3157
        %v4838 = vpack.c.b16 %v3162, %v3158
        %v4839 = vpack.c.b16 %v3167, %v3163
        %v4840 = vpack.c.b16 %v3168, %v3164
        %v4841 = vpack.c.b16 %v3169, %v3165
        %v4842 = vpack.c.b16 %v3170, %v3166
        %v4843 = vpack.c.b16 %v3175, %v3171
        %v4844 = vpack.c.b16 %v3176, %v3172
        %v4845 = vpack.c.b16 %v3177, %v3173
        %v4846 = vpack.c.b16 %v3178, %v3174
        %v4847 = vpack.c.b16 %v3183, %v3179
        %v4848 = vpack.c.b16 %v3184, %v3180
        %v4849 = vpack.c.b16 %v3185, %v3181
        %v4850 = vpack.c.b16 %v3186, %v3182
        %v4851 = vpack.c.b16 %v3191, %v3187
        %v4852 = vpack.c.b16 %v3192, %v3188
        %v4853 = vpack.c.b16 %v3193, %v3189
        %v4854 = vpack.c.b16 %v3194, %v3190
        %v4855 = vpack.c.b16 %v3199, %v3195
        %v4856 = vpack.c.b16 %v3200, %v3196
        %v4857 = vpack.c.b16 %v3201, %v3197
        %v4858 = vpack.c.b16 %v3202, %v3198
        %v4859 = vpack.c.b16 %v3207, %v3203
        %v4860 = vpack.c.b16 %v3208, %v3204
        %v4861 = vpack.c.b16 %v3209, %v3205
        %v4862 = vpack.c.b16 %v3210, %v3206
        %v4863 = vpack.c.b16 %v3215, %v3211
        %v4864 = vpack.c.b16 %v3216, %v3212
        %v4865 = vpack.c.b16 %v3217, %v3213
        %v4866 = vpack.c.b16 %v3218, %v3214
        %v4867 = vpack.c.b16 %v3223, %v3219
        %v4868 = vpack.c.b16 %v3224, %v3220
        %v4869 = vpack.c.b16 %v3225, %v3221
        %v4870 = vpack.c.b16 %v3226, %v3222
        %v4871 = vpack.c.b16 %v3231, %v3227
        %v4872 = vpack.c.b16 %v3232, %v3228
        %v4873 = vpack.c.b16 %v3233, %v3229
        %v4874 = vpack.c.b16 %v3234, %v3230
        %v4875 = vpack.c.b16 %v3239, %v3235
        %v4876 = vpack.c.b16 %v3240, %v3236
        %v4877 = vpack.c.b16 %v3241, %v3237
        %v4878 = vpack.c.b16 %v3242, %v3238
        %v4879 = vpack.c.b16 %v3247, %v3243
        %v4880 = vpack.c.b16 %v3248, %v3244
        %v4881 = vpack.c.b16 %v3249, %v3245
        %v4882 = vpack.c.b16 %v3250, %v3246
        %v4883 = vpack.c.b16 %v3255, %v3251
        %v4884 = vpack.c.b16 %v3256, %v3252
        %v4885 = vpack.c.b16 %v3257, %v3253
        %v4886 = vpack.c.b16 %v3258, %v3254
        %v4887 = vpack.c.b16 %v3263, %v3259
        %v4888 = vpack.c.b16 %v3264, %v3260
        %v4889 = vpack.c.b16 %v3265, %v3261
        %v4890 = vpack.c.b16 %v3266, %v3262
        %v4891 = vpack.c.b16 %v3271, %v3267
        %v4892 = vpack.c.b16 %v3272, %v3268
        %v4893 = vpack.c.b16 %v3273, %v3269
        %v4894 = vpack.c.b16 %v3274, %v3270
        %v4895 = vpack.c.b16 %v3279, %v3275
        %v4896 = vpack.c.b16 %v3280, %v3276
        %v4897 = vpack.c.b16 %v3281, %v3277
        %v4898 = vpack.c.b16 %v3282, %v3278
        %v4899 = vpack.c.b16 %v3287, %v3283
        %v4900 = vpack.c.b16 %v3288, %v3284
        %v4901 = vpack.c.b16 %v3289, %v3285
        %v4902 = vpack.c.b16 %v3290, %v3286
        %v4903 = vpack.c.b16 %v3295, %v3291
        %v4904 = vpack.c.b16 %v3296, %v3292
        %v4905 = vpack.c.b16 %v3297, %v3293
        %v4906 = vpack.c.b16 %v3298, %v3294
        %v4907 = vpack.c.b16 %v3303, %v3299
        %v4908 = vpack.c.b16 %v3304, %v3300
        %v4909 = vpack.c.b16 %v3305, %v3301
        %v4910 = vpack.c.b16 %v3306, %v3302
        %v4911 = vpack.c.b16 %v3311, %v3307
        %v4912 = vpack.c.b16 %v3312, %v3308
        %v4913 = vpack.c.b16 %v3313, %v3309
        %v4914 = vpack.c.b16 %v3314, %v3310
        %v4915 = vpack.c.b16 %v3319, %v3315
        %v4916 = vpack.c.b16 %v3320, %v3316
        %v4917 = vpack.c.b16 %v3321, %v3317
        %v4918 = vpack.c.b16 %v3322, %v3318
        %v4919 = vpack.c.b16 %v3327, %v3323
        %v4920 = vpack.c.b16 %v3328, %v3324
        %v4921 = vpack.c.b16 %v3329, %v3325
        %v4922 = vpack.c.b16 %v3330, %v3326
        %v4923 = vpack.c.b16 %v3335, %v3331
        %v4924 = vpack.c.b16 %v3336, %v3332
        %v4925 = vpack.c.b16 %v3337, %v3333
        %v4926 = vpack.c.b16 %v3338, %v3334
        %v4927 = vpack.c.b16 %v3343, %v3339
        %v4928 = vpack.c.b16 %v3344, %v3340
        %v4929 = vpack.c.b16 %v3345, %v3341
        %v4930 = vpack.c.b16 %v3346, %v3342
        %v4931 = vpack.c.b16 %v3351, %v3347
        %v4932 = vpack.c.b16 %v3352, %v3348
        %v4933 = vpack.c.b16 %v3353, %v3349
        %v4934 = vpack.c.b16 %v3354, %v3350
        %v4935 = vpack.c.b16 %v3359, %v3355
        %v4936 = vpack.c.b16 %v3360, %v3356
        %v4937 = vpack.c.b16 %v3361, %v3357
        %v4938 = vpack.c.b16 %v3362, %v3358
        %v4939 = vpack.c.b16 %v3367, %v3363
        %v4940 = vpack.c.b16 %v3368, %v3364
        %v4941 = vpack.c.b16 %v3369, %v3365
        %v4942 = vpack.c.b16 %v3370, %v3366
        %v4943 = vpack.c.b16 %v3375, %v3371
        %v4944 = vpack.c.b16 %v3376, %v3372
        %v4945 = vpack.c.b16 %v3377, %v3373
        %v4946 = vpack.c.b16 %v3378, %v3374
        %v4947 = vpack.c.b16 %v3383, %v3379
        %v4948 = vpack.c.b16 %v3384, %v3380
        %v4949 = vpack.c.b16 %v3385, %v3381
        %v4950 = vpack.c.b16 %v3386, %v3382
        %v4951 = vpack.c.b16 %v3391, %v3387
        %v4952 = vpack.c.b16 %v3392, %v3388
        %v4953 = vpack.c.b16 %v3393, %v3389
        %v4954 = vpack.c.b16 %v3394, %v3390
        %v4955 = vpack.c.b16 %v3399, %v3395
        %v4956 = vpack.c.b16 %v3400, %v3396
        %v4957 = vpack.c.b16 %v3401, %v3397
        %v4958 = vpack.c.b16 %v3402, %v3398
        %v4959 = vpack.c.b16 %v3407, %v3403
        %v4960 = vpack.c.b16 %v3408, %v3404
        %v4961 = vpack.c.b16 %v3409, %v3405
        %v4962 = vpack.c.b16 %v3410, %v3406
        %v4963 = vpack.c.b16 %v3415, %v3411
        %v4964 = vpack.c.b16 %v3416, %v3412
        %v4965 = vpack.c.b16 %v3417, %v3413
        %v4966 = vpack.c.b16 %v3418, %v3414
        %v4967 = vpack.c.b16 %v3423, %v3419
        %v4968 = vpack.c.b16 %v3424, %v3420
        %v4969 = vpack.c.b16 %v3425, %v3421
        %v4970 = vpack.c.b16 %v3426, %v3422
        %v4971 = vpack.c.b16 %v3431, %v3427
        %v4972 = vpack.c.b16 %v3432, %v3428
        %v4973 = vpack.c.b16 %v3433, %v3429
        %v4974 = vpack.c.b16 %v3434, %v3430
        %v4975 = vpack.c.b16 %v3439, %v3435
        %v4976 = vpack.c.b16 %v3440, %v3436
        %v4977 = vpack.c.b16 %v3441, %v3437
        %v4978 = vpack.c.b16 %v3442, %v3438
        %v4979 = vpack.c.b16 %v3447, %v3443
        %v4980 = vpack.c.b16 %v3448, %v3444
        %v4981 = vpack.c.b16 %v3449, %v3445
        %v4982 = vpack.c.b16 %v3450, %v3446
        %v4983 = vpack.c.b16 %v3455, %v3451
        %v4984 = vpack.c.b16 %v3456, %v3452
        %v4985 = vpack.c.b16 %v3457, %v3453
        %v4986 = vpack.c.b16 %v3458, %v3454
        %v4987 = vpack.c.b16 %v3463, %v3459
        %v4988 = vpack.c.b16 %v3464, %v3460
        %v4989 = vpack.c.b16 %v3465, %v3461
        %v4990 = vpack.c.b16 %v3466, %v3462
        %v4991 = vpack.c.b16 %v3471, %v3467
        %v4992 = vpack.c.b16 %v3472, %v3468
        %v4993 = vpack.c.b16 %v3473, %v3469
        %v4994 = vpack.c.b16 %v3474, %v3470
        %v4995 = vpack.c.b16 %v3479, %v3475
        %v4996 = vpack.c.b16 %v3480, %v3476
        %v4997 = vpack.c.b16 %v3481, %v3477
        %v4998 = vpack.c.b16 %v3482, %v3478
        %v4999 = vpack.c.b16 %v3487, %v3483
        %v5000 = vpack.c.b16 %v3488, %v3484
        %v5001 = vpack.c.b16 %v3489, %v3485
        %v5002 = vpack.c.b16 %v3490, %v3486
        %v5003 = vpack.c.b16 %v3495, %v3491
        %v5004 = vpack.c.b16 %v3496, %v3492
        %v5005 = vpack.c.b16 %v3497, %v3493
        %v5006 = vpack.c.b16 %v3498, %v3494
        %v5007 = vpack.c.b16 %v3503, %v3499
        %v5008 = vpack.c.b16 %v3504, %v3500
        %v5009 = vpack.c.b16 %v3505, %v3501
        %v5010 = vpack.c.b16 %v3506, %v3502
        %v5011 = vpack.c.b16 %v3511, %v3507
        %v5012 = vpack.c.b16 %v3512, %v3508
        %v5013 = vpack.c.b16 %v3513, %v3509
        %v5014 = vpack.c.b16 %v3514, %v3510
        %v5015 = vpack.c.b16 %v3519, %v3515
        %v5016 = vpack.c.b16 %v3520, %v3516
        %v5017 = vpack.c.b16 %v3521, %v3517
        %v5018 = vpack.c.b16 %v3522, %v3518
        %v5019 = vpack.c.b16 %v3527, %v3523
        %v5020 = vpack.c.b16 %v3528, %v3524
        %v5021 = vpack.c.b16 %v3529, %v3525
        %v5022 = vpack.c.b16 %v3530, %v3526
        %v5023 = vpack.c.b16 %v3535, %v3531
        %v5024 = vpack.c.b16 %v3536, %v3532
        %v5025 = vpack.c.b16 %v3537, %v3533
        %v5026 = vpack.c.b16 %v3538, %v3534
        %v5027 = vpack.c.b16 %v3543, %v3539
        %v5028 = vpack.c.b16 %v3544, %v3540
        %v5029 = vpack.c.b16 %v3545, %v3541
        %v5030 = vpack.c.b16 %v3546, %v3542
        %v5031 = vpack.c.b16 %v3551, %v3547
        %v5032 = vpack.c.b16 %v3552, %v3548
        %v5033 = vpack.c.b16 %v3553, %v3549
        %v5034 = vpack.c.b16 %v3554, %v3550
        %v5035 = vpack.c.b16 %v3559, %v3555
        %v5036 = vpack.c.b16 %v3560, %v3556
        %v5037 = vpack.c.b16 %v3561, %v3557
        %v5038 = vpack.c.b16 %v3562, %v3558
        %v5039 = vpack.c.b16 %v3567, %v3563
        %v5040 = vpack.c.b16 %v3568, %v3564
        %v5041 = vpack.c.b16 %v3569, %v3565
        %v5042 = vpack.c.b16 %v3570, %v3566
        %v5043 = vpack.c.b16 %v3575, %v3571
        %v5044 = vpack.c.b16 %v3576, %v3572
        %v5045 = vpack.c.b16 %v3577, %v3573
        %v5046 = vpack.c.b16 %v3578, %v3574
        %v5047 = vpack.c.b16 %v3583, %v3579
        %v5048 = vpack.c.b16 %v3584, %v3580
        %v5049 = vpack.c.b16 %v3585, %v3581
        %v5050 = vpack.c.b16 %v3586, %v3582
        %v5051 = vpack.c.b16 %v3591, %v3587
        %v5052 = vpack.c.b16 %v3592, %v3588
        %v5053 = vpack.c.b16 %v3593, %v3589
        %v5054 = vpack.c.b16 %v3594, %v3590
        %v5055 = vpack.c.b16 %v3599, %v3595
        %v5056 = vpack.c.b16 %v3600, %v3596
        %v5057 = vpack.c.b16 %v3601, %v3597
        %v5058 = vpack.c.b16 %v3602, %v3598
        %v5059 = vpack.c.b16 %v3607, %v3603
        %v5060 = vpack.c.b16 %v3608, %v3604
        %v5061 = vpack.c.b16 %v3609, %v3605
        %v5062 = vpack.c.b16 %v3610, %v3606
        %v5063 = vpack.c.b16 %v3615, %v3611
        %v5064 = vpack.c.b16 %v3616, %v3612
        %v5065 = vpack.c.b16 %v3617, %v3613
        %v5066 = vpack.c.b16 %v3618, %v3614
        %v5067 = vpack.c.b16 %v3623, %v3619
        %v5068 = vpack.c.b16 %v3624, %v3620
        %v5069 = vpack.c.b16 %v3625, %v3621
        %v5070 = vpack.c.b16 %v3626, %v3622
        %v5071 = vpack.c.b16 %v3631, %v3627
        %v5072 = vpack.c.b16 %v3632, %v3628
        %v5073 = vpack.c.b16 %v3633, %v3629
        %v5074 = vpack.c.b16 %v3634, %v3630
        %v5075 = vpack.c.b16 %v3639, %v3635
        %v5076 = vpack.c.b16 %v3640, %v3636
        %v5077 = vpack.c.b16 %v3641, %v3637
        %v5078 = vpack.c.b16 %v3642, %v3638
        %v5079 = vpack.c.b16 %v3647, %v3643
        %v5080 = vpack.c.b16 %v3648, %v3644
        %v5081 = vpack.c.b16 %v3649, %v3645
        %v5082 = vpack.c.b16 %v3650, %v3646
        %v5083 = vpack.c.b16 %v3655, %v3651
        %v5084 = vpack.c.b16 %v3656, %v3652
        %v5085 = vpack.c.b16 %v3657, %v3653
        %v5086 = vpack.c.b16 %v3658, %v3654
        %v5087 = vpack.c.b16 %v3663, %v3659
        %v5088 = vpack.c.b16 %v3664, %v3660
        %v5089 = vpack.c.b16 %v3665, %v3661
        %v5090 = vpack.c.b16 %v3666, %v3662
        %v5091 = vpack.c.b16 %v3671, %v3667
        %v5092 = vpack.c.b16 %v3672, %v3668
        %v5093 = vpack.c.b16 %v3673, %v3669
        %v5094 = vpack.c.b16 %v3674, %v3670
        %v5095 = vpack.c.b16 %v3679, %v3675
        %v5096 = vpack.c.b16 %v3680, %v3676
        %v5097 = vpack.c.b16 %v3681, %v3677
        %v5098 = vpack.c.b16 %v3682, %v3678
        %v5099 = vpack.c.b16 %v3687, %v3683
        %v5100 = vpack.c.b16 %v3688, %v3684
        %v5101 = vpack.c.b16 %v3689, %v3685
        %v5102 = vpack.c.b16 %v3690, %v3686
        %v5103 = vpack.c.b16 %v3695, %v3691
        %v5104 = vpack.c.b16 %v3696, %v3692
        %v5105 = vpack.c.b16 %v3697, %v3693
        %v5106 = vpack.c.b16 %v3698, %v3694
        %v5107 = vpack.c.b16 %v3703, %v3699
        %v5108 = vpack.c.b16 %v3704, %v3700
        %v5109 = vpack.c.b16 %v3705, %v3701
        %v5110 = vpack.c.b16 %v3706, %v3702
        %v5111 = vpack.c.b16 %v3711, %v3707
        %v5112 = vpack.c.b16 %v3712, %v3708
        %v5113 = vpack.c.b16 %v3713, %v3709
        %v5114 = vpack.c.b16 %v3714, %v3710
        %v5115 = vpack.c.b16 %v3719, %v3715
        %v5116 = vpack.c.b16 %v3720, %v3716
        %v5117 = vpack.c.b16 %v3721, %v3717
        %v5118 = vpack.c.b16 %v3722, %v3718
        %v5119 = vpack.c.b16 %v3727, %v3723
        %v5120 = vpack.c.b16 %v3728, %v3724
        %v5121 = vpack.c.b16 %v3729, %v3725
        %v5122 = vpack.c.b16 %v3730, %v3726
        %v5123 = vpack.c.b16 %v3735, %v3731
        %v5124 = vpack.c.b16 %v3736, %v3732
        %v5125 = vpack.c.b16 %v3737, %v3733
        %v5126 = vpack.c.b16 %v3738, %v3734
        %v5127 = vpack.c.b16 %v3743, %v3739
        %v5128 = vpack.c.b16 %v3744, %v3740
        %v5129 = vpack.c.b16 %v3745, %v3741
        %v5130 = vpack.c.b16 %v3746, %v3742
        %v5131 = vpack.c.b16 %v3751, %v3747
        %v5132 = vpack.c.b16 %v3752, %v3748
        %v5133 = vpack.c.b16 %v3753, %v3749
        %v5134 = vpack.c.b16 %v3754, %v3750
        %v5135 = vpack.c.b16 %v3759, %v3755
        %v5136 = vpack.c.b16 %v3760, %v3756
        %v5137 = vpack.c.b16 %v3761, %v3757
        %v5138 = vpack.c.b16 %v3762, %v3758
        %v5139 = vpack.c.b16 %v3767, %v3763
        %v5140 = vpack.c.b16 %v3768, %v3764
        %v5141 = vpack.c.b16 %v3769, %v3765
        %v5142 = vpack.c.b16 %v3770, %v3766
        %v5143 = vpack.c.b16 %v3775, %v3771
        %v5144 = vpack.c.b16 %v3776, %v3772
        %v5145 = vpack.c.b16 %v3777, %v3773
        %v5146 = vpack.c.b16 %v3778, %v3774
        %v5147 = vpack.c.b16 %v3783, %v3779
        %v5148 = vpack.c.b16 %v3784, %v3780
        %v5149 = vpack.c.b16 %v3785, %v3781
        %v5150 = vpack.c.b16 %v3786, %v3782
        %v5151 = vpack.c.b16 %v3791, %v3787
        %v5152 = vpack.c.b16 %v3792, %v3788
        %v5153 = vpack.c.b16 %v3793, %v3789
        %v5154 = vpack.c.b16 %v3794, %v3790
        %v5155 = vpack.c.b16 %v3799, %v3795
        %v5156 = vpack.c.b16 %v3800, %v3796
        %v5157 = vpack.c.b16 %v3801, %v3797
        %v5158 = vpack.c.b16 %v3802, %v3798
        %v5159 = vpack.c.b16 %v3807, %v3803
        %v5160 = vpack.c.b16 %v3808, %v3804
        %v5161 = vpack.c.b16 %v3809, %v3805
        %v5162 = vpack.c.b16 %v3810, %v3806
        %v5163 = vpack.c.b16 %v3815, %v3811
        %v5164 = vpack.c.b16 %v3816, %v3812
        %v5165 = vpack.c.b16 %v3817, %v3813
        %v5166 = vpack.c.b16 %v3818, %v3814
        %v5167 = vpack.c.b16 %v3823, %v3819
        %v5168 = vpack.c.b16 %v3824, %v3820
        %v5169 = vpack.c.b16 %v3825, %v3821
        %v5170 = vpack.c.b16 %v3826, %v3822
        %v5171 = vpack.c.b16 %v3831, %v3827
        %v5172 = vpack.c.b16 %v3832, %v3828
        %v5173 = vpack.c.b16 %v3833, %v3829
        %v5174 = vpack.c.b16 %v3834, %v3830
        %v5175 = vpack.c.b16 %v3839, %v3835
        %v5176 = vpack.c.b16 %v3840, %v3836
        %v5177 = vpack.c.b16 %v3841, %v3837
        %v5178 = vpack.c.b16 %v3842, %v3838
        %v5179 = vpack.c.b16 %v3847, %v3843
        %v5180 = vpack.c.b16 %v3848, %v3844
        %v5181 = vpack.c.b16 %v3849, %v3845
        %v5182 = vpack.c.b16 %v3850, %v3846
        %v5183 = vpack.c.b16 %v3855, %v3851
        %v5184 = vpack.c.b16 %v3856, %v3852
        %v5185 = vpack.c.b16 %v3857, %v3853
        %v5186 = vpack.c.b16 %v3858, %v3854
        %v5187 = vpack.c.b16 %v3863, %v3859
        %v5188 = vpack.c.b16 %v3864, %v3860
        %v5189 = vpack.c.b16 %v3865, %v3861
        %v5190 = vpack.c.b16 %v3866, %v3862
        %v5191 = vpack.c.b16 %v3871, %v3867
        %v5192 = vpack.c.b16 %v3872, %v3868
        %v5193 = vpack.c.b16 %v3873, %v3869
        %v5194 = vpack.c.b16 %v3874, %v3870
        %v5195 = vpack.c.b16 %v3879, %v3875
        %v5196 = vpack.c.b16 %v3880, %v3876
        %v5197 = vpack.c.b16 %v3881, %v3877
        %v5198 = vpack.c.b16 %v3882, %v3878
        %v5199 = vpack.c.b16 %v3887, %v3883
        %v5200 = vpack.c.b16 %v3888, %v3884
        %v5201 = vpack.c.b16 %v3889, %v3885
        %v5202 = vpack.c.b16 %v3890, %v3886
        %v5203 = vpack.c.b16 %v3895, %v3891
        %v5204 = vpack.c.b16 %v3896, %v3892
        %v5205 = vpack.c.b16 %v3897, %v3893
        %v5206 = vpack.c.b16 %v3898, %v3894
        %v5207 = vpack.c.b16 %v3903, %v3899
        %v5208 = vpack.c.b16 %v3904, %v3900
        %v5209 = vpack.c.b16 %v3905, %v3901
        %v5210 = vpack.c.b16 %v3906, %v3902
        %v5211 = vpack.c.b16 %v3911, %v3907
        %v5212 = vpack.c.b16 %v3912, %v3908
        %v5213 = vpack.c.b16 %v3913, %v3909
        %v5214 = vpack.c.b16 %v3914, %v3910
        %v5215 = vpack.c.b16 %v3919, %v3915
        %v5216 = vpack.c.b16 %v3920, %v3916
        %v5217 = vpack.c.b16 %v3921, %v3917
        %v5218 = vpack.c.b16 %v3922, %v3918
        %v5219 = vpack.c.b16 %v3927, %v3923
        %v5220 = vpack.c.b16 %v3928, %v3924
        %v5221 = vpack.c.b16 %v3929, %v3925
        %v5222 = vpack.c.b16 %v3930, %v3926
        %v5223 = vpack.c.b16 %v3935, %v3931
        %v5224 = vpack.c.b16 %v3936, %v3932
        %v5225 = vpack.c.b16 %v3937, %v3933
        %v5226 = vpack.c.b16 %v3938, %v3934
        %v5227 = vpack.c.b16 %v3943, %v3939
        %v5228 = vpack.c.b16 %v3944, %v3940
        %v5229 = vpack.c.b16 %v3945, %v3941
        %v5230 = vpack.c.b16 %v3946, %v3942
        %v5231 = vpack.c.b16 %v3951, %v3947
        %v5232 = vpack.c.b16 %v3952, %v3948
        %v5233 = vpack.c.b16 %v3953, %v3949
        %v5234 = vpack.c.b16 %v3954, %v3950
        %v5235 = vpack.c.b16 %v3959, %v3955
        %v5236 = vpack.c.b16 %v3960, %v3956
        %v5237 = vpack.c.b16 %v3961, %v3957
        %v5238 = vpack.c.b16 %v3962, %v3958
        %v5239 = vpack.c.b16 %v3967, %v3963
        %v5240 = vpack.c.b16 %v3968, %v3964
        %v5241 = vpack.c.b16 %v3969, %v3965
        %v5242 = vpack.c.b16 %v3970, %v3966
        %v5243 = vpack.c.b16 %v3975, %v3971
        %v5244 = vpack.c.b16 %v3976, %v3972
        %v5245 = vpack.c.b16 %v3977, %v3973
        %v5246 = vpack.c.b16 %v3978, %v3974
        %v5247 = vpack.c.b16 %v3983, %v3979
        %v5248 = vpack.c.b16 %v3984, %v3980
        %v5249 = vpack.c.b16 %v3985, %v3981
        %v5250 = vpack.c.b16 %v3986, %v3982
        %v5251 = vpack.c.b16 %v3991, %v3987
        %v5252 = vpack.c.b16 %v3992, %v3988
        %v5253 = vpack.c.b16 %v3993, %v3989
        %v5254 = vpack.c.b16 %v3994, %v3990
        %v5255 = vpack.c.b16 %v3999, %v3995
        %v5256 = vpack.c.b16 %v4000, %v3996
        %v5257 = vpack.c.b16 %v4001, %v3997
        %v5258 = vpack.c.b16 %v4002, %v3998
        %v5259 = vpack.c.b16 %v4007, %v4003
        %v5260 = vpack.c.b16 %v4008, %v4004
        %v5261 = vpack.c.b16 %v4009, %v4005
        %v5262 = vpack.c.b16 %v4010, %v4006
        %v5263 = vpack.c.b16 %v4015, %v4011
        %v5264 = vpack.c.b16 %v4016, %v4012
        %v5265 = vpack.c.b16 %v4017, %v4013
        %v5266 = vpack.c.b16 %v4018, %v4014
        %v5267 = vpack.c.b16 %v4023, %v4019
        %v5268 = vpack.c.b16 %v4024, %v4020
        %v5269 = vpack.c.b16 %v4025, %v4021
        %v5270 = vpack.c.b16 %v4026, %v4022
        %v5271 = vpack.c.b16 %v4031, %v4027
        %v5272 = vpack.c.b16 %v4032, %v4028
        %v5273 = vpack.c.b16 %v4033, %v4029
        %v5274 = vpack.c.b16 %v4034, %v4030
        %v5275 = vpack.c.b16 %v4039, %v4035
        %v5276 = vpack.c.b16 %v4040, %v4036
        %v5277 = vpack.c.b16 %v4041, %v4037
        %v5278 = vpack.c.b16 %v4042, %v4038
        %v5279 = vpack.c.b16 %v4047, %v4043
        %v5280 = vpack.c.b16 %v4048, %v4044
        %v5281 = vpack.c.b16 %v4049, %v4045
        %v5282 = vpack.c.b16 %v4050, %v4046
        %v5283 = vpack.c.b16 %v4055, %v4051
        %v5284 = vpack.c.b16 %v4056, %v4052
        %v5285 = vpack.c.b16 %v4057, %v4053
        %v5286 = vpack.c.b16 %v4058, %v4054
        %v5287 = vpack.c.b16 %v4063, %v4059
        %v5288 = vpack.c.b16 %v4064, %v4060
        %v5289 = vpack.c.b16 %v4065, %v4061
        %v5290 = vpack.c.b16 %v4066, %v4062
        %v5291 = vpack.c.b16 %v4071, %v4067
        %v5292 = vpack.c.b16 %v4072, %v4068
        %v5293 = vpack.c.b16 %v4073, %v4069
        %v5294 = vpack.c.b16 %v4074, %v4070
        %v5295 = vpack.c.b16 %v4079, %v4075
        %v5296 = vpack.c.b16 %v4080, %v4076
        %v5297 = vpack.c.b16 %v4081, %v4077
        %v5298 = vpack.c.b16 %v4082, %v4078
        %v5299 = vpack.c.b16 %v4087, %v4083
        %v5300 = vpack.c.b16 %v4088, %v4084
        %v5301 = vpack.c.b16 %v4089, %v4085
        %v5302 = vpack.c.b16 %v4090, %v4086
        %v5303 = vpack.c.b16 %v4095, %v4091
        %v5304 = vpack.c.b16 %v4096, %v4092
        %v5305 = vpack.c.b16 %v4097, %v4093
        %v5306 = vpack.c.b16 %v4098, %v4094
        %v5307 = vpack.c.b16 %v4103, %v4099
        %v5308 = vpack.c.b16 %v4104, %v4100
        %v5309 = vpack.c.b16 %v4105, %v4101
        %v5310 = vpack.c.b16 %v4106, %v4102
        %v5311 = vpack.c.b16 %v4111, %v4107
        %v5312 = vpack.c.b16 %v4112, %v4108
        %v5313 = vpack.c.b16 %v4113, %v4109
        %v5314 = vpack.c.b16 %v4114, %v4110
        %v5315 = vpack.c.b16 %v4119, %v4115
        %v5316 = vpack.c.b16 %v4120, %v4116
        %v5317 = vpack.c.b16 %v4121, %v4117
        %v5318 = vpack.c.b16 %v4122, %v4118
        %v5319 = vpack.c.b16 %v4127, %v4123
        %v5320 = vpack.c.b16 %v4128, %v4124
        %v5321 = vpack.c.b16 %v4129, %v4125
        %v5322 = vpack.c.b16 %v4130, %v4126
        %v5323 = vpack.c.b16 %v4135, %v4131
        %v5324 = vpack.c.b16 %v4136, %v4132
        %v5325 = vpack.c.b16 %v4137, %v4133
        %v5326 = vpack.c.b16 %v4138, %v4134
        %v5327 = vpack.c.b16 %v4143, %v4139
        %v5328 = vpack.c.b16 %v4144, %v4140
        %v5329 = vpack.c.b16 %v4145, %v4141
        %v5330 = vpack.c.b16 %v4146, %v4142
        %v5331 = vpack.c.b16 %v4151, %v4147
        %v5332 = vpack.c.b16 %v4152, %v4148
        %v5333 = vpack.c.b16 %v4153, %v4149
        %v5334 = vpack.c.b16 %v4154, %v4150
        %v5335 = vpack.c.b16 %v4159, %v4155
        %v5336 = vpack.c.b16 %v4160, %v4156
        %v5337 = vpack.c.b16 %v4161, %v4157
        %v5338 = vpack.c.b16 %v4162, %v4158
        %v5339 = vpack.c.b16 %v4167, %v4163
        %v5340 = vpack.c.b16 %v4168, %v4164
        %v5341 = vpack.c.b16 %v4169, %v4165
        %v5342 = vpack.c.b16 %v4170, %v4166
        %v5343 = vpack.c.b16 %v4175, %v4171
        %v5344 = vpack.c.b16 %v4176, %v4172
        %v5345 = vpack.c.b16 %v4177, %v4173
        %v5346 = vpack.c.b16 %v4178, %v4174
        %v5347 = vpack.c.b16 %v4183, %v4179
        %v5348 = vpack.c.b16 %v4184, %v4180
        %v5349 = vpack.c.b16 %v4185, %v4181
        %v5350 = vpack.c.b16 %v4186, %v4182
        %v5351 = vpack.c.b16 %v4191, %v4187
        %v5352 = vpack.c.b16 %v4192, %v4188
        %v5353 = vpack.c.b16 %v4193, %v4189
        %v5354 = vpack.c.b16 %v4194, %v4190
        %v5355 = vpack.c.b16 %v4199, %v4195
        %v5356 = vpack.c.b16 %v4200, %v4196
        %v5357 = vpack.c.b16 %v4201, %v4197
        %v5358 = vpack.c.b16 %v4202, %v4198
        %v5359 = vpack.c.b16 %v4207, %v4203
        %v5360 = vpack.c.b16 %v4208, %v4204
        %v5361 = vpack.c.b16 %v4209, %v4205
        %v5362 = vpack.c.b16 %v4210, %v4206
        %v5363 = vpack.c.b16 %v4215, %v4211
        %v5364 = vpack.c.b16 %v4216, %v4212
        %v5365 = vpack.c.b16 %v4217, %v4213
        %v5366 = vpack.c.b16 %v4218, %v4214
        %v5367 = vpack.c.b16 %v4223, %v4219
        %v5368 = vpack.c.b16 %v4224, %v4220
        %v5369 = vpack.c.b16 %v4225, %v4221
        %v5370 = vpack.c.b16 %v4226, %v4222
        %v5371 = vpack.c.b16 %v4231, %v4227
        %v5372 = vpack.c.b16 %v4232, %v4228
        %v5373 = vpack.c.b16 %v4233, %v4229
        %v5374 = vpack.c.b16 %v4234, %v4230
        %v5375 = vpack.c.b16 %v4239, %v4235
        %v5376 = vpack.c.b16 %v4240, %v4236
        %v5377 = vpack.c.b16 %v4241, %v4237
        %v5378 = vpack.c.b16 %v4242, %v4238
        %v5379 = vpack.c.b16 %v4247, %v4243
        %v5380 = vpack.c.b16 %v4248, %v4244
        %v5381 = vpack.c.b16 %v4249, %v4245
        %v5382 = vpack.c.b16 %v4250, %v4246
        %v5383 = vpack.c.b16 %v4255, %v4251
        %v5384 = vpack.c.b16 %v4256, %v4252
        %v5385 = vpack.c.b16 %v4257, %v4253
        %v5386 = vpack.c.b16 %v4258, %v4254
        %v5387 = vpack.c.b16 %v4263, %v4259
        %v5388 = vpack.c.b16 %v4264, %v4260
        %v5389 = vpack.c.b16 %v4265, %v4261
        %v5390 = vpack.c.b16 %v4266, %v4262
        %v5391 = vpack.c.b16 %v4271, %v4267
        %v5392 = vpack.c.b16 %v4272, %v4268
        %v5393 = vpack.c.b16 %v4273, %v4269
        %v5394 = vpack.c.b16 %v4274, %v4270
        %v5395 = vpack.c.b16 %v4279, %v4275
        %v5396 = vpack.c.b16 %v4280, %v4276
        %v5397 = vpack.c.b16 %v4281, %v4277
        %v5398 = vpack.c.b16 %v4282, %v4278
        %v5399 = vpack.c.b16 %v4287, %v4283
        %v5400 = vpack.c.b16 %v4288, %v4284
        %v5401 = vpack.c.b16 %v4289, %v4285
        %v5402 = vpack.c.b16 %v4290, %v4286
        %v5403 = vpack.c.b16 %v4295, %v4291
        %v5404 = vpack.c.b16 %v4296, %v4292
        %v5405 = vpack.c.b16 %v4297, %v4293
        %v5406 = vpack.c.b16 %v4298, %v4294
        %v5407 = vpack.c.b16 %v4303, %v4299
        %v5408 = vpack.c.b16 %v4304, %v4300
        %v5409 = vpack.c.b16 %v4305, %v4301
        %v5410 = vpack.c.b16 %v4306, %v4302
        %v5411 = vpack.c.b16 %v4311, %v4307
        %v5412 = vpack.c.b16 %v4312, %v4308
        %v5413 = vpack.c.b16 %v4313, %v4309
        %v5414 = vpack.c.b16 %v4314, %v4310
        %v5415 = vpack.c.b16 %v4319, %v4315
        %v5416 = vpack.c.b16 %v4320, %v4316
        %v5417 = vpack.c.b16 %v4321, %v4317
        %v5418 = vpack.c.b16 %v4322, %v4318
        %v5419 = vpack.c.b16 %v4327, %v4323
        %v5420 = vpack.c.b16 %v4328, %v4324
        %v5421 = vpack.c.b16 %v4329, %v4325
        %v5422 = vpack.c.b16 %v4330, %v4326
        %v5423 = vpack.c.b16 %v4335, %v4331
        %v5424 = vpack.c.b16 %v4336, %v4332
        %v5425 = vpack.c.b16 %v4337, %v4333
        %v5426 = vpack.c.b16 %v4338, %v4334
        %v5427 = vpack.c.b16 %v4343, %v4339
        %v5428 = vpack.c.b16 %v4344, %v4340
        %v5429 = vpack.c.b16 %v4345, %v4341
        %v5430 = vpack.c.b16 %v4346, %v4342
        %v5431 = vpack.c.b16 %v4351, %v4347
        %v5432 = vpack.c.b16 %v4352, %v4348
        %v5433 = vpack.c.b16 %v4353, %v4349
        %v5434 = vpack.c.b16 %v4354, %v4350
        %v5435 = vpack.c.b16 %v4359, %v4355
        %v5436 = vpack.c.b16 %v4360, %v4356
        %v5437 = vpack.c.b16 %v4361, %v4357
        %v5438 = vpack.c.b16 %v4362, %v4358
        %v5439 = vpack.c.b16 %v4367, %v4363
        %v5440 = vpack.c.b16 %v4368, %v4364
        %v5441 = vpack.c.b16 %v4369, %v4365
        %v5442 = vpack.c.b16 %v4370, %v4366
        %v5443 = vpack.c.b16 %v4375, %v4371
        %v5444 = vpack.c.b16 %v4376, %v4372
        %v5445 = vpack.c.b16 %v4377, %v4373
        %v5446 = vpack.c.b16 %v4378, %v4374
        %v5447 = vpack.c.b16 %v4383, %v4379
        %v5448 = vpack.c.b16 %v4384, %v4380
        %v5449 = vpack.c.b16 %v4385, %v4381
        %v5450 = vpack.c.b16 %v4386, %v4382
        %v5451 = vpack.c.b16 %v4391, %v4387
        %v5452 = vpack.c.b16 %v4392, %v4388
        %v5453 = vpack.c.b16 %v4393, %v4389
        %v5454 = vpack.c.b16 %v4394, %v4390
        %v5455 = vpack.c.b16 %v4399, %v4395
        %v5456 = vpack.c.b16 %v4400, %v4396
        %v5457 = vpack.c.b16 %v4401, %v4397
        %v5458 = vpack.c.b16 %v4402, %v4398
        %v5459 = vpack.c.b16 %v4407, %v4403
        %v5460 = vpack.c.b16 %v4408, %v4404
        %v5461 = vpack.c.b16 %v4409, %v4405
        %v5462 = vpack.c.b16 %v4410, %v4406
        %v5463 = vpack.c.b16 %v4415, %v4411
        %v5464 = vpack.c.b16 %v4416, %v4412
        %v5465 = vpack.c.b16 %v4417, %v4413
        %v5466 = vpack.c.b16 %v4418, %v4414
        %v5467 = vpack.c.b16 %v4423, %v4419
        %v5468 = vpack.c.b16 %v4424, %v4420
        %v5469 = vpack.c.b16 %v4425, %v4421
        %v5470 = vpack.c.b16 %v4426, %v4422
        %v5471 = vpack.c.b16 %v4431, %v4427
        %v5472 = vpack.c.b16 %v4432, %v4428
        %v5473 = vpack.c.b16 %v4433, %v4429
        %v5474 = vpack.c.b16 %v4434, %v4430
        %v5475 = vpack.c.b16 %v4439, %v4435
        %v5476 = vpack.c.b16 %v4440, %v4436
        %v5477 = vpack.c.b16 %v4441, %v4437
        %v5478 = vpack.c.b16 %v4442, %v4438
        %v5479 = vpack.c.b16 %v4447, %v4443
        %v5480 = vpack.c.b16 %v4448, %v4444
        %v5481 = vpack.c.b16 %v4449, %v4445
        %v5482 = vpack.c.b16 %v4450, %v4446
        %v5483 = vpack.c.b16 %v4455, %v4451
        %v5484 = vpack.c.b16 %v4456, %v4452
        %v5485 = vpack.c.b16 %v4457, %v4453
        %v5486 = vpack.c.b16 %v4458, %v4454
        %v5487 = vpack.c.b16 %v4463, %v4459
        %v5488 = vpack.c.b16 %v4464, %v4460
        %v5489 = vpack.c.b16 %v4465, %v4461
        %v5490 = vpack.c.b16 %v4466, %v4462
        %6515 = vmatpush.bf16.msra.mxu0 %v4495
        %6516 = vmatpush.bf16.msra.mxu0 %v4491
        %6517 = vmatpush.bf16.msra.mxu0 %v4487
        %6518 = vmatpush.bf16.msra.mxu0 %v4483
        %6519 = vmatpush.bf16.msra.mxu0 %v4479
        %6520 = vmatpush.bf16.msra.mxu0 %v4475
        %6521 = vmatpush.bf16.msra.mxu0 %v4471
        %6522 = vmatpush.bf16.msra.mxu0 %v4467
        %6523 = vmatmul.bf16.gmra.mxu0 %v1325
        %v6524 = vpop.f32.mrf.mxu0
        %v6525 = vadd.f32 0.0, %v6524
        %v6526 = vpop.f32.mrf.mxu0
        %6527 = vdwg.mxu0
        %6528 = vmatpush.bf16.msra.mxu0 %v4527
        %6529 = vmatpush.bf16.msra.mxu0 %v4523
        %6530 = vmatpush.bf16.msra.mxu0 %v4519
        %6531 = vmatpush.bf16.msra.mxu0 %v4515
        %6532 = vmatpush.bf16.msra.mxu0 %v4511
        %6533 = vmatpush.bf16.msra.mxu0 %v4507
        %6534 = vmatpush.bf16.msra.mxu0 %v4503
        %6535 = vmatpush.bf16.msra.mxu0 %v4499
        %6536 = vmatmul.bf16.gmra.mxu0 %v1326
        %v6537 = vpop.f32.mrf.mxu0
        %v6538 = vadd.f32 %v6525, %v6537
        %v6539 = vpop.f32.mrf.mxu0
        %6540 = vdwg.mxu0
        %6541 = vmatpush.bf16.msra.mxu0 %v4559
        %6542 = vmatpush.bf16.msra.mxu0 %v4555
        %6543 = vmatpush.bf16.msra.mxu0 %v4551
        %6544 = vmatpush.bf16.msra.mxu0 %v4547
        %6545 = vmatpush.bf16.msra.mxu0 %v4543
        %6546 = vmatpush.bf16.msra.mxu0 %v4539
        %6547 = vmatpush.bf16.msra.mxu0 %v4535
        %6548 = vmatpush.bf16.msra.mxu0 %v4531
        %6549 = vmatmul.bf16.gmra.mxu0 %v1327
        %v6550 = vpop.f32.mrf.mxu0
        %v6551 = vadd.f32 %v6538, %v6550
        %v6552 = vpop.f32.mrf.mxu0
        %6553 = vdwg.mxu0
        %6554 = vmatpush.bf16.msra.mxu0 %v4591
        %6555 = vmatpush.bf16.msra.mxu0 %v4587
        %6556 = vmatpush.bf16.msra.mxu0 %v4583
        %6557 = vmatpush.bf16.msra.mxu0 %v4579
        %6558 = vmatpush.bf16.msra.mxu0 %v4575
        %6559 = vmatpush.bf16.msra.mxu0 %v4571
        %6560 = vmatpush.bf16.msra.mxu0 %v4567
        %6561 = vmatpush.bf16.msra.mxu0 %v4563
        %6562 = vmatmul.bf16.gmra.mxu0 %v1328
        %v6563 = vpop.f32.mrf.mxu0
        %v6564 = vadd.f32 %v6551, %v6563
        %v6565 = vpop.f32.mrf.mxu0
        %6566 = vdwg.mxu0
        %6567 = vmatpush.bf16.msra.mxu0 %v4623
        %6568 = vmatpush.bf16.msra.mxu0 %v4619
        %6569 = vmatpush.bf16.msra.mxu0 %v4615
        %6570 = vmatpush.bf16.msra.mxu0 %v4611
        %6571 = vmatpush.bf16.msra.mxu0 %v4607
        %6572 = vmatpush.bf16.msra.mxu0 %v4603
        %6573 = vmatpush.bf16.msra.mxu0 %v4599
        %6574 = vmatpush.bf16.msra.mxu0 %v4595
        %6575 = vmatmul.bf16.gmra.mxu0 %v1329
        %v6576 = vpop.f32.mrf.mxu0
        %v6577 = vadd.f32 %v6564, %v6576
        %v6578 = vpop.f32.mrf.mxu0
        %6579 = vdwg.mxu0
        %6580 = vmatpush.bf16.msra.mxu0 %v4655
        %6581 = vmatpush.bf16.msra.mxu0 %v4651
        %6582 = vmatpush.bf16.msra.mxu0 %v4647
        %6583 = vmatpush.bf16.msra.mxu0 %v4643
        %6584 = vmatpush.bf16.msra.mxu0 %v4639
        %6585 = vmatpush.bf16.msra.mxu0 %v4635
        %6586 = vmatpush.bf16.msra.mxu0 %v4631
        %6587 = vmatpush.bf16.msra.mxu0 %v4627
        %6588 = vmatmul.bf16.gmra.mxu0 %v1330
        %v6589 = vpop.f32.mrf.mxu0
        %v6590 = vadd.f32 %v6577, %v6589
        %v6591 = vpop.f32.mrf.mxu0
        %6592 = vdwg.mxu0
        %6593 = vmatpush.bf16.msra.mxu0 %v4687
        %6594 = vmatpush.bf16.msra.mxu0 %v4683
        %6595 = vmatpush.bf16.msra.mxu0 %v4679
        %6596 = vmatpush.bf16.msra.mxu0 %v4675
        %6597 = vmatpush.bf16.msra.mxu0 %v4671
        %6598 = vmatpush.bf16.msra.mxu0 %v4667
        %6599 = vmatpush.bf16.msra.mxu0 %v4663
        %6600 = vmatpush.bf16.msra.mxu0 %v4659
        %6601 = vmatmul.bf16.gmra.mxu0 %v1331
        %v6602 = vpop.f32.mrf.mxu0
        %v6603 = vadd.f32 %v6590, %v6602
        %v6604 = vpop.f32.mrf.mxu0
        %6605 = vdwg.mxu0
        %6606 = vmatpush.bf16.msra.mxu0 %v4719
        %6607 = vmatpush.bf16.msra.mxu0 %v4715
        %6608 = vmatpush.bf16.msra.mxu0 %v4711
        %6609 = vmatpush.bf16.msra.mxu0 %v4707
        %6610 = vmatpush.bf16.msra.mxu0 %v4703
        %6611 = vmatpush.bf16.msra.mxu0 %v4699
        %6612 = vmatpush.bf16.msra.mxu0 %v4695
        %6613 = vmatpush.bf16.msra.mxu0 %v4691
        %6614 = vmatmul.bf16.gmra.mxu0 %v1332
        %v6615 = vpop.f32.mrf.mxu0
        %v6616 = vadd.f32 %v6603, %v6615
        %v6617 = vpop.f32.mrf.mxu0
        %6618 = vdwg.mxu0
        %6619 = vmatpush.bf16.msra.mxu0 %v4751
        %6620 = vmatpush.bf16.msra.mxu0 %v4747
        %6621 = vmatpush.bf16.msra.mxu0 %v4743
        %6622 = vmatpush.bf16.msra.mxu0 %v4739
        %6623 = vmatpush.bf16.msra.mxu0 %v4735
        %6624 = vmatpush.bf16.msra.mxu0 %v4731
        %6625 = vmatpush.bf16.msra.mxu0 %v4727
        %6626 = vmatpush.bf16.msra.mxu0 %v4723
        %6627 = vmatmul.bf16.gmra.mxu0 %v1335
        %v6628 = vpop.f32.mrf.mxu0
        %v6629 = vadd.f32 %v6616, %v6628
        %v6630 = vpop.f32.mrf.mxu0
        %6631 = vdwg.mxu0
        %6632 = vmatpush.bf16.msra.mxu0 %v4783
        %6633 = vmatpush.bf16.msra.mxu0 %v4779
        %6634 = vmatpush.bf16.msra.mxu0 %v4775
        %6635 = vmatpush.bf16.msra.mxu0 %v4771
        %6636 = vmatpush.bf16.msra.mxu0 %v4767
        %6637 = vmatpush.bf16.msra.mxu0 %v4763
        %6638 = vmatpush.bf16.msra.mxu0 %v4759
        %6639 = vmatpush.bf16.msra.mxu0 %v4755
        %6640 = vmatmul.bf16.gmra.mxu0 %v1336
        %v6641 = vpop.f32.mrf.mxu0
        %v6642 = vadd.f32 %v6629, %v6641
        %v6643 = vpop.f32.mrf.mxu0
        %6644 = vdwg.mxu0
        %6645 = vmatpush.bf16.msra.mxu0 %v4815
        %6646 = vmatpush.bf16.msra.mxu0 %v4811
        %6647 = vmatpush.bf16.msra.mxu0 %v4807
        %6648 = vmatpush.bf16.msra.mxu0 %v4803
        %6649 = vmatpush.bf16.msra.mxu0 %v4799
        %6650 = vmatpush.bf16.msra.mxu0 %v4795
        %6651 = vmatpush.bf16.msra.mxu0 %v4791
        %6652 = vmatpush.bf16.msra.mxu0 %v4787
        %6653 = vmatmul.bf16.gmra.mxu0 %v1337
        %v6654 = vpop.f32.mrf.mxu0
        %v6655 = vadd.f32 %v6642, %v6654
        %v6656 = vpop.f32.mrf.mxu0
        %6657 = vdwg.mxu0
        %6658 = vmatpush.bf16.msra.mxu0 %v4847
        %6659 = vmatpush.bf16.msra.mxu0 %v4843
        %6660 = vmatpush.bf16.msra.mxu0 %v4839
        %6661 = vmatpush.bf16.msra.mxu0 %v4835
        %6662 = vmatpush.bf16.msra.mxu0 %v4831
        %6663 = vmatpush.bf16.msra.mxu0 %v4827
        %6664 = vmatpush.bf16.msra.mxu0 %v4823
        %6665 = vmatpush.bf16.msra.mxu0 %v4819
        %6666 = vmatmul.bf16.gmra.mxu0 %v1338
        %v6667 = vpop.f32.mrf.mxu0
        %v6668 = vadd.f32 %v6655, %v6667
        %v6669 = vpop.f32.mrf.mxu0
        %6670 = vdwg.mxu0
        %6671 = vmatpush.bf16.msra.mxu0 %v4879
        %6672 = vmatpush.bf16.msra.mxu0 %v4875
        %6673 = vmatpush.bf16.msra.mxu0 %v4871
        %6674 = vmatpush.bf16.msra.mxu0 %v4867
        %6675 = vmatpush.bf16.msra.mxu0 %v4863
        %6676 = vmatpush.bf16.msra.mxu0 %v4859
        %6677 = vmatpush.bf16.msra.mxu0 %v4855
        %6678 = vmatpush.bf16.msra.mxu0 %v4851
        %6679 = vmatmul.bf16.gmra.mxu0 %v1339
        %v6680 = vpop.f32.mrf.mxu0
        %v6681 = vadd.f32 %v6668, %v6680
        %v6682 = vpop.f32.mrf.mxu0
        %6683 = vdwg.mxu0
        %6684 = vmatpush.bf16.msra.mxu0 %v4911
        %6685 = vmatpush.bf16.msra.mxu0 %v4907
        %6686 = vmatpush.bf16.msra.mxu0 %v4903
        %6687 = vmatpush.bf16.msra.mxu0 %v4899
        %6688 = vmatpush.bf16.msra.mxu0 %v4895
        %6689 = vmatpush.bf16.msra.mxu0 %v4891
        %6690 = vmatpush.bf16.msra.mxu0 %v4887
        %6691 = vmatpush.bf16.msra.mxu0 %v4883
        %6692 = vmatmul.bf16.gmra.mxu0 %v1340
        %v6693 = vpop.f32.mrf.mxu0
        %v6694 = vadd.f32 %v6681, %v6693
        %v6695 = vpop.f32.mrf.mxu0
        %6696 = vdwg.mxu0
        %6697 = vmatpush.bf16.msra.mxu0 %v4943
        %6698 = vmatpush.bf16.msra.mxu0 %v4939
        %6699 = vmatpush.bf16.msra.mxu0 %v4935
        %6700 = vmatpush.bf16.msra.mxu0 %v4931
        %6701 = vmatpush.bf16.msra.mxu0 %v4927
        %6702 = vmatpush.bf16.msra.mxu0 %v4923
        %6703 = vmatpush.bf16.msra.mxu0 %v4919
        %6704 = vmatpush.bf16.msra.mxu0 %v4915
        %6705 = vmatmul.bf16.gmra.mxu0 %v1341
        %v6706 = vpop.f32.mrf.mxu0
        %v6707 = vadd.f32 %v6694, %v6706
        %v6708 = vpop.f32.mrf.mxu0
        %6709 = vdwg.mxu0
        %6710 = vmatpush.bf16.msra.mxu0 %v4975
        %6711 = vmatpush.bf16.msra.mxu0 %v4971
        %6712 = vmatpush.bf16.msra.mxu0 %v4967
        %6713 = vmatpush.bf16.msra.mxu0 %v4963
        %6714 = vmatpush.bf16.msra.mxu0 %v4959
        %6715 = vmatpush.bf16.msra.mxu0 %v4955
        %6716 = vmatpush.bf16.msra.mxu0 %v4951
        %6717 = vmatpush.bf16.msra.mxu0 %v4947
        %6718 = vmatmul.bf16.gmra.mxu0 %v1342
        %v6719 = vpop.f32.mrf.mxu0
        %v6720 = vadd.f32 %v6707, %v6719
        %v6721 = vpop.f32.mrf.mxu0
        %6722 = vdwg.mxu0
        %6723 = vmatpush.bf16.msra.mxu0 %v5007
        %6724 = vmatpush.bf16.msra.mxu0 %v5003
        %6725 = vmatpush.bf16.msra.mxu0 %v4999
        %6726 = vmatpush.bf16.msra.mxu0 %v4995
        %6727 = vmatpush.bf16.msra.mxu0 %v4991
        %6728 = vmatpush.bf16.msra.mxu0 %v4987
        %6729 = vmatpush.bf16.msra.mxu0 %v4983
        %6730 = vmatpush.bf16.msra.mxu0 %v4979
        %6731 = vmatmul.bf16.gmra.mxu0 %v1345
        %v6732 = vpop.f32.mrf.mxu0
        %v6733 = vadd.f32 %v6720, %v6732
        %v6734 = vpop.f32.mrf.mxu0
        %6735 = vdwg.mxu0
        %6736 = vmatpush.bf16.msra.mxu0 %v5039
        %6737 = vmatpush.bf16.msra.mxu0 %v5035
        %6738 = vmatpush.bf16.msra.mxu0 %v5031
        %6739 = vmatpush.bf16.msra.mxu0 %v5027
        %6740 = vmatpush.bf16.msra.mxu0 %v5023
        %6741 = vmatpush.bf16.msra.mxu0 %v5019
        %6742 = vmatpush.bf16.msra.mxu0 %v5015
        %6743 = vmatpush.bf16.msra.mxu0 %v5011
        %6744 = vmatmul.bf16.gmra.mxu0 %v1346
        %v6745 = vpop.f32.mrf.mxu0
        %v6746 = vadd.f32 %v6733, %v6745
        %v6747 = vpop.f32.mrf.mxu0
        %6748 = vdwg.mxu0
        %6749 = vmatpush.bf16.msra.mxu0 %v5071
        %6750 = vmatpush.bf16.msra.mxu0 %v5067
        %6751 = vmatpush.bf16.msra.mxu0 %v5063
        %6752 = vmatpush.bf16.msra.mxu0 %v5059
        %6753 = vmatpush.bf16.msra.mxu0 %v5055
        %6754 = vmatpush.bf16.msra.mxu0 %v5051
        %6755 = vmatpush.bf16.msra.mxu0 %v5047
        %6756 = vmatpush.bf16.msra.mxu0 %v5043
        %6757 = vmatmul.bf16.gmra.mxu0 %v1347
        %v6758 = vpop.f32.mrf.mxu0
        %v6759 = vadd.f32 %v6746, %v6758
        %v6760 = vpop.f32.mrf.mxu0
        %6761 = vdwg.mxu0
        %6762 = vmatpush.bf16.msra.mxu0 %v5103
        %6763 = vmatpush.bf16.msra.mxu0 %v5099
        %6764 = vmatpush.bf16.msra.mxu0 %v5095
        %6765 = vmatpush.bf16.msra.mxu0 %v5091
        %6766 = vmatpush.bf16.msra.mxu0 %v5087
        %6767 = vmatpush.bf16.msra.mxu0 %v5083
        %6768 = vmatpush.bf16.msra.mxu0 %v5079
        %6769 = vmatpush.bf16.msra.mxu0 %v5075
        %6770 = vmatmul.bf16.gmra.mxu0 %v1348
        %v6771 = vpop.f32.mrf.mxu0
        %v6772 = vadd.f32 %v6759, %v6771
        %v6773 = vpop.f32.mrf.mxu0
        %6774 = vdwg.mxu0
        %6775 = vmatpush.bf16.msra.mxu0 %v5135
        %6776 = vmatpush.bf16.msra.mxu0 %v5131
        %6777 = vmatpush.bf16.msra.mxu0 %v5127
        %6778 = vmatpush.bf16.msra.mxu0 %v5123
        %6779 = vmatpush.bf16.msra.mxu0 %v5119
        %6780 = vmatpush.bf16.msra.mxu0 %v5115
        %6781 = vmatpush.bf16.msra.mxu0 %v5111
        %6782 = vmatpush.bf16.msra.mxu0 %v5107
        %6783 = vmatmul.bf16.gmra.mxu0 %v1349
        %v6784 = vpop.f32.mrf.mxu0
        %v6785 = vadd.f32 %v6772, %v6784
        %v6786 = vpop.f32.mrf.mxu0
        %6787 = vdwg.mxu0
        %6788 = vmatpush.bf16.msra.mxu0 %v5167
        %6789 = vmatpush.bf16.msra.mxu0 %v5163
        %6790 = vmatpush.bf16.msra.mxu0 %v5159
        %6791 = vmatpush.bf16.msra.mxu0 %v5155
        %6792 = vmatpush.bf16.msra.mxu0 %v5151
        %6793 = vmatpush.bf16.msra.mxu0 %v5147
        %6794 = vmatpush.bf16.msra.mxu0 %v5143
        %6795 = vmatpush.bf16.msra.mxu0 %v5139
        %6796 = vmatmul.bf16.gmra.mxu0 %v1350
        %v6797 = vpop.f32.mrf.mxu0
        %v6798 = vadd.f32 %v6785, %v6797
        %v6799 = vpop.f32.mrf.mxu0
        %6800 = vdwg.mxu0
        %6801 = vmatpush.bf16.msra.mxu0 %v5199
        %6802 = vmatpush.bf16.msra.mxu0 %v5195
        %6803 = vmatpush.bf16.msra.mxu0 %v5191
        %6804 = vmatpush.bf16.msra.mxu0 %v5187
        %6805 = vmatpush.bf16.msra.mxu0 %v5183
        %6806 = vmatpush.bf16.msra.mxu0 %v5179
        %6807 = vmatpush.bf16.msra.mxu0 %v5175
        %6808 = vmatpush.bf16.msra.mxu0 %v5171
        %6809 = vmatmul.bf16.gmra.mxu0 %v1351
        %v6810 = vpop.f32.mrf.mxu0
        %v6811 = vadd.f32 %v6798, %v6810
        %v6812 = vpop.f32.mrf.mxu0
        %6813 = vdwg.mxu0
        %6814 = vmatpush.bf16.msra.mxu0 %v5231
        %6815 = vmatpush.bf16.msra.mxu0 %v5227
        %6816 = vmatpush.bf16.msra.mxu0 %v5223
        %6817 = vmatpush.bf16.msra.mxu0 %v5219
        %6818 = vmatpush.bf16.msra.mxu0 %v5215
        %6819 = vmatpush.bf16.msra.mxu0 %v5211
        %6820 = vmatpush.bf16.msra.mxu0 %v5207
        %6821 = vmatpush.bf16.msra.mxu0 %v5203
        %6822 = vmatmul.bf16.gmra.mxu0 %v1352
        %v6823 = vpop.f32.mrf.mxu0
        %v6824 = vadd.f32 %v6811, %v6823
        %v6825 = vpop.f32.mrf.mxu0
        %6826 = vdwg.mxu0
        %6827 = vmatpush.bf16.msra.mxu0 %v5263
        %6828 = vmatpush.bf16.msra.mxu0 %v5259
        %6829 = vmatpush.bf16.msra.mxu0 %v5255
        %6830 = vmatpush.bf16.msra.mxu0 %v5251
        %6831 = vmatpush.bf16.msra.mxu0 %v5247
        %6832 = vmatpush.bf16.msra.mxu0 %v5243
        %6833 = vmatpush.bf16.msra.mxu0 %v5239
        %6834 = vmatpush.bf16.msra.mxu0 %v5235
        %6835 = vmatmul.bf16.gmra.mxu0 %v1355
        %v6836 = vpop.f32.mrf.mxu0
        %v6837 = vadd.f32 %v6824, %v6836
        %v6838 = vpop.f32.mrf.mxu0
        %6839 = vdwg.mxu0
        %6840 = vmatpush.bf16.msra.mxu0 %v5295
        %6841 = vmatpush.bf16.msra.mxu0 %v5291
        %6842 = vmatpush.bf16.msra.mxu0 %v5287
        %6843 = vmatpush.bf16.msra.mxu0 %v5283
        %6844 = vmatpush.bf16.msra.mxu0 %v5279
        %6845 = vmatpush.bf16.msra.mxu0 %v5275
        %6846 = vmatpush.bf16.msra.mxu0 %v5271
        %6847 = vmatpush.bf16.msra.mxu0 %v5267
        %6848 = vmatmul.bf16.gmra.mxu0 %v1356
        %v6849 = vpop.f32.mrf.mxu0
        %v6850 = vadd.f32 %v6837, %v6849
        %v6851 = vpop.f32.mrf.mxu0
        %6852 = vdwg.mxu0
        %6853 = vmatpush.bf16.msra.mxu0 %v5327
        %6854 = vmatpush.bf16.msra.mxu0 %v5323
        %6855 = vmatpush.bf16.msra.mxu0 %v5319
        %6856 = vmatpush.bf16.msra.mxu0 %v5315
        %6857 = vmatpush.bf16.msra.mxu0 %v5311
        %6858 = vmatpush.bf16.msra.mxu0 %v5307
        %6859 = vmatpush.bf16.msra.mxu0 %v5303
        %6860 = vmatpush.bf16.msra.mxu0 %v5299
        %6861 = vmatmul.bf16.gmra.mxu0 %v1357
        %v6862 = vpop.f32.mrf.mxu0
        %v6863 = vadd.f32 %v6850, %v6862
        %v6864 = vpop.f32.mrf.mxu0
        %6865 = vdwg.mxu0
        %6866 = vmatpush.bf16.msra.mxu0 %v5359
        %6867 = vmatpush.bf16.msra.mxu0 %v5355
        %6868 = vmatpush.bf16.msra.mxu0 %v5351
        %6869 = vmatpush.bf16.msra.mxu0 %v5347
        %6870 = vmatpush.bf16.msra.mxu0 %v5343
        %6871 = vmatpush.bf16.msra.mxu0 %v5339
        %6872 = vmatpush.bf16.msra.mxu0 %v5335
        %6873 = vmatpush.bf16.msra.mxu0 %v5331
        %6874 = vmatmul.bf16.gmra.mxu0 %v1358
        %v6875 = vpop.f32.mrf.mxu0
        %v6876 = vadd.f32 %v6863, %v6875
        %v6877 = vpop.f32.mrf.mxu0
        %6878 = vdwg.mxu0
        %6879 = vmatpush.bf16.msra.mxu0 %v5391
        %6880 = vmatpush.bf16.msra.mxu0 %v5387
        %6881 = vmatpush.bf16.msra.mxu0 %v5383
        %6882 = vmatpush.bf16.msra.mxu0 %v5379
        %6883 = vmatpush.bf16.msra.mxu0 %v5375
        %6884 = vmatpush.bf16.msra.mxu0 %v5371
        %6885 = vmatpush.bf16.msra.mxu0 %v5367
        %6886 = vmatpush.bf16.msra.mxu0 %v5363
        %6887 = vmatmul.bf16.gmra.mxu0 %v1359
        %v6888 = vpop.f32.mrf.mxu0
        %v6889 = vadd.f32 %v6876, %v6888
        %v6890 = vpop.f32.mrf.mxu0
        %6891 = vdwg.mxu0
        %6892 = vmatpush.bf16.msra.mxu0 %v5423
        %6893 = vmatpush.bf16.msra.mxu0 %v5419
        %6894 = vmatpush.bf16.msra.mxu0 %v5415
        %6895 = vmatpush.bf16.msra.mxu0 %v5411
        %6896 = vmatpush.bf16.msra.mxu0 %v5407
        %6897 = vmatpush.bf16.msra.mxu0 %v5403
        %6898 = vmatpush.bf16.msra.mxu0 %v5399
        %6899 = vmatpush.bf16.msra.mxu0 %v5395
        %6900 = vmatmul.bf16.gmra.mxu0 %v1360
        %v6901 = vpop.f32.mrf.mxu0
        %v6902 = vadd.f32 %v6889, %v6901
        %v6903 = vpop.f32.mrf.mxu0
        %6904 = vdwg.mxu0
        %6905 = vmatpush.bf16.msra.mxu0 %v5455
        %6906 = vmatpush.bf16.msra.mxu0 %v5451
        %6907 = vmatpush.bf16.msra.mxu0 %v5447
        %6908 = vmatpush.bf16.msra.mxu0 %v5443
        %6909 = vmatpush.bf16.msra.mxu0 %v5439
        %6910 = vmatpush.bf16.msra.mxu0 %v5435
        %6911 = vmatpush.bf16.msra.mxu0 %v5431
        %6912 = vmatpush.bf16.msra.mxu0 %v5427
        %6913 = vmatmul.bf16.gmra.mxu0 %v1361
        %v6914 = vpop.f32.mrf.mxu0
        %v6915 = vadd.f32 %v6902, %v6914
        %v6916 = vpop.f32.mrf.mxu0
        %6917 = vdwg.mxu0
        %6918 = vmatpush.bf16.msra.mxu0 %v5487
        %6919 = vmatpush.bf16.msra.mxu0 %v5483
        %6920 = vmatpush.bf16.msra.mxu0 %v5479
        %6921 = vmatpush.bf16.msra.mxu0 %v5475
        %6922 = vmatpush.bf16.msra.mxu0 %v5471
        %6923 = vmatpush.bf16.msra.mxu0 %v5467
        %6924 = vmatpush.bf16.msra.mxu0 %v5463
        %6925 = vmatpush.bf16.msra.mxu0 %v5459
        %6926 = vmatmul.bf16.gmra.mxu0 %v1362
        %v6927 = vpop.f32.mrf.mxu0
        %v6928 = vadd.f32 %v6915, %v6927
        %v6929 = vpop.f32.mrf.mxu0
        %6930 = vdwg.mxu0
        %6931 = vmatpush.bf16.msra.mxu0 %v4496
        %6932 = vmatpush.bf16.msra.mxu0 %v4492
        %6933 = vmatpush.bf16.msra.mxu0 %v4488
        %6934 = vmatpush.bf16.msra.mxu0 %v4484
        %6935 = vmatpush.bf16.msra.mxu0 %v4480
        %6936 = vmatpush.bf16.msra.mxu0 %v4476
        %6937 = vmatpush.bf16.msra.mxu0 %v4472
        %6938 = vmatpush.bf16.msra.mxu0 %v4468
        %6939 = vmatmul.bf16.gmra.mxu0 %v1325
        %v6940 = vpop.f32.mrf.mxu0
        %v6941 = vadd.f32 0.0, %v6940
        %v6942 = vpop.f32.mrf.mxu0
        %6943 = vdwg.mxu0
        %6944 = vmatpush.bf16.msra.mxu0 %v4528
        %6945 = vmatpush.bf16.msra.mxu0 %v4524
        %6946 = vmatpush.bf16.msra.mxu0 %v4520
        %6947 = vmatpush.bf16.msra.mxu0 %v4516
        %6948 = vmatpush.bf16.msra.mxu0 %v4512
        %6949 = vmatpush.bf16.msra.mxu0 %v4508
        %6950 = vmatpush.bf16.msra.mxu0 %v4504
        %6951 = vmatpush.bf16.msra.mxu0 %v4500
        %6952 = vmatmul.bf16.gmra.mxu0 %v1326
        %v6953 = vpop.f32.mrf.mxu0
        %v6954 = vadd.f32 %v6941, %v6953
        %v6955 = vpop.f32.mrf.mxu0
        %6956 = vdwg.mxu0
        %6957 = vmatpush.bf16.msra.mxu0 %v4560
        %6958 = vmatpush.bf16.msra.mxu0 %v4556
        %6959 = vmatpush.bf16.msra.mxu0 %v4552
        %6960 = vmatpush.bf16.msra.mxu0 %v4548
        %6961 = vmatpush.bf16.msra.mxu0 %v4544
        %6962 = vmatpush.bf16.msra.mxu0 %v4540
        %6963 = vmatpush.bf16.msra.mxu0 %v4536
        %6964 = vmatpush.bf16.msra.mxu0 %v4532
        %6965 = vmatmul.bf16.gmra.mxu0 %v1327
        %v6966 = vpop.f32.mrf.mxu0
        %v6967 = vadd.f32 %v6954, %v6966
        %v6968 = vpop.f32.mrf.mxu0
        %6969 = vdwg.mxu0
        %6970 = vmatpush.bf16.msra.mxu0 %v4592
        %6971 = vmatpush.bf16.msra.mxu0 %v4588
        %6972 = vmatpush.bf16.msra.mxu0 %v4584
        %6973 = vmatpush.bf16.msra.mxu0 %v4580
        %6974 = vmatpush.bf16.msra.mxu0 %v4576
        %6975 = vmatpush.bf16.msra.mxu0 %v4572
        %6976 = vmatpush.bf16.msra.mxu0 %v4568
        %6977 = vmatpush.bf16.msra.mxu0 %v4564
        %6978 = vmatmul.bf16.gmra.mxu0 %v1328
        %v6979 = vpop.f32.mrf.mxu0
        %v6980 = vadd.f32 %v6967, %v6979
        %v6981 = vpop.f32.mrf.mxu0
        %6982 = vdwg.mxu0
        %6983 = vmatpush.bf16.msra.mxu0 %v4624
        %6984 = vmatpush.bf16.msra.mxu0 %v4620
        %6985 = vmatpush.bf16.msra.mxu0 %v4616
        %6986 = vmatpush.bf16.msra.mxu0 %v4612
        %6987 = vmatpush.bf16.msra.mxu0 %v4608
        %6988 = vmatpush.bf16.msra.mxu0 %v4604
        %6989 = vmatpush.bf16.msra.mxu0 %v4600
        %6990 = vmatpush.bf16.msra.mxu0 %v4596
        %6991 = vmatmul.bf16.gmra.mxu0 %v1329
        %v6992 = vpop.f32.mrf.mxu0
        %v6993 = vadd.f32 %v6980, %v6992
        %v6994 = vpop.f32.mrf.mxu0
        %6995 = vdwg.mxu0
        %6996 = vmatpush.bf16.msra.mxu0 %v4656
        %6997 = vmatpush.bf16.msra.mxu0 %v4652
        %6998 = vmatpush.bf16.msra.mxu0 %v4648
        %6999 = vmatpush.bf16.msra.mxu0 %v4644
        %7000 = vmatpush.bf16.msra.mxu0 %v4640
        %7001 = vmatpush.bf16.msra.mxu0 %v4636
        %7002 = vmatpush.bf16.msra.mxu0 %v4632
        %7003 = vmatpush.bf16.msra.mxu0 %v4628
        %7004 = vmatmul.bf16.gmra.mxu0 %v1330
        %v7005 = vpop.f32.mrf.mxu0
        %v7006 = vadd.f32 %v6993, %v7005
        %v7007 = vpop.f32.mrf.mxu0
        %7008 = vdwg.mxu0
        %7009 = vmatpush.bf16.msra.mxu0 %v4688
        %7010 = vmatpush.bf16.msra.mxu0 %v4684
        %7011 = vmatpush.bf16.msra.mxu0 %v4680
        %7012 = vmatpush.bf16.msra.mxu0 %v4676
        %7013 = vmatpush.bf16.msra.mxu0 %v4672
        %7014 = vmatpush.bf16.msra.mxu0 %v4668
        %7015 = vmatpush.bf16.msra.mxu0 %v4664
        %7016 = vmatpush.bf16.msra.mxu0 %v4660
        %7017 = vmatmul.bf16.gmra.mxu0 %v1331
        %v7018 = vpop.f32.mrf.mxu0
        %v7019 = vadd.f32 %v7006, %v7018
        %v7020 = vpop.f32.mrf.mxu0
        %7021 = vdwg.mxu0
        %7022 = vmatpush.bf16.msra.mxu0 %v4720
        %7023 = vmatpush.bf16.msra.mxu0 %v4716
        %7024 = vmatpush.bf16.msra.mxu0 %v4712
        %7025 = vmatpush.bf16.msra.mxu0 %v4708
        %7026 = vmatpush.bf16.msra.mxu0 %v4704
        %7027 = vmatpush.bf16.msra.mxu0 %v4700
        %7028 = vmatpush.bf16.msra.mxu0 %v4696
        %7029 = vmatpush.bf16.msra.mxu0 %v4692
        %7030 = vmatmul.bf16.gmra.mxu0 %v1332
        %v7031 = vpop.f32.mrf.mxu0
        %v7032 = vadd.f32 %v7019, %v7031
        %v7033 = vpop.f32.mrf.mxu0
        %7034 = vdwg.mxu0
        %7035 = vmatpush.bf16.msra.mxu0 %v4752
        %7036 = vmatpush.bf16.msra.mxu0 %v4748
        %7037 = vmatpush.bf16.msra.mxu0 %v4744
        %7038 = vmatpush.bf16.msra.mxu0 %v4740
        %7039 = vmatpush.bf16.msra.mxu0 %v4736
        %7040 = vmatpush.bf16.msra.mxu0 %v4732
        %7041 = vmatpush.bf16.msra.mxu0 %v4728
        %7042 = vmatpush.bf16.msra.mxu0 %v4724
        %7043 = vmatmul.bf16.gmra.mxu0 %v1335
        %v7044 = vpop.f32.mrf.mxu0
        %v7045 = vadd.f32 %v7032, %v7044
        %v7046 = vpop.f32.mrf.mxu0
        %7047 = vdwg.mxu0
        %7048 = vmatpush.bf16.msra.mxu0 %v4784
        %7049 = vmatpush.bf16.msra.mxu0 %v4780
        %7050 = vmatpush.bf16.msra.mxu0 %v4776
        %7051 = vmatpush.bf16.msra.mxu0 %v4772
        %7052 = vmatpush.bf16.msra.mxu0 %v4768
        %7053 = vmatpush.bf16.msra.mxu0 %v4764
        %7054 = vmatpush.bf16.msra.mxu0 %v4760
        %7055 = vmatpush.bf16.msra.mxu0 %v4756
        %7056 = vmatmul.bf16.gmra.mxu0 %v1336
        %v7057 = vpop.f32.mrf.mxu0
        %v7058 = vadd.f32 %v7045, %v7057
        %v7059 = vpop.f32.mrf.mxu0
        %7060 = vdwg.mxu0
        %7061 = vmatpush.bf16.msra.mxu0 %v4816
        %7062 = vmatpush.bf16.msra.mxu0 %v4812
        %7063 = vmatpush.bf16.msra.mxu0 %v4808
        %7064 = vmatpush.bf16.msra.mxu0 %v4804
        %7065 = vmatpush.bf16.msra.mxu0 %v4800
        %7066 = vmatpush.bf16.msra.mxu0 %v4796
        %7067 = vmatpush.bf16.msra.mxu0 %v4792
        %7068 = vmatpush.bf16.msra.mxu0 %v4788
        %7069 = vmatmul.bf16.gmra.mxu0 %v1337
        %v7070 = vpop.f32.mrf.mxu0
        %v7071 = vadd.f32 %v7058, %v7070
        %v7072 = vpop.f32.mrf.mxu0
        %7073 = vdwg.mxu0
        %7074 = vmatpush.bf16.msra.mxu0 %v4848
        %7075 = vmatpush.bf16.msra.mxu0 %v4844
        %7076 = vmatpush.bf16.msra.mxu0 %v4840
        %7077 = vmatpush.bf16.msra.mxu0 %v4836
        %7078 = vmatpush.bf16.msra.mxu0 %v4832
        %7079 = vmatpush.bf16.msra.mxu0 %v4828
        %7080 = vmatpush.bf16.msra.mxu0 %v4824
        %7081 = vmatpush.bf16.msra.mxu0 %v4820
        %7082 = vmatmul.bf16.gmra.mxu0 %v1338
        %v7083 = vpop.f32.mrf.mxu0
        %v7084 = vadd.f32 %v7071, %v7083
        %v7085 = vpop.f32.mrf.mxu0
        %7086 = vdwg.mxu0
        %7087 = vmatpush.bf16.msra.mxu0 %v4880
        %7088 = vmatpush.bf16.msra.mxu0 %v4876
        %7089 = vmatpush.bf16.msra.mxu0 %v4872
        %7090 = vmatpush.bf16.msra.mxu0 %v4868
        %7091 = vmatpush.bf16.msra.mxu0 %v4864
        %7092 = vmatpush.bf16.msra.mxu0 %v4860
        %7093 = vmatpush.bf16.msra.mxu0 %v4856
        %7094 = vmatpush.bf16.msra.mxu0 %v4852
        %7095 = vmatmul.bf16.gmra.mxu0 %v1339
        %v7096 = vpop.f32.mrf.mxu0
        %v7097 = vadd.f32 %v7084, %v7096
        %v7098 = vpop.f32.mrf.mxu0
        %7099 = vdwg.mxu0
        %7100 = vmatpush.bf16.msra.mxu0 %v4912
        %7101 = vmatpush.bf16.msra.mxu0 %v4908
        %7102 = vmatpush.bf16.msra.mxu0 %v4904
        %7103 = vmatpush.bf16.msra.mxu0 %v4900
        %7104 = vmatpush.bf16.msra.mxu0 %v4896
        %7105 = vmatpush.bf16.msra.mxu0 %v4892
        %7106 = vmatpush.bf16.msra.mxu0 %v4888
        %7107 = vmatpush.bf16.msra.mxu0 %v4884
        %7108 = vmatmul.bf16.gmra.mxu0 %v1340
        %v7109 = vpop.f32.mrf.mxu0
        %v7110 = vadd.f32 %v7097, %v7109
        %v7111 = vpop.f32.mrf.mxu0
        %7112 = vdwg.mxu0
        %7113 = vmatpush.bf16.msra.mxu0 %v4944
        %7114 = vmatpush.bf16.msra.mxu0 %v4940
        %7115 = vmatpush.bf16.msra.mxu0 %v4936
        %7116 = vmatpush.bf16.msra.mxu0 %v4932
        %7117 = vmatpush.bf16.msra.mxu0 %v4928
        %7118 = vmatpush.bf16.msra.mxu0 %v4924
        %7119 = vmatpush.bf16.msra.mxu0 %v4920
        %7120 = vmatpush.bf16.msra.mxu0 %v4916
        %7121 = vmatmul.bf16.gmra.mxu0 %v1341
        %v7122 = vpop.f32.mrf.mxu0
        %v7123 = vadd.f32 %v7110, %v7122
        %v7124 = vpop.f32.mrf.mxu0
        %7125 = vdwg.mxu0
        %7126 = vmatpush.bf16.msra.mxu0 %v4976
        %7127 = vmatpush.bf16.msra.mxu0 %v4972
        %7128 = vmatpush.bf16.msra.mxu0 %v4968
        %7129 = vmatpush.bf16.msra.mxu0 %v4964
        %7130 = vmatpush.bf16.msra.mxu0 %v4960
        %7131 = vmatpush.bf16.msra.mxu0 %v4956
        %7132 = vmatpush.bf16.msra.mxu0 %v4952
        %7133 = vmatpush.bf16.msra.mxu0 %v4948
        %7134 = vmatmul.bf16.gmra.mxu0 %v1342
        %v7135 = vpop.f32.mrf.mxu0
        %v7136 = vadd.f32 %v7123, %v7135
        %v7137 = vpop.f32.mrf.mxu0
        %7138 = vdwg.mxu0
        %7139 = vmatpush.bf16.msra.mxu0 %v5008
        %7140 = vmatpush.bf16.msra.mxu0 %v5004
        %7141 = vmatpush.bf16.msra.mxu0 %v5000
        %7142 = vmatpush.bf16.msra.mxu0 %v4996
        %7143 = vmatpush.bf16.msra.mxu0 %v4992
        %7144 = vmatpush.bf16.msra.mxu0 %v4988
        %7145 = vmatpush.bf16.msra.mxu0 %v4984
        %7146 = vmatpush.bf16.msra.mxu0 %v4980
        %7147 = vmatmul.bf16.gmra.mxu0 %v1345
        %v7148 = vpop.f32.mrf.mxu0
        %v7149 = vadd.f32 %v7136, %v7148
        %v7150 = vpop.f32.mrf.mxu0
        %7151 = vdwg.mxu0
        %7152 = vmatpush.bf16.msra.mxu0 %v5040
        %7153 = vmatpush.bf16.msra.mxu0 %v5036
        %7154 = vmatpush.bf16.msra.mxu0 %v5032
        %7155 = vmatpush.bf16.msra.mxu0 %v5028
        %7156 = vmatpush.bf16.msra.mxu0 %v5024
        %7157 = vmatpush.bf16.msra.mxu0 %v5020
        %7158 = vmatpush.bf16.msra.mxu0 %v5016
        %7159 = vmatpush.bf16.msra.mxu0 %v5012
        %7160 = vmatmul.bf16.gmra.mxu0 %v1346
        %v7161 = vpop.f32.mrf.mxu0
        %v7162 = vadd.f32 %v7149, %v7161
        %v7163 = vpop.f32.mrf.mxu0
        %7164 = vdwg.mxu0
        %7165 = vmatpush.bf16.msra.mxu0 %v5072
        %7166 = vmatpush.bf16.msra.mxu0 %v5068
        %7167 = vmatpush.bf16.msra.mxu0 %v5064
        %7168 = vmatpush.bf16.msra.mxu0 %v5060
        %7169 = vmatpush.bf16.msra.mxu0 %v5056
        %7170 = vmatpush.bf16.msra.mxu0 %v5052
        %7171 = vmatpush.bf16.msra.mxu0 %v5048
        %7172 = vmatpush.bf16.msra.mxu0 %v5044
        %7173 = vmatmul.bf16.gmra.mxu0 %v1347
        %v7174 = vpop.f32.mrf.mxu0
        %v7175 = vadd.f32 %v7162, %v7174
        %v7176 = vpop.f32.mrf.mxu0
        %7177 = vdwg.mxu0
        %7178 = vmatpush.bf16.msra.mxu0 %v5104
        %7179 = vmatpush.bf16.msra.mxu0 %v5100
        %7180 = vmatpush.bf16.msra.mxu0 %v5096
        %7181 = vmatpush.bf16.msra.mxu0 %v5092
        %7182 = vmatpush.bf16.msra.mxu0 %v5088
        %7183 = vmatpush.bf16.msra.mxu0 %v5084
        %7184 = vmatpush.bf16.msra.mxu0 %v5080
        %7185 = vmatpush.bf16.msra.mxu0 %v5076
        %7186 = vmatmul.bf16.gmra.mxu0 %v1348
        %v7187 = vpop.f32.mrf.mxu0
        %v7188 = vadd.f32 %v7175, %v7187
        %v7189 = vpop.f32.mrf.mxu0
        %7190 = vdwg.mxu0
        %7191 = vmatpush.bf16.msra.mxu0 %v5136
        %7192 = vmatpush.bf16.msra.mxu0 %v5132
        %7193 = vmatpush.bf16.msra.mxu0 %v5128
        %7194 = vmatpush.bf16.msra.mxu0 %v5124
        %7195 = vmatpush.bf16.msra.mxu0 %v5120
        %7196 = vmatpush.bf16.msra.mxu0 %v5116
        %7197 = vmatpush.bf16.msra.mxu0 %v5112
        %7198 = vmatpush.bf16.msra.mxu0 %v5108
        %7199 = vmatmul.bf16.gmra.mxu0 %v1349
        %v7200 = vpop.f32.mrf.mxu0
        %v7201 = vadd.f32 %v7188, %v7200
        %v7202 = vpop.f32.mrf.mxu0
        %7203 = vdwg.mxu0
        %7204 = vmatpush.bf16.msra.mxu0 %v5168
        %7205 = vmatpush.bf16.msra.mxu0 %v5164
        %7206 = vmatpush.bf16.msra.mxu0 %v5160
        %7207 = vmatpush.bf16.msra.mxu0 %v5156
        %7208 = vmatpush.bf16.msra.mxu0 %v5152
        %7209 = vmatpush.bf16.msra.mxu0 %v5148
        %7210 = vmatpush.bf16.msra.mxu0 %v5144
        %7211 = vmatpush.bf16.msra.mxu0 %v5140
        %7212 = vmatmul.bf16.gmra.mxu0 %v1350
        %v7213 = vpop.f32.mrf.mxu0
        %v7214 = vadd.f32 %v7201, %v7213
        %v7215 = vpop.f32.mrf.mxu0
        %7216 = vdwg.mxu0
        %7217 = vmatpush.bf16.msra.mxu0 %v5200
        %7218 = vmatpush.bf16.msra.mxu0 %v5196
        %7219 = vmatpush.bf16.msra.mxu0 %v5192
        %7220 = vmatpush.bf16.msra.mxu0 %v5188
        %7221 = vmatpush.bf16.msra.mxu0 %v5184
        %7222 = vmatpush.bf16.msra.mxu0 %v5180
        %7223 = vmatpush.bf16.msra.mxu0 %v5176
        %7224 = vmatpush.bf16.msra.mxu0 %v5172
        %7225 = vmatmul.bf16.gmra.mxu0 %v1351
        %v7226 = vpop.f32.mrf.mxu0
        %v7227 = vadd.f32 %v7214, %v7226
        %v7228 = vpop.f32.mrf.mxu0
        %7229 = vdwg.mxu0
        %7230 = vmatpush.bf16.msra.mxu0 %v5232
        %7231 = vmatpush.bf16.msra.mxu0 %v5228
        %7232 = vmatpush.bf16.msra.mxu0 %v5224
        %7233 = vmatpush.bf16.msra.mxu0 %v5220
        %7234 = vmatpush.bf16.msra.mxu0 %v5216
        %7235 = vmatpush.bf16.msra.mxu0 %v5212
        %7236 = vmatpush.bf16.msra.mxu0 %v5208
        %7237 = vmatpush.bf16.msra.mxu0 %v5204
        %7238 = vmatmul.bf16.gmra.mxu0 %v1352
        %v7239 = vpop.f32.mrf.mxu0
        %v7240 = vadd.f32 %v7227, %v7239
        %v7241 = vpop.f32.mrf.mxu0
        %7242 = vdwg.mxu0
        %7243 = vmatpush.bf16.msra.mxu0 %v5264
        %7244 = vmatpush.bf16.msra.mxu0 %v5260
        %7245 = vmatpush.bf16.msra.mxu0 %v5256
        %7246 = vmatpush.bf16.msra.mxu0 %v5252
        %7247 = vmatpush.bf16.msra.mxu0 %v5248
        %7248 = vmatpush.bf16.msra.mxu0 %v5244
        %7249 = vmatpush.bf16.msra.mxu0 %v5240
        %7250 = vmatpush.bf16.msra.mxu0 %v5236
        %7251 = vmatmul.bf16.gmra.mxu0 %v1355
        %v7252 = vpop.f32.mrf.mxu0
        %v7253 = vadd.f32 %v7240, %v7252
        %v7254 = vpop.f32.mrf.mxu0
        %7255 = vdwg.mxu0
        %7256 = vmatpush.bf16.msra.mxu0 %v5296
        %7257 = vmatpush.bf16.msra.mxu0 %v5292
        %7258 = vmatpush.bf16.msra.mxu0 %v5288
        %7259 = vmatpush.bf16.msra.mxu0 %v5284
        %7260 = vmatpush.bf16.msra.mxu0 %v5280
        %7261 = vmatpush.bf16.msra.mxu0 %v5276
        %7262 = vmatpush.bf16.msra.mxu0 %v5272
        %7263 = vmatpush.bf16.msra.mxu0 %v5268
        %7264 = vmatmul.bf16.gmra.mxu0 %v1356
        %v7265 = vpop.f32.mrf.mxu0
        %v7266 = vadd.f32 %v7253, %v7265
        %v7267 = vpop.f32.mrf.mxu0
        %7268 = vdwg.mxu0
        %7269 = vmatpush.bf16.msra.mxu0 %v5328
        %7270 = vmatpush.bf16.msra.mxu0 %v5324
        %7271 = vmatpush.bf16.msra.mxu0 %v5320
        %7272 = vmatpush.bf16.msra.mxu0 %v5316
        %7273 = vmatpush.bf16.msra.mxu0 %v5312
        %7274 = vmatpush.bf16.msra.mxu0 %v5308
        %7275 = vmatpush.bf16.msra.mxu0 %v5304
        %7276 = vmatpush.bf16.msra.mxu0 %v5300
        %7277 = vmatmul.bf16.gmra.mxu0 %v1357
        %v7278 = vpop.f32.mrf.mxu0
        %v7279 = vadd.f32 %v7266, %v7278
        %v7280 = vpop.f32.mrf.mxu0
        %7281 = vdwg.mxu0
        %7282 = vmatpush.bf16.msra.mxu0 %v5360
        %7283 = vmatpush.bf16.msra.mxu0 %v5356
        %7284 = vmatpush.bf16.msra.mxu0 %v5352
        %7285 = vmatpush.bf16.msra.mxu0 %v5348
        %7286 = vmatpush.bf16.msra.mxu0 %v5344
        %7287 = vmatpush.bf16.msra.mxu0 %v5340
        %7288 = vmatpush.bf16.msra.mxu0 %v5336
        %7289 = vmatpush.bf16.msra.mxu0 %v5332
        %7290 = vmatmul.bf16.gmra.mxu0 %v1358
        %v7291 = vpop.f32.mrf.mxu0
        %v7292 = vadd.f32 %v7279, %v7291
        %v7293 = vpop.f32.mrf.mxu0
        %7294 = vdwg.mxu0
        %7295 = vmatpush.bf16.msra.mxu0 %v5392
        %7296 = vmatpush.bf16.msra.mxu0 %v5388
        %7297 = vmatpush.bf16.msra.mxu0 %v5384
        %7298 = vmatpush.bf16.msra.mxu0 %v5380
        %7299 = vmatpush.bf16.msra.mxu0 %v5376
        %7300 = vmatpush.bf16.msra.mxu0 %v5372
        %7301 = vmatpush.bf16.msra.mxu0 %v5368
        %7302 = vmatpush.bf16.msra.mxu0 %v5364
        %7303 = vmatmul.bf16.gmra.mxu0 %v1359
        %v7304 = vpop.f32.mrf.mxu0
        %v7305 = vadd.f32 %v7292, %v7304
        %v7306 = vpop.f32.mrf.mxu0
        %7307 = vdwg.mxu0
        %7308 = vmatpush.bf16.msra.mxu0 %v5424
        %7309 = vmatpush.bf16.msra.mxu0 %v5420
        %7310 = vmatpush.bf16.msra.mxu0 %v5416
        %7311 = vmatpush.bf16.msra.mxu0 %v5412
        %7312 = vmatpush.bf16.msra.mxu0 %v5408
        %7313 = vmatpush.bf16.msra.mxu0 %v5404
        %7314 = vmatpush.bf16.msra.mxu0 %v5400
        %7315 = vmatpush.bf16.msra.mxu0 %v5396
        %7316 = vmatmul.bf16.gmra.mxu0 %v1360
        %v7317 = vpop.f32.mrf.mxu0
        %v7318 = vadd.f32 %v7305, %v7317
        %v7319 = vpop.f32.mrf.mxu0
        %7320 = vdwg.mxu0
        %7321 = vmatpush.bf16.msra.mxu0 %v5456
        %7322 = vmatpush.bf16.msra.mxu0 %v5452
        %7323 = vmatpush.bf16.msra.mxu0 %v5448
        %7324 = vmatpush.bf16.msra.mxu0 %v5444
        %7325 = vmatpush.bf16.msra.mxu0 %v5440
        %7326 = vmatpush.bf16.msra.mxu0 %v5436
        %7327 = vmatpush.bf16.msra.mxu0 %v5432
        %7328 = vmatpush.bf16.msra.mxu0 %v5428
        %7329 = vmatmul.bf16.gmra.mxu0 %v1361
        %v7330 = vpop.f32.mrf.mxu0
        %v7331 = vadd.f32 %v7318, %v7330
        %v7332 = vpop.f32.mrf.mxu0
        %7333 = vdwg.mxu0
        %7334 = vmatpush.bf16.msra.mxu0 %v5488
        %7335 = vmatpush.bf16.msra.mxu0 %v5484
        %7336 = vmatpush.bf16.msra.mxu0 %v5480
        %7337 = vmatpush.bf16.msra.mxu0 %v5476
        %7338 = vmatpush.bf16.msra.mxu0 %v5472
        %7339 = vmatpush.bf16.msra.mxu0 %v5468
        %7340 = vmatpush.bf16.msra.mxu0 %v5464
        %7341 = vmatpush.bf16.msra.mxu0 %v5460
        %7342 = vmatmul.bf16.gmra.mxu0 %v1362
        %v7343 = vpop.f32.mrf.mxu0
        %v7344 = vadd.f32 %v7331, %v7343
        %v7345 = vpop.f32.mrf.mxu0
        %7346 = vdwg.mxu0
        %7347 = vmatpush.bf16.msra.mxu0 %v4497
        %7348 = vmatpush.bf16.msra.mxu0 %v4493
        %7349 = vmatpush.bf16.msra.mxu0 %v4489
        %7350 = vmatpush.bf16.msra.mxu0 %v4485
        %7351 = vmatpush.bf16.msra.mxu0 %v4481
        %7352 = vmatpush.bf16.msra.mxu0 %v4477
        %7353 = vmatpush.bf16.msra.mxu0 %v4473
        %7354 = vmatpush.bf16.msra.mxu0 %v4469
        %7355 = vmatmul.bf16.gmra.mxu0 %v1325
        %v7356 = vpop.f32.mrf.mxu0
        %v7357 = vadd.f32 0.0, %v7356
        %v7358 = vpop.f32.mrf.mxu0
        %7359 = vdwg.mxu0
        %7360 = vmatpush.bf16.msra.mxu0 %v4529
        %7361 = vmatpush.bf16.msra.mxu0 %v4525
        %7362 = vmatpush.bf16.msra.mxu0 %v4521
        %7363 = vmatpush.bf16.msra.mxu0 %v4517
        %7364 = vmatpush.bf16.msra.mxu0 %v4513
        %7365 = vmatpush.bf16.msra.mxu0 %v4509
        %7366 = vmatpush.bf16.msra.mxu0 %v4505
        %7367 = vmatpush.bf16.msra.mxu0 %v4501
        %7368 = vmatmul.bf16.gmra.mxu0 %v1326
        %v7369 = vpop.f32.mrf.mxu0
        %v7370 = vadd.f32 %v7357, %v7369
        %v7371 = vpop.f32.mrf.mxu0
        %7372 = vdwg.mxu0
        %7373 = vmatpush.bf16.msra.mxu0 %v4561
        %7374 = vmatpush.bf16.msra.mxu0 %v4557
        %7375 = vmatpush.bf16.msra.mxu0 %v4553
        %7376 = vmatpush.bf16.msra.mxu0 %v4549
        %7377 = vmatpush.bf16.msra.mxu0 %v4545
        %7378 = vmatpush.bf16.msra.mxu0 %v4541
        %7379 = vmatpush.bf16.msra.mxu0 %v4537
        %7380 = vmatpush.bf16.msra.mxu0 %v4533
        %7381 = vmatmul.bf16.gmra.mxu0 %v1327
        %v7382 = vpop.f32.mrf.mxu0
        %v7383 = vadd.f32 %v7370, %v7382
        %v7384 = vpop.f32.mrf.mxu0
        %7385 = vdwg.mxu0
        %7386 = vmatpush.bf16.msra.mxu0 %v4593
        %7387 = vmatpush.bf16.msra.mxu0 %v4589
        %7388 = vmatpush.bf16.msra.mxu0 %v4585
        %7389 = vmatpush.bf16.msra.mxu0 %v4581
        %7390 = vmatpush.bf16.msra.mxu0 %v4577
        %7391 = vmatpush.bf16.msra.mxu0 %v4573
        %7392 = vmatpush.bf16.msra.mxu0 %v4569
        %7393 = vmatpush.bf16.msra.mxu0 %v4565
        %7394 = vmatmul.bf16.gmra.mxu0 %v1328
        %v7395 = vpop.f32.mrf.mxu0
        %v7396 = vadd.f32 %v7383, %v7395
        %v7397 = vpop.f32.mrf.mxu0
        %7398 = vdwg.mxu0
        %7399 = vmatpush.bf16.msra.mxu0 %v4625
        %7400 = vmatpush.bf16.msra.mxu0 %v4621
        %7401 = vmatpush.bf16.msra.mxu0 %v4617
        %7402 = vmatpush.bf16.msra.mxu0 %v4613
        %7403 = vmatpush.bf16.msra.mxu0 %v4609
        %7404 = vmatpush.bf16.msra.mxu0 %v4605
        %7405 = vmatpush.bf16.msra.mxu0 %v4601
        %7406 = vmatpush.bf16.msra.mxu0 %v4597
        %7407 = vmatmul.bf16.gmra.mxu0 %v1329
        %v7408 = vpop.f32.mrf.mxu0
        %v7409 = vadd.f32 %v7396, %v7408
        %v7410 = vpop.f32.mrf.mxu0
        %7411 = vdwg.mxu0
        %7412 = vmatpush.bf16.msra.mxu0 %v4657
        %7413 = vmatpush.bf16.msra.mxu0 %v4653
        %7414 = vmatpush.bf16.msra.mxu0 %v4649
        %7415 = vmatpush.bf16.msra.mxu0 %v4645
        %7416 = vmatpush.bf16.msra.mxu0 %v4641
        %7417 = vmatpush.bf16.msra.mxu0 %v4637
        %7418 = vmatpush.bf16.msra.mxu0 %v4633
        %7419 = vmatpush.bf16.msra.mxu0 %v4629
        %7420 = vmatmul.bf16.gmra.mxu0 %v1330
        %v7421 = vpop.f32.mrf.mxu0
        %v7422 = vadd.f32 %v7409, %v7421
        %v7423 = vpop.f32.mrf.mxu0
        %7424 = vdwg.mxu0
        %7425 = vmatpush.bf16.msra.mxu0 %v4689
        %7426 = vmatpush.bf16.msra.mxu0 %v4685
        %7427 = vmatpush.bf16.msra.mxu0 %v4681
        %7428 = vmatpush.bf16.msra.mxu0 %v4677
        %7429 = vmatpush.bf16.msra.mxu0 %v4673
        %7430 = vmatpush.bf16.msra.mxu0 %v4669
        %7431 = vmatpush.bf16.msra.mxu0 %v4665
        %7432 = vmatpush.bf16.msra.mxu0 %v4661
        %7433 = vmatmul.bf16.gmra.mxu0 %v1331
        %v7434 = vpop.f32.mrf.mxu0
        %v7435 = vadd.f32 %v7422, %v7434
        %v7436 = vpop.f32.mrf.mxu0
        %7437 = vdwg.mxu0
        %7438 = vmatpush.bf16.msra.mxu0 %v4721
        %7439 = vmatpush.bf16.msra.mxu0 %v4717
        %7440 = vmatpush.bf16.msra.mxu0 %v4713
        %7441 = vmatpush.bf16.msra.mxu0 %v4709
        %7442 = vmatpush.bf16.msra.mxu0 %v4705
        %7443 = vmatpush.bf16.msra.mxu0 %v4701
        %7444 = vmatpush.bf16.msra.mxu0 %v4697
        %7445 = vmatpush.bf16.msra.mxu0 %v4693
        %7446 = vmatmul.bf16.gmra.mxu0 %v1332
        %v7447 = vpop.f32.mrf.mxu0
        %v7448 = vadd.f32 %v7435, %v7447
        %v7449 = vpop.f32.mrf.mxu0
        %7450 = vdwg.mxu0
        %7451 = vmatpush.bf16.msra.mxu0 %v4753
        %7452 = vmatpush.bf16.msra.mxu0 %v4749
        %7453 = vmatpush.bf16.msra.mxu0 %v4745
        %7454 = vmatpush.bf16.msra.mxu0 %v4741
        %7455 = vmatpush.bf16.msra.mxu0 %v4737
        %7456 = vmatpush.bf16.msra.mxu0 %v4733
        %7457 = vmatpush.bf16.msra.mxu0 %v4729
        %7458 = vmatpush.bf16.msra.mxu0 %v4725
        %7459 = vmatmul.bf16.gmra.mxu0 %v1335
        %v7460 = vpop.f32.mrf.mxu0
        %v7461 = vadd.f32 %v7448, %v7460
        %v7462 = vpop.f32.mrf.mxu0
        %7463 = vdwg.mxu0
        %7464 = vmatpush.bf16.msra.mxu0 %v4785
        %7465 = vmatpush.bf16.msra.mxu0 %v4781
        %7466 = vmatpush.bf16.msra.mxu0 %v4777
        %7467 = vmatpush.bf16.msra.mxu0 %v4773
        %7468 = vmatpush.bf16.msra.mxu0 %v4769
        %7469 = vmatpush.bf16.msra.mxu0 %v4765
        %7470 = vmatpush.bf16.msra.mxu0 %v4761
        %7471 = vmatpush.bf16.msra.mxu0 %v4757
        %7472 = vmatmul.bf16.gmra.mxu0 %v1336
        %v7473 = vpop.f32.mrf.mxu0
        %v7474 = vadd.f32 %v7461, %v7473
        %v7475 = vpop.f32.mrf.mxu0
        %7476 = vdwg.mxu0
        %7477 = vmatpush.bf16.msra.mxu0 %v4817
        %7478 = vmatpush.bf16.msra.mxu0 %v4813
        %7479 = vmatpush.bf16.msra.mxu0 %v4809
        %7480 = vmatpush.bf16.msra.mxu0 %v4805
        %7481 = vmatpush.bf16.msra.mxu0 %v4801
        %7482 = vmatpush.bf16.msra.mxu0 %v4797
        %7483 = vmatpush.bf16.msra.mxu0 %v4793
        %7484 = vmatpush.bf16.msra.mxu0 %v4789
        %7485 = vmatmul.bf16.gmra.mxu0 %v1337
        %v7486 = vpop.f32.mrf.mxu0
        %v7487 = vadd.f32 %v7474, %v7486
        %v7488 = vpop.f32.mrf.mxu0
        %7489 = vdwg.mxu0
        %7490 = vmatpush.bf16.msra.mxu0 %v4849
        %7491 = vmatpush.bf16.msra.mxu0 %v4845
        %7492 = vmatpush.bf16.msra.mxu0 %v4841
        %7493 = vmatpush.bf16.msra.mxu0 %v4837
        %7494 = vmatpush.bf16.msra.mxu0 %v4833
        %7495 = vmatpush.bf16.msra.mxu0 %v4829
        %7496 = vmatpush.bf16.msra.mxu0 %v4825
        %7497 = vmatpush.bf16.msra.mxu0 %v4821
        %7498 = vmatmul.bf16.gmra.mxu0 %v1338
        %v7499 = vpop.f32.mrf.mxu0
        %v7500 = vadd.f32 %v7487, %v7499
        %v7501 = vpop.f32.mrf.mxu0
        %7502 = vdwg.mxu0
        %7503 = vmatpush.bf16.msra.mxu0 %v4881
        %7504 = vmatpush.bf16.msra.mxu0 %v4877
        %7505 = vmatpush.bf16.msra.mxu0 %v4873
        %7506 = vmatpush.bf16.msra.mxu0 %v4869
        %7507 = vmatpush.bf16.msra.mxu0 %v4865
        %7508 = vmatpush.bf16.msra.mxu0 %v4861
        %7509 = vmatpush.bf16.msra.mxu0 %v4857
        %7510 = vmatpush.bf16.msra.mxu0 %v4853
        %7511 = vmatmul.bf16.gmra.mxu0 %v1339
        %v7512 = vpop.f32.mrf.mxu0
        %v7513 = vadd.f32 %v7500, %v7512
        %v7514 = vpop.f32.mrf.mxu0
        %7515 = vdwg.mxu0
        %7516 = vmatpush.bf16.msra.mxu0 %v4913
        %7517 = vmatpush.bf16.msra.mxu0 %v4909
        %7518 = vmatpush.bf16.msra.mxu0 %v4905
        %7519 = vmatpush.bf16.msra.mxu0 %v4901
        %7520 = vmatpush.bf16.msra.mxu0 %v4897
        %7521 = vmatpush.bf16.msra.mxu0 %v4893
        %7522 = vmatpush.bf16.msra.mxu0 %v4889
        %7523 = vmatpush.bf16.msra.mxu0 %v4885
        %7524 = vmatmul.bf16.gmra.mxu0 %v1340
        %v7525 = vpop.f32.mrf.mxu0
        %v7526 = vadd.f32 %v7513, %v7525
        %v7527 = vpop.f32.mrf.mxu0
        %7528 = vdwg.mxu0
        %7529 = vmatpush.bf16.msra.mxu0 %v4945
        %7530 = vmatpush.bf16.msra.mxu0 %v4941
        %7531 = vmatpush.bf16.msra.mxu0 %v4937
        %7532 = vmatpush.bf16.msra.mxu0 %v4933
        %7533 = vmatpush.bf16.msra.mxu0 %v4929
        %7534 = vmatpush.bf16.msra.mxu0 %v4925
        %7535 = vmatpush.bf16.msra.mxu0 %v4921
        %7536 = vmatpush.bf16.msra.mxu0 %v4917
        %7537 = vmatmul.bf16.gmra.mxu0 %v1341
        %v7538 = vpop.f32.mrf.mxu0
        %v7539 = vadd.f32 %v7526, %v7538
        %v7540 = vpop.f32.mrf.mxu0
        %7541 = vdwg.mxu0
        %7542 = vmatpush.bf16.msra.mxu0 %v4977
        %7543 = vmatpush.bf16.msra.mxu0 %v4973
        %7544 = vmatpush.bf16.msra.mxu0 %v4969
        %7545 = vmatpush.bf16.msra.mxu0 %v4965
        %7546 = vmatpush.bf16.msra.mxu0 %v4961
        %7547 = vmatpush.bf16.msra.mxu0 %v4957
        %7548 = vmatpush.bf16.msra.mxu0 %v4953
        %7549 = vmatpush.bf16.msra.mxu0 %v4949
        %7550 = vmatmul.bf16.gmra.mxu0 %v1342
        %v7551 = vpop.f32.mrf.mxu0
        %v7552 = vadd.f32 %v7539, %v7551
        %v7553 = vpop.f32.mrf.mxu0
        %7554 = vdwg.mxu0
        %7555 = vmatpush.bf16.msra.mxu0 %v5009
        %7556 = vmatpush.bf16.msra.mxu0 %v5005
        %7557 = vmatpush.bf16.msra.mxu0 %v5001
        %7558 = vmatpush.bf16.msra.mxu0 %v4997
        %7559 = vmatpush.bf16.msra.mxu0 %v4993
        %7560 = vmatpush.bf16.msra.mxu0 %v4989
        %7561 = vmatpush.bf16.msra.mxu0 %v4985
        %7562 = vmatpush.bf16.msra.mxu0 %v4981
        %7563 = vmatmul.bf16.gmra.mxu0 %v1345
        %v7564 = vpop.f32.mrf.mxu0
        %v7565 = vadd.f32 %v7552, %v7564
        %v7566 = vpop.f32.mrf.mxu0
        %7567 = vdwg.mxu0
        %7568 = vmatpush.bf16.msra.mxu0 %v5041
        %7569 = vmatpush.bf16.msra.mxu0 %v5037
        %7570 = vmatpush.bf16.msra.mxu0 %v5033
        %7571 = vmatpush.bf16.msra.mxu0 %v5029
        %7572 = vmatpush.bf16.msra.mxu0 %v5025
        %7573 = vmatpush.bf16.msra.mxu0 %v5021
        %7574 = vmatpush.bf16.msra.mxu0 %v5017
        %7575 = vmatpush.bf16.msra.mxu0 %v5013
        %7576 = vmatmul.bf16.gmra.mxu0 %v1346
        %v7577 = vpop.f32.mrf.mxu0
        %v7578 = vadd.f32 %v7565, %v7577
        %v7579 = vpop.f32.mrf.mxu0
        %7580 = vdwg.mxu0
        %7581 = vmatpush.bf16.msra.mxu0 %v5073
        %7582 = vmatpush.bf16.msra.mxu0 %v5069
        %7583 = vmatpush.bf16.msra.mxu0 %v5065
        %7584 = vmatpush.bf16.msra.mxu0 %v5061
        %7585 = vmatpush.bf16.msra.mxu0 %v5057
        %7586 = vmatpush.bf16.msra.mxu0 %v5053
        %7587 = vmatpush.bf16.msra.mxu0 %v5049
        %7588 = vmatpush.bf16.msra.mxu0 %v5045
        %7589 = vmatmul.bf16.gmra.mxu0 %v1347
        %v7590 = vpop.f32.mrf.mxu0
        %v7591 = vadd.f32 %v7578, %v7590
        %v7592 = vpop.f32.mrf.mxu0
        %7593 = vdwg.mxu0
        %7594 = vmatpush.bf16.msra.mxu0 %v5105
        %7595 = vmatpush.bf16.msra.mxu0 %v5101
        %7596 = vmatpush.bf16.msra.mxu0 %v5097
        %7597 = vmatpush.bf16.msra.mxu0 %v5093
        %7598 = vmatpush.bf16.msra.mxu0 %v5089
        %7599 = vmatpush.bf16.msra.mxu0 %v5085
        %7600 = vmatpush.bf16.msra.mxu0 %v5081
        %7601 = vmatpush.bf16.msra.mxu0 %v5077
        %7602 = vmatmul.bf16.gmra.mxu0 %v1348
        %v7603 = vpop.f32.mrf.mxu0
        %v7604 = vadd.f32 %v7591, %v7603
        %v7605 = vpop.f32.mrf.mxu0
        %7606 = vdwg.mxu0
        %7607 = vmatpush.bf16.msra.mxu0 %v5137
        %7608 = vmatpush.bf16.msra.mxu0 %v5133
        %7609 = vmatpush.bf16.msra.mxu0 %v5129
        %7610 = vmatpush.bf16.msra.mxu0 %v5125
        %7611 = vmatpush.bf16.msra.mxu0 %v5121
        %7612 = vmatpush.bf16.msra.mxu0 %v5117
        %7613 = vmatpush.bf16.msra.mxu0 %v5113
        %7614 = vmatpush.bf16.msra.mxu0 %v5109
        %7615 = vmatmul.bf16.gmra.mxu0 %v1349
        %v7616 = vpop.f32.mrf.mxu0
        %v7617 = vadd.f32 %v7604, %v7616
        %v7618 = vpop.f32.mrf.mxu0
        %7619 = vdwg.mxu0
        %7620 = vmatpush.bf16.msra.mxu0 %v5169
        %7621 = vmatpush.bf16.msra.mxu0 %v5165
        %7622 = vmatpush.bf16.msra.mxu0 %v5161
        %7623 = vmatpush.bf16.msra.mxu0 %v5157
        %7624 = vmatpush.bf16.msra.mxu0 %v5153
        %7625 = vmatpush.bf16.msra.mxu0 %v5149
        %7626 = vmatpush.bf16.msra.mxu0 %v5145
        %7627 = vmatpush.bf16.msra.mxu0 %v5141
        %7628 = vmatmul.bf16.gmra.mxu0 %v1350
        %v7629 = vpop.f32.mrf.mxu0
        %v7630 = vadd.f32 %v7617, %v7629
        %v7631 = vpop.f32.mrf.mxu0
        %7632 = vdwg.mxu0
        %7633 = vmatpush.bf16.msra.mxu0 %v5201
        %7634 = vmatpush.bf16.msra.mxu0 %v5197
        %7635 = vmatpush.bf16.msra.mxu0 %v5193
        %7636 = vmatpush.bf16.msra.mxu0 %v5189
        %7637 = vmatpush.bf16.msra.mxu0 %v5185
        %7638 = vmatpush.bf16.msra.mxu0 %v5181
        %7639 = vmatpush.bf16.msra.mxu0 %v5177
        %7640 = vmatpush.bf16.msra.mxu0 %v5173
        %7641 = vmatmul.bf16.gmra.mxu0 %v1351
        %v7642 = vpop.f32.mrf.mxu0
        %v7643 = vadd.f32 %v7630, %v7642
        %v7644 = vpop.f32.mrf.mxu0
        %7645 = vdwg.mxu0
        %7646 = vmatpush.bf16.msra.mxu0 %v5233
        %7647 = vmatpush.bf16.msra.mxu0 %v5229
        %7648 = vmatpush.bf16.msra.mxu0 %v5225
        %7649 = vmatpush.bf16.msra.mxu0 %v5221
        %7650 = vmatpush.bf16.msra.mxu0 %v5217
        %7651 = vmatpush.bf16.msra.mxu0 %v5213
        %7652 = vmatpush.bf16.msra.mxu0 %v5209
        %7653 = vmatpush.bf16.msra.mxu0 %v5205
        %7654 = vmatmul.bf16.gmra.mxu0 %v1352
        %v7655 = vpop.f32.mrf.mxu0
        %v7656 = vadd.f32 %v7643, %v7655
        %v7657 = vpop.f32.mrf.mxu0
        %7658 = vdwg.mxu0
        %7659 = vmatpush.bf16.msra.mxu0 %v5265
        %7660 = vmatpush.bf16.msra.mxu0 %v5261
        %7661 = vmatpush.bf16.msra.mxu0 %v5257
        %7662 = vmatpush.bf16.msra.mxu0 %v5253
        %7663 = vmatpush.bf16.msra.mxu0 %v5249
        %7664 = vmatpush.bf16.msra.mxu0 %v5245
        %7665 = vmatpush.bf16.msra.mxu0 %v5241
        %7666 = vmatpush.bf16.msra.mxu0 %v5237
        %7667 = vmatmul.bf16.gmra.mxu0 %v1355
        %v7668 = vpop.f32.mrf.mxu0
        %v7669 = vadd.f32 %v7656, %v7668
        %v7670 = vpop.f32.mrf.mxu0
        %7671 = vdwg.mxu0
        %7672 = vmatpush.bf16.msra.mxu0 %v5297
        %7673 = vmatpush.bf16.msra.mxu0 %v5293
        %7674 = vmatpush.bf16.msra.mxu0 %v5289
        %7675 = vmatpush.bf16.msra.mxu0 %v5285
        %7676 = vmatpush.bf16.msra.mxu0 %v5281
        %7677 = vmatpush.bf16.msra.mxu0 %v5277
        %7678 = vmatpush.bf16.msra.mxu0 %v5273
        %7679 = vmatpush.bf16.msra.mxu0 %v5269
        %7680 = vmatmul.bf16.gmra.mxu0 %v1356
        %v7681 = vpop.f32.mrf.mxu0
        %v7682 = vadd.f32 %v7669, %v7681
        %v7683 = vpop.f32.mrf.mxu0
        %7684 = vdwg.mxu0
        %7685 = vmatpush.bf16.msra.mxu0 %v5329
        %7686 = vmatpush.bf16.msra.mxu0 %v5325
        %7687 = vmatpush.bf16.msra.mxu0 %v5321
        %7688 = vmatpush.bf16.msra.mxu0 %v5317
        %7689 = vmatpush.bf16.msra.mxu0 %v5313
        %7690 = vmatpush.bf16.msra.mxu0 %v5309
        %7691 = vmatpush.bf16.msra.mxu0 %v5305
        %7692 = vmatpush.bf16.msra.mxu0 %v5301
        %7693 = vmatmul.bf16.gmra.mxu0 %v1357
        %v7694 = vpop.f32.mrf.mxu0
        %v7695 = vadd.f32 %v7682, %v7694
        %v7696 = vpop.f32.mrf.mxu0
        %7697 = vdwg.mxu0
        %7698 = vmatpush.bf16.msra.mxu0 %v5361
        %7699 = vmatpush.bf16.msra.mxu0 %v5357
        %7700 = vmatpush.bf16.msra.mxu0 %v5353
        %7701 = vmatpush.bf16.msra.mxu0 %v5349
        %7702 = vmatpush.bf16.msra.mxu0 %v5345
        %7703 = vmatpush.bf16.msra.mxu0 %v5341
        %7704 = vmatpush.bf16.msra.mxu0 %v5337
        %7705 = vmatpush.bf16.msra.mxu0 %v5333
        %7706 = vmatmul.bf16.gmra.mxu0 %v1358
        %v7707 = vpop.f32.mrf.mxu0
        %v7708 = vadd.f32 %v7695, %v7707
        %v7709 = vpop.f32.mrf.mxu0
        %7710 = vdwg.mxu0
        %7711 = vmatpush.bf16.msra.mxu0 %v5393
        %7712 = vmatpush.bf16.msra.mxu0 %v5389
        %7713 = vmatpush.bf16.msra.mxu0 %v5385
        %7714 = vmatpush.bf16.msra.mxu0 %v5381
        %7715 = vmatpush.bf16.msra.mxu0 %v5377
        %7716 = vmatpush.bf16.msra.mxu0 %v5373
        %7717 = vmatpush.bf16.msra.mxu0 %v5369
        %7718 = vmatpush.bf16.msra.mxu0 %v5365
        %7719 = vmatmul.bf16.gmra.mxu0 %v1359
        %v7720 = vpop.f32.mrf.mxu0
        %v7721 = vadd.f32 %v7708, %v7720
        %v7722 = vpop.f32.mrf.mxu0
        %7723 = vdwg.mxu0
        %7724 = vmatpush.bf16.msra.mxu0 %v5425
        %7725 = vmatpush.bf16.msra.mxu0 %v5421
        %7726 = vmatpush.bf16.msra.mxu0 %v5417
        %7727 = vmatpush.bf16.msra.mxu0 %v5413
        %7728 = vmatpush.bf16.msra.mxu0 %v5409
        %7729 = vmatpush.bf16.msra.mxu0 %v5405
        %7730 = vmatpush.bf16.msra.mxu0 %v5401
        %7731 = vmatpush.bf16.msra.mxu0 %v5397
        %7732 = vmatmul.bf16.gmra.mxu0 %v1360
        %v7733 = vpop.f32.mrf.mxu0
        %v7734 = vadd.f32 %v7721, %v7733
        %v7735 = vpop.f32.mrf.mxu0
        %7736 = vdwg.mxu0
        %7737 = vmatpush.bf16.msra.mxu0 %v5457
        %7738 = vmatpush.bf16.msra.mxu0 %v5453
        %7739 = vmatpush.bf16.msra.mxu0 %v5449
        %7740 = vmatpush.bf16.msra.mxu0 %v5445
        %7741 = vmatpush.bf16.msra.mxu0 %v5441
        %7742 = vmatpush.bf16.msra.mxu0 %v5437
        %7743 = vmatpush.bf16.msra.mxu0 %v5433
        %7744 = vmatpush.bf16.msra.mxu0 %v5429
        %7745 = vmatmul.bf16.gmra.mxu0 %v1361
        %v7746 = vpop.f32.mrf.mxu0
        %v7747 = vadd.f32 %v7734, %v7746
        %v7748 = vpop.f32.mrf.mxu0
        %7749 = vdwg.mxu0
        %7750 = vmatpush.bf16.msra.mxu0 %v5489
        %7751 = vmatpush.bf16.msra.mxu0 %v5485
        %7752 = vmatpush.bf16.msra.mxu0 %v5481
        %7753 = vmatpush.bf16.msra.mxu0 %v5477
        %7754 = vmatpush.bf16.msra.mxu0 %v5473
        %7755 = vmatpush.bf16.msra.mxu0 %v5469
        %7756 = vmatpush.bf16.msra.mxu0 %v5465
        %7757 = vmatpush.bf16.msra.mxu0 %v5461
        %7758 = vmatmul.bf16.gmra.mxu0 %v1362
        %v7759 = vpop.f32.mrf.mxu0
        %v7760 = vadd.f32 %v7747, %v7759
        %v7761 = vpop.f32.mrf.mxu0
        %7762 = vdwg.mxu0
        %7763 = vmatpush.bf16.msra.mxu0 %v4498
        %7764 = vmatpush.bf16.msra.mxu0 %v4494
        %7765 = vmatpush.bf16.msra.mxu0 %v4490
        %7766 = vmatpush.bf16.msra.mxu0 %v4486
        %7767 = vmatpush.bf16.msra.mxu0 %v4482
        %7768 = vmatpush.bf16.msra.mxu0 %v4478
        %7769 = vmatpush.bf16.msra.mxu0 %v4474
        %7770 = vmatpush.bf16.msra.mxu0 %v4470
        %7771 = vmatmul.bf16.gmra.mxu0 %v1325
        %v7772 = vpop.f32.mrf.mxu0
        %v7773 = vadd.f32 0.0, %v7772
        %v7774 = vpop.f32.mrf.mxu0
        %7775 = vdwg.mxu0
        %7776 = vmatpush.bf16.msra.mxu0 %v4530
        %7777 = vmatpush.bf16.msra.mxu0 %v4526
        %7778 = vmatpush.bf16.msra.mxu0 %v4522
        %7779 = vmatpush.bf16.msra.mxu0 %v4518
        %7780 = vmatpush.bf16.msra.mxu0 %v4514
        %7781 = vmatpush.bf16.msra.mxu0 %v4510
        %7782 = vmatpush.bf16.msra.mxu0 %v4506
        %7783 = vmatpush.bf16.msra.mxu0 %v4502
        %7784 = vmatmul.bf16.gmra.mxu0 %v1326
        %v7785 = vpop.f32.mrf.mxu0
        %v7786 = vadd.f32 %v7773, %v7785
        %v7787 = vpop.f32.mrf.mxu0
        %7788 = vdwg.mxu0
        %7789 = vmatpush.bf16.msra.mxu0 %v4562
        %7790 = vmatpush.bf16.msra.mxu0 %v4558
        %7791 = vmatpush.bf16.msra.mxu0 %v4554
        %7792 = vmatpush.bf16.msra.mxu0 %v4550
        %7793 = vmatpush.bf16.msra.mxu0 %v4546
        %7794 = vmatpush.bf16.msra.mxu0 %v4542
        %7795 = vmatpush.bf16.msra.mxu0 %v4538
        %7796 = vmatpush.bf16.msra.mxu0 %v4534
        %7797 = vmatmul.bf16.gmra.mxu0 %v1327
        %v7798 = vpop.f32.mrf.mxu0
        %v7799 = vadd.f32 %v7786, %v7798
        %v7800 = vpop.f32.mrf.mxu0
        %7801 = vdwg.mxu0
        %7802 = vmatpush.bf16.msra.mxu0 %v4594
        %7803 = vmatpush.bf16.msra.mxu0 %v4590
        %7804 = vmatpush.bf16.msra.mxu0 %v4586
        %7805 = vmatpush.bf16.msra.mxu0 %v4582
        %7806 = vmatpush.bf16.msra.mxu0 %v4578
        %7807 = vmatpush.bf16.msra.mxu0 %v4574
        %7808 = vmatpush.bf16.msra.mxu0 %v4570
        %7809 = vmatpush.bf16.msra.mxu0 %v4566
        %7810 = vmatmul.bf16.gmra.mxu0 %v1328
        %v7811 = vpop.f32.mrf.mxu0
        %v7812 = vadd.f32 %v7799, %v7811
        %v7813 = vpop.f32.mrf.mxu0
        %7814 = vdwg.mxu0
        %7815 = vmatpush.bf16.msra.mxu0 %v4626
        %7816 = vmatpush.bf16.msra.mxu0 %v4622
        %7817 = vmatpush.bf16.msra.mxu0 %v4618
        %7818 = vmatpush.bf16.msra.mxu0 %v4614
        %7819 = vmatpush.bf16.msra.mxu0 %v4610
        %7820 = vmatpush.bf16.msra.mxu0 %v4606
        %7821 = vmatpush.bf16.msra.mxu0 %v4602
        %7822 = vmatpush.bf16.msra.mxu0 %v4598
        %7823 = vmatmul.bf16.gmra.mxu0 %v1329
        %v7824 = vpop.f32.mrf.mxu0
        %v7825 = vadd.f32 %v7812, %v7824
        %v7826 = vpop.f32.mrf.mxu0
        %7827 = vdwg.mxu0
        %7828 = vmatpush.bf16.msra.mxu0 %v4658
        %7829 = vmatpush.bf16.msra.mxu0 %v4654
        %7830 = vmatpush.bf16.msra.mxu0 %v4650
        %7831 = vmatpush.bf16.msra.mxu0 %v4646
        %7832 = vmatpush.bf16.msra.mxu0 %v4642
        %7833 = vmatpush.bf16.msra.mxu0 %v4638
        %7834 = vmatpush.bf16.msra.mxu0 %v4634
        %7835 = vmatpush.bf16.msra.mxu0 %v4630
        %7836 = vmatmul.bf16.gmra.mxu0 %v1330
        %v7837 = vpop.f32.mrf.mxu0
        %v7838 = vadd.f32 %v7825, %v7837
        %v7839 = vpop.f32.mrf.mxu0
        %7840 = vdwg.mxu0
        %7841 = vmatpush.bf16.msra.mxu0 %v4690
        %7842 = vmatpush.bf16.msra.mxu0 %v4686
        %7843 = vmatpush.bf16.msra.mxu0 %v4682
        %7844 = vmatpush.bf16.msra.mxu0 %v4678
        %7845 = vmatpush.bf16.msra.mxu0 %v4674
        %7846 = vmatpush.bf16.msra.mxu0 %v4670
        %7847 = vmatpush.bf16.msra.mxu0 %v4666
        %7848 = vmatpush.bf16.msra.mxu0 %v4662
        %7849 = vmatmul.bf16.gmra.mxu0 %v1331
        %v7850 = vpop.f32.mrf.mxu0
        %v7851 = vadd.f32 %v7838, %v7850
        %v7852 = vpop.f32.mrf.mxu0
        %7853 = vdwg.mxu0
        %7854 = vmatpush.bf16.msra.mxu0 %v4722
        %7855 = vmatpush.bf16.msra.mxu0 %v4718
        %7856 = vmatpush.bf16.msra.mxu0 %v4714
        %7857 = vmatpush.bf16.msra.mxu0 %v4710
        %7858 = vmatpush.bf16.msra.mxu0 %v4706
        %7859 = vmatpush.bf16.msra.mxu0 %v4702
        %7860 = vmatpush.bf16.msra.mxu0 %v4698
        %7861 = vmatpush.bf16.msra.mxu0 %v4694
        %7862 = vmatmul.bf16.gmra.mxu0 %v1332
        %v7863 = vpop.f32.mrf.mxu0
        %v7864 = vadd.f32 %v7851, %v7863
        %v7865 = vpop.f32.mrf.mxu0
        %7866 = vdwg.mxu0
        %7867 = vmatpush.bf16.msra.mxu0 %v4754
        %7868 = vmatpush.bf16.msra.mxu0 %v4750
        %7869 = vmatpush.bf16.msra.mxu0 %v4746
        %7870 = vmatpush.bf16.msra.mxu0 %v4742
        %7871 = vmatpush.bf16.msra.mxu0 %v4738
        %7872 = vmatpush.bf16.msra.mxu0 %v4734
        %7873 = vmatpush.bf16.msra.mxu0 %v4730
        %7874 = vmatpush.bf16.msra.mxu0 %v4726
        %7875 = vmatmul.bf16.gmra.mxu0 %v1335
        %v7876 = vpop.f32.mrf.mxu0
        %v7877 = vadd.f32 %v7864, %v7876
        %v7878 = vpop.f32.mrf.mxu0
        %7879 = vdwg.mxu0
        %7880 = vmatpush.bf16.msra.mxu0 %v4786
        %7881 = vmatpush.bf16.msra.mxu0 %v4782
        %7882 = vmatpush.bf16.msra.mxu0 %v4778
        %7883 = vmatpush.bf16.msra.mxu0 %v4774
        %7884 = vmatpush.bf16.msra.mxu0 %v4770
        %7885 = vmatpush.bf16.msra.mxu0 %v4766
        %7886 = vmatpush.bf16.msra.mxu0 %v4762
        %7887 = vmatpush.bf16.msra.mxu0 %v4758
        %7888 = vmatmul.bf16.gmra.mxu0 %v1336
        %v7889 = vpop.f32.mrf.mxu0
        %v7890 = vadd.f32 %v7877, %v7889
        %v7891 = vpop.f32.mrf.mxu0
        %7892 = vdwg.mxu0
        %7893 = vmatpush.bf16.msra.mxu0 %v4818
        %7894 = vmatpush.bf16.msra.mxu0 %v4814
        %7895 = vmatpush.bf16.msra.mxu0 %v4810
        %7896 = vmatpush.bf16.msra.mxu0 %v4806
        %7897 = vmatpush.bf16.msra.mxu0 %v4802
        %7898 = vmatpush.bf16.msra.mxu0 %v4798
        %7899 = vmatpush.bf16.msra.mxu0 %v4794
        %7900 = vmatpush.bf16.msra.mxu0 %v4790
        %7901 = vmatmul.bf16.gmra.mxu0 %v1337
        %v7902 = vpop.f32.mrf.mxu0
        %v7903 = vadd.f32 %v7890, %v7902
        %v7904 = vpop.f32.mrf.mxu0
        %7905 = vdwg.mxu0
        %7906 = vmatpush.bf16.msra.mxu0 %v4850
        %7907 = vmatpush.bf16.msra.mxu0 %v4846
        %7908 = vmatpush.bf16.msra.mxu0 %v4842
        %7909 = vmatpush.bf16.msra.mxu0 %v4838
        %7910 = vmatpush.bf16.msra.mxu0 %v4834
        %7911 = vmatpush.bf16.msra.mxu0 %v4830
        %7912 = vmatpush.bf16.msra.mxu0 %v4826
        %7913 = vmatpush.bf16.msra.mxu0 %v4822
        %7914 = vmatmul.bf16.gmra.mxu0 %v1338
        %v7915 = vpop.f32.mrf.mxu0
        %v7916 = vadd.f32 %v7903, %v7915
        %v7917 = vpop.f32.mrf.mxu0
        %7918 = vdwg.mxu0
        %7919 = vmatpush.bf16.msra.mxu0 %v4882
        %7920 = vmatpush.bf16.msra.mxu0 %v4878
        %7921 = vmatpush.bf16.msra.mxu0 %v4874
        %7922 = vmatpush.bf16.msra.mxu0 %v4870
        %7923 = vmatpush.bf16.msra.mxu0 %v4866
        %7924 = vmatpush.bf16.msra.mxu0 %v4862
        %7925 = vmatpush.bf16.msra.mxu0 %v4858
        %7926 = vmatpush.bf16.msra.mxu0 %v4854
        %7927 = vmatmul.bf16.gmra.mxu0 %v1339
        %v7928 = vpop.f32.mrf.mxu0
        %v7929 = vadd.f32 %v7916, %v7928
        %v7930 = vpop.f32.mrf.mxu0
        %7931 = vdwg.mxu0
        %7932 = vmatpush.bf16.msra.mxu0 %v4914
        %7933 = vmatpush.bf16.msra.mxu0 %v4910
        %7934 = vmatpush.bf16.msra.mxu0 %v4906
        %7935 = vmatpush.bf16.msra.mxu0 %v4902
        %7936 = vmatpush.bf16.msra.mxu0 %v4898
        %7937 = vmatpush.bf16.msra.mxu0 %v4894
        %7938 = vmatpush.bf16.msra.mxu0 %v4890
        %7939 = vmatpush.bf16.msra.mxu0 %v4886
        %7940 = vmatmul.bf16.gmra.mxu0 %v1340
        %v7941 = vpop.f32.mrf.mxu0
        %v7942 = vadd.f32 %v7929, %v7941
        %v7943 = vpop.f32.mrf.mxu0
        %7944 = vdwg.mxu0
        %7945 = vmatpush.bf16.msra.mxu0 %v4946
        %7946 = vmatpush.bf16.msra.mxu0 %v4942
        %7947 = vmatpush.bf16.msra.mxu0 %v4938
        %7948 = vmatpush.bf16.msra.mxu0 %v4934
        %7949 = vmatpush.bf16.msra.mxu0 %v4930
        %7950 = vmatpush.bf16.msra.mxu0 %v4926
        %7951 = vmatpush.bf16.msra.mxu0 %v4922
        %7952 = vmatpush.bf16.msra.mxu0 %v4918
        %7953 = vmatmul.bf16.gmra.mxu0 %v1341
        %v7954 = vpop.f32.mrf.mxu0
        %v7955 = vadd.f32 %v7942, %v7954
        %v7956 = vpop.f32.mrf.mxu0
        %7957 = vdwg.mxu0
        %7958 = vmatpush.bf16.msra.mxu0 %v4978
        %7959 = vmatpush.bf16.msra.mxu0 %v4974
        %7960 = vmatpush.bf16.msra.mxu0 %v4970
        %7961 = vmatpush.bf16.msra.mxu0 %v4966
        %7962 = vmatpush.bf16.msra.mxu0 %v4962
        %7963 = vmatpush.bf16.msra.mxu0 %v4958
        %7964 = vmatpush.bf16.msra.mxu0 %v4954
        %7965 = vmatpush.bf16.msra.mxu0 %v4950
        %7966 = vmatmul.bf16.gmra.mxu0 %v1342
        %v7967 = vpop.f32.mrf.mxu0
        %v7968 = vadd.f32 %v7955, %v7967
        %v7969 = vpop.f32.mrf.mxu0
        %7970 = vdwg.mxu0
        %7971 = vmatpush.bf16.msra.mxu0 %v5010
        %7972 = vmatpush.bf16.msra.mxu0 %v5006
        %7973 = vmatpush.bf16.msra.mxu0 %v5002
        %7974 = vmatpush.bf16.msra.mxu0 %v4998
        %7975 = vmatpush.bf16.msra.mxu0 %v4994
        %7976 = vmatpush.bf16.msra.mxu0 %v4990
        %7977 = vmatpush.bf16.msra.mxu0 %v4986
        %7978 = vmatpush.bf16.msra.mxu0 %v4982
        %7979 = vmatmul.bf16.gmra.mxu0 %v1345
        %v7980 = vpop.f32.mrf.mxu0
        %v7981 = vadd.f32 %v7968, %v7980
        %v7982 = vpop.f32.mrf.mxu0
        %7983 = vdwg.mxu0
        %7984 = vmatpush.bf16.msra.mxu0 %v5042
        %7985 = vmatpush.bf16.msra.mxu0 %v5038
        %7986 = vmatpush.bf16.msra.mxu0 %v5034
        %7987 = vmatpush.bf16.msra.mxu0 %v5030
        %7988 = vmatpush.bf16.msra.mxu0 %v5026
        %7989 = vmatpush.bf16.msra.mxu0 %v5022
        %7990 = vmatpush.bf16.msra.mxu0 %v5018
        %7991 = vmatpush.bf16.msra.mxu0 %v5014
        %7992 = vmatmul.bf16.gmra.mxu0 %v1346
        %v7993 = vpop.f32.mrf.mxu0
        %v7994 = vadd.f32 %v7981, %v7993
        %v7995 = vpop.f32.mrf.mxu0
        %7996 = vdwg.mxu0
        %7997 = vmatpush.bf16.msra.mxu0 %v5074
        %7998 = vmatpush.bf16.msra.mxu0 %v5070
        %7999 = vmatpush.bf16.msra.mxu0 %v5066
        %8000 = vmatpush.bf16.msra.mxu0 %v5062
        %8001 = vmatpush.bf16.msra.mxu0 %v5058
        %8002 = vmatpush.bf16.msra.mxu0 %v5054
        %8003 = vmatpush.bf16.msra.mxu0 %v5050
        %8004 = vmatpush.bf16.msra.mxu0 %v5046
        %8005 = vmatmul.bf16.gmra.mxu0 %v1347
        %v8006 = vpop.f32.mrf.mxu0
        %v8007 = vadd.f32 %v7994, %v8006
        %v8008 = vpop.f32.mrf.mxu0
        %8009 = vdwg.mxu0
        %8010 = vmatpush.bf16.msra.mxu0 %v5106
        %8011 = vmatpush.bf16.msra.mxu0 %v5102
        %8012 = vmatpush.bf16.msra.mxu0 %v5098
        %8013 = vmatpush.bf16.msra.mxu0 %v5094
        %8014 = vmatpush.bf16.msra.mxu0 %v5090
        %8015 = vmatpush.bf16.msra.mxu0 %v5086
        %8016 = vmatpush.bf16.msra.mxu0 %v5082
        %8017 = vmatpush.bf16.msra.mxu0 %v5078
        %8018 = vmatmul.bf16.gmra.mxu0 %v1348
        %v8019 = vpop.f32.mrf.mxu0
        %v8020 = vadd.f32 %v8007, %v8019
        %v8021 = vpop.f32.mrf.mxu0
        %8022 = vdwg.mxu0
        %8023 = vmatpush.bf16.msra.mxu0 %v5138
        %8024 = vmatpush.bf16.msra.mxu0 %v5134
        %8025 = vmatpush.bf16.msra.mxu0 %v5130
        %8026 = vmatpush.bf16.msra.mxu0 %v5126
        %8027 = vmatpush.bf16.msra.mxu0 %v5122
        %8028 = vmatpush.bf16.msra.mxu0 %v5118
        %8029 = vmatpush.bf16.msra.mxu0 %v5114
        %8030 = vmatpush.bf16.msra.mxu0 %v5110
        %8031 = vmatmul.bf16.gmra.mxu0 %v1349
        %v8032 = vpop.f32.mrf.mxu0
        %v8033 = vadd.f32 %v8020, %v8032
        %v8034 = vpop.f32.mrf.mxu0
        %8035 = vdwg.mxu0
        %8036 = vmatpush.bf16.msra.mxu0 %v5170
        %8037 = vmatpush.bf16.msra.mxu0 %v5166
        %8038 = vmatpush.bf16.msra.mxu0 %v5162
        %8039 = vmatpush.bf16.msra.mxu0 %v5158
        %8040 = vmatpush.bf16.msra.mxu0 %v5154
        %8041 = vmatpush.bf16.msra.mxu0 %v5150
        %8042 = vmatpush.bf16.msra.mxu0 %v5146
        %8043 = vmatpush.bf16.msra.mxu0 %v5142
        %8044 = vmatmul.bf16.gmra.mxu0 %v1350
        %v8045 = vpop.f32.mrf.mxu0
        %v8046 = vadd.f32 %v8033, %v8045
        %v8047 = vpop.f32.mrf.mxu0
        %8048 = vdwg.mxu0
        %8049 = vmatpush.bf16.msra.mxu0 %v5202
        %8050 = vmatpush.bf16.msra.mxu0 %v5198
        %8051 = vmatpush.bf16.msra.mxu0 %v5194
        %8052 = vmatpush.bf16.msra.mxu0 %v5190
        %8053 = vmatpush.bf16.msra.mxu0 %v5186
        %8054 = vmatpush.bf16.msra.mxu0 %v5182
        %8055 = vmatpush.bf16.msra.mxu0 %v5178
        %8056 = vmatpush.bf16.msra.mxu0 %v5174
        %8057 = vmatmul.bf16.gmra.mxu0 %v1351
        %v8058 = vpop.f32.mrf.mxu0
        %v8059 = vadd.f32 %v8046, %v8058
        %v8060 = vpop.f32.mrf.mxu0
        %8061 = vdwg.mxu0
        %8062 = vmatpush.bf16.msra.mxu0 %v5234
        %8063 = vmatpush.bf16.msra.mxu0 %v5230
        %8064 = vmatpush.bf16.msra.mxu0 %v5226
        %8065 = vmatpush.bf16.msra.mxu0 %v5222
        %8066 = vmatpush.bf16.msra.mxu0 %v5218
        %8067 = vmatpush.bf16.msra.mxu0 %v5214
        %8068 = vmatpush.bf16.msra.mxu0 %v5210
        %8069 = vmatpush.bf16.msra.mxu0 %v5206
        %8070 = vmatmul.bf16.gmra.mxu0 %v1352
        %v8071 = vpop.f32.mrf.mxu0
        %v8072 = vadd.f32 %v8059, %v8071
        %v8073 = vpop.f32.mrf.mxu0
        %8074 = vdwg.mxu0
        %8075 = vmatpush.bf16.msra.mxu0 %v5266
        %8076 = vmatpush.bf16.msra.mxu0 %v5262
        %8077 = vmatpush.bf16.msra.mxu0 %v5258
        %8078 = vmatpush.bf16.msra.mxu0 %v5254
        %8079 = vmatpush.bf16.msra.mxu0 %v5250
        %8080 = vmatpush.bf16.msra.mxu0 %v5246
        %8081 = vmatpush.bf16.msra.mxu0 %v5242
        %8082 = vmatpush.bf16.msra.mxu0 %v5238
        %8083 = vmatmul.bf16.gmra.mxu0 %v1355
        %v8084 = vpop.f32.mrf.mxu0
        %v8085 = vadd.f32 %v8072, %v8084
        %v8086 = vpop.f32.mrf.mxu0
        %8087 = vdwg.mxu0
        %8088 = vmatpush.bf16.msra.mxu0 %v5298
        %8089 = vmatpush.bf16.msra.mxu0 %v5294
        %8090 = vmatpush.bf16.msra.mxu0 %v5290
        %8091 = vmatpush.bf16.msra.mxu0 %v5286
        %8092 = vmatpush.bf16.msra.mxu0 %v5282
        %8093 = vmatpush.bf16.msra.mxu0 %v5278
        %8094 = vmatpush.bf16.msra.mxu0 %v5274
        %8095 = vmatpush.bf16.msra.mxu0 %v5270
        %8096 = vmatmul.bf16.gmra.mxu0 %v1356
        %v8097 = vpop.f32.mrf.mxu0
        %v8098 = vadd.f32 %v8085, %v8097
        %v8099 = vpop.f32.mrf.mxu0
        %8100 = vdwg.mxu0
        %8101 = vmatpush.bf16.msra.mxu0 %v5330
        %8102 = vmatpush.bf16.msra.mxu0 %v5326
        %8103 = vmatpush.bf16.msra.mxu0 %v5322
        %8104 = vmatpush.bf16.msra.mxu0 %v5318
        %8105 = vmatpush.bf16.msra.mxu0 %v5314
        %8106 = vmatpush.bf16.msra.mxu0 %v5310
        %8107 = vmatpush.bf16.msra.mxu0 %v5306
        %8108 = vmatpush.bf16.msra.mxu0 %v5302
        %8109 = vmatmul.bf16.gmra.mxu0 %v1357
        %v8110 = vpop.f32.mrf.mxu0
        %v8111 = vadd.f32 %v8098, %v8110
        %v8112 = vpop.f32.mrf.mxu0
        %8113 = vdwg.mxu0
        %8114 = vmatpush.bf16.msra.mxu0 %v5362
        %8115 = vmatpush.bf16.msra.mxu0 %v5358
        %8116 = vmatpush.bf16.msra.mxu0 %v5354
        %8117 = vmatpush.bf16.msra.mxu0 %v5350
        %8118 = vmatpush.bf16.msra.mxu0 %v5346
        %8119 = vmatpush.bf16.msra.mxu0 %v5342
        %8120 = vmatpush.bf16.msra.mxu0 %v5338
        %8121 = vmatpush.bf16.msra.mxu0 %v5334
        %8122 = vmatmul.bf16.gmra.mxu0 %v1358
        %v8123 = vpop.f32.mrf.mxu0
        %v8124 = vadd.f32 %v8111, %v8123
        %v8125 = vpop.f32.mrf.mxu0
        %8126 = vdwg.mxu0
        %8127 = vmatpush.bf16.msra.mxu0 %v5394
        %8128 = vmatpush.bf16.msra.mxu0 %v5390
        %8129 = vmatpush.bf16.msra.mxu0 %v5386
        %8130 = vmatpush.bf16.msra.mxu0 %v5382
        %8131 = vmatpush.bf16.msra.mxu0 %v5378
        %8132 = vmatpush.bf16.msra.mxu0 %v5374
        %8133 = vmatpush.bf16.msra.mxu0 %v5370
        %8134 = vmatpush.bf16.msra.mxu0 %v5366
        %8135 = vmatmul.bf16.gmra.mxu0 %v1359
        %v8136 = vpop.f32.mrf.mxu0
        %v8137 = vadd.f32 %v8124, %v8136
        %v8138 = vpop.f32.mrf.mxu0
        %8139 = vdwg.mxu0
        %8140 = vmatpush.bf16.msra.mxu0 %v5426
        %8141 = vmatpush.bf16.msra.mxu0 %v5422
        %8142 = vmatpush.bf16.msra.mxu0 %v5418
        %8143 = vmatpush.bf16.msra.mxu0 %v5414
        %8144 = vmatpush.bf16.msra.mxu0 %v5410
        %8145 = vmatpush.bf16.msra.mxu0 %v5406
        %8146 = vmatpush.bf16.msra.mxu0 %v5402
        %8147 = vmatpush.bf16.msra.mxu0 %v5398
        %8148 = vmatmul.bf16.gmra.mxu0 %v1360
        %v8149 = vpop.f32.mrf.mxu0
        %v8150 = vadd.f32 %v8137, %v8149
        %v8151 = vpop.f32.mrf.mxu0
        %8152 = vdwg.mxu0
        %8153 = vmatpush.bf16.msra.mxu0 %v5458
        %8154 = vmatpush.bf16.msra.mxu0 %v5454
        %8155 = vmatpush.bf16.msra.mxu0 %v5450
        %8156 = vmatpush.bf16.msra.mxu0 %v5446
        %8157 = vmatpush.bf16.msra.mxu0 %v5442
        %8158 = vmatpush.bf16.msra.mxu0 %v5438
        %8159 = vmatpush.bf16.msra.mxu0 %v5434
        %8160 = vmatpush.bf16.msra.mxu0 %v5430
        %8161 = vmatmul.bf16.gmra.mxu0 %v1361
        %v8162 = vpop.f32.mrf.mxu0
        %v8163 = vadd.f32 %v8150, %v8162
        %v8164 = vpop.f32.mrf.mxu0
        %8165 = vdwg.mxu0
        %8166 = vmatpush.bf16.msra.mxu0 %v5490
        %8167 = vmatpush.bf16.msra.mxu0 %v5486
        %8168 = vmatpush.bf16.msra.mxu0 %v5482
        %8169 = vmatpush.bf16.msra.mxu0 %v5478
        %8170 = vmatpush.bf16.msra.mxu0 %v5474
        %8171 = vmatpush.bf16.msra.mxu0 %v5470
        %8172 = vmatpush.bf16.msra.mxu0 %v5466
        %8173 = vmatpush.bf16.msra.mxu0 %v5462
        %8174 = vmatmul.bf16.gmra.mxu0 %v1362
        %v8175 = vpop.f32.mrf.mxu0
        %v8176 = vadd.f32 %v8163, %v8175
        %v8177 = vpop.f32.mrf.mxu0
        %8178 = vdwg.mxu0
        %v8183 = vrot.slane %v7344, 6
        %v8184 = vrot.slane %v7760, 4
        %v8185 = vrot.slane %v8176, 2
        %vm8186 = vcmask 1041408
        %v8187 = vsel %vm8186, %v6928, %v8183
        %vm8188 = vcmask 1045508
        %v8189 = vsel %vm8188, %v8184, %v8185
        %vm8190 = vcmask 1043456
        %v8191 = vsel %vm8190, %v8187, %v8189
        %v8193 = vadd.f32 %v294, %v8191
        %8194 = vst [vmem:[#allocation2] sm:$0xff] %v8193
        %p8195 = scmp.eq.s32.totalorder %s19, 1
        // Predicated region
        $region53: #{emotion_net_forward.7} parent=47 // pred_check
          %p8196 = pneg %p8195
        $region54: #{emotion_net_forward.7} parent=47 // pred_check_branch
          %8198 = sbr.rel (%p8196) target = $region56
        $region55: #{emotion_net_forward.7} parent=47 // pred_region
          %v8199 = vld [vmem:[#allocation2] sm:$0xff]
          %v8200 = vld [vmem:[%s2] sm:$0xf]
          %v8202 = vperm.slane %v8200, 0
          %v8203 = vperm.slane %v8200, 1
          %v8204 = vperm.slane %v8200, 2
          %v8205 = vperm.slane %v8200, 3
          %v8206 = vrot.slane %v8203, 6
          %v8207 = vrot.slane %v8204, 4
          %v8208 = vrot.slane %v8205, 2
          %v8209 = vsel %vm8186, %v8202, %v8206
          %v8210 = vsel %vm8188, %v8207, %v8208
          %v8211 = vsel %vm8190, %v8209, %v8210
          %v8213 = vadd.f32 %v8199, %v8211
          %v8214 = vmax.f32 %v8213, 0.0
          %v8215 = vld [vmem:[%s3] sm:$0xff]
          %v8216 = vld [vmem:[%s3 + $0x8] sm:$0xff]
          %v8217 = vld [vmem:[%s3 + $0x10] sm:$0xff]
          %v8218 = vld [vmem:[%s3 + $0x18] sm:$0xff]
          %v8219 = vld [vmem:[%s3 + $0x20] sm:$0xff]
          %v8220 = vld [vmem:[%s3 + $0x28] sm:$0xff]
          %v8221 = vld [vmem:[%s3 + $0x30] sm:$0xff]
          %v8222 = vld [vmem:[%s3 + $0x38] sm:$0xff]
          %v8223 = vld [vmem:[%s3 + $0x40] sm:$0xff]
          %v8224 = vld [vmem:[%s3 + $0x48] sm:$0xff]
          %v8225 = vld [vmem:[%s3 + $0x50] sm:$0xff]
          %v8226 = vld [vmem:[%s3 + $0x58] sm:$0xff]
          %v8227 = vld [vmem:[%s3 + $0x60] sm:$0xff]
          %v8228 = vld [vmem:[%s3 + $0x68] sm:$0xff]
          %v8229 = vld [vmem:[%s3 + $0x70] sm:$0xff]
          %v8230 = vld [vmem:[%s3 + $0x78] sm:$0xff]
          %v8231 = vld [vmem:[%s3 + $0x80] sm:$0xff]
          %v8232 = vld [vmem:[%s3 + $0x88] sm:$0xff]
          %v8233 = vld [vmem:[%s3 + $0x90] sm:$0xff]
          %v8234 = vld [vmem:[%s3 + $0x98] sm:$0xff]
          %v8235 = vld [vmem:[%s3 + $0xa0] sm:$0xff]
          %v8236 = vld [vmem:[%s3 + $0xa8] sm:$0xff]
          %v8237 = vld [vmem:[%s3 + $0xb0] sm:$0xff]
          %v8238 = vld [vmem:[%s3 + $0xb8] sm:$0xff]
          %v8239 = vld [vmem:[%s3 + $0xc0] sm:$0xff]
          %v8240 = vld [vmem:[%s3 + $0xc8] sm:$0xff]
          %v8241 = vld [vmem:[%s3 + $0xd0] sm:$0xff]
          %v8242 = vld [vmem:[%s3 + $0xd8] sm:$0xff]
          %v8243 = vld [vmem:[%s3 + $0xe0] sm:$0xff]
          %v8244 = vld [vmem:[%s3 + $0xe8] sm:$0xff]
          %v8245 = vld [vmem:[%s3 + $0xf0] sm:$0xff]
          %v8246 = vld [vmem:[%s3 + $0xf8] sm:$0xff]
          %v8247 = vld [vmem:[%s3 + $0x100] sm:$0xff]
          %v8248 = vld [vmem:[%s3 + $0x108] sm:$0xff]
          %v8249 = vld [vmem:[%s3 + $0x110] sm:$0xff]
          %v8250 = vld [vmem:[%s3 + $0x118] sm:$0xff]
          %v8251 = vld [vmem:[%s3 + $0x120] sm:$0xff]
          %v8252 = vld [vmem:[%s3 + $0x128] sm:$0xff]
          %v8253 = vld [vmem:[%s3 + $0x130] sm:$0xff]
          %v8254 = vld [vmem:[%s3 + $0x138] sm:$0xff]
          %v8255 = vld [vmem:[%s3 + $0x140] sm:$0xff]
          %v8256 = vld [vmem:[%s3 + $0x148] sm:$0xff]
          %v8257 = vld [vmem:[%s3 + $0x150] sm:$0xff]
          %v8258 = vld [vmem:[%s3 + $0x158] sm:$0xff]
          %v8259 = vld [vmem:[%s3 + $0x160] sm:$0xff]
          %v8260 = vld [vmem:[%s3 + $0x168] sm:$0xff]
          %v8261 = vld [vmem:[%s3 + $0x170] sm:$0xff]
          %v8262 = vld [vmem:[%s3 + $0x178] sm:$0xff]
          %v8263 = vld [vmem:[%s3 + $0x180] sm:$0xff]
          %v8264 = vld [vmem:[%s3 + $0x188] sm:$0xff]
          %v8265 = vld [vmem:[%s3 + $0x190] sm:$0xff]
          %v8266 = vld [vmem:[%s3 + $0x198] sm:$0xff]
          %v8267 = vld [vmem:[%s3 + $0x1a0] sm:$0xff]
          %v8268 = vld [vmem:[%s3 + $0x1a8] sm:$0xff]
          %v8269 = vld [vmem:[%s3 + $0x1b0] sm:$0xff]
          %v8270 = vld [vmem:[%s3 + $0x1b8] sm:$0xff]
          %v8271 = vld [vmem:[%s3 + $0x1c0] sm:$0xff]
          %v8272 = vld [vmem:[%s3 + $0x1c8] sm:$0xff]
          %v8273 = vld [vmem:[%s3 + $0x1d0] sm:$0xff]
          %v8274 = vld [vmem:[%s3 + $0x1d8] sm:$0xff]
          %v8275 = vld [vmem:[%s3 + $0x1e0] sm:$0xff]
          %v8276 = vld [vmem:[%s3 + $0x1e8] sm:$0xff]
          %v8277 = vld [vmem:[%s3 + $0x1f0] sm:$0xff]
          %v8278 = vld [vmem:[%s3 + $0x1f8] sm:$0xff]
          %v8279 = vld [vmem:[%s4] sm:$0x1]
          %v8281 = vperm.slane %v8279, 0
          %8284 = vst [vmem:[#allocation1] ss:$4 sm:$0xff] %v8214
          %v8285 = vld.sshfl [vmem:[#allocation1] sm:$0xff pattern:$0x73625140]
          %v8286 = vld.sshfl [vmem:[#allocation1 + $0x8] sm:$0xff pattern:$0x73625140]
          %v8287 = vld.sshfl [vmem:[#allocation1 + $0x10] sm:$0xff pattern:$0x73625140]
          %v8288 = vld.sshfl [vmem:[#allocation1 + $0x18] sm:$0xff pattern:$0x73625140]
          %8293 = vmatpush.msra.mxu0 %v8230
          %8294 = vmatpush.msra.mxu0 %v8229
          %8295 = vmatpush.msra.mxu0 %v8228
          %8296 = vmatpush.msra.mxu0 %v8227
          %8297 = vmatpush.msra.mxu0 %v8226
          %8298 = vmatpush.msra.mxu0 %v8225
          %8299 = vmatpush.msra.mxu0 %v8224
          %8300 = vmatpush.msra.mxu0 %v8223
          %8301 = vmatpush.msra.mxu0 %v8222
          %8302 = vmatpush.msra.mxu0 %v8221
          %8303 = vmatpush.msra.mxu0 %v8220
          %8304 = vmatpush.msra.mxu0 %v8219
          %8305 = vmatpush.msra.mxu0 %v8218
          %8306 = vmatpush.msra.mxu0 %v8217
          %8307 = vmatpush.msra.mxu0 %v8216
          %8308 = vmatpush.msra.mxu0 %v8215
          %8309 = vmatmul.f32.gmra.mxu0 %v8285
          %v8310 = vpop.f32.mrf.mxu0
          %v8311 = vadd.f32 %v8281, %v8310
          %8312 = vdwg.mxu0
          %8313 = vmatpush.msra.mxu0 %v8246
          %8314 = vmatpush.msra.mxu0 %v8245
          %8315 = vmatpush.msra.mxu0 %v8244
          %8316 = vmatpush.msra.mxu0 %v8243
          %8317 = vmatpush.msra.mxu0 %v8242
          %8318 = vmatpush.msra.mxu0 %v8241
          %8319 = vmatpush.msra.mxu0 %v8240
          %8320 = vmatpush.msra.mxu0 %v8239
          %8321 = vmatpush.msra.mxu0 %v8238
          %8322 = vmatpush.msra.mxu0 %v8237
          %8323 = vmatpush.msra.mxu0 %v8236
          %8324 = vmatpush.msra.mxu0 %v8235
          %8325 = vmatpush.msra.mxu0 %v8234
          %8326 = vmatpush.msra.mxu0 %v8233
          %8327 = vmatpush.msra.mxu0 %v8232
          %8328 = vmatpush.msra.mxu0 %v8231
          %8329 = vmatmul.f32.gmra.mxu0 %v8286
          %v8330 = vpop.f32.mrf.mxu0
          %v8331 = vadd.f32 %v8311, %v8330
          %8332 = vdwg.mxu0
          %8333 = vmatpush.msra.mxu0 %v8262
          %8334 = vmatpush.msra.mxu0 %v8261
          %8335 = vmatpush.msra.mxu0 %v8260
          %8336 = vmatpush.msra.mxu0 %v8259
          %8337 = vmatpush.msra.mxu0 %v8258
          %8338 = vmatpush.msra.mxu0 %v8257
          %8339 = vmatpush.msra.mxu0 %v8256
          %8340 = vmatpush.msra.mxu0 %v8255
          %8341 = vmatpush.msra.mxu0 %v8254
          %8342 = vmatpush.msra.mxu0 %v8253
          %8343 = vmatpush.msra.mxu0 %v8252
          %8344 = vmatpush.msra.mxu0 %v8251
          %8345 = vmatpush.msra.mxu0 %v8250
          %8346 = vmatpush.msra.mxu0 %v8249
          %8347 = vmatpush.msra.mxu0 %v8248
          %8348 = vmatpush.msra.mxu0 %v8247
          %8349 = vmatmul.f32.gmra.mxu0 %v8287
          %v8350 = vpop.f32.mrf.mxu0
          %v8351 = vadd.f32 %v8331, %v8350
          %8352 = vdwg.mxu0
          %8353 = vmatpush.msra.mxu0 %v8278
          %8354 = vmatpush.msra.mxu0 %v8277
          %8355 = vmatpush.msra.mxu0 %v8276
          %8356 = vmatpush.msra.mxu0 %v8275
          %8357 = vmatpush.msra.mxu0 %v8274
          %8358 = vmatpush.msra.mxu0 %v8273
          %8359 = vmatpush.msra.mxu0 %v8272
          %8360 = vmatpush.msra.mxu0 %v8271
          %8361 = vmatpush.msra.mxu0 %v8270
          %8362 = vmatpush.msra.mxu0 %v8269
          %8363 = vmatpush.msra.mxu0 %v8268
          %8364 = vmatpush.msra.mxu0 %v8267
          %8365 = vmatpush.msra.mxu0 %v8266
          %8366 = vmatpush.msra.mxu0 %v8265
          %8367 = vmatpush.msra.mxu0 %v8264
          %8368 = vmatpush.msra.mxu0 %v8263
          %8369 = vmatmul.f32.gmra.mxu0 %v8288
          %v8370 = vpop.f32.mrf.mxu0
          %v8371 = vadd.f32 %v8351, %v8370
          %8372 = vdwg.mxu0
          %v8373 = vmax.f32 %v8371, 0.0
          %v8374 = vld [vmem:[%s5] sm:$0xff]
          %v8375 = vld [vmem:[%s5 + $0x8] sm:$0xff]
          %v8376 = vld [vmem:[%s5 + $0x10] sm:$0xff]
          %v8377 = vld [vmem:[%s5 + $0x18] sm:$0xff]
          %v8378 = vld [vmem:[%s5 + $0x20] sm:$0xff]
          %v8379 = vld [vmem:[%s5 + $0x28] sm:$0xff]
          %v8380 = vld [vmem:[%s5 + $0x30] sm:$0xff]
          %v8381 = vld [vmem:[%s5 + $0x38] sm:$0xff]
          %v8382 = vld [vmem:[%s5 + $0x40] sm:$0xff]
          %v8383 = vld [vmem:[%s5 + $0x48] sm:$0xff]
          %v8384 = vld [vmem:[%s5 + $0x50] sm:$0xff]
          %v8385 = vld [vmem:[%s5 + $0x58] sm:$0xff]
          %v8386 = vld [vmem:[%s5 + $0x60] sm:$0xff]
          %v8387 = vld [vmem:[%s5 + $0x68] sm:$0xff]
          %v8388 = vld [vmem:[%s5 + $0x70] sm:$0xff]
          %v8389 = vld [vmem:[%s5 + $0x78] sm:$0xff]
          %v8390 = vld [vmem:[%s6] sm:$0x1]
          %v8392 = vperm.slane %v8390, 0
          %8394 = vmatpush.msra.mxu0 %v8389
          %8395 = vmatpush.msra.mxu0 %v8388
          %8396 = vmatpush.msra.mxu0 %v8387
          %8397 = vmatpush.msra.mxu0 %v8386
          %8398 = vmatpush.msra.mxu0 %v8385
          %8399 = vmatpush.msra.mxu0 %v8384
          %8400 = vmatpush.msra.mxu0 %v8383
          %8401 = vmatpush.msra.mxu0 %v8382
          %8402 = vmatpush.msra.mxu0 %v8381
          %8403 = vmatpush.msra.mxu0 %v8380
          %8404 = vmatpush.msra.mxu0 %v8379
          %8405 = vmatpush.msra.mxu0 %v8378
          %8406 = vmatpush.msra.mxu0 %v8377
          %8407 = vmatpush.msra.mxu0 %v8376
          %8408 = vmatpush.msra.mxu0 %v8375
          %8409 = vmatpush.msra.mxu0 %v8374
          %8410 = vmatmul.f32.gmra.mxu0 %v8373
          %v8411 = vpop.f32.mrf.mxu0
          %v8412 = vadd.f32 %v8392, %v8411
          %8413 = vdwg.mxu0
          %vm8414 = vcmask 25600
          %8415 = vst.msk [vmem:[#allocation3] sm:$0x3] %vm8414, %v8412
        $region56: #{emotion_net_forward.7} parent=47 // pred_fallthru
          _
        // Predicated region
        $region57: #{emotion_net_forward.7} parent=47 // pred_check
          %p8416 = pneg %p189
        $region58: #{emotion_net_forward.7} parent=47 // pred_check_branch
          %8418 = sbr.rel (%p8416) target = $region60
        $region59: #{emotion_net_forward.7} parent=47 // pred_region
          %8420 = vsyncadd [#allocation4], 0
          %s8422 = sshll.u32 [#allocation3], 4
          %s8423 = int_to_ptr.vmem [resolvable:$true] %s8422
          %s8424 = sshll.u32 %s7, 4
          %s8425 = int_to_ptr.hbm [resolvable:$true] %s8424
          %8427 = dma.vmem_to_hbm [thread:$0]  %s8423, 32, %s8425, [#allocation4]
        $region60: #{emotion_net_forward.7} parent=47 // pred_fallthru
          _
        // Predicated region
        $region61: #{emotion_net_forward.7} parent=47 // pred_check
          %p8428 = pneg %p189
        $region62: #{emotion_net_forward.7} parent=47 // pred_check_branch
          %8430 = sbr.rel (%p8428) target = $region64
        $region63: #{emotion_net_forward.7} parent=47 // pred_region
          %8432 = dma.done [#allocation4], 32
        $region64: #{emotion_net_forward.7} parent=47 // pred_fallthru
          _
      $region48: #{emotion_net_forward.7} parent=5 // pred_fallthru
        _
      %p8433 = scmp.le.s32.totalorder 2, %s14
      // Predicated region
      $region65: #{emotion_net_forward.7} parent=5 // pred_check
        %p8434 = pneg %p8433
      $region66: #{emotion_net_forward.7} parent=5 // pred_check_branch
        %8436 = sbr.rel (%p8434) target = $region68
      $region67: #{emotion_net_forward.7} parent=5 // pred_region
        %s8437 = ssub.s32 %s14, 2
      $region68: #{emotion_net_forward.7} parent=5 // pred_fallthru
        _
    $region6: #{emotion_net_forward.7} parent=1 // loop_footer
      %s18 = sadd.s32 1, %s14
    $region7: #{emotion_net_forward.7} parent=1 // loop_footer_branch
      %13 = sbr.rel target = $region3
    $region8: #{emotion_net_forward.7} parent=1 // loop_exit
      _
    %8438 = vsyncpa [#allocation4], 1
    %s8439 = scalar_lea.sflag [#allocation4], 1
    %8440 = vsyncpa %s8439, 1

</llo_original>
